<compile_context>
chip_gen: v7x
topology: tpu7x:2x2x1
jax: 0.10.0
libtpu: 0.0.40
codegen_flags: <defaults>
</compile_context>

<pallas_src>
import functools

import jax
import jax.numpy as jnp
import numpy as np
from jax.experimental import pallas as pl
from jax.experimental.pallas import tpu as pltpu

# ----- synthetic `args` ------------------------------------------------------
LATDIM = 32        # args.latdim
HEAD = 4           # args.head
ANCHOR = 8         # args.anchor
GT_LAYER = 2       # args.gt_layer
SCALE_LAYER = 2.0  # args.scale_layer
ACT = "relu"       # args.act
N_NODES = 64       # number of graph nodes (sequence length)
LN_EPS = 1e-5


# ----------------------------------------------------------------------------
# Fused kernel: all GT layers, both MHA calls, FFN + LayerNorms, anchor gather
# ----------------------------------------------------------------------------
def _gt_fused_kernel(idx_ref, emb_ref,
                     wq_ref, wkv_ref, wo_ref,
                     w1_ref, b1_ref, w2_ref, b2_ref,
                     g1_ref, be1_ref, g2_ref, be2_ref,
                     o_ref, anc_ref,
                     *, num_heads, num_layers, anchor, inv_scale):
    d = emb_ref.shape[-1]
    dh = d // num_heads

    def layer_norm(x, g, b):
        mu = jnp.mean(x, axis=-1, keepdims=True)
        var = jnp.mean((x - mu) ** 2, axis=-1, keepdims=True)
        return (x - mu) * jax.lax.rsqrt(var + LN_EPS) * g + b

    def mha(q_in, kv_in, wq_t, wkv_t, wo_t):
        lq = q_in.shape[0]
        # in-projections: 1/sqrt(dh) is pre-folded into wq_t on the host;
        # K and V share a single packed matmul.
        q = jnp.dot(q_in, wq_t, preferred_element_type=jnp.float32)      # (lq, d)
        kv = jnp.dot(kv_in, wkv_t, preferred_element_type=jnp.float32)   # (lk, 2d)
        k = kv[:, :d]
        v = kv[:, d:]
        # per-head scores stacked along sublanes -> one softmax for all heads
        s = jnp.concatenate(
            [jnp.dot(q[:, h * dh:(h + 1) * dh], k[:, h * dh:(h + 1) * dh].T,
                     preferred_element_type=jnp.float32)
             for h in range(num_heads)], axis=0)                         # (H*lq, lk)
        s = s - jnp.max(s, axis=-1, keepdims=True)
        p = jnp.exp(s)
        p = p * pl.reciprocal(jnp.sum(p, axis=-1, keepdims=True))
        # per-head PV; output projection folded per head via ROW slices of the
        # pre-transposed Wo (no in-kernel transposes, no minor-dim concat).
        out = q_in                                                        # fused residual
        for h in range(num_heads):
            head_out = jnp.dot(p[h * lq:(h + 1) * lq, :],
                               v[:, h * dh:(h + 1) * dh],
                               preferred_element_type=jnp.float32)        # (lq, dh)
            out = out + jnp.dot(head_out, wo_t[h * dh:(h + 1) * dh, :],
                                preferred_element_type=jnp.float32)
        return out

    # Output ref doubles as the VMEM-resident embeds buffer across layers.
    o_ref[...] = emb_ref[...]

    for l in range(num_layers):
        # in-kernel anchor gather: indices in SMEM, dynamic row reads from VMEM
        for a in range(anchor):
            idx = idx_ref[l * anchor + a]
            anc_ref[a:a + 1, :] = o_ref[pl.ds(idx, 1), :]
        anchors = anc_ref[...]                                            # (A, D)
        e = o_ref[...]                                                    # (N, D)

        wq_t, wkv_t, wo_t = wq_ref[l], wkv_ref[l], wo_ref[l]

        a_emb = mha(anchors, e, wq_t, wkv_t, wo_t)                        # (A, D)
        x = mha(e, a_emb, wq_t, wkv_t, wo_t)                              # (N, D)

        h = layer_norm(x, g1_ref[l], be1_ref[l])
        f = jnp.dot(h, w1_ref[l], preferred_element_type=jnp.float32) + b1_ref[l]
        f = jnp.maximum(f, 0.0)
        f = jnp.dot(f, w2_ref[l], preferred_element_type=jnp.float32) + b2_ref[l]
        f = jnp.maximum(f, 0.0)
        o_ref[...] = layer_norm(h + f, g2_ref[l], be2_ref[l]) * inv_scale


def _cost_estimate(n, d, a, heads, layers, total_input_bytes):
    dh = d // heads

    def mha_flops(lq, lk):
        return 2 * (lq * d * d          # q projection
                    + lk * d * 2 * d    # packed k/v projection
                    + 2 * heads * lq * lk * dh   # scores + PV
                    + lq * d * d)       # output projection

    per_layer = mha_flops(a, n) + mha_flops(n, a) + 2 * (2 * n * d * d)
    flops = per_layer * layers
    transcendentals = layers * (2 * heads * a * n + 2 * n + a)   # exp + rsqrt-ish
    bytes_accessed = total_input_bytes + n * d * 4
    return pl.CostEstimate(flops=flops, transcendentals=transcendentals,
                           bytes_accessed=bytes_accessed)


def graph_transformer_forward(embeds, packed, anchor_idx_flat):
    n, d = embeds.shape
    kern = functools.partial(_gt_fused_kernel, num_heads=HEAD,
                             num_layers=GT_LAYER, anchor=ANCHOR,
                             inv_scale=1.0 / SCALE_LAYER)
    operands = (anchor_idx_flat, embeds) + tuple(packed)
    total_in_bytes = sum(int(np.prod(x.shape)) * x.dtype.itemsize
                         for x in operands)
    return pl.pallas_call(
        kern,
        out_shape=jax.ShapeDtypeStruct((n, d), jnp.float32),
        in_specs=[pl.BlockSpec(memory_space=pltpu.MemorySpace.SMEM)]
                 + [pl.BlockSpec(memory_space=pltpu.MemorySpace.VMEM)]
                 * (len(operands) - 1),
        out_specs=pl.BlockSpec(memory_space=pltpu.MemorySpace.VMEM),
        scratch_shapes=[pltpu.VMEM((ANCHOR, d), jnp.float32)],
        cost_estimate=_cost_estimate(n, d, ANCHOR, HEAD, GT_LAYER,
                                     total_in_bytes),
    )(*operands)


# ----------------------------------------------------------------------------
# Parameter construction (torch layout) + host-side packing for the kernel
# ----------------------------------------------------------------------------
def init_layer_params(key, d):
    ks = jax.random.split(key, 6)
    in_proj = jax.random.normal(ks[0], (3 * d, d), jnp.float32) * 0.05
    wq, wk, wv = in_proj[:d], in_proj[d:2 * d], in_proj[2 * d:]
    wo = jax.random.normal(ks[1], (d, d), jnp.float32) * 0.05
    w1 = jax.random.normal(ks[2], (d, d), jnp.float32) * 0.05
    b1 = jax.random.normal(ks[3], (1, d), jnp.float32) * 0.01
    w2 = jax.random.normal(ks[4], (d, d), jnp.float32) * 0.05
    b2 = jax.random.normal(ks[5], (1, d), jnp.float32) * 0.01
    g1 = jnp.ones((1, d), jnp.float32)
    be1 = jnp.zeros((1, d), jnp.float32)
    g2 = jnp.ones((1, d), jnp.float32)
    be2 = jnp.zeros((1, d), jnp.float32)
    return dict(wq=wq, wk=wk, wv=wv, wo=wo, w1=w1, b1=b1, w2=w2, b2=b2,
                g1=g1, be1=be1, g2=g2, be2=be2)


def pack_params(params, num_heads):
    """Pre-transpose weights, fold 1/sqrt(dh) into Wq, pack K/V, stack layers."""
    d = params[0]["wq"].shape[0]
    dh = d // num_heads
    scale = 1.0 / float(np.sqrt(dh))
    wq_t = jnp.stack([p["wq"].T * scale for p in params])                 # (L, D, D)
    wkv_t = jnp.stack([jnp.concatenate([p["wk"].T, p["wv"].T], axis=1)
                       for p in params])                                  # (L, D, 2D)
    wo_t = jnp.stack([p["wo"].T for p in params])                         # (L, D, D)
    w1_t = jnp.stack([p["w1"].T for p in params])                         # (L, D, D)
    b1 = jnp.stack([p["b1"] for p in params])                             # (L, 1, D)
    w2_t = jnp.stack([p["w2"].T for p in params])                         # (L, D, D)
    b2 = jnp.stack([p["b2"] for p in params])                             # (L, 1, D)
    g1 = jnp.stack([p["g1"] for p in params])
    be1 = jnp.stack([p["be1"] for p in params])
    g2 = jnp.stack([p["g2"] for p in params])
    be2 = jnp.stack([p["be2"] for p in params])
    return (wq_t, wkv_t, wo_t, w1_t, b1, w2_t, b2, g1, be1, g2, be2)


# ----------------------------------------------------------------------------
# Pure-JAX reference (same math) for a sanity check
# ----------------------------------------------------------------------------
def _ref_mha(q, kv, p):
    d = q.shape[-1]
    dh = d // HEAD
    qq = q @ p["wq"].T
    kk = kv @ p["wk"].T
    vv = kv @ p["wv"].T
    outs = []
    for h in range(HEAD):
        sl = slice(h * dh, (h + 1) * dh)
        s = (qq[:, sl] / np.sqrt(dh)) @ kk[:, sl].T
        w = jax.nn.softmax(s, axis=-1)
        outs.append(w @ vv[:, sl])
    return jnp.concatenate(outs, -1) @ p["wo"].T + q


def _ref_forward(embeds, params, anchor_idx_per_layer):
    def ln(x, g, b):
        mu = x.mean(-1, keepdims=True)
        var = ((x - mu) ** 2).mean(-1, keepdims=True)
        return (x - mu) / jnp.sqrt(var + LN_EPS) * g + b

    for i in range(GT_LAYER):
        p = params[i]
        a = _ref_mha(embeds[anchor_idx_per_layer[i]], embeds, p)
        x = _ref_mha(embeds, a, p)
        h = ln(x, p["g1"], p["be1"])
        f = jnp.maximum(h @ p["w1"].T + p["b1"], 0.0)
        f = jnp.maximum(f @ p["w2"].T + p["b2"], 0.0)
        embeds = ln(h + f, p["g2"], p["be2"]) / SCALE_LAYER
    return embeds


if __name__ == "__main__":
    root = jax.random.PRNGKey(0)
    k_embed, k_params, k_anchor = jax.random.split(root, 3)

    embeds = jax.random.normal(k_embed, (N_NODES, LATDIM), jnp.float32)

    param_keys = jax.random.split(k_params, GT_LAYER)
    params = [init_layer_params(param_keys[i], LATDIM) for i in range(GT_LAYER)]
    packed = pack_params(params, HEAD)

    anchor_keys = jax.random.split(k_anchor, GT_LAYER)
    anchor_idx = [jax.random.permutation(anchor_keys[i], N_NODES)[:ANCHOR]
                  for i in range(GT_LAYER)]
    anchor_idx_flat = jnp.concatenate(anchor_idx).astype(jnp.int32)   # (L*A,)

    out = graph_transformer_forward(embeds, packed, anchor_idx_flat)
    out = jax.block_until_ready(out)

    ref = jax.block_until_ready(_ref_forward(embeds, params, anchor_idx))
    assert out.shape == (N_NODES, LATDIM)
    np.testing.assert_allclose(np.asarray(out), np.asarray(ref),
                               rtol=1e-4, atol=1e-4)
    print("KERNEL_OK")
</pallas_src>

<mosaic_0001>
module attributes {stable_mosaic.version = 11 : i64} {
  func.func @_gt_fused_kernel(%arg0: memref<16xi32, #tpu.memory_space<smem>>, %arg1: memref<64x32xf32, #tpu.memory_space<vmem>>, %arg2: memref<2x32x32xf32, #tpu.memory_space<vmem>>, %arg3: memref<2x32x64xf32, #tpu.memory_space<vmem>>, %arg4: memref<2x32x32xf32, #tpu.memory_space<vmem>>, %arg5: memref<2x32x32xf32, #tpu.memory_space<vmem>>, %arg6: memref<2x1x32xf32, #tpu.memory_space<vmem>>, %arg7: memref<2x32x32xf32, #tpu.memory_space<vmem>>, %arg8: memref<2x1x32xf32, #tpu.memory_space<vmem>>, %arg9: memref<2x1x32xf32, #tpu.memory_space<vmem>>, %arg10: memref<2x1x32xf32, #tpu.memory_space<vmem>>, %arg11: memref<2x1x32xf32, #tpu.memory_space<vmem>>, %arg12: memref<2x1x32xf32, #tpu.memory_space<vmem>>, %arg13: memref<64x32xf32, #tpu.memory_space<vmem>>, %arg14: memref<8x32xf32, #tpu.memory_space<vmem>>) attributes {dimension_semantics = [], scalar_prefetch = 0 : i64, scratch_operands = 1 : i64, tpu.core_type = #tpu.core_type<tc>} {
    %c0 = arith.constant 0 : index
    %c0_0 = arith.constant 0 : index
    %0 = vector.load %arg1[%c0, %c0_0] : memref<64x32xf32, #tpu.memory_space<vmem>>, vector<64x32xf32>
    %c0_1 = arith.constant 0 : index
    %c0_2 = arith.constant 0 : index
    %1 = vector.load %arg13[%c0_1, %c0_2] : memref<64x32xf32, #tpu.memory_space<vmem>>, vector<64x32xf32>
    tpu.vector_store %arg13[%c0_1, %c0_2], %0 {strides = array<i32>} : memref<64x32xf32, #tpu.memory_space<vmem>>, vector<64x32xf32>,
    %c0_3 = arith.constant 0 : index
    %2 = memref.load %arg0[%c0_3] : memref<16xi32, #tpu.memory_space<smem>>
    %3 = arith.index_cast %2 : i32 to index
    %c0_4 = arith.constant 0 : index
    %4 = vector.load %arg13[%3, %c0_4] : memref<64x32xf32, #tpu.memory_space<vmem>>, vector<1x32xf32>
    %c0_5 = arith.constant 0 : index
    %c0_6 = arith.constant 0 : index
    %5 = vector.load %arg14[%c0_5, %c0_6] : memref<8x32xf32, #tpu.memory_space<vmem>>, vector<1x32xf32>
    tpu.vector_store %arg14[%c0_5, %c0_6], %4 {strides = array<i32>} : memref<8x32xf32, #tpu.memory_space<vmem>>, vector<1x32xf32>,
    %c1 = arith.constant 1 : index
    %6 = memref.load %arg0[%c1] : memref<16xi32, #tpu.memory_space<smem>>
    %7 = arith.index_cast %6 : i32 to index
    %c0_7 = arith.constant 0 : index
    %8 = vector.load %arg13[%7, %c0_7] : memref<64x32xf32, #tpu.memory_space<vmem>>, vector<1x32xf32>
    %c1_8 = arith.constant 1 : index
    %c0_9 = arith.constant 0 : index
    %9 = vector.load %arg14[%c1_8, %c0_9] : memref<8x32xf32, #tpu.memory_space<vmem>>, vector<1x32xf32>
    tpu.vector_store %arg14[%c1_8, %c0_9], %8 {strides = array<i32>} : memref<8x32xf32, #tpu.memory_space<vmem>>, vector<1x32xf32>,
    %c2 = arith.constant 2 : index
    %10 = memref.load %arg0[%c2] : memref<16xi32, #tpu.memory_space<smem>>
    %11 = arith.index_cast %10 : i32 to index
    %c0_10 = arith.constant 0 : index
    %12 = vector.load %arg13[%11, %c0_10] : memref<64x32xf32, #tpu.memory_space<vmem>>, vector<1x32xf32>
    %c2_11 = arith.constant 2 : index
    %c0_12 = arith.constant 0 : index
    %13 = vector.load %arg14[%c2_11, %c0_12] : memref<8x32xf32, #tpu.memory_space<vmem>>, vector<1x32xf32>
    tpu.vector_store %arg14[%c2_11, %c0_12], %12 {strides = array<i32>} : memref<8x32xf32, #tpu.memory_space<vmem>>, vector<1x32xf32>,
    %c3 = arith.constant 3 : index
    %14 = memref.load %arg0[%c3] : memref<16xi32, #tpu.memory_space<smem>>
    %15 = arith.index_cast %14 : i32 to index
    %c0_13 = arith.constant 0 : index
    %16 = vector.load %arg13[%15, %c0_13] : memref<64x32xf32, #tpu.memory_space<vmem>>, vector<1x32xf32>
    %c3_14 = arith.constant 3 : index
    %c0_15 = arith.constant 0 : index
    %17 = vector.load %arg14[%c3_14, %c0_15] : memref<8x32xf32, #tpu.memory_space<vmem>>, vector<1x32xf32>
    tpu.vector_store %arg14[%c3_14, %c0_15], %16 {strides = array<i32>} : memref<8x32xf32, #tpu.memory_space<vmem>>, vector<1x32xf32>,
    %c4 = arith.constant 4 : index
    %18 = memref.load %arg0[%c4] : memref<16xi32, #tpu.memory_space<smem>>
    %19 = arith.index_cast %18 : i32 to index
    %c0_16 = arith.constant 0 : index
    %20 = vector.load %arg13[%19, %c0_16] : memref<64x32xf32, #tpu.memory_space<vmem>>, vector<1x32xf32>
    %c4_17 = arith.constant 4 : index
    %c0_18 = arith.constant 0 : index
    %21 = vector.load %arg14[%c4_17, %c0_18] : memref<8x32xf32, #tpu.memory_space<vmem>>, vector<1x32xf32>
    tpu.vector_store %arg14[%c4_17, %c0_18], %20 {strides = array<i32>} : memref<8x32xf32, #tpu.memory_space<vmem>>, vector<1x32xf32>,
    %c5 = arith.constant 5 : index
    %22 = memref.load %arg0[%c5] : memref<16xi32, #tpu.memory_space<smem>>
    %23 = arith.index_cast %22 : i32 to index
    %c0_19 = arith.constant 0 : index
    %24 = vector.load %arg13[%23, %c0_19] : memref<64x32xf32, #tpu.memory_space<vmem>>, vector<1x32xf32>
    %c5_20 = arith.constant 5 : index
    %c0_21 = arith.constant 0 : index
    %25 = vector.load %arg14[%c5_20, %c0_21] : memref<8x32xf32, #tpu.memory_space<vmem>>, vector<1x32xf32>
    tpu.vector_store %arg14[%c5_20, %c0_21], %24 {strides = array<i32>} : memref<8x32xf32, #tpu.memory_space<vmem>>, vector<1x32xf32>,
    %c6 = arith.constant 6 : index
    %26 = memref.load %arg0[%c6] : memref<16xi32, #tpu.memory_space<smem>>
    %27 = arith.index_cast %26 : i32 to index
    %c0_22 = arith.constant 0 : index
    %28 = vector.load %arg13[%27, %c0_22] : memref<64x32xf32, #tpu.memory_space<vmem>>, vector<1x32xf32>
    %c6_23 = arith.constant 6 : index
    %c0_24 = arith.constant 0 : index
    %29 = vector.load %arg14[%c6_23, %c0_24] : memref<8x32xf32, #tpu.memory_space<vmem>>, vector<1x32xf32>
    tpu.vector_store %arg14[%c6_23, %c0_24], %28 {strides = array<i32>} : memref<8x32xf32, #tpu.memory_space<vmem>>, vector<1x32xf32>,
    %c7 = arith.constant 7 : index
    %30 = memref.load %arg0[%c7] : memref<16xi32, #tpu.memory_space<smem>>
    %31 = arith.index_cast %30 : i32 to index
    %c0_25 = arith.constant 0 : index
    %32 = vector.load %arg13[%31, %c0_25] : memref<64x32xf32, #tpu.memory_space<vmem>>, vector<1x32xf32>
    %c7_26 = arith.constant 7 : index
    %c0_27 = arith.constant 0 : index
    %33 = vector.load %arg14[%c7_26, %c0_27] : memref<8x32xf32, #tpu.memory_space<vmem>>, vector<1x32xf32>
    tpu.vector_store %arg14[%c7_26, %c0_27], %32 {strides = array<i32>} : memref<8x32xf32, #tpu.memory_space<vmem>>, vector<1x32xf32>,
    %c0_28 = arith.constant 0 : index
    %c0_29 = arith.constant 0 : index
    %34 = vector.load %arg14[%c0_28, %c0_29] : memref<8x32xf32, #tpu.memory_space<vmem>>, vector<8x32xf32>
    %c0_30 = arith.constant 0 : index
    %c0_31 = arith.constant 0 : index
    %35 = vector.load %arg13[%c0_30, %c0_31] : memref<64x32xf32, #tpu.memory_space<vmem>>, vector<64x32xf32>
    %c0_32 = arith.constant 0 : index
    %c0_33 = arith.constant 0 : index
    %c0_34 = arith.constant 0 : index
    %36 = vector.load %arg2[%c0_32, %c0_33, %c0_34] : memref<2x32x32xf32, #tpu.memory_space<vmem>>, vector<1x32x32xf32>
    %37 = vector.shape_cast %36 : vector<1x32x32xf32> to vector<32x32xf32>
    %c0_35 = arith.constant 0 : index
    %c0_36 = arith.constant 0 : index
    %c0_37 = arith.constant 0 : index
    %38 = vector.load %arg3[%c0_35, %c0_36, %c0_37] : memref<2x32x64xf32, #tpu.memory_space<vmem>>, vector<1x32x64xf32>
    %39 = vector.shape_cast %38 : vector<1x32x64xf32> to vector<32x64xf32>
    %c0_38 = arith.constant 0 : index
    %c0_39 = arith.constant 0 : index
    %c0_40 = arith.constant 0 : index
    %40 = vector.load %arg4[%c0_38, %c0_39, %c0_40] : memref<2x32x32xf32, #tpu.memory_space<vmem>>, vector<1x32x32xf32>
    %41 = vector.shape_cast %40 : vector<1x32x32xf32> to vector<32x32xf32>
    %cst = arith.constant dense<0.000000e+00> : vector<8x32xf32>
    %42 = tpu.matmul %34, %37, %cst {dimension_numbers = #tpu.dot_dimension_numbers<[1], [0], [0], [1], [0, 0, 1, 1], [], []>} : vector<8x32xf32>, vector<32x32xf32>, vector<8x32xf32> -> vector<8x32xf32>
    %cst_41 = arith.constant dense<0.000000e+00> : vector<64x64xf32>
    %43 = tpu.matmul %35, %39, %cst_41 {dimension_numbers = #tpu.dot_dimension_numbers<[1], [0], [0], [1], [0, 0, 1, 1], [], []>} : vector<64x32xf32>, vector<32x64xf32>, vector<64x64xf32> -> vector<64x64xf32>
    %44 = vector.extract_strided_slice %43 {offsets = [0, 0], sizes = [64, 32], strides = [1, 1]} : vector<64x64xf32> to vector<64x32xf32>
    %45 = vector.extract_strided_slice %43 {offsets = [0, 32], sizes = [64, 32], strides = [1, 1]} : vector<64x64xf32> to vector<64x32xf32>
    %46 = vector.extract_strided_slice %42 {offsets = [0, 0], sizes = [8, 8], strides = [1, 1]} : vector<8x32xf32> to vector<8x8xf32>
    %47 = vector.extract_strided_slice %44 {offsets = [0, 0], sizes = [64, 8], strides = [1, 1]} : vector<64x32xf32> to vector<64x8xf32>
    %48 = tpu.transpose %47, [1, 0] : vector<64x8xf32> -> vector<8x64xf32>
    %cst_42 = arith.constant dense<0.000000e+00> : vector<8x64xf32>
    %49 = tpu.matmul %46, %48, %cst_42 {dimension_numbers = #tpu.dot_dimension_numbers<[1], [0], [0], [1], [0, 0, 1, 1], [], []>} : vector<8x8xf32>, vector<8x64xf32>, vector<8x64xf32> -> vector<8x64xf32>
    %50 = vector.extract_strided_slice %42 {offsets = [0, 8], sizes = [8, 8], strides = [1, 1]} : vector<8x32xf32> to vector<8x8xf32>
    %51 = vector.extract_strided_slice %44 {offsets = [0, 8], sizes = [64, 8], strides = [1, 1]} : vector<64x32xf32> to vector<64x8xf32>
    %52 = tpu.transpose %51, [1, 0] : vector<64x8xf32> -> vector<8x64xf32>
    %cst_43 = arith.constant dense<0.000000e+00> : vector<8x64xf32>
    %53 = tpu.matmul %50, %52, %cst_43 {dimension_numbers = #tpu.dot_dimension_numbers<[1], [0], [0], [1], [0, 0, 1, 1], [], []>} : vector<8x8xf32>, vector<8x64xf32>, vector<8x64xf32> -> vector<8x64xf32>
    %54 = vector.extract_strided_slice %42 {offsets = [0, 16], sizes = [8, 8], strides = [1, 1]} : vector<8x32xf32> to vector<8x8xf32>
    %55 = vector.extract_strided_slice %44 {offsets = [0, 16], sizes = [64, 8], strides = [1, 1]} : vector<64x32xf32> to vector<64x8xf32>
    %56 = tpu.transpose %55, [1, 0] : vector<64x8xf32> -> vector<8x64xf32>
    %cst_44 = arith.constant dense<0.000000e+00> : vector<8x64xf32>
    %57 = tpu.matmul %54, %56, %cst_44 {dimension_numbers = #tpu.dot_dimension_numbers<[1], [0], [0], [1], [0, 0, 1, 1], [], []>} : vector<8x8xf32>, vector<8x64xf32>, vector<8x64xf32> -> vector<8x64xf32>
    %58 = vector.extract_strided_slice %42 {offsets = [0, 24], sizes = [8, 8], strides = [1, 1]} : vector<8x32xf32> to vector<8x8xf32>
    %59 = vector.extract_strided_slice %44 {offsets = [0, 24], sizes = [64, 8], strides = [1, 1]} : vector<64x32xf32> to vector<64x8xf32>
    %60 = tpu.transpose %59, [1, 0] : vector<64x8xf32> -> vector<8x64xf32>
    %cst_45 = arith.constant dense<0.000000e+00> : vector<8x64xf32>
    %61 = tpu.matmul %58, %60, %cst_45 {dimension_numbers = #tpu.dot_dimension_numbers<[1], [0], [0], [1], [0, 0, 1, 1], [], []>} : vector<8x8xf32>, vector<8x64xf32>, vector<8x64xf32> -> vector<8x64xf32>
    %62 = tpu.concatenate %49, %53, %57, %61 in 0 : vector<8x64xf32>, vector<8x64xf32>, vector<8x64xf32>, vector<8x64xf32> -> vector<32x64xf32>
    %cst_46 = arith.constant dense<0xFF800000> : vector<32xf32>
    %63 = vector.multi_reduction <maximumf>, %62, %cst_46 [1] : vector<32x64xf32> to vector<32xf32>
    %64 = vector.shape_cast %63 : vector<32xf32> to vector<32x1xf32>
    %65 = vector.broadcast %64 : vector<32x1xf32> to vector<32x64xf32>
    %66 = arith.subf %62, %65 : vector<32x64xf32>
    %67 = math.exp %66 : vector<32x64xf32>
    %cst_47 = arith.constant dense<0.000000e+00> : vector<32xf32>
    %68 = vector.multi_reduction <add>, %67, %cst_47 [1] : vector<32x64xf32> to vector<32xf32>
    %69 = vector.shape_cast %68 : vector<32xf32> to vector<32x1xf32>
    %70 = tpu.reciprocal %69 : vector<32x1xf32> -> vector<32x1xf32>
    %71 = vector.broadcast %70 : vector<32x1xf32> to vector<32x64xf32>
    %72 = arith.mulf %67, %71 : vector<32x64xf32>
    %73 = vector.extract_strided_slice %72 {offsets = [0, 0], sizes = [8, 64], strides = [1, 1]} : vector<32x64xf32> to vector<8x64xf32>
    %74 = vector.extract_strided_slice %45 {offsets = [0, 0], sizes = [64, 8], strides = [1, 1]} : vector<64x32xf32> to vector<64x8xf32>
    %cst_48 = arith.constant dense<0.000000e+00> : vector<8x8xf32>
    %75 = tpu.matmul %73, %74, %cst_48 {dimension_numbers = #tpu.dot_dimension_numbers<[1], [0], [0], [1], [0, 0, 1, 1], [], []>} : vector<8x64xf32>, vector<64x8xf32>, vector<8x8xf32> -> vector<8x8xf32>
    %76 = vector.extract_strided_slice %41 {offsets = [0, 0], sizes = [8, 32], strides = [1, 1]} : vector<32x32xf32> to vector<8x32xf32>
    %cst_49 = arith.constant dense<0.000000e+00> : vector<8x32xf32>
    %77 = tpu.matmul %75, %76, %cst_49 {dimension_numbers = #tpu.dot_dimension_numbers<[1], [0], [0], [1], [0, 0, 1, 1], [], []>} : vector<8x8xf32>, vector<8x32xf32>, vector<8x32xf32> -> vector<8x32xf32>
    %78 = arith.addf %34, %77 : vector<8x32xf32>
    %79 = vector.extract_strided_slice %72 {offsets = [8, 0], sizes = [8, 64], strides = [1, 1]} : vector<32x64xf32> to vector<8x64xf32>
    %80 = vector.extract_strided_slice %45 {offsets = [0, 8], sizes = [64, 8], strides = [1, 1]} : vector<64x32xf32> to vector<64x8xf32>
    %cst_50 = arith.constant dense<0.000000e+00> : vector<8x8xf32>
    %81 = tpu.matmul %79, %80, %cst_50 {dimension_numbers = #tpu.dot_dimension_numbers<[1], [0], [0], [1], [0, 0, 1, 1], [], []>} : vector<8x64xf32>, vector<64x8xf32>, vector<8x8xf32> -> vector<8x8xf32>
    %82 = vector.extract_strided_slice %41 {offsets = [8, 0], sizes = [8, 32], strides = [1, 1]} : vector<32x32xf32> to vector<8x32xf32>
    %cst_51 = arith.constant dense<0.000000e+00> : vector<8x32xf32>
    %83 = tpu.matmul %81, %82, %cst_51 {dimension_numbers = #tpu.dot_dimension_numbers<[1], [0], [0], [1], [0, 0, 1, 1], [], []>} : vector<8x8xf32>, vector<8x32xf32>, vector<8x32xf32> -> vector<8x32xf32>
    %84 = arith.addf %78, %83 : vector<8x32xf32>
    %85 = vector.extract_strided_slice %72 {offsets = [16, 0], sizes = [8, 64], strides = [1, 1]} : vector<32x64xf32> to vector<8x64xf32>
    %86 = vector.extract_strided_slice %45 {offsets = [0, 16], sizes = [64, 8], strides = [1, 1]} : vector<64x32xf32> to vector<64x8xf32>
    %cst_52 = arith.constant dense<0.000000e+00> : vector<8x8xf32>
    %87 = tpu.matmul %85, %86, %cst_52 {dimension_numbers = #tpu.dot_dimension_numbers<[1], [0], [0], [1], [0, 0, 1, 1], [], []>} : vector<8x64xf32>, vector<64x8xf32>, vector<8x8xf32> -> vector<8x8xf32>
    %88 = vector.extract_strided_slice %41 {offsets = [16, 0], sizes = [8, 32], strides = [1, 1]} : vector<32x32xf32> to vector<8x32xf32>
    %cst_53 = arith.constant dense<0.000000e+00> : vector<8x32xf32>
    %89 = tpu.matmul %87, %88, %cst_53 {dimension_numbers = #tpu.dot_dimension_numbers<[1], [0], [0], [1], [0, 0, 1, 1], [], []>} : vector<8x8xf32>, vector<8x32xf32>, vector<8x32xf32> -> vector<8x32xf32>
    %90 = arith.addf %84, %89 : vector<8x32xf32>
    %91 = vector.extract_strided_slice %72 {offsets = [24, 0], sizes = [8, 64], strides = [1, 1]} : vector<32x64xf32> to vector<8x64xf32>
    %92 = vector.extract_strided_slice %45 {offsets = [0, 24], sizes = [64, 8], strides = [1, 1]} : vector<64x32xf32> to vector<64x8xf32>
    %cst_54 = arith.constant dense<0.000000e+00> : vector<8x8xf32>
    %93 = tpu.matmul %91, %92, %cst_54 {dimension_numbers = #tpu.dot_dimension_numbers<[1], [0], [0], [1], [0, 0, 1, 1], [], []>} : vector<8x64xf32>, vector<64x8xf32>, vector<8x8xf32> -> vector<8x8xf32>
    %94 = vector.extract_strided_slice %41 {offsets = [24, 0], sizes = [8, 32], strides = [1, 1]} : vector<32x32xf32> to vector<8x32xf32>
    %cst_55 = arith.constant dense<0.000000e+00> : vector<8x32xf32>
    %95 = tpu.matmul %93, %94, %cst_55 {dimension_numbers = #tpu.dot_dimension_numbers<[1], [0], [0], [1], [0, 0, 1, 1], [], []>} : vector<8x8xf32>, vector<8x32xf32>, vector<8x32xf32> -> vector<8x32xf32>
    %96 = arith.addf %90, %95 : vector<8x32xf32>
    %cst_56 = arith.constant dense<0.000000e+00> : vector<64x32xf32>
    %97 = tpu.matmul %35, %37, %cst_56 {dimension_numbers = #tpu.dot_dimension_numbers<[1], [0], [0], [1], [0, 0, 1, 1], [], []>} : vector<64x32xf32>, vector<32x32xf32>, vector<64x32xf32> -> vector<64x32xf32>
    %cst_57 = arith.constant dense<0.000000e+00> : vector<8x64xf32>
    %98 = tpu.matmul %96, %39, %cst_57 {dimension_numbers = #tpu.dot_dimension_numbers<[1], [0], [0], [1], [0, 0, 1, 1], [], []>} : vector<8x32xf32>, vector<32x64xf32>, vector<8x64xf32> -> vector<8x64xf32>
    %99 = vector.extract_strided_slice %98 {offsets = [0, 0], sizes = [8, 32], strides = [1, 1]} : vector<8x64xf32> to vector<8x32xf32>
    %100 = vector.extract_strided_slice %98 {offsets = [0, 32], sizes = [8, 32], strides = [1, 1]} : vector<8x64xf32> to vector<8x32xf32>
    %101 = vector.extract_strided_slice %97 {offsets = [0, 0], sizes = [64, 8], strides = [1, 1]} : vector<64x32xf32> to vector<64x8xf32>
    %102 = vector.extract_strided_slice %99 {offsets = [0, 0], sizes = [8, 8], strides = [1, 1]} : vector<8x32xf32> to vector<8x8xf32>
    %103 = tpu.transpose %102, [1, 0] : vector<8x8xf32> -> vector<8x8xf32>
    %cst_58 = arith.constant dense<0.000000e+00> : vector<64x8xf32>
    %104 = tpu.matmul %101, %103, %cst_58 {dimension_numbers = #tpu.dot_dimension_numbers<[1], [0], [0], [1], [0, 0, 1, 1], [], []>} : vector<64x8xf32>, vector<8x8xf32>, vector<64x8xf32> -> vector<64x8xf32>
    %105 = vector.extract_strided_slice %97 {offsets = [0, 8], sizes = [64, 8], strides = [1, 1]} : vector<64x32xf32> to vector<64x8xf32>
    %106 = vector.extract_strided_slice %99 {offsets = [0, 8], sizes = [8, 8], strides = [1, 1]} : vector<8x32xf32> to vector<8x8xf32>
    %107 = tpu.transpose %106, [1, 0] : vector<8x8xf32> -> vector<8x8xf32>
    %cst_59 = arith.constant dense<0.000000e+00> : vector<64x8xf32>
    %108 = tpu.matmul %105, %107, %cst_59 {dimension_numbers = #tpu.dot_dimension_numbers<[1], [0], [0], [1], [0, 0, 1, 1], [], []>} : vector<64x8xf32>, vector<8x8xf32>, vector<64x8xf32> -> vector<64x8xf32>
    %109 = vector.extract_strided_slice %97 {offsets = [0, 16], sizes = [64, 8], strides = [1, 1]} : vector<64x32xf32> to vector<64x8xf32>
    %110 = vector.extract_strided_slice %99 {offsets = [0, 16], sizes = [8, 8], strides = [1, 1]} : vector<8x32xf32> to vector<8x8xf32>
    %111 = tpu.transpose %110, [1, 0] : vector<8x8xf32> -> vector<8x8xf32>
    %cst_60 = arith.constant dense<0.000000e+00> : vector<64x8xf32>
    %112 = tpu.matmul %109, %111, %cst_60 {dimension_numbers = #tpu.dot_dimension_numbers<[1], [0], [0], [1], [0, 0, 1, 1], [], []>} : vector<64x8xf32>, vector<8x8xf32>, vector<64x8xf32> -> vector<64x8xf32>
    %113 = vector.extract_strided_slice %97 {offsets = [0, 24], sizes = [64, 8], strides = [1, 1]} : vector<64x32xf32> to vector<64x8xf32>
    %114 = vector.extract_strided_slice %99 {offsets = [0, 24], sizes = [8, 8], strides = [1, 1]} : vector<8x32xf32> to vector<8x8xf32>
    %115 = tpu.transpose %114, [1, 0] : vector<8x8xf32> -> vector<8x8xf32>
    %cst_61 = arith.constant dense<0.000000e+00> : vector<64x8xf32>
    %116 = tpu.matmul %113, %115, %cst_61 {dimension_numbers = #tpu.dot_dimension_numbers<[1], [0], [0], [1], [0, 0, 1, 1], [], []>} : vector<64x8xf32>, vector<8x8xf32>, vector<64x8xf32> -> vector<64x8xf32>
    %117 = tpu.concatenate %104, %108, %112, %116 in 0 : vector<64x8xf32>, vector<64x8xf32>, vector<64x8xf32>, vector<64x8xf32> -> vector<256x8xf32>
    %cst_62 = arith.constant dense<0xFF800000> : vector<256xf32>
    %118 = vector.multi_reduction <maximumf>, %117, %cst_62 [1] : vector<256x8xf32> to vector<256xf32>
    %119 = vector.shape_cast %118 : vector<256xf32> to vector<256x1xf32>
    %120 = vector.broadcast %119 : vector<256x1xf32> to vector<256x8xf32>
    %121 = arith.subf %117, %120 : vector<256x8xf32>
    %122 = math.exp %121 : vector<256x8xf32>
    %cst_63 = arith.constant dense<0.000000e+00> : vector<256xf32>
    %123 = vector.multi_reduction <add>, %122, %cst_63 [1] : vector<256x8xf32> to vector<256xf32>
    %124 = vector.shape_cast %123 : vector<256xf32> to vector<256x1xf32>
    %125 = tpu.reciprocal %124 : vector<256x1xf32> -> vector<256x1xf32>
    %126 = vector.broadcast %125 : vector<256x1xf32> to vector<256x8xf32>
    %127 = arith.mulf %122, %126 : vector<256x8xf32>
    %128 = vector.extract_strided_slice %127 {offsets = [0, 0], sizes = [64, 8], strides = [1, 1]} : vector<256x8xf32> to vector<64x8xf32>
    %129 = vector.extract_strided_slice %100 {offsets = [0, 0], sizes = [8, 8], strides = [1, 1]} : vector<8x32xf32> to vector<8x8xf32>
    %cst_64 = arith.constant dense<0.000000e+00> : vector<64x8xf32>
    %130 = tpu.matmul %128, %129, %cst_64 {dimension_numbers = #tpu.dot_dimension_numbers<[1], [0], [0], [1], [0, 0, 1, 1], [], []>} : vector<64x8xf32>, vector<8x8xf32>, vector<64x8xf32> -> vector<64x8xf32>
    %131 = vector.extract_strided_slice %41 {offsets = [0, 0], sizes = [8, 32], strides = [1, 1]} : vector<32x32xf32> to vector<8x32xf32>
    %cst_65 = arith.constant dense<0.000000e+00> : vector<64x32xf32>
    %132 = tpu.matmul %130, %131, %cst_65 {dimension_numbers = #tpu.dot_dimension_numbers<[1], [0], [0], [1], [0, 0, 1, 1], [], []>} : vector<64x8xf32>, vector<8x32xf32>, vector<64x32xf32> -> vector<64x32xf32>
    %133 = arith.addf %35, %132 : vector<64x32xf32>
    %134 = vector.extract_strided_slice %127 {offsets = [64, 0], sizes = [64, 8], strides = [1, 1]} : vector<256x8xf32> to vector<64x8xf32>
    %135 = vector.extract_strided_slice %100 {offsets = [0, 8], sizes = [8, 8], strides = [1, 1]} : vector<8x32xf32> to vector<8x8xf32>
    %cst_66 = arith.constant dense<0.000000e+00> : vector<64x8xf32>
    %136 = tpu.matmul %134, %135, %cst_66 {dimension_numbers = #tpu.dot_dimension_numbers<[1], [0], [0], [1], [0, 0, 1, 1], [], []>} : vector<64x8xf32>, vector<8x8xf32>, vector<64x8xf32> -> vector<64x8xf32>
    %137 = vector.extract_strided_slice %41 {offsets = [8, 0], sizes = [8, 32], strides = [1, 1]} : vector<32x32xf32> to vector<8x32xf32>
    %cst_67 = arith.constant dense<0.000000e+00> : vector<64x32xf32>
    %138 = tpu.matmul %136, %137, %cst_67 {dimension_numbers = #tpu.dot_dimension_numbers<[1], [0], [0], [1], [0, 0, 1, 1], [], []>} : vector<64x8xf32>, vector<8x32xf32>, vector<64x32xf32> -> vector<64x32xf32>
    %139 = arith.addf %133, %138 : vector<64x32xf32>
    %140 = vector.extract_strided_slice %127 {offsets = [128, 0], sizes = [64, 8], strides = [1, 1]} : vector<256x8xf32> to vector<64x8xf32>
    %141 = vector.extract_strided_slice %100 {offsets = [0, 16], sizes = [8, 8], strides = [1, 1]} : vector<8x32xf32> to vector<8x8xf32>
    %cst_68 = arith.constant dense<0.000000e+00> : vector<64x8xf32>
    %142 = tpu.matmul %140, %141, %cst_68 {dimension_numbers = #tpu.dot_dimension_numbers<[1], [0], [0], [1], [0, 0, 1, 1], [], []>} : vector<64x8xf32>, vector<8x8xf32>, vector<64x8xf32> -> vector<64x8xf32>
    %143 = vector.extract_strided_slice %41 {offsets = [16, 0], sizes = [8, 32], strides = [1, 1]} : vector<32x32xf32> to vector<8x32xf32>
    %cst_69 = arith.constant dense<0.000000e+00> : vector<64x32xf32>
    %144 = tpu.matmul %142, %143, %cst_69 {dimension_numbers = #tpu.dot_dimension_numbers<[1], [0], [0], [1], [0, 0, 1, 1], [], []>} : vector<64x8xf32>, vector<8x32xf32>, vector<64x32xf32> -> vector<64x32xf32>
    %145 = arith.addf %139, %144 : vector<64x32xf32>
    %146 = vector.extract_strided_slice %127 {offsets = [192, 0], sizes = [64, 8], strides = [1, 1]} : vector<256x8xf32> to vector<64x8xf32>
    %147 = vector.extract_strided_slice %100 {offsets = [0, 24], sizes = [8, 8], strides = [1, 1]} : vector<8x32xf32> to vector<8x8xf32>
    %cst_70 = arith.constant dense<0.000000e+00> : vector<64x8xf32>
    %148 = tpu.matmul %146, %147, %cst_70 {dimension_numbers = #tpu.dot_dimension_numbers<[1], [0], [0], [1], [0, 0, 1, 1], [], []>} : vector<64x8xf32>, vector<8x8xf32>, vector<64x8xf32> -> vector<64x8xf32>
    %149 = vector.extract_strided_slice %41 {offsets = [24, 0], sizes = [8, 32], strides = [1, 1]} : vector<32x32xf32> to vector<8x32xf32>
    %cst_71 = arith.constant dense<0.000000e+00> : vector<64x32xf32>
    %150 = tpu.matmul %148, %149, %cst_71 {dimension_numbers = #tpu.dot_dimension_numbers<[1], [0], [0], [1], [0, 0, 1, 1], [], []>} : vector<64x8xf32>, vector<8x32xf32>, vector<64x32xf32> -> vector<64x32xf32>
    %151 = arith.addf %145, %150 : vector<64x32xf32>
    %c0_72 = arith.constant 0 : index
    %c0_73 = arith.constant 0 : index
    %c0_74 = arith.constant 0 : index
    %152 = vector.load %arg9[%c0_72, %c0_73, %c0_74] : memref<2x1x32xf32, #tpu.memory_space<vmem>>, vector<1x1x32xf32>
    %153 = vector.shape_cast %152 : vector<1x1x32xf32> to vector<1x32xf32>
    %c0_75 = arith.constant 0 : index
    %c0_76 = arith.constant 0 : index
    %c0_77 = arith.constant 0 : index
    %154 = vector.load %arg10[%c0_75, %c0_76, %c0_77] : memref<2x1x32xf32, #tpu.memory_space<vmem>>, vector<1x1x32xf32>
    %155 = vector.shape_cast %154 : vector<1x1x32xf32> to vector<1x32xf32>
    %cst_78 = arith.constant dense<0.000000e+00> : vector<64xf32>
    %156 = vector.multi_reduction <add>, %151, %cst_78 [1] : vector<64x32xf32> to vector<64xf32>
    %157 = vector.shape_cast %156 : vector<64xf32> to vector<64x1xf32>
    %cst_79 = arith.constant 3.200000e+01 : f32
    %158 = vector.broadcast %cst_79 : f32 to vector<64x1xf32>
    %159 = arith.divf %157, %158 : vector<64x1xf32>
    %160 = vector.broadcast %159 : vector<64x1xf32> to vector<64x32xf32>
    %161 = arith.subf %151, %160 : vector<64x32xf32>
    %162 = arith.mulf %161, %161 : vector<64x32xf32>
    %cst_80 = arith.constant dense<0.000000e+00> : vector<64xf32>
    %163 = vector.multi_reduction <add>, %162, %cst_80 [1] : vector<64x32xf32> to vector<64xf32>
    %164 = vector.shape_cast %163 : vector<64xf32> to vector<64x1xf32>
    %cst_81 = arith.constant 3.200000e+01 : f32
    %165 = vector.broadcast %cst_81 : f32 to vector<64x1xf32>
    %166 = arith.divf %164, %165 : vector<64x1xf32>
    %167 = vector.broadcast %159 : vector<64x1xf32> to vector<64x32xf32>
    %168 = arith.subf %151, %167 : vector<64x32xf32>
    %cst_82 = arith.constant 9.99999974E-6 : f32
    %169 = vector.broadcast %cst_82 : f32 to vector<64x1xf32>
    %170 = arith.addf %166, %169 : vector<64x1xf32>
    %171 = math.rsqrt %170 : vector<64x1xf32>
    %172 = vector.broadcast %171 : vector<64x1xf32> to vector<64x32xf32>
    %173 = arith.mulf %168, %172 : vector<64x32xf32>
    %174 = vector.broadcast %153 : vector<1x32xf32> to vector<64x32xf32>
    %175 = arith.mulf %173, %174 : vector<64x32xf32>
    %176 = vector.broadcast %155 : vector<1x32xf32> to vector<64x32xf32>
    %177 = arith.addf %175, %176 : vector<64x32xf32>
    %c0_83 = arith.constant 0 : index
    %c0_84 = arith.constant 0 : index
    %c0_85 = arith.constant 0 : index
    %178 = vector.load %arg5[%c0_83, %c0_84, %c0_85] : memref<2x32x32xf32, #tpu.memory_space<vmem>>, vector<1x32x32xf32>
    %179 = vector.shape_cast %178 : vector<1x32x32xf32> to vector<32x32xf32>
    %cst_86 = arith.constant dense<0.000000e+00> : vector<64x32xf32>
    %180 = tpu.matmul %177, %179, %cst_86 {dimension_numbers = #tpu.dot_dimension_numbers<[1], [0], [0], [1], [0, 0, 1, 1], [], []>} : vector<64x32xf32>, vector<32x32xf32>, vector<64x32xf32> -> vector<64x32xf32>
    %c0_87 = arith.constant 0 : index
    %c0_88 = arith.constant 0 : index
    %c0_89 = arith.constant 0 : index
    %181 = vector.load %arg6[%c0_87, %c0_88, %c0_89] : memref<2x1x32xf32, #tpu.memory_space<vmem>>, vector<1x1x32xf32>
    %182 = vector.shape_cast %181 : vector<1x1x32xf32> to vector<1x32xf32>
    %183 = vector.broadcast %182 : vector<1x32xf32> to vector<64x32xf32>
    %184 = arith.addf %180, %183 : vector<64x32xf32>
    %cst_90 = arith.constant 0.000000e+00 : f32
    %185 = vector.broadcast %cst_90 : f32 to vector<64x32xf32>
    %186 = arith.maximumf %184, %185 : vector<64x32xf32>
    %c0_91 = arith.constant 0 : index
    %c0_92 = arith.constant 0 : index
    %c0_93 = arith.constant 0 : index
    %187 = vector.load %arg7[%c0_91, %c0_92, %c0_93] : memref<2x32x32xf32, #tpu.memory_space<vmem>>, vector<1x32x32xf32>
    %188 = vector.shape_cast %187 : vector<1x32x32xf32> to vector<32x32xf32>
    %cst_94 = arith.constant dense<0.000000e+00> : vector<64x32xf32>
    %189 = tpu.matmul %186, %188, %cst_94 {dimension_numbers = #tpu.dot_dimension_numbers<[1], [0], [0], [1], [0, 0, 1, 1], [], []>} : vector<64x32xf32>, vector<32x32xf32>, vector<64x32xf32> -> vector<64x32xf32>
    %c0_95 = arith.constant 0 : index
    %c0_96 = arith.constant 0 : index
    %c0_97 = arith.constant 0 : index
    %190 = vector.load %arg8[%c0_95, %c0_96, %c0_97] : memref<2x1x32xf32, #tpu.memory_space<vmem>>, vector<1x1x32xf32>
    %191 = vector.shape_cast %190 : vector<1x1x32xf32> to vector<1x32xf32>
    %192 = vector.broadcast %191 : vector<1x32xf32> to vector<64x32xf32>
    %193 = arith.addf %189, %192 : vector<64x32xf32>
    %cst_98 = arith.constant 0.000000e+00 : f32
    %194 = vector.broadcast %cst_98 : f32 to vector<64x32xf32>
    %195 = arith.maximumf %193, %194 : vector<64x32xf32>
    %196 = arith.addf %177, %195 : vector<64x32xf32>
    %c0_99 = arith.constant 0 : index
    %c0_100 = arith.constant 0 : index
    %c0_101 = arith.constant 0 : index
    %197 = vector.load %arg11[%c0_99, %c0_100, %c0_101] : memref<2x1x32xf32, #tpu.memory_space<vmem>>, vector<1x1x32xf32>
    %198 = vector.shape_cast %197 : vector<1x1x32xf32> to vector<1x32xf32>
    %c0_102 = arith.constant 0 : index
    %c0_103 = arith.constant 0 : index
    %c0_104 = arith.constant 0 : index
    %199 = vector.load %arg12[%c0_102, %c0_103, %c0_104] : memref<2x1x32xf32, #tpu.memory_space<vmem>>, vector<1x1x32xf32>
    %200 = vector.shape_cast %199 : vector<1x1x32xf32> to vector<1x32xf32>
    %cst_105 = arith.constant dense<0.000000e+00> : vector<64xf32>
    %201 = vector.multi_reduction <add>, %196, %cst_105 [1] : vector<64x32xf32> to vector<64xf32>
    %202 = vector.shape_cast %201 : vector<64xf32> to vector<64x1xf32>
    %cst_106 = arith.constant 3.200000e+01 : f32
    %203 = vector.broadcast %cst_106 : f32 to vector<64x1xf32>
    %204 = arith.divf %202, %203 : vector<64x1xf32>
    %205 = vector.broadcast %204 : vector<64x1xf32> to vector<64x32xf32>
    %206 = arith.subf %196, %205 : vector<64x32xf32>
    %207 = arith.mulf %206, %206 : vector<64x32xf32>
    %cst_107 = arith.constant dense<0.000000e+00> : vector<64xf32>
    %208 = vector.multi_reduction <add>, %207, %cst_107 [1] : vector<64x32xf32> to vector<64xf32>
    %209 = vector.shape_cast %208 : vector<64xf32> to vector<64x1xf32>
    %cst_108 = arith.constant 3.200000e+01 : f32
    %210 = vector.broadcast %cst_108 : f32 to vector<64x1xf32>
    %211 = arith.divf %209, %210 : vector<64x1xf32>
    %212 = vector.broadcast %204 : vector<64x1xf32> to vector<64x32xf32>
    %213 = arith.subf %196, %212 : vector<64x32xf32>
    %cst_109 = arith.constant 9.99999974E-6 : f32
    %214 = vector.broadcast %cst_109 : f32 to vector<64x1xf32>
    %215 = arith.addf %211, %214 : vector<64x1xf32>
    %216 = math.rsqrt %215 : vector<64x1xf32>
    %217 = vector.broadcast %216 : vector<64x1xf32> to vector<64x32xf32>
    %218 = arith.mulf %213, %217 : vector<64x32xf32>
    %219 = vector.broadcast %198 : vector<1x32xf32> to vector<64x32xf32>
    %220 = arith.mulf %218, %219 : vector<64x32xf32>
    %221 = vector.broadcast %200 : vector<1x32xf32> to vector<64x32xf32>
    %222 = arith.addf %220, %221 : vector<64x32xf32>
    %cst_110 = arith.constant 5.000000e-01 : f32
    %223 = vector.broadcast %cst_110 : f32 to vector<64x32xf32>
    %224 = arith.mulf %222, %223 : vector<64x32xf32>
    %c0_111 = arith.constant 0 : index
    %c0_112 = arith.constant 0 : index
    %225 = vector.load %arg13[%c0_111, %c0_112] : memref<64x32xf32, #tpu.memory_space<vmem>>, vector<64x32xf32>
    tpu.vector_store %arg13[%c0_111, %c0_112], %224 {strides = array<i32>} : memref<64x32xf32, #tpu.memory_space<vmem>>, vector<64x32xf32>,
    %c8 = arith.constant 8 : index
    %226 = memref.load %arg0[%c8] : memref<16xi32, #tpu.memory_space<smem>>
    %227 = arith.index_cast %226 : i32 to index
    %c0_113 = arith.constant 0 : index
    %228 = vector.load %arg13[%227, %c0_113] : memref<64x32xf32, #tpu.memory_space<vmem>>, vector<1x32xf32>
    %c0_114 = arith.constant 0 : index
    %c0_115 = arith.constant 0 : index
    %229 = vector.load %arg14[%c0_114, %c0_115] : memref<8x32xf32, #tpu.memory_space<vmem>>, vector<1x32xf32>
    tpu.vector_store %arg14[%c0_114, %c0_115], %228 {strides = array<i32>} : memref<8x32xf32, #tpu.memory_space<vmem>>, vector<1x32xf32>,
    %c9 = arith.constant 9 : index
    %230 = memref.load %arg0[%c9] : memref<16xi32, #tpu.memory_space<smem>>
    %231 = arith.index_cast %230 : i32 to index
    %c0_116 = arith.constant 0 : index
    %232 = vector.load %arg13[%231, %c0_116] : memref<64x32xf32, #tpu.memory_space<vmem>>, vector<1x32xf32>
    %c1_117 = arith.constant 1 : index
    %c0_118 = arith.constant 0 : index
    %233 = vector.load %arg14[%c1_117, %c0_118] : memref<8x32xf32, #tpu.memory_space<vmem>>, vector<1x32xf32>
    tpu.vector_store %arg14[%c1_117, %c0_118], %232 {strides = array<i32>} : memref<8x32xf32, #tpu.memory_space<vmem>>, vector<1x32xf32>,
    %c10 = arith.constant 10 : index
    %234 = memref.load %arg0[%c10] : memref<16xi32, #tpu.memory_space<smem>>
    %235 = arith.index_cast %234 : i32 to index
    %c0_119 = arith.constant 0 : index
    %236 = vector.load %arg13[%235, %c0_119] : memref<64x32xf32, #tpu.memory_space<vmem>>, vector<1x32xf32>
    %c2_120 = arith.constant 2 : index
    %c0_121 = arith.constant 0 : index
    %237 = vector.load %arg14[%c2_120, %c0_121] : memref<8x32xf32, #tpu.memory_space<vmem>>, vector<1x32xf32>
    tpu.vector_store %arg14[%c2_120, %c0_121], %236 {strides = array<i32>} : memref<8x32xf32, #tpu.memory_space<vmem>>, vector<1x32xf32>,
    %c11 = arith.constant 11 : index
    %238 = memref.load %arg0[%c11] : memref<16xi32, #tpu.memory_space<smem>>
    %239 = arith.index_cast %238 : i32 to index
    %c0_122 = arith.constant 0 : index
    %240 = vector.load %arg13[%239, %c0_122] : memref<64x32xf32, #tpu.memory_space<vmem>>, vector<1x32xf32>
    %c3_123 = arith.constant 3 : index
    %c0_124 = arith.constant 0 : index
    %241 = vector.load %arg14[%c3_123, %c0_124] : memref<8x32xf32, #tpu.memory_space<vmem>>, vector<1x32xf32>
    tpu.vector_store %arg14[%c3_123, %c0_124], %240 {strides = array<i32>} : memref<8x32xf32, #tpu.memory_space<vmem>>, vector<1x32xf32>,
    %c12 = arith.constant 12 : index
    %242 = memref.load %arg0[%c12] : memref<16xi32, #tpu.memory_space<smem>>
    %243 = arith.index_cast %242 : i32 to index
    %c0_125 = arith.constant 0 : index
    %244 = vector.load %arg13[%243, %c0_125] : memref<64x32xf32, #tpu.memory_space<vmem>>, vector<1x32xf32>
    %c4_126 = arith.constant 4 : index
    %c0_127 = arith.constant 0 : index
    %245 = vector.load %arg14[%c4_126, %c0_127] : memref<8x32xf32, #tpu.memory_space<vmem>>, vector<1x32xf32>
    tpu.vector_store %arg14[%c4_126, %c0_127], %244 {strides = array<i32>} : memref<8x32xf32, #tpu.memory_space<vmem>>, vector<1x32xf32>,
    %c13 = arith.constant 13 : index
    %246 = memref.load %arg0[%c13] : memref<16xi32, #tpu.memory_space<smem>>
    %247 = arith.index_cast %246 : i32 to index
    %c0_128 = arith.constant 0 : index
    %248 = vector.load %arg13[%247, %c0_128] : memref<64x32xf32, #tpu.memory_space<vmem>>, vector<1x32xf32>
    %c5_129 = arith.constant 5 : index
    %c0_130 = arith.constant 0 : index
    %249 = vector.load %arg14[%c5_129, %c0_130] : memref<8x32xf32, #tpu.memory_space<vmem>>, vector<1x32xf32>
    tpu.vector_store %arg14[%c5_129, %c0_130], %248 {strides = array<i32>} : memref<8x32xf32, #tpu.memory_space<vmem>>, vector<1x32xf32>,
    %c14 = arith.constant 14 : index
    %250 = memref.load %arg0[%c14] : memref<16xi32, #tpu.memory_space<smem>>
    %251 = arith.index_cast %250 : i32 to index
    %c0_131 = arith.constant 0 : index
    %252 = vector.load %arg13[%251, %c0_131] : memref<64x32xf32, #tpu.memory_space<vmem>>, vector<1x32xf32>
    %c6_132 = arith.constant 6 : index
    %c0_133 = arith.constant 0 : index
    %253 = vector.load %arg14[%c6_132, %c0_133] : memref<8x32xf32, #tpu.memory_space<vmem>>, vector<1x32xf32>
    tpu.vector_store %arg14[%c6_132, %c0_133], %252 {strides = array<i32>} : memref<8x32xf32, #tpu.memory_space<vmem>>, vector<1x32xf32>,
    %c15 = arith.constant 15 : index
    %254 = memref.load %arg0[%c15] : memref<16xi32, #tpu.memory_space<smem>>
    %255 = arith.index_cast %254 : i32 to index
    %c0_134 = arith.constant 0 : index
    %256 = vector.load %arg13[%255, %c0_134] : memref<64x32xf32, #tpu.memory_space<vmem>>, vector<1x32xf32>
    %c7_135 = arith.constant 7 : index
    %c0_136 = arith.constant 0 : index
    %257 = vector.load %arg14[%c7_135, %c0_136] : memref<8x32xf32, #tpu.memory_space<vmem>>, vector<1x32xf32>
    tpu.vector_store %arg14[%c7_135, %c0_136], %256 {strides = array<i32>} : memref<8x32xf32, #tpu.memory_space<vmem>>, vector<1x32xf32>,
    %c0_137 = arith.constant 0 : index
    %c0_138 = arith.constant 0 : index
    %258 = vector.load %arg14[%c0_137, %c0_138] : memref<8x32xf32, #tpu.memory_space<vmem>>, vector<8x32xf32>
    %c0_139 = arith.constant 0 : index
    %c0_140 = arith.constant 0 : index
    %259 = vector.load %arg13[%c0_139, %c0_140] : memref<64x32xf32, #tpu.memory_space<vmem>>, vector<64x32xf32>
    %c1_141 = arith.constant 1 : index
    %c0_142 = arith.constant 0 : index
    %c0_143 = arith.constant 0 : index
    %260 = vector.load %arg2[%c1_141, %c0_142, %c0_143] : memref<2x32x32xf32, #tpu.memory_space<vmem>>, vector<1x32x32xf32>
    %261 = vector.shape_cast %260 : vector<1x32x32xf32> to vector<32x32xf32>
    %c1_144 = arith.constant 1 : index
    %c0_145 = arith.constant 0 : index
    %c0_146 = arith.constant 0 : index
    %262 = vector.load %arg3[%c1_144, %c0_145, %c0_146] : memref<2x32x64xf32, #tpu.memory_space<vmem>>, vector<1x32x64xf32>
    %263 = vector.shape_cast %262 : vector<1x32x64xf32> to vector<32x64xf32>
    %c1_147 = arith.constant 1 : index
    %c0_148 = arith.constant 0 : index
    %c0_149 = arith.constant 0 : index
    %264 = vector.load %arg4[%c1_147, %c0_148, %c0_149] : memref<2x32x32xf32, #tpu.memory_space<vmem>>, vector<1x32x32xf32>
    %265 = vector.shape_cast %264 : vector<1x32x32xf32> to vector<32x32xf32>
    %cst_150 = arith.constant dense<0.000000e+00> : vector<8x32xf32>
    %266 = tpu.matmul %258, %261, %cst_150 {dimension_numbers = #tpu.dot_dimension_numbers<[1], [0], [0], [1], [0, 0, 1, 1], [], []>} : vector<8x32xf32>, vector<32x32xf32>, vector<8x32xf32> -> vector<8x32xf32>
    %cst_151 = arith.constant dense<0.000000e+00> : vector<64x64xf32>
    %267 = tpu.matmul %259, %263, %cst_151 {dimension_numbers = #tpu.dot_dimension_numbers<[1], [0], [0], [1], [0, 0, 1, 1], [], []>} : vector<64x32xf32>, vector<32x64xf32>, vector<64x64xf32> -> vector<64x64xf32>
    %268 = vector.extract_strided_slice %267 {offsets = [0, 0], sizes = [64, 32], strides = [1, 1]} : vector<64x64xf32> to vector<64x32xf32>
    %269 = vector.extract_strided_slice %267 {offsets = [0, 32], sizes = [64, 32], strides = [1, 1]} : vector<64x64xf32> to vector<64x32xf32>
    %270 = vector.extract_strided_slice %266 {offsets = [0, 0], sizes = [8, 8], strides = [1, 1]} : vector<8x32xf32> to vector<8x8xf32>
    %271 = vector.extract_strided_slice %268 {offsets = [0, 0], sizes = [64, 8], strides = [1, 1]} : vector<64x32xf32> to vector<64x8xf32>
    %272 = tpu.transpose %271, [1, 0] : vector<64x8xf32> -> vector<8x64xf32>
    %cst_152 = arith.constant dense<0.000000e+00> : vector<8x64xf32>
    %273 = tpu.matmul %270, %272, %cst_152 {dimension_numbers = #tpu.dot_dimension_numbers<[1], [0], [0], [1], [0, 0, 1, 1], [], []>} : vector<8x8xf32>, vector<8x64xf32>, vector<8x64xf32> -> vector<8x64xf32>
    %274 = vector.extract_strided_slice %266 {offsets = [0, 8], sizes = [8, 8], strides = [1, 1]} : vector<8x32xf32> to vector<8x8xf32>
    %275 = vector.extract_strided_slice %268 {offsets = [0, 8], sizes = [64, 8], strides = [1, 1]} : vector<64x32xf32> to vector<64x8xf32>
    %276 = tpu.transpose %275, [1, 0] : vector<64x8xf32> -> vector<8x64xf32>
    %cst_153 = arith.constant dense<0.000000e+00> : vector<8x64xf32>
    %277 = tpu.matmul %274, %276, %cst_153 {dimension_numbers = #tpu.dot_dimension_numbers<[1], [0], [0], [1], [0, 0, 1, 1], [], []>} : vector<8x8xf32>, vector<8x64xf32>, vector<8x64xf32> -> vector<8x64xf32>
    %278 = vector.extract_strided_slice %266 {offsets = [0, 16], sizes = [8, 8], strides = [1, 1]} : vector<8x32xf32> to vector<8x8xf32>
    %279 = vector.extract_strided_slice %268 {offsets = [0, 16], sizes = [64, 8], strides = [1, 1]} : vector<64x32xf32> to vector<64x8xf32>
    %280 = tpu.transpose %279, [1, 0] : vector<64x8xf32> -> vector<8x64xf32>
    %cst_154 = arith.constant dense<0.000000e+00> : vector<8x64xf32>
    %281 = tpu.matmul %278, %280, %cst_154 {dimension_numbers = #tpu.dot_dimension_numbers<[1], [0], [0], [1], [0, 0, 1, 1], [], []>} : vector<8x8xf32>, vector<8x64xf32>, vector<8x64xf32> -> vector<8x64xf32>
    %282 = vector.extract_strided_slice %266 {offsets = [0, 24], sizes = [8, 8], strides = [1, 1]} : vector<8x32xf32> to vector<8x8xf32>
    %283 = vector.extract_strided_slice %268 {offsets = [0, 24], sizes = [64, 8], strides = [1, 1]} : vector<64x32xf32> to vector<64x8xf32>
    %284 = tpu.transpose %283, [1, 0] : vector<64x8xf32> -> vector<8x64xf32>
    %cst_155 = arith.constant dense<0.000000e+00> : vector<8x64xf32>
    %285 = tpu.matmul %282, %284, %cst_155 {dimension_numbers = #tpu.dot_dimension_numbers<[1], [0], [0], [1], [0, 0, 1, 1], [], []>} : vector<8x8xf32>, vector<8x64xf32>, vector<8x64xf32> -> vector<8x64xf32>
    %286 = tpu.concatenate %273, %277, %281, %285 in 0 : vector<8x64xf32>, vector<8x64xf32>, vector<8x64xf32>, vector<8x64xf32> -> vector<32x64xf32>
    %cst_156 = arith.constant dense<0xFF800000> : vector<32xf32>
    %287 = vector.multi_reduction <maximumf>, %286, %cst_156 [1] : vector<32x64xf32> to vector<32xf32>
    %288 = vector.shape_cast %287 : vector<32xf32> to vector<32x1xf32>
    %289 = vector.broadcast %288 : vector<32x1xf32> to vector<32x64xf32>
    %290 = arith.subf %286, %289 : vector<32x64xf32>
    %291 = math.exp %290 : vector<32x64xf32>
    %cst_157 = arith.constant dense<0.000000e+00> : vector<32xf32>
    %292 = vector.multi_reduction <add>, %291, %cst_157 [1] : vector<32x64xf32> to vector<32xf32>
    %293 = vector.shape_cast %292 : vector<32xf32> to vector<32x1xf32>
    %294 = tpu.reciprocal %293 : vector<32x1xf32> -> vector<32x1xf32>
    %295 = vector.broadcast %294 : vector<32x1xf32> to vector<32x64xf32>
    %296 = arith.mulf %291, %295 : vector<32x64xf32>
    %297 = vector.extract_strided_slice %296 {offsets = [0, 0], sizes = [8, 64], strides = [1, 1]} : vector<32x64xf32> to vector<8x64xf32>
    %298 = vector.extract_strided_slice %269 {offsets = [0, 0], sizes = [64, 8], strides = [1, 1]} : vector<64x32xf32> to vector<64x8xf32>
    %cst_158 = arith.constant dense<0.000000e+00> : vector<8x8xf32>
    %299 = tpu.matmul %297, %298, %cst_158 {dimension_numbers = #tpu.dot_dimension_numbers<[1], [0], [0], [1], [0, 0, 1, 1], [], []>} : vector<8x64xf32>, vector<64x8xf32>, vector<8x8xf32> -> vector<8x8xf32>
    %300 = vector.extract_strided_slice %265 {offsets = [0, 0], sizes = [8, 32], strides = [1, 1]} : vector<32x32xf32> to vector<8x32xf32>
    %cst_159 = arith.constant dense<0.000000e+00> : vector<8x32xf32>
    %301 = tpu.matmul %299, %300, %cst_159 {dimension_numbers = #tpu.dot_dimension_numbers<[1], [0], [0], [1], [0, 0, 1, 1], [], []>} : vector<8x8xf32>, vector<8x32xf32>, vector<8x32xf32> -> vector<8x32xf32>
    %302 = arith.addf %258, %301 : vector<8x32xf32>
    %303 = vector.extract_strided_slice %296 {offsets = [8, 0], sizes = [8, 64], strides = [1, 1]} : vector<32x64xf32> to vector<8x64xf32>
    %304 = vector.extract_strided_slice %269 {offsets = [0, 8], sizes = [64, 8], strides = [1, 1]} : vector<64x32xf32> to vector<64x8xf32>
    %cst_160 = arith.constant dense<0.000000e+00> : vector<8x8xf32>
    %305 = tpu.matmul %303, %304, %cst_160 {dimension_numbers = #tpu.dot_dimension_numbers<[1], [0], [0], [1], [0, 0, 1, 1], [], []>} : vector<8x64xf32>, vector<64x8xf32>, vector<8x8xf32> -> vector<8x8xf32>
    %306 = vector.extract_strided_slice %265 {offsets = [8, 0], sizes = [8, 32], strides = [1, 1]} : vector<32x32xf32> to vector<8x32xf32>
    %cst_161 = arith.constant dense<0.000000e+00> : vector<8x32xf32>
    %307 = tpu.matmul %305, %306, %cst_161 {dimension_numbers = #tpu.dot_dimension_numbers<[1], [0], [0], [1], [0, 0, 1, 1], [], []>} : vector<8x8xf32>, vector<8x32xf32>, vector<8x32xf32> -> vector<8x32xf32>
    %308 = arith.addf %302, %307 : vector<8x32xf32>
    %309 = vector.extract_strided_slice %296 {offsets = [16, 0], sizes = [8, 64], strides = [1, 1]} : vector<32x64xf32> to vector<8x64xf32>
    %310 = vector.extract_strided_slice %269 {offsets = [0, 16], sizes = [64, 8], strides = [1, 1]} : vector<64x32xf32> to vector<64x8xf32>
    %cst_162 = arith.constant dense<0.000000e+00> : vector<8x8xf32>
    %311 = tpu.matmul %309, %310, %cst_162 {dimension_numbers = #tpu.dot_dimension_numbers<[1], [0], [0], [1], [0, 0, 1, 1], [], []>} : vector<8x64xf32>, vector<64x8xf32>, vector<8x8xf32> -> vector<8x8xf32>
    %312 = vector.extract_strided_slice %265 {offsets = [16, 0], sizes = [8, 32], strides = [1, 1]} : vector<32x32xf32> to vector<8x32xf32>
    %cst_163 = arith.constant dense<0.000000e+00> : vector<8x32xf32>
    %313 = tpu.matmul %311, %312, %cst_163 {dimension_numbers = #tpu.dot_dimension_numbers<[1], [0], [0], [1], [0, 0, 1, 1], [], []>} : vector<8x8xf32>, vector<8x32xf32>, vector<8x32xf32> -> vector<8x32xf32>
    %314 = arith.addf %308, %313 : vector<8x32xf32>
    %315 = vector.extract_strided_slice %296 {offsets = [24, 0], sizes = [8, 64], strides = [1, 1]} : vector<32x64xf32> to vector<8x64xf32>
    %316 = vector.extract_strided_slice %269 {offsets = [0, 24], sizes = [64, 8], strides = [1, 1]} : vector<64x32xf32> to vector<64x8xf32>
    %cst_164 = arith.constant dense<0.000000e+00> : vector<8x8xf32>
    %317 = tpu.matmul %315, %316, %cst_164 {dimension_numbers = #tpu.dot_dimension_numbers<[1], [0], [0], [1], [0, 0, 1, 1], [], []>} : vector<8x64xf32>, vector<64x8xf32>, vector<8x8xf32> -> vector<8x8xf32>
    %318 = vector.extract_strided_slice %265 {offsets = [24, 0], sizes = [8, 32], strides = [1, 1]} : vector<32x32xf32> to vector<8x32xf32>
    %cst_165 = arith.constant dense<0.000000e+00> : vector<8x32xf32>
    %319 = tpu.matmul %317, %318, %cst_165 {dimension_numbers = #tpu.dot_dimension_numbers<[1], [0], [0], [1], [0, 0, 1, 1], [], []>} : vector<8x8xf32>, vector<8x32xf32>, vector<8x32xf32> -> vector<8x32xf32>
    %320 = arith.addf %314, %319 : vector<8x32xf32>
    %cst_166 = arith.constant dense<0.000000e+00> : vector<64x32xf32>
    %321 = tpu.matmul %259, %261, %cst_166 {dimension_numbers = #tpu.dot_dimension_numbers<[1], [0], [0], [1], [0, 0, 1, 1], [], []>} : vector<64x32xf32>, vector<32x32xf32>, vector<64x32xf32> -> vector<64x32xf32>
    %cst_167 = arith.constant dense<0.000000e+00> : vector<8x64xf32>
    %322 = tpu.matmul %320, %263, %cst_167 {dimension_numbers = #tpu.dot_dimension_numbers<[1], [0], [0], [1], [0, 0, 1, 1], [], []>} : vector<8x32xf32>, vector<32x64xf32>, vector<8x64xf32> -> vector<8x64xf32>
    %323 = vector.extract_strided_slice %322 {offsets = [0, 0], sizes = [8, 32], strides = [1, 1]} : vector<8x64xf32> to vector<8x32xf32>
    %324 = vector.extract_strided_slice %322 {offsets = [0, 32], sizes = [8, 32], strides = [1, 1]} : vector<8x64xf32> to vector<8x32xf32>
    %325 = vector.extract_strided_slice %321 {offsets = [0, 0], sizes = [64, 8], strides = [1, 1]} : vector<64x32xf32> to vector<64x8xf32>
    %326 = vector.extract_strided_slice %323 {offsets = [0, 0], sizes = [8, 8], strides = [1, 1]} : vector<8x32xf32> to vector<8x8xf32>
    %327 = tpu.transpose %326, [1, 0] : vector<8x8xf32> -> vector<8x8xf32>
    %cst_168 = arith.constant dense<0.000000e+00> : vector<64x8xf32>
    %328 = tpu.matmul %325, %327, %cst_168 {dimension_numbers = #tpu.dot_dimension_numbers<[1], [0], [0], [1], [0, 0, 1, 1], [], []>} : vector<64x8xf32>, vector<8x8xf32>, vector<64x8xf32> -> vector<64x8xf32>
    %329 = vector.extract_strided_slice %321 {offsets = [0, 8], sizes = [64, 8], strides = [1, 1]} : vector<64x32xf32> to vector<64x8xf32>
    %330 = vector.extract_strided_slice %323 {offsets = [0, 8], sizes = [8, 8], strides = [1, 1]} : vector<8x32xf32> to vector<8x8xf32>
    %331 = tpu.transpose %330, [1, 0] : vector<8x8xf32> -> vector<8x8xf32>
    %cst_169 = arith.constant dense<0.000000e+00> : vector<64x8xf32>
    %332 = tpu.matmul %329, %331, %cst_169 {dimension_numbers = #tpu.dot_dimension_numbers<[1], [0], [0], [1], [0, 0, 1, 1], [], []>} : vector<64x8xf32>, vector<8x8xf32>, vector<64x8xf32> -> vector<64x8xf32>
    %333 = vector.extract_strided_slice %321 {offsets = [0, 16], sizes = [64, 8], strides = [1, 1]} : vector<64x32xf32> to vector<64x8xf32>
    %334 = vector.extract_strided_slice %323 {offsets = [0, 16], sizes = [8, 8], strides = [1, 1]} : vector<8x32xf32> to vector<8x8xf32>
    %335 = tpu.transpose %334, [1, 0] : vector<8x8xf32> -> vector<8x8xf32>
    %cst_170 = arith.constant dense<0.000000e+00> : vector<64x8xf32>
    %336 = tpu.matmul %333, %335, %cst_170 {dimension_numbers = #tpu.dot_dimension_numbers<[1], [0], [0], [1], [0, 0, 1, 1], [], []>} : vector<64x8xf32>, vector<8x8xf32>, vector<64x8xf32> -> vector<64x8xf32>
    %337 = vector.extract_strided_slice %321 {offsets = [0, 24], sizes = [64, 8], strides = [1, 1]} : vector<64x32xf32> to vector<64x8xf32>
    %338 = vector.extract_strided_slice %323 {offsets = [0, 24], sizes = [8, 8], strides = [1, 1]} : vector<8x32xf32> to vector<8x8xf32>
    %339 = tpu.transpose %338, [1, 0] : vector<8x8xf32> -> vector<8x8xf32>
    %cst_171 = arith.constant dense<0.000000e+00> : vector<64x8xf32>
    %340 = tpu.matmul %337, %339, %cst_171 {dimension_numbers = #tpu.dot_dimension_numbers<[1], [0], [0], [1], [0, 0, 1, 1], [], []>} : vector<64x8xf32>, vector<8x8xf32>, vector<64x8xf32> -> vector<64x8xf32>
    %341 = tpu.concatenate %328, %332, %336, %340 in 0 : vector<64x8xf32>, vector<64x8xf32>, vector<64x8xf32>, vector<64x8xf32> -> vector<256x8xf32>
    %cst_172 = arith.constant dense<0xFF800000> : vector<256xf32>
    %342 = vector.multi_reduction <maximumf>, %341, %cst_172 [1] : vector<256x8xf32> to vector<256xf32>
    %343 = vector.shape_cast %342 : vector<256xf32> to vector<256x1xf32>
    %344 = vector.broadcast %343 : vector<256x1xf32> to vector<256x8xf32>
    %345 = arith.subf %341, %344 : vector<256x8xf32>
    %346 = math.exp %345 : vector<256x8xf32>
    %cst_173 = arith.constant dense<0.000000e+00> : vector<256xf32>
    %347 = vector.multi_reduction <add>, %346, %cst_173 [1] : vector<256x8xf32> to vector<256xf32>
    %348 = vector.shape_cast %347 : vector<256xf32> to vector<256x1xf32>
    %349 = tpu.reciprocal %348 : vector<256x1xf32> -> vector<256x1xf32>
    %350 = vector.broadcast %349 : vector<256x1xf32> to vector<256x8xf32>
    %351 = arith.mulf %346, %350 : vector<256x8xf32>
    %352 = vector.extract_strided_slice %351 {offsets = [0, 0], sizes = [64, 8], strides = [1, 1]} : vector<256x8xf32> to vector<64x8xf32>
    %353 = vector.extract_strided_slice %324 {offsets = [0, 0], sizes = [8, 8], strides = [1, 1]} : vector<8x32xf32> to vector<8x8xf32>
    %cst_174 = arith.constant dense<0.000000e+00> : vector<64x8xf32>
    %354 = tpu.matmul %352, %353, %cst_174 {dimension_numbers = #tpu.dot_dimension_numbers<[1], [0], [0], [1], [0, 0, 1, 1], [], []>} : vector<64x8xf32>, vector<8x8xf32>, vector<64x8xf32> -> vector<64x8xf32>
    %355 = vector.extract_strided_slice %265 {offsets = [0, 0], sizes = [8, 32], strides = [1, 1]} : vector<32x32xf32> to vector<8x32xf32>
    %cst_175 = arith.constant dense<0.000000e+00> : vector<64x32xf32>
    %356 = tpu.matmul %354, %355, %cst_175 {dimension_numbers = #tpu.dot_dimension_numbers<[1], [0], [0], [1], [0, 0, 1, 1], [], []>} : vector<64x8xf32>, vector<8x32xf32>, vector<64x32xf32> -> vector<64x32xf32>
    %357 = arith.addf %259, %356 : vector<64x32xf32>
    %358 = vector.extract_strided_slice %351 {offsets = [64, 0], sizes = [64, 8], strides = [1, 1]} : vector<256x8xf32> to vector<64x8xf32>
    %359 = vector.extract_strided_slice %324 {offsets = [0, 8], sizes = [8, 8], strides = [1, 1]} : vector<8x32xf32> to vector<8x8xf32>
    %cst_176 = arith.constant dense<0.000000e+00> : vector<64x8xf32>
    %360 = tpu.matmul %358, %359, %cst_176 {dimension_numbers = #tpu.dot_dimension_numbers<[1], [0], [0], [1], [0, 0, 1, 1], [], []>} : vector<64x8xf32>, vector<8x8xf32>, vector<64x8xf32> -> vector<64x8xf32>
    %361 = vector.extract_strided_slice %265 {offsets = [8, 0], sizes = [8, 32], strides = [1, 1]} : vector<32x32xf32> to vector<8x32xf32>
    %cst_177 = arith.constant dense<0.000000e+00> : vector<64x32xf32>
    %362 = tpu.matmul %360, %361, %cst_177 {dimension_numbers = #tpu.dot_dimension_numbers<[1], [0], [0], [1], [0, 0, 1, 1], [], []>} : vector<64x8xf32>, vector<8x32xf32>, vector<64x32xf32> -> vector<64x32xf32>
    %363 = arith.addf %357, %362 : vector<64x32xf32>
    %364 = vector.extract_strided_slice %351 {offsets = [128, 0], sizes = [64, 8], strides = [1, 1]} : vector<256x8xf32> to vector<64x8xf32>
    %365 = vector.extract_strided_slice %324 {offsets = [0, 16], sizes = [8, 8], strides = [1, 1]} : vector<8x32xf32> to vector<8x8xf32>
    %cst_178 = arith.constant dense<0.000000e+00> : vector<64x8xf32>
    %366 = tpu.matmul %364, %365, %cst_178 {dimension_numbers = #tpu.dot_dimension_numbers<[1], [0], [0], [1], [0, 0, 1, 1], [], []>} : vector<64x8xf32>, vector<8x8xf32>, vector<64x8xf32> -> vector<64x8xf32>
    %367 = vector.extract_strided_slice %265 {offsets = [16, 0], sizes = [8, 32], strides = [1, 1]} : vector<32x32xf32> to vector<8x32xf32>
    %cst_179 = arith.constant dense<0.000000e+00> : vector<64x32xf32>
    %368 = tpu.matmul %366, %367, %cst_179 {dimension_numbers = #tpu.dot_dimension_numbers<[1], [0], [0], [1], [0, 0, 1, 1], [], []>} : vector<64x8xf32>, vector<8x32xf32>, vector<64x32xf32> -> vector<64x32xf32>
    %369 = arith.addf %363, %368 : vector<64x32xf32>
    %370 = vector.extract_strided_slice %351 {offsets = [192, 0], sizes = [64, 8], strides = [1, 1]} : vector<256x8xf32> to vector<64x8xf32>
    %371 = vector.extract_strided_slice %324 {offsets = [0, 24], sizes = [8, 8], strides = [1, 1]} : vector<8x32xf32> to vector<8x8xf32>
    %cst_180 = arith.constant dense<0.000000e+00> : vector<64x8xf32>
    %372 = tpu.matmul %370, %371, %cst_180 {dimension_numbers = #tpu.dot_dimension_numbers<[1], [0], [0], [1], [0, 0, 1, 1], [], []>} : vector<64x8xf32>, vector<8x8xf32>, vector<64x8xf32> -> vector<64x8xf32>
    %373 = vector.extract_strided_slice %265 {offsets = [24, 0], sizes = [8, 32], strides = [1, 1]} : vector<32x32xf32> to vector<8x32xf32>
    %cst_181 = arith.constant dense<0.000000e+00> : vector<64x32xf32>
    %374 = tpu.matmul %372, %373, %cst_181 {dimension_numbers = #tpu.dot_dimension_numbers<[1], [0], [0], [1], [0, 0, 1, 1], [], []>} : vector<64x8xf32>, vector<8x32xf32>, vector<64x32xf32> -> vector<64x32xf32>
    %375 = arith.addf %369, %374 : vector<64x32xf32>
    %c1_182 = arith.constant 1 : index
    %c0_183 = arith.constant 0 : index
    %c0_184 = arith.constant 0 : index
    %376 = vector.load %arg9[%c1_182, %c0_183, %c0_184] : memref<2x1x32xf32, #tpu.memory_space<vmem>>, vector<1x1x32xf32>
    %377 = vector.shape_cast %376 : vector<1x1x32xf32> to vector<1x32xf32>
    %c1_185 = arith.constant 1 : index
    %c0_186 = arith.constant 0 : index
    %c0_187 = arith.constant 0 : index
    %378 = vector.load %arg10[%c1_185, %c0_186, %c0_187] : memref<2x1x32xf32, #tpu.memory_space<vmem>>, vector<1x1x32xf32>
    %379 = vector.shape_cast %378 : vector<1x1x32xf32> to vector<1x32xf32>
    %cst_188 = arith.constant dense<0.000000e+00> : vector<64xf32>
    %380 = vector.multi_reduction <add>, %375, %cst_188 [1] : vector<64x32xf32> to vector<64xf32>
    %381 = vector.shape_cast %380 : vector<64xf32> to vector<64x1xf32>
    %cst_189 = arith.constant 3.200000e+01 : f32
    %382 = vector.broadcast %cst_189 : f32 to vector<64x1xf32>
    %383 = arith.divf %381, %382 : vector<64x1xf32>
    %384 = vector.broadcast %383 : vector<64x1xf32> to vector<64x32xf32>
    %385 = arith.subf %375, %384 : vector<64x32xf32>
    %386 = arith.mulf %385, %385 : vector<64x32xf32>
    %cst_190 = arith.constant dense<0.000000e+00> : vector<64xf32>
    %387 = vector.multi_reduction <add>, %386, %cst_190 [1] : vector<64x32xf32> to vector<64xf32>
    %388 = vector.shape_cast %387 : vector<64xf32> to vector<64x1xf32>
    %cst_191 = arith.constant 3.200000e+01 : f32
    %389 = vector.broadcast %cst_191 : f32 to vector<64x1xf32>
    %390 = arith.divf %388, %389 : vector<64x1xf32>
    %391 = vector.broadcast %383 : vector<64x1xf32> to vector<64x32xf32>
    %392 = arith.subf %375, %391 : vector<64x32xf32>
    %cst_192 = arith.constant 9.99999974E-6 : f32
    %393 = vector.broadcast %cst_192 : f32 to vector<64x1xf32>
    %394 = arith.addf %390, %393 : vector<64x1xf32>
    %395 = math.rsqrt %394 : vector<64x1xf32>
    %396 = vector.broadcast %395 : vector<64x1xf32> to vector<64x32xf32>
    %397 = arith.mulf %392, %396 : vector<64x32xf32>
    %398 = vector.broadcast %377 : vector<1x32xf32> to vector<64x32xf32>
    %399 = arith.mulf %397, %398 : vector<64x32xf32>
    %400 = vector.broadcast %379 : vector<1x32xf32> to vector<64x32xf32>
    %401 = arith.addf %399, %400 : vector<64x32xf32>
    %c1_193 = arith.constant 1 : index
    %c0_194 = arith.constant 0 : index
    %c0_195 = arith.constant 0 : index
    %402 = vector.load %arg5[%c1_193, %c0_194, %c0_195] : memref<2x32x32xf32, #tpu.memory_space<vmem>>, vector<1x32x32xf32>
    %403 = vector.shape_cast %402 : vector<1x32x32xf32> to vector<32x32xf32>
    %cst_196 = arith.constant dense<0.000000e+00> : vector<64x32xf32>
    %404 = tpu.matmul %401, %403, %cst_196 {dimension_numbers = #tpu.dot_dimension_numbers<[1], [0], [0], [1], [0, 0, 1, 1], [], []>} : vector<64x32xf32>, vector<32x32xf32>, vector<64x32xf32> -> vector<64x32xf32>
    %c1_197 = arith.constant 1 : index
    %c0_198 = arith.constant 0 : index
    %c0_199 = arith.constant 0 : index
    %405 = vector.load %arg6[%c1_197, %c0_198, %c0_199] : memref<2x1x32xf32, #tpu.memory_space<vmem>>, vector<1x1x32xf32>
    %406 = vector.shape_cast %405 : vector<1x1x32xf32> to vector<1x32xf32>
    %407 = vector.broadcast %406 : vector<1x32xf32> to vector<64x32xf32>
    %408 = arith.addf %404, %407 : vector<64x32xf32>
    %cst_200 = arith.constant 0.000000e+00 : f32
    %409 = vector.broadcast %cst_200 : f32 to vector<64x32xf32>
    %410 = arith.maximumf %408, %409 : vector<64x32xf32>
    %c1_201 = arith.constant 1 : index
    %c0_202 = arith.constant 0 : index
    %c0_203 = arith.constant 0 : index
    %411 = vector.load %arg7[%c1_201, %c0_202, %c0_203] : memref<2x32x32xf32, #tpu.memory_space<vmem>>, vector<1x32x32xf32>
    %412 = vector.shape_cast %411 : vector<1x32x32xf32> to vector<32x32xf32>
    %cst_204 = arith.constant dense<0.000000e+00> : vector<64x32xf32>
    %413 = tpu.matmul %410, %412, %cst_204 {dimension_numbers = #tpu.dot_dimension_numbers<[1], [0], [0], [1], [0, 0, 1, 1], [], []>} : vector<64x32xf32>, vector<32x32xf32>, vector<64x32xf32> -> vector<64x32xf32>
    %c1_205 = arith.constant 1 : index
    %c0_206 = arith.constant 0 : index
    %c0_207 = arith.constant 0 : index
    %414 = vector.load %arg8[%c1_205, %c0_206, %c0_207] : memref<2x1x32xf32, #tpu.memory_space<vmem>>, vector<1x1x32xf32>
    %415 = vector.shape_cast %414 : vector<1x1x32xf32> to vector<1x32xf32>
    %416 = vector.broadcast %415 : vector<1x32xf32> to vector<64x32xf32>
    %417 = arith.addf %413, %416 : vector<64x32xf32>
    %cst_208 = arith.constant 0.000000e+00 : f32
    %418 = vector.broadcast %cst_208 : f32 to vector<64x32xf32>
    %419 = arith.maximumf %417, %418 : vector<64x32xf32>
    %420 = arith.addf %401, %419 : vector<64x32xf32>
    %c1_209 = arith.constant 1 : index
    %c0_210 = arith.constant 0 : index
    %c0_211 = arith.constant 0 : index
    %421 = vector.load %arg11[%c1_209, %c0_210, %c0_211] : memref<2x1x32xf32, #tpu.memory_space<vmem>>, vector<1x1x32xf32>
    %422 = vector.shape_cast %421 : vector<1x1x32xf32> to vector<1x32xf32>
    %c1_212 = arith.constant 1 : index
    %c0_213 = arith.constant 0 : index
    %c0_214 = arith.constant 0 : index
    %423 = vector.load %arg12[%c1_212, %c0_213, %c0_214] : memref<2x1x32xf32, #tpu.memory_space<vmem>>, vector<1x1x32xf32>
    %424 = vector.shape_cast %423 : vector<1x1x32xf32> to vector<1x32xf32>
    %cst_215 = arith.constant dense<0.000000e+00> : vector<64xf32>
    %425 = vector.multi_reduction <add>, %420, %cst_215 [1] : vector<64x32xf32> to vector<64xf32>
    %426 = vector.shape_cast %425 : vector<64xf32> to vector<64x1xf32>
    %cst_216 = arith.constant 3.200000e+01 : f32
    %427 = vector.broadcast %cst_216 : f32 to vector<64x1xf32>
    %428 = arith.divf %426, %427 : vector<64x1xf32>
    %429 = vector.broadcast %428 : vector<64x1xf32> to vector<64x32xf32>
    %430 = arith.subf %420, %429 : vector<64x32xf32>
    %431 = arith.mulf %430, %430 : vector<64x32xf32>
    %cst_217 = arith.constant dense<0.000000e+00> : vector<64xf32>
    %432 = vector.multi_reduction <add>, %431, %cst_217 [1] : vector<64x32xf32> to vector<64xf32>
    %433 = vector.shape_cast %432 : vector<64xf32> to vector<64x1xf32>
    %cst_218 = arith.constant 3.200000e+01 : f32
    %434 = vector.broadcast %cst_218 : f32 to vector<64x1xf32>
    %435 = arith.divf %433, %434 : vector<64x1xf32>
    %436 = vector.broadcast %428 : vector<64x1xf32> to vector<64x32xf32>
    %437 = arith.subf %420, %436 : vector<64x32xf32>
    %cst_219 = arith.constant 9.99999974E-6 : f32
    %438 = vector.broadcast %cst_219 : f32 to vector<64x1xf32>
    %439 = arith.addf %435, %438 : vector<64x1xf32>
    %440 = math.rsqrt %439 : vector<64x1xf32>
    %441 = vector.broadcast %440 : vector<64x1xf32> to vector<64x32xf32>
    %442 = arith.mulf %437, %441 : vector<64x32xf32>
    %443 = vector.broadcast %422 : vector<1x32xf32> to vector<64x32xf32>
    %444 = arith.mulf %442, %443 : vector<64x32xf32>
    %445 = vector.broadcast %424 : vector<1x32xf32> to vector<64x32xf32>
    %446 = arith.addf %444, %445 : vector<64x32xf32>
    %cst_220 = arith.constant 5.000000e-01 : f32
    %447 = vector.broadcast %cst_220 : f32 to vector<64x32xf32>
    %448 = arith.mulf %446, %447 : vector<64x32xf32>
    %c0_221 = arith.constant 0 : index
    %c0_222 = arith.constant 0 : index
    %449 = vector.load %arg13[%c0_221, %c0_222] : memref<64x32xf32, #tpu.memory_space<vmem>>, vector<64x32xf32>
    tpu.vector_store %arg13[%c0_221, %c0_222], %448 {strides = array<i32>} : memref<64x32xf32, #tpu.memory_space<vmem>>, vector<64x32xf32>,
    return
  }
}

</mosaic_0001>

<llo_original>
// kernel: tpu_custom_call.1
$region0: #{tpu_custom_call.1}
  #allocation0 [shape = 'u32[]', space=smem, size = 0x4, offset = 0x4, fixed_abs, tag = 'smem constant byte address 0x4 - core index']
  #allocation1 [shape = 'u32[144,128]{1,0:T(1,128)}', space=vmem, size = 0x12000, scoped, tag = 'internal scratch']
  #allocation2 [shape = 'f32[8,32]{1,0:T(8,128)}', space=vmem, size = 0x1000, scoped, tag = 'scratch operand']
  %s0 = inlined_call_operand.vmem [shape: s32[16], index: 0, kind: input, shape index: {}]
  %s1 = inlined_call_operand.vmem [shape: f32[64,32], index: 1, kind: input, shape index: {}]
  %s2 = inlined_call_operand.vmem [shape: f32[2,32,32], index: 2, kind: input, shape index: {}]
  %s3 = inlined_call_operand.hbm [shape: f32[2,32,64], index: 3, kind: input, shape index: {}]
  %s4 = inlined_call_operand.hbm [shape: f32[2,32,32], index: 4, kind: input, shape index: {}]
  %s5 = inlined_call_operand.hbm [shape: f32[2,32,32], index: 5, kind: input, shape index: {}]
  %s6 = inlined_call_operand.vmem [shape: f32[2,1,32], index: 6, kind: input, shape index: {}]
  %s7 = inlined_call_operand.hbm [shape: f32[2,32,32], index: 7, kind: input, shape index: {}]
  %s8 = inlined_call_operand.vmem [shape: f32[2,1,32], index: 8, kind: input, shape index: {}]
  %s9 = inlined_call_operand.vmem [shape: f32[2,1,32], index: 9, kind: input, shape index: {}]
  %s10 = inlined_call_operand.vmem [shape: f32[2,1,32], index: 10, kind: input, shape index: {}]
  %s11 = inlined_call_operand.vmem [shape: f32[2,1,32], index: 11, kind: input, shape index: {}]
  %s12 = inlined_call_operand.vmem [shape: f32[2,1,32], index: 12, kind: input, shape index: {}]
  %s13 = inlined_call_operand.vmem [shape: f32[64,32], index: 13, kind: output, shape index: {}]
  %s14 = sld [smem:[#allocation0]]
  $region82: #{tpu_custom_call.1} parent=0
    _
  %s16 = ssub.s32 1, %s14
  %s17 = scalar_select 0, %s16, %s14
  $region1: #{tpu_custom_call.1} parent=0
    #allocation3 [shape = 'u8[512]{0}', space=smem, size = 0x200, scoped, tag = 'input window, operand 0, single buffered']
    #allocation4 [shape = 's32[1]{0}', space=sflag, size = 0x4, scoped, tag = 'scoped memory for tpu_custom_call.1']
    #allocation5 [shape = 's32[1]{0}', space=sflag, size = 0x4, scoped, tag = 'scoped memory for tpu_custom_call.1']
    #allocation6 [shape = 'u8[32768]{0}', space=vmem, size = 0x8000, scoped, tag = 'input window, operand 3, single buffered']
    #allocation7 [shape = 'u8[32768]{0}', space=vmem, size = 0x8000, scoped, tag = 'input window, operand 4, single buffered']
    #allocation8 [shape = 's32[1]{0}', space=sflag, size = 0x4, scoped, tag = 'scoped memory for tpu_custom_call.1']
    #allocation9 [shape = 'u8[32768]{0}', space=vmem, size = 0x8000, scoped, tag = 'input window, operand 5, single buffered']
    #allocation10 [shape = 'u8[32768]{0}', space=vmem, size = 0x8000, scoped, tag = 'input window, operand 7, single buffered']
    #allocation11 [shape = 's32[1]{0}', space=sflag, size = 0x4, scoped, tag = 'scoped memory for tpu_custom_call.1']
    %18 = vsyncpa [#allocation5], 0
    %19 = vsyncpa [#allocation4], 0
    %20 = vsyncpa [#allocation8], 0
    %21 = vsyncpa [#allocation11], 0
    // Predicated region
    $region2: #{tpu_custom_call.1} parent=1 // pred_check
      _
    $region3: #{tpu_custom_call.1} parent=1 // pred_check_branch
      %23 = sbr.rel (0) target = $region5
    $region4: #{tpu_custom_call.1} parent=1 // pred_region
      %s25 = ssub.s32 16, 16
      %26 = vsyncadd [#allocation5], %s25
      %s28 = sshll.u32 %s0, 4
      %s29 = int_to_ptr.vmem [resolvable:$true] %s28
      %31 = dma.vmem_to_smem %s29, 16, [#allocation3], [#allocation5]
    $region5: #{tpu_custom_call.1} parent=1 // pred_fallthru
      _
    // Predicated region
    $region6: #{tpu_custom_call.1} parent=1 // pred_check
      _
    $region7: #{tpu_custom_call.1} parent=1 // pred_check_branch
      %33 = sbr.rel (0) target = $region9
    $region8: #{tpu_custom_call.1} parent=1 // pred_region
      _
    $region9: #{tpu_custom_call.1} parent=1 // pred_fallthru
      _
    // Predicated region
    $region10: #{tpu_custom_call.1} parent=1 // pred_check
      _
    $region11: #{tpu_custom_call.1} parent=1 // pred_check_branch
      %35 = sbr.rel (0) target = $region13
    $region12: #{tpu_custom_call.1} parent=1 // pred_region
      _
    $region13: #{tpu_custom_call.1} parent=1 // pred_fallthru
      _
    // Predicated region
    $region14: #{tpu_custom_call.1} parent=1 // pred_check
      _
    $region15: #{tpu_custom_call.1} parent=1 // pred_check_branch
      %37 = sbr.rel (0) target = $region17
    $region16: #{tpu_custom_call.1} parent=1 // pred_region
      %s39 = ssub.s32 1024, 1024
      %40 = vsyncadd [#allocation4], %s39
      %s41 = sshll.u32 [#allocation6], 4
      %s42 = int_to_ptr.vmem [resolvable:$true] %s41
      %47 = dma.hbm_to_vmem [thread:$0]  %s3, 1024, %s42, [#allocation4], 128, 128, 8
    $region17: #{tpu_custom_call.1} parent=1 // pred_fallthru
      _
    // Predicated region
    $region18: #{tpu_custom_call.1} parent=1 // pred_check
      _
    $region19: #{tpu_custom_call.1} parent=1 // pred_check_branch
      %49 = sbr.rel (0) target = $region21
    $region20: #{tpu_custom_call.1} parent=1 // pred_region
      %s51 = ssub.s32 1024, 1024
      %52 = vsyncadd [#allocation8], %s51
      %s53 = sshll.u32 [#allocation7], 4
      %s54 = int_to_ptr.vmem [resolvable:$true] %s53
      %59 = dma.hbm_to_vmem [thread:$0]  %s4, 1024, %s54, [#allocation8], 128, 128, 8
    $region21: #{tpu_custom_call.1} parent=1 // pred_fallthru
      _
    // Predicated region
    $region22: #{tpu_custom_call.1} parent=1 // pred_check
      _
    $region23: #{tpu_custom_call.1} parent=1 // pred_check_branch
      %61 = sbr.rel (0) target = $region25
    $region24: #{tpu_custom_call.1} parent=1 // pred_region
      %s63 = ssub.s32 1024, 1024
      %64 = vsyncadd [#allocation8], %s63
      %s65 = sshll.u32 [#allocation9], 4
      %s66 = int_to_ptr.vmem [resolvable:$true] %s65
      %71 = dma.hbm_to_vmem [thread:$0]  %s5, 1024, %s66, [#allocation8], 128, 128, 8
    $region25: #{tpu_custom_call.1} parent=1 // pred_fallthru
      _
    // Predicated region
    $region26: #{tpu_custom_call.1} parent=1 // pred_check
      _
    $region27: #{tpu_custom_call.1} parent=1 // pred_check_branch
      %73 = sbr.rel (0) target = $region29
    $region28: #{tpu_custom_call.1} parent=1 // pred_region
      _
    $region29: #{tpu_custom_call.1} parent=1 // pred_fallthru
      _
    // Predicated region
    $region30: #{tpu_custom_call.1} parent=1 // pred_check
      _
    $region31: #{tpu_custom_call.1} parent=1 // pred_check_branch
      %75 = sbr.rel (0) target = $region33
    $region32: #{tpu_custom_call.1} parent=1 // pred_region
      %s77 = ssub.s32 1024, 1024
      %78 = vsyncadd [#allocation11], %s77
      %s79 = sshll.u32 [#allocation10], 4
      %s80 = int_to_ptr.vmem [resolvable:$true] %s79
      %85 = dma.hbm_to_vmem [thread:$0]  %s7, 1024, %s80, [#allocation11], 128, 128, 8
    $region33: #{tpu_custom_call.1} parent=1 // pred_fallthru
      _
    // Predicated region
    $region34: #{tpu_custom_call.1} parent=1 // pred_check
      _
    $region35: #{tpu_custom_call.1} parent=1 // pred_check_branch
      %87 = sbr.rel (0) target = $region37
    $region36: #{tpu_custom_call.1} parent=1 // pred_region
      _
    $region37: #{tpu_custom_call.1} parent=1 // pred_fallthru
      _
    // Predicated region
    $region38: #{tpu_custom_call.1} parent=1 // pred_check
      _
    $region39: #{tpu_custom_call.1} parent=1 // pred_check_branch
      %89 = sbr.rel (0) target = $region41
    $region40: #{tpu_custom_call.1} parent=1 // pred_region
      _
    $region41: #{tpu_custom_call.1} parent=1 // pred_fallthru
      _
    // Predicated region
    $region42: #{tpu_custom_call.1} parent=1 // pred_check
      _
    $region43: #{tpu_custom_call.1} parent=1 // pred_check_branch
      %91 = sbr.rel (0) target = $region45
    $region44: #{tpu_custom_call.1} parent=1 // pred_region
      _
    $region45: #{tpu_custom_call.1} parent=1 // pred_fallthru
      _
    // Predicated region
    $region46: #{tpu_custom_call.1} parent=1 // pred_check
      _
    $region47: #{tpu_custom_call.1} parent=1 // pred_check_branch
      %93 = sbr.rel (0) target = $region49
    $region48: #{tpu_custom_call.1} parent=1 // pred_region
      _
    $region49: #{tpu_custom_call.1} parent=1 // pred_fallthru
      _
    // Predicated region
    $region50: #{tpu_custom_call.1} parent=1 // pred_check
      _
    $region51: #{tpu_custom_call.1} parent=1 // pred_check_branch
      %95 = sbr.rel (0) target = $region53
    $region52: #{tpu_custom_call.1} parent=1 // pred_region
      _
    $region53: #{tpu_custom_call.1} parent=1 // pred_fallthru
      _
    // Predicated region
    $region54: #{tpu_custom_call.1} parent=1 // pred_check
      _
    $region55: #{tpu_custom_call.1} parent=1 // pred_check_branch
      %97 = sbr.rel (0) target = $region57
    $region56: #{tpu_custom_call.1} parent=1 // pred_region
      %98 = dma.done [#allocation5], 16
    $region57: #{tpu_custom_call.1} parent=1 // pred_fallthru
      _
    // Predicated region
    $region58: #{tpu_custom_call.1} parent=1 // pred_check
      _
    $region59: #{tpu_custom_call.1} parent=1 // pred_check_branch
      %100 = sbr.rel (0) target = $region61
    $region60: #{tpu_custom_call.1} parent=1 // pred_region
      %101 = dma.done [#allocation4], 1024
    $region61: #{tpu_custom_call.1} parent=1 // pred_fallthru
      _
    // Predicated region
    $region62: #{tpu_custom_call.1} parent=1 // pred_check
      _
    $region63: #{tpu_custom_call.1} parent=1 // pred_check_branch
      %103 = sbr.rel (0) target = $region65
    $region64: #{tpu_custom_call.1} parent=1 // pred_region
      %104 = dma.done [#allocation8], 1024
    $region65: #{tpu_custom_call.1} parent=1 // pred_fallthru
      _
    // Predicated region
    $region66: #{tpu_custom_call.1} parent=1 // pred_check
      _
    $region67: #{tpu_custom_call.1} parent=1 // pred_check_branch
      %106 = sbr.rel (0) target = $region69
    $region68: #{tpu_custom_call.1} parent=1 // pred_region
      %107 = dma.done [#allocation8], 1024
    $region69: #{tpu_custom_call.1} parent=1 // pred_fallthru
      _
    // Predicated region
    $region70: #{tpu_custom_call.1} parent=1 // pred_check
      _
    $region71: #{tpu_custom_call.1} parent=1 // pred_check_branch
      %109 = sbr.rel (0) target = $region73
    $region72: #{tpu_custom_call.1} parent=1 // pred_region
      %110 = dma.done [#allocation11], 1024
    $region73: #{tpu_custom_call.1} parent=1 // pred_fallthru
      _
    %111 = sfence
    %v112 = vld [vmem:[%s1] sm:$0xff]
    %v113 = vld [vmem:[%s1 + $0x8] sm:$0xff]
    %v114 = vld [vmem:[%s1 + $0x10] sm:$0xff]
    %v115 = vld [vmem:[%s1 + $0x18] sm:$0xff]
    %v116 = vld [vmem:[%s1 + $0x20] sm:$0xff]
    %v117 = vld [vmem:[%s1 + $0x28] sm:$0xff]
    %v118 = vld [vmem:[%s1 + $0x30] sm:$0xff]
    %v119 = vld [vmem:[%s1 + $0x38] sm:$0xff]
    %vm120 = vcmask 261120
    %121 = vst.msk [vmem:[%s13] sm:$0xff] %vm120, %v112
    %122 = vst.msk [vmem:[%s13 + $0x8] sm:$0xff] %vm120, %v113
    %123 = vst.msk [vmem:[%s13 + $0x10] sm:$0xff] %vm120, %v114
    %124 = vst.msk [vmem:[%s13 + $0x18] sm:$0xff] %vm120, %v115
    %125 = vst.msk [vmem:[%s13 + $0x20] sm:$0xff] %vm120, %v116
    %126 = vst.msk [vmem:[%s13 + $0x28] sm:$0xff] %vm120, %v117
    %127 = vst.msk [vmem:[%s13 + $0x30] sm:$0xff] %vm120, %v118
    %128 = vst.msk [vmem:[%s13 + $0x38] sm:$0xff] %vm120, %v119
    %s129 = sld [smem:[#allocation3]]
    %s130 = scalar_lea.vmem %s13, %s129
    %v131 = vld [vmem:[%s130] sm:$0x1]
    %vm132 = vcmask 253952
    %133 = vst.msk [vmem:[#allocation2] sm:$0x1] %vm132, %v131
    %s134 = sld [smem:[#allocation3 + $0x1]]
    %s135 = scalar_lea.vmem %s13, %s134
    %v136 = vld [vmem:[%s135] sm:$0x1]
    %137 = vst.msk [vmem:[#allocation2 + $0x1] sm:$0x1] %vm132, %v136
    %s138 = sld [smem:[#allocation3 + $0x2]]
    %s139 = scalar_lea.vmem %s13, %s138
    %v140 = vld [vmem:[%s139] sm:$0x1]
    %141 = vst.msk [vmem:[#allocation2 + $0x2] sm:$0x1] %vm132, %v140
    %s142 = sld [smem:[#allocation3 + $0x3]]
    %s143 = scalar_lea.vmem %s13, %s142
    %v144 = vld [vmem:[%s143] sm:$0x1]
    %145 = vst.msk [vmem:[#allocation2 + $0x3] sm:$0x1] %vm132, %v144
    %s146 = sld [smem:[#allocation3 + $0x4]]
    %s147 = scalar_lea.vmem %s13, %s146
    %v148 = vld [vmem:[%s147] sm:$0x1]
    %149 = vst.msk [vmem:[#allocation2 + $0x4] sm:$0x1] %vm132, %v148
    %s150 = sld [smem:[#allocation3 + $0x5]]
    %s151 = scalar_lea.vmem %s13, %s150
    %v152 = vld [vmem:[%s151] sm:$0x1]
    %153 = vst.msk [vmem:[#allocation2 + $0x5] sm:$0x1] %vm132, %v152
    %s154 = sld [smem:[#allocation3 + $0x6]]
    %s155 = scalar_lea.vmem %s13, %s154
    %v156 = vld [vmem:[%s155] sm:$0x1]
    %157 = vst.msk [vmem:[#allocation2 + $0x6] sm:$0x1] %vm132, %v156
    %s158 = sld [smem:[#allocation3 + $0x7]]
    %s159 = scalar_lea.vmem %s13, %s158
    %v160 = vld [vmem:[%s159] sm:$0x1]
    %161 = vst.msk [vmem:[#allocation2 + $0x7] sm:$0x1] %vm132, %v160
    %v162 = vld [vmem:[#allocation2] sm:$0xff]
    %v163 = vld [vmem:[%s13] sm:$0xff]
    %v164 = vld [vmem:[%s13 + $0x8] sm:$0xff]
    %v165 = vld [vmem:[%s13 + $0x10] sm:$0xff]
    %v166 = vld [vmem:[%s13 + $0x18] sm:$0xff]
    %v167 = vld [vmem:[%s13 + $0x20] sm:$0xff]
    %v168 = vld [vmem:[%s13 + $0x28] sm:$0xff]
    %v169 = vld [vmem:[%s13 + $0x30] sm:$0xff]
    %v170 = vld [vmem:[%s13 + $0x38] sm:$0xff]
    %v171 = vld [vmem:[%s2] sm:$0xff]
    %v172 = vld [vmem:[%s2 + $0x8] sm:$0xff]
    %v173 = vld [vmem:[%s2 + $0x10] sm:$0xff]
    %v174 = vld [vmem:[%s2 + $0x18] sm:$0xff]
    %v175 = vld [vmem:[#allocation6] sm:$0xff]
    %v176 = vld [vmem:[#allocation6 + $0x8] sm:$0xff]
    %v177 = vld [vmem:[#allocation6 + $0x10] sm:$0xff]
    %v178 = vld [vmem:[#allocation6 + $0x18] sm:$0xff]
    %v179 = vld [vmem:[#allocation7] sm:$0xff]
    %v180 = vld [vmem:[#allocation7 + $0x8] sm:$0xff]
    %v181 = vld [vmem:[#allocation7 + $0x10] sm:$0xff]
    %v182 = vld [vmem:[#allocation7 + $0x18] sm:$0xff]
    %v184 = vsel %vm120, %v162, 0
    %186 = vmatprep.subr.mxu0 0.0
    %187 = vmatpush1.msra.mxu0 %v171
    %188 = vmatprep.subr.mxu0 0.0
    %189 = vmatpush1.msra.mxu0 %v172
    %190 = vmatprep.subr.mxu0 0.0
    %191 = vmatpush1.msra.mxu0 %v173
    %192 = vmatprep.subr.mxu0 0.0
    %193 = vmatpush1.msra.mxu0 %v174
    %194 = vmatprep.subr.mxu0 0.0
    %195 = vmatpush1.msra.mxu0 0.0
    %196 = vmatprep.subr.mxu0 0.0
    %197 = vmatpush1.msra.mxu0 0.0
    %198 = vmatprep.subr.mxu0 0.0
    %199 = vmatpush1.msra.mxu0 0.0
    %200 = vmatprep.subr.mxu0 0.0
    %201 = vmatpush1.msra.mxu0 0.0
    %202 = vmatprep.subr.mxu0 0.0
    %203 = vmatpush1.msra.mxu0 0.0
    %204 = vmatprep.subr.mxu0 0.0
    %205 = vmatpush1.msra.mxu0 0.0
    %206 = vmatprep.subr.mxu0 0.0
    %207 = vmatpush1.msra.mxu0 0.0
    %208 = vmatprep.subr.mxu0 0.0
    %209 = vmatpush1.msra.mxu0 0.0
    %210 = vmatprep.subr.mxu0 0.0
    %211 = vmatpush1.msra.mxu0 0.0
    %212 = vmatprep.subr.mxu0 0.0
    %213 = vmatpush1.msra.mxu0 0.0
    %214 = vmatprep.subr.mxu0 0.0
    %215 = vmatpush1.msra.mxu0 0.0
    %216 = vmatprep.subr.mxu0 0.0
    %217 = vmatpush1.msra.mxu0 0.0
    %218 = vmatprep.subr.mxu0 0.0
    %219 = vmatpush1.msra.mxu0 0.0
    %220 = vmatprep.subr.mxu0 0.0
    %221 = vmatpush1.msra.mxu0 0.0
    %222 = vmatprep.subr.mxu0 0.0
    %223 = vmatpush1.msra.mxu0 0.0
    %224 = vmatprep.subr.mxu0 0.0
    %225 = vmatpush1.msra.mxu0 0.0
    %226 = vmatprep.subr.mxu0 0.0
    %227 = vmatpush1.msra.mxu0 0.0
    %228 = vmatprep.subr.mxu0 0.0
    %229 = vmatpush1.msra.mxu0 0.0
    %230 = vmatprep.subr.mxu0 0.0
    %231 = vmatpush1.msra.mxu0 0.0
    %232 = vmatprep.subr.mxu0 0.0
    %233 = vmatpush1.msra.mxu0 0.0
    %234 = vmatprep.subr.mxu0 0.0
    %235 = vmatpush1.msra.mxu0 0.0
    %236 = vmatprep.subr.mxu0 0.0
    %237 = vmatpush1.msra.mxu0 0.0
    %238 = vmatprep.subr.mxu0 0.0
    %239 = vmatpush1.msra.mxu0 0.0
    %240 = vmatprep.subr.mxu0 0.0
    %241 = vmatpush1.msra.mxu0 0.0
    %242 = vmatprep.subr.mxu0 0.0
    %243 = vmatpush1.msra.mxu0 0.0
    %244 = vmatprep.subr.mxu0 0.0
    %245 = vmatpush1.msra.mxu0 0.0
    %246 = vmatprep.subr.mxu0 0.0
    %247 = vmatpush1.msra.mxu0 0.0
    %248 = vmatprep.subr.mxu0 0.0
    %249 = vmatpush1.msra.mxu0 0.0
    %250 = vmatprep.mubr.f32.mxu0 0.0
    %251 = vmatmul.mubr.f32.gmra.mrb[0].mxu0 %v184
    %v252 = vpop.f32.mrb[0].mxu0
    %v253 = vadd.f32 0.0, %v252
    %v254 = vpop.f32.mrb[0].mxu0
    %255 = vdwg.mxu0
    %v257 = vsel %vm120, %v163, 0
    %v260 = vsel %vm120, %v164, 0
    %v263 = vsel %vm120, %v165, 0
    %v266 = vsel %vm120, %v166, 0
    %v269 = vsel %vm120, %v167, 0
    %v272 = vsel %vm120, %v168, 0
    %v275 = vsel %vm120, %v169, 0
    %v278 = vsel %vm120, %v170, 0
    %280 = vmatprep.subr.mxu0 0.0
    %281 = vmatpush1.msra.mxu0 %v175
    %282 = vmatprep.subr.mxu0 0.0
    %283 = vmatpush1.msra.mxu0 %v176
    %284 = vmatprep.subr.mxu0 0.0
    %285 = vmatpush1.msra.mxu0 %v177
    %286 = vmatprep.subr.mxu0 0.0
    %287 = vmatpush1.msra.mxu0 %v178
    %288 = vmatprep.subr.mxu0 0.0
    %289 = vmatpush1.msra.mxu0 0.0
    %290 = vmatprep.subr.mxu0 0.0
    %291 = vmatpush1.msra.mxu0 0.0
    %292 = vmatprep.subr.mxu0 0.0
    %293 = vmatpush1.msra.mxu0 0.0
    %294 = vmatprep.subr.mxu0 0.0
    %295 = vmatpush1.msra.mxu0 0.0
    %296 = vmatprep.subr.mxu0 0.0
    %297 = vmatpush1.msra.mxu0 0.0
    %298 = vmatprep.subr.mxu0 0.0
    %299 = vmatpush1.msra.mxu0 0.0
    %300 = vmatprep.subr.mxu0 0.0
    %301 = vmatpush1.msra.mxu0 0.0
    %302 = vmatprep.subr.mxu0 0.0
    %303 = vmatpush1.msra.mxu0 0.0
    %304 = vmatprep.subr.mxu0 0.0
    %305 = vmatpush1.msra.mxu0 0.0
    %306 = vmatprep.subr.mxu0 0.0
    %307 = vmatpush1.msra.mxu0 0.0
    %308 = vmatprep.subr.mxu0 0.0
    %309 = vmatpush1.msra.mxu0 0.0
    %310 = vmatprep.subr.mxu0 0.0
    %311 = vmatpush1.msra.mxu0 0.0
    %312 = vmatprep.subr.mxu0 0.0
    %313 = vmatpush1.msra.mxu0 0.0
    %314 = vmatprep.subr.mxu0 0.0
    %315 = vmatpush1.msra.mxu0 0.0
    %316 = vmatprep.subr.mxu0 0.0
    %317 = vmatpush1.msra.mxu0 0.0
    %318 = vmatprep.subr.mxu0 0.0
    %319 = vmatpush1.msra.mxu0 0.0
    %320 = vmatprep.subr.mxu0 0.0
    %321 = vmatpush1.msra.mxu0 0.0
    %322 = vmatprep.subr.mxu0 0.0
    %323 = vmatpush1.msra.mxu0 0.0
    %324 = vmatprep.subr.mxu0 0.0
    %325 = vmatpush1.msra.mxu0 0.0
    %326 = vmatprep.subr.mxu0 0.0
    %327 = vmatpush1.msra.mxu0 0.0
    %328 = vmatprep.subr.mxu0 0.0
    %329 = vmatpush1.msra.mxu0 0.0
    %330 = vmatprep.subr.mxu0 0.0
    %331 = vmatpush1.msra.mxu0 0.0
    %332 = vmatprep.subr.mxu0 0.0
    %333 = vmatpush1.msra.mxu0 0.0
    %334 = vmatprep.subr.mxu0 0.0
    %335 = vmatpush1.msra.mxu0 0.0
    %336 = vmatprep.subr.mxu0 0.0
    %337 = vmatpush1.msra.mxu0 0.0
    %338 = vmatprep.subr.mxu0 0.0
    %339 = vmatpush1.msra.mxu0 0.0
    %340 = vmatprep.subr.mxu0 0.0
    %341 = vmatpush1.msra.mxu0 0.0
    %342 = vmatprep.subr.mxu0 0.0
    %343 = vmatpush1.msra.mxu0 0.0
    %344 = vmatprep.mubr.f32.mxu0 0.0
    %345 = vmatmul.mubr.f32.gmra.mrb[0].mxu0 %v257
    %v346 = vpop.f32.mrb[0].mxu0
    %v347 = vadd.f32 0.0, %v346
    %v348 = vpop.f32.mrb[0].mxu0
    %349 = vmatprep.mubr.f32.mxu0 0.0
    %350 = vmatmul.mubr.f32.gmra.mrb[0].mxu0 %v260
    %v351 = vpop.f32.mrb[0].mxu0
    %v352 = vadd.f32 0.0, %v351
    %v353 = vpop.f32.mrb[0].mxu0
    %354 = vmatprep.mubr.f32.mxu0 0.0
    %355 = vmatmul.mubr.f32.gmra.mrb[0].mxu0 %v263
    %v356 = vpop.f32.mrb[0].mxu0
    %v357 = vadd.f32 0.0, %v356
    %v358 = vpop.f32.mrb[0].mxu0
    %359 = vmatprep.mubr.f32.mxu0 0.0
    %360 = vmatmul.mubr.f32.gmra.mrb[0].mxu0 %v266
    %v361 = vpop.f32.mrb[0].mxu0
    %v362 = vadd.f32 0.0, %v361
    %v363 = vpop.f32.mrb[0].mxu0
    %364 = vmatprep.mubr.f32.mxu0 0.0
    %365 = vmatmul.mubr.f32.gmra.mrb[0].mxu0 %v269
    %v366 = vpop.f32.mrb[0].mxu0
    %v367 = vadd.f32 0.0, %v366
    %v368 = vpop.f32.mrb[0].mxu0
    %369 = vmatprep.mubr.f32.mxu0 0.0
    %370 = vmatmul.mubr.f32.gmra.mrb[0].mxu0 %v272
    %v371 = vpop.f32.mrb[0].mxu0
    %v372 = vadd.f32 0.0, %v371
    %v373 = vpop.f32.mrb[0].mxu0
    %374 = vmatprep.mubr.f32.mxu0 0.0
    %375 = vmatmul.mubr.f32.gmra.mrb[0].mxu0 %v275
    %v376 = vpop.f32.mrb[0].mxu0
    %v377 = vadd.f32 0.0, %v376
    %v378 = vpop.f32.mrb[0].mxu0
    %379 = vmatprep.mubr.f32.mxu0 0.0
    %380 = vmatmul.mubr.f32.gmra.mrb[0].mxu0 %v278
    %v381 = vpop.f32.mrb[0].mxu0
    %v382 = vadd.f32 0.0, %v381
    %v383 = vpop.f32.mrb[0].mxu0
    %384 = vdwg.mxu0
    %vm385 = vcmask 64512
    %v387 = vsel %vm385, %v253, 0
    %v390 = vsel %vm385, %v347, 0
    %v393 = vsel %vm385, %v352, 0
    %v396 = vsel %vm385, %v357, 0
    %v399 = vsel %vm385, %v362, 0
    %v402 = vsel %vm385, %v367, 0
    %v405 = vsel %vm385, %v372, 0
    %v408 = vsel %vm385, %v377, 0
    %v411 = vsel %vm385, %v382, 0
    %413 = vmatprep.subr.mxu0 0.0
    %414 = vmatpush1.xpose.msra.mxu0 %v390
    %415 = vmatprep.subr.mxu0 0.0
    %416 = vmatpush1.xpose.msra.mxu0 %v393
    %417 = vmatprep.subr.mxu0 0.0
    %418 = vmatpush1.xpose.msra.mxu0 %v396
    %419 = vmatprep.subr.mxu0 0.0
    %420 = vmatpush1.xpose.msra.mxu0 %v399
    %421 = vmatprep.subr.mxu0 0.0
    %422 = vmatpush1.xpose.msra.mxu0 %v402
    %423 = vmatprep.subr.mxu0 0.0
    %424 = vmatpush1.xpose.msra.mxu0 %v405
    %425 = vmatprep.subr.mxu0 0.0
    %426 = vmatpush1.xpose.msra.mxu0 %v408
    %427 = vmatprep.subr.mxu0 0.0
    %428 = vmatpush1.xpose.msra.mxu0 %v411
    %429 = vmatprep.subr.mxu0 0.0
    %430 = vmatpush1.xpose.msra.mxu0 0.0
    %431 = vmatprep.subr.mxu0 0.0
    %432 = vmatpush1.xpose.msra.mxu0 0.0
    %433 = vmatprep.subr.mxu0 0.0
    %434 = vmatpush1.xpose.msra.mxu0 0.0
    %435 = vmatprep.subr.mxu0 0.0
    %436 = vmatpush1.xpose.msra.mxu0 0.0
    %437 = vmatprep.subr.mxu0 0.0
    %438 = vmatpush1.xpose.msra.mxu0 0.0
    %439 = vmatprep.subr.mxu0 0.0
    %440 = vmatpush1.xpose.msra.mxu0 0.0
    %441 = vmatprep.subr.mxu0 0.0
    %442 = vmatpush1.xpose.msra.mxu0 0.0
    %443 = vmatprep.subr.mxu0 0.0
    %444 = vmatpush1.xpose.msra.mxu0 0.0
    %445 = vmatprep.subr.mxu0 0.0
    %446 = vmatpush1.xpose.msra.mxu0 0.0
    %447 = vmatprep.subr.mxu0 0.0
    %448 = vmatpush1.xpose.msra.mxu0 0.0
    %449 = vmatprep.subr.mxu0 0.0
    %450 = vmatpush1.xpose.msra.mxu0 0.0
    %451 = vmatprep.subr.mxu0 0.0
    %452 = vmatpush1.xpose.msra.mxu0 0.0
    %453 = vmatprep.subr.mxu0 0.0
    %454 = vmatpush1.xpose.msra.mxu0 0.0
    %455 = vmatprep.subr.mxu0 0.0
    %456 = vmatpush1.xpose.msra.mxu0 0.0
    %457 = vmatprep.subr.mxu0 0.0
    %458 = vmatpush1.xpose.msra.mxu0 0.0
    %459 = vmatprep.subr.mxu0 0.0
    %460 = vmatpush1.xpose.msra.mxu0 0.0
    %461 = vmatprep.subr.mxu0 0.0
    %462 = vmatpush1.xpose.msra.mxu0 0.0
    %463 = vmatprep.subr.mxu0 0.0
    %464 = vmatpush1.xpose.msra.mxu0 0.0
    %465 = vmatprep.subr.mxu0 0.0
    %466 = vmatpush1.xpose.msra.mxu0 0.0
    %467 = vmatprep.subr.mxu0 0.0
    %468 = vmatpush1.xpose.msra.mxu0 0.0
    %469 = vmatprep.subr.mxu0 0.0
    %470 = vmatpush1.xpose.msra.mxu0 0.0
    %471 = vmatprep.subr.mxu0 0.0
    %472 = vmatpush1.xpose.msra.mxu0 0.0
    %473 = vmatprep.subr.mxu0 0.0
    %474 = vmatpush1.xpose.msra.mxu0 0.0
    %475 = vmatprep.subr.mxu0 0.0
    %476 = vmatpush1.xpose.msra.mxu0 0.0
    %477 = vmatprep.mubr.f32.mxu0 0.0
    %478 = vmatmul.mubr.f32.gmra.mrb[0].mxu0 %v387
    %v479 = vpop.f32.mrb[0].mxu0
    %v480 = vadd.f32 0.0, %v479
    %v481 = vpop.f32.mrb[0].mxu0
    %482 = vdwg.mxu0
    %483 = vrot.lane.b32.xlu0 %v253, 120
    %v484 = vpop.permute.xlu0 %483
    %485 = vrot.lane.b32.xlu0 %v347, 120
    %v486 = vpop.permute.xlu0 %485
    %487 = vrot.lane.b32.xlu0 %v352, 120
    %v488 = vpop.permute.xlu0 %487
    %489 = vrot.lane.b32.xlu0 %v357, 120
    %v490 = vpop.permute.xlu0 %489
    %491 = vrot.lane.b32.xlu0 %v362, 120
    %v492 = vpop.permute.xlu0 %491
    %493 = vrot.lane.b32.xlu0 %v367, 120
    %v494 = vpop.permute.xlu0 %493
    %495 = vrot.lane.b32.xlu0 %v372, 120
    %v496 = vpop.permute.xlu0 %495
    %497 = vrot.lane.b32.xlu0 %v377, 120
    %v498 = vpop.permute.xlu0 %497
    %499 = vrot.lane.b32.xlu0 %v382, 120
    %v500 = vpop.permute.xlu0 %499
    %v501 = vsel %vm385, %v484, 0
    %v503 = vsel %vm385, %v486, 0
    %v505 = vsel %vm385, %v488, 0
    %v507 = vsel %vm385, %v490, 0
    %v509 = vsel %vm385, %v492, 0
    %v511 = vsel %vm385, %v494, 0
    %v513 = vsel %vm385, %v496, 0
    %v515 = vsel %vm385, %v498, 0
    %v517 = vsel %vm385, %v500, 0
    %519 = vmatprep.subr.mxu0 0.0
    %520 = vmatpush1.xpose.msra.mxu0 %v503
    %521 = vmatprep.subr.mxu0 0.0
    %522 = vmatpush1.xpose.msra.mxu0 %v505
    %523 = vmatprep.subr.mxu0 0.0
    %524 = vmatpush1.xpose.msra.mxu0 %v507
    %525 = vmatprep.subr.mxu0 0.0
    %526 = vmatpush1.xpose.msra.mxu0 %v509
    %527 = vmatprep.subr.mxu0 0.0
    %528 = vmatpush1.xpose.msra.mxu0 %v511
    %529 = vmatprep.subr.mxu0 0.0
    %530 = vmatpush1.xpose.msra.mxu0 %v513
    %531 = vmatprep.subr.mxu0 0.0
    %532 = vmatpush1.xpose.msra.mxu0 %v515
    %533 = vmatprep.subr.mxu0 0.0
    %534 = vmatpush1.xpose.msra.mxu0 %v517
    %535 = vmatprep.subr.mxu0 0.0
    %536 = vmatpush1.xpose.msra.mxu0 0.0
    %537 = vmatprep.subr.mxu0 0.0
    %538 = vmatpush1.xpose.msra.mxu0 0.0
    %539 = vmatprep.subr.mxu0 0.0
    %540 = vmatpush1.xpose.msra.mxu0 0.0
    %541 = vmatprep.subr.mxu0 0.0
    %542 = vmatpush1.xpose.msra.mxu0 0.0
    %543 = vmatprep.subr.mxu0 0.0
    %544 = vmatpush1.xpose.msra.mxu0 0.0
    %545 = vmatprep.subr.mxu0 0.0
    %546 = vmatpush1.xpose.msra.mxu0 0.0
    %547 = vmatprep.subr.mxu0 0.0
    %548 = vmatpush1.xpose.msra.mxu0 0.0
    %549 = vmatprep.subr.mxu0 0.0
    %550 = vmatpush1.xpose.msra.mxu0 0.0
    %551 = vmatprep.subr.mxu0 0.0
    %552 = vmatpush1.xpose.msra.mxu0 0.0
    %553 = vmatprep.subr.mxu0 0.0
    %554 = vmatpush1.xpose.msra.mxu0 0.0
    %555 = vmatprep.subr.mxu0 0.0
    %556 = vmatpush1.xpose.msra.mxu0 0.0
    %557 = vmatprep.subr.mxu0 0.0
    %558 = vmatpush1.xpose.msra.mxu0 0.0
    %559 = vmatprep.subr.mxu0 0.0
    %560 = vmatpush1.xpose.msra.mxu0 0.0
    %561 = vmatprep.subr.mxu0 0.0
    %562 = vmatpush1.xpose.msra.mxu0 0.0
    %563 = vmatprep.subr.mxu0 0.0
    %564 = vmatpush1.xpose.msra.mxu0 0.0
    %565 = vmatprep.subr.mxu0 0.0
    %566 = vmatpush1.xpose.msra.mxu0 0.0
    %567 = vmatprep.subr.mxu0 0.0
    %568 = vmatpush1.xpose.msra.mxu0 0.0
    %569 = vmatprep.subr.mxu0 0.0
    %570 = vmatpush1.xpose.msra.mxu0 0.0
    %571 = vmatprep.subr.mxu0 0.0
    %572 = vmatpush1.xpose.msra.mxu0 0.0
    %573 = vmatprep.subr.mxu0 0.0
    %574 = vmatpush1.xpose.msra.mxu0 0.0
    %575 = vmatprep.subr.mxu0 0.0
    %576 = vmatpush1.xpose.msra.mxu0 0.0
    %577 = vmatprep.subr.mxu0 0.0
    %578 = vmatpush1.xpose.msra.mxu0 0.0
    %579 = vmatprep.subr.mxu0 0.0
    %580 = vmatpush1.xpose.msra.mxu0 0.0
    %581 = vmatprep.subr.mxu0 0.0
    %582 = vmatpush1.xpose.msra.mxu0 0.0
    %583 = vmatprep.mubr.f32.mxu0 0.0
    %584 = vmatmul.mubr.f32.gmra.mrb[0].mxu0 %v501
    %v585 = vpop.f32.mrb[0].mxu0
    %v586 = vadd.f32 0.0, %v585
    %v587 = vpop.f32.mrb[0].mxu0
    %588 = vdwg.mxu0
    %589 = vrot.lane.b32.xlu0 %v253, 112
    %v590 = vpop.permute.xlu0 %589
    %591 = vrot.lane.b32.xlu0 %v347, 112
    %v592 = vpop.permute.xlu0 %591
    %593 = vrot.lane.b32.xlu0 %v352, 112
    %v594 = vpop.permute.xlu0 %593
    %595 = vrot.lane.b32.xlu0 %v357, 112
    %v596 = vpop.permute.xlu0 %595
    %597 = vrot.lane.b32.xlu0 %v362, 112
    %v598 = vpop.permute.xlu0 %597
    %599 = vrot.lane.b32.xlu0 %v367, 112
    %v600 = vpop.permute.xlu0 %599
    %601 = vrot.lane.b32.xlu0 %v372, 112
    %v602 = vpop.permute.xlu0 %601
    %603 = vrot.lane.b32.xlu0 %v377, 112
    %v604 = vpop.permute.xlu0 %603
    %605 = vrot.lane.b32.xlu0 %v382, 112
    %v606 = vpop.permute.xlu0 %605
    %v607 = vsel %vm385, %v590, 0
    %v609 = vsel %vm385, %v592, 0
    %v611 = vsel %vm385, %v594, 0
    %v613 = vsel %vm385, %v596, 0
    %v615 = vsel %vm385, %v598, 0
    %v617 = vsel %vm385, %v600, 0
    %v619 = vsel %vm385, %v602, 0
    %v621 = vsel %vm385, %v604, 0
    %v623 = vsel %vm385, %v606, 0
    %625 = vmatprep.subr.mxu0 0.0
    %626 = vmatpush1.xpose.msra.mxu0 %v609
    %627 = vmatprep.subr.mxu0 0.0
    %628 = vmatpush1.xpose.msra.mxu0 %v611
    %629 = vmatprep.subr.mxu0 0.0
    %630 = vmatpush1.xpose.msra.mxu0 %v613
    %631 = vmatprep.subr.mxu0 0.0
    %632 = vmatpush1.xpose.msra.mxu0 %v615
    %633 = vmatprep.subr.mxu0 0.0
    %634 = vmatpush1.xpose.msra.mxu0 %v617
    %635 = vmatprep.subr.mxu0 0.0
    %636 = vmatpush1.xpose.msra.mxu0 %v619
    %637 = vmatprep.subr.mxu0 0.0
    %638 = vmatpush1.xpose.msra.mxu0 %v621
    %639 = vmatprep.subr.mxu0 0.0
    %640 = vmatpush1.xpose.msra.mxu0 %v623
    %641 = vmatprep.subr.mxu0 0.0
    %642 = vmatpush1.xpose.msra.mxu0 0.0
    %643 = vmatprep.subr.mxu0 0.0
    %644 = vmatpush1.xpose.msra.mxu0 0.0
    %645 = vmatprep.subr.mxu0 0.0
    %646 = vmatpush1.xpose.msra.mxu0 0.0
    %647 = vmatprep.subr.mxu0 0.0
    %648 = vmatpush1.xpose.msra.mxu0 0.0
    %649 = vmatprep.subr.mxu0 0.0
    %650 = vmatpush1.xpose.msra.mxu0 0.0
    %651 = vmatprep.subr.mxu0 0.0
    %652 = vmatpush1.xpose.msra.mxu0 0.0
    %653 = vmatprep.subr.mxu0 0.0
    %654 = vmatpush1.xpose.msra.mxu0 0.0
    %655 = vmatprep.subr.mxu0 0.0
    %656 = vmatpush1.xpose.msra.mxu0 0.0
    %657 = vmatprep.subr.mxu0 0.0
    %658 = vmatpush1.xpose.msra.mxu0 0.0
    %659 = vmatprep.subr.mxu0 0.0
    %660 = vmatpush1.xpose.msra.mxu0 0.0
    %661 = vmatprep.subr.mxu0 0.0
    %662 = vmatpush1.xpose.msra.mxu0 0.0
    %663 = vmatprep.subr.mxu0 0.0
    %664 = vmatpush1.xpose.msra.mxu0 0.0
    %665 = vmatprep.subr.mxu0 0.0
    %666 = vmatpush1.xpose.msra.mxu0 0.0
    %667 = vmatprep.subr.mxu0 0.0
    %668 = vmatpush1.xpose.msra.mxu0 0.0
    %669 = vmatprep.subr.mxu0 0.0
    %670 = vmatpush1.xpose.msra.mxu0 0.0
    %671 = vmatprep.subr.mxu0 0.0
    %672 = vmatpush1.xpose.msra.mxu0 0.0
    %673 = vmatprep.subr.mxu0 0.0
    %674 = vmatpush1.xpose.msra.mxu0 0.0
    %675 = vmatprep.subr.mxu0 0.0
    %676 = vmatpush1.xpose.msra.mxu0 0.0
    %677 = vmatprep.subr.mxu0 0.0
    %678 = vmatpush1.xpose.msra.mxu0 0.0
    %679 = vmatprep.subr.mxu0 0.0
    %680 = vmatpush1.xpose.msra.mxu0 0.0
    %681 = vmatprep.subr.mxu0 0.0
    %682 = vmatpush1.xpose.msra.mxu0 0.0
    %683 = vmatprep.subr.mxu0 0.0
    %684 = vmatpush1.xpose.msra.mxu0 0.0
    %685 = vmatprep.subr.mxu0 0.0
    %686 = vmatpush1.xpose.msra.mxu0 0.0
    %687 = vmatprep.subr.mxu0 0.0
    %688 = vmatpush1.xpose.msra.mxu0 0.0
    %689 = vmatprep.mubr.f32.mxu0 0.0
    %690 = vmatmul.mubr.f32.gmra.mrb[0].mxu0 %v607
    %v691 = vpop.f32.mrb[0].mxu0
    %v692 = vadd.f32 0.0, %v691
    %v693 = vpop.f32.mrb[0].mxu0
    %694 = vdwg.mxu0
    %695 = vrot.lane.b32.xlu0 %v253, 104
    %v696 = vpop.permute.xlu0 %695
    %697 = vrot.lane.b32.xlu0 %v347, 104
    %v698 = vpop.permute.xlu0 %697
    %699 = vrot.lane.b32.xlu0 %v352, 104
    %v700 = vpop.permute.xlu0 %699
    %701 = vrot.lane.b32.xlu0 %v357, 104
    %v702 = vpop.permute.xlu0 %701
    %703 = vrot.lane.b32.xlu0 %v362, 104
    %v704 = vpop.permute.xlu0 %703
    %705 = vrot.lane.b32.xlu0 %v367, 104
    %v706 = vpop.permute.xlu0 %705
    %707 = vrot.lane.b32.xlu0 %v372, 104
    %v708 = vpop.permute.xlu0 %707
    %709 = vrot.lane.b32.xlu0 %v377, 104
    %v710 = vpop.permute.xlu0 %709
    %711 = vrot.lane.b32.xlu0 %v382, 104
    %v712 = vpop.permute.xlu0 %711
    %v713 = vsel %vm385, %v696, 0
    %v715 = vsel %vm385, %v698, 0
    %v717 = vsel %vm385, %v700, 0
    %v719 = vsel %vm385, %v702, 0
    %v721 = vsel %vm385, %v704, 0
    %v723 = vsel %vm385, %v706, 0
    %v725 = vsel %vm385, %v708, 0
    %v727 = vsel %vm385, %v710, 0
    %v729 = vsel %vm385, %v712, 0
    %731 = vmatprep.subr.mxu0 0.0
    %732 = vmatpush1.xpose.msra.mxu0 %v715
    %733 = vmatprep.subr.mxu0 0.0
    %734 = vmatpush1.xpose.msra.mxu0 %v717
    %735 = vmatprep.subr.mxu0 0.0
    %736 = vmatpush1.xpose.msra.mxu0 %v719
    %737 = vmatprep.subr.mxu0 0.0
    %738 = vmatpush1.xpose.msra.mxu0 %v721
    %739 = vmatprep.subr.mxu0 0.0
    %740 = vmatpush1.xpose.msra.mxu0 %v723
    %741 = vmatprep.subr.mxu0 0.0
    %742 = vmatpush1.xpose.msra.mxu0 %v725
    %743 = vmatprep.subr.mxu0 0.0
    %744 = vmatpush1.xpose.msra.mxu0 %v727
    %745 = vmatprep.subr.mxu0 0.0
    %746 = vmatpush1.xpose.msra.mxu0 %v729
    %747 = vmatprep.subr.mxu0 0.0
    %748 = vmatpush1.xpose.msra.mxu0 0.0
    %749 = vmatprep.subr.mxu0 0.0
    %750 = vmatpush1.xpose.msra.mxu0 0.0
    %751 = vmatprep.subr.mxu0 0.0
    %752 = vmatpush1.xpose.msra.mxu0 0.0
    %753 = vmatprep.subr.mxu0 0.0
    %754 = vmatpush1.xpose.msra.mxu0 0.0
    %755 = vmatprep.subr.mxu0 0.0
    %756 = vmatpush1.xpose.msra.mxu0 0.0
    %757 = vmatprep.subr.mxu0 0.0
    %758 = vmatpush1.xpose.msra.mxu0 0.0
    %759 = vmatprep.subr.mxu0 0.0
    %760 = vmatpush1.xpose.msra.mxu0 0.0
    %761 = vmatprep.subr.mxu0 0.0
    %762 = vmatpush1.xpose.msra.mxu0 0.0
    %763 = vmatprep.subr.mxu0 0.0
    %764 = vmatpush1.xpose.msra.mxu0 0.0
    %765 = vmatprep.subr.mxu0 0.0
    %766 = vmatpush1.xpose.msra.mxu0 0.0
    %767 = vmatprep.subr.mxu0 0.0
    %768 = vmatpush1.xpose.msra.mxu0 0.0
    %769 = vmatprep.subr.mxu0 0.0
    %770 = vmatpush1.xpose.msra.mxu0 0.0
    %771 = vmatprep.subr.mxu0 0.0
    %772 = vmatpush1.xpose.msra.mxu0 0.0
    %773 = vmatprep.subr.mxu0 0.0
    %774 = vmatpush1.xpose.msra.mxu0 0.0
    %775 = vmatprep.subr.mxu0 0.0
    %776 = vmatpush1.xpose.msra.mxu0 0.0
    %777 = vmatprep.subr.mxu0 0.0
    %778 = vmatpush1.xpose.msra.mxu0 0.0
    %779 = vmatprep.subr.mxu0 0.0
    %780 = vmatpush1.xpose.msra.mxu0 0.0
    %781 = vmatprep.subr.mxu0 0.0
    %782 = vmatpush1.xpose.msra.mxu0 0.0
    %783 = vmatprep.subr.mxu0 0.0
    %784 = vmatpush1.xpose.msra.mxu0 0.0
    %785 = vmatprep.subr.mxu0 0.0
    %786 = vmatpush1.xpose.msra.mxu0 0.0
    %787 = vmatprep.subr.mxu0 0.0
    %788 = vmatpush1.xpose.msra.mxu0 0.0
    %789 = vmatprep.subr.mxu0 0.0
    %790 = vmatpush1.xpose.msra.mxu0 0.0
    %791 = vmatprep.subr.mxu0 0.0
    %792 = vmatpush1.xpose.msra.mxu0 0.0
    %793 = vmatprep.subr.mxu0 0.0
    %794 = vmatpush1.xpose.msra.mxu0 0.0
    %795 = vmatprep.mubr.f32.mxu0 0.0
    %796 = vmatmul.mubr.f32.gmra.mrb[0].mxu0 %v713
    %v797 = vpop.f32.mrb[0].mxu0
    %v798 = vadd.f32 0.0, %v797
    %v799 = vpop.f32.mrb[0].mxu0
    %800 = vdwg.mxu0
    %vm801 = vcmask 523264
    %v802 = vsel %vm801, %v480, -inf
    %803 = vmax.xlane.f32.xlu0 %v802
    %v804 = vpop.xlane.xlu0 %803
    %v805 = vsel %vm801, %v586, -inf
    %806 = vmax.xlane.f32.xlu0 %v805
    %v807 = vpop.xlane.xlu0 %806
    %v808 = vsel %vm801, %v692, -inf
    %809 = vmax.xlane.f32.xlu0 %v808
    %v810 = vpop.xlane.xlu0 %809
    %v811 = vsel %vm801, %v798, -inf
    %812 = vmax.xlane.f32.xlu0 %v811
    %v813 = vpop.xlane.xlu0 %812
    %v814 = vsub.f32 %v480, %v804
    %v815 = vsub.f32 %v586, %v807
    %v816 = vsub.f32 %v692, %v810
    %v817 = vsub.f32 %v798, %v813
    %v818 = vmul.f32 %v814, 1.442695
    %v819 = vpow.pop %v818
    %v820 = vmul.f32 %v815, 1.442695
    %v821 = vpow.pop %v820
    %v822 = vmul.f32 %v816, 1.442695
    %v823 = vpow.pop %v822
    %v824 = vmul.f32 %v817, 1.442695
    %v825 = vpow.pop %v824
    %v826 = vsel %vm801, %v819, 0.0
    %827 = vadd.xlane.f32.xlu0 %v826
    %v828 = vpop.xlane.xlu0 %827
    %v829 = vsel %vm801, %v821, 0.0
    %830 = vadd.xlane.f32.xlu0 %v829
    %v831 = vpop.xlane.xlu0 %830
    %v832 = vsel %vm801, %v823, 0.0
    %833 = vadd.xlane.f32.xlu0 %v832
    %v834 = vpop.xlane.xlu0 %833
    %v835 = vsel %vm801, %v825, 0.0
    %836 = vadd.xlane.f32.xlu0 %v835
    %v837 = vpop.xlane.xlu0 %836
    %v838 = vrcp.pop %v828
    %v839 = vrcp.pop %v831
    %v840 = vrcp.pop %v834
    %v841 = vrcp.pop %v837
    %v842 = vmul.f32 %v819, %v838
    %v843 = vmul.f32 %v821, %v839
    %v844 = vmul.f32 %v823, %v840
    %v845 = vmul.f32 %v825, %v841
    %846 = vrot.lane.b32.xlu0 %v347, 96
    %v847 = vpop.permute.xlu0 %846
    %848 = vrot.lane.b32.xlu0 %v352, 96
    %v849 = vpop.permute.xlu0 %848
    %850 = vrot.lane.b32.xlu0 %v357, 96
    %v851 = vpop.permute.xlu0 %850
    %852 = vrot.lane.b32.xlu0 %v362, 96
    %v853 = vpop.permute.xlu0 %852
    %854 = vrot.lane.b32.xlu0 %v367, 96
    %v855 = vpop.permute.xlu0 %854
    %856 = vrot.lane.b32.xlu0 %v372, 96
    %v857 = vpop.permute.xlu0 %856
    %858 = vrot.lane.b32.xlu0 %v377, 96
    %v859 = vpop.permute.xlu0 %858
    %860 = vrot.lane.b32.xlu0 %v382, 96
    %v861 = vpop.permute.xlu0 %860
    %v871 = vsel %vm801, %v842, 0
    %873 = vmatprep.subr.mxu0 0.0
    %874 = vmatpush1.msra.mxu0 %v847
    %875 = vmatprep.subr.mxu0 0.0
    %876 = vmatpush1.msra.mxu0 %v849
    %877 = vmatprep.subr.mxu0 0.0
    %878 = vmatpush1.msra.mxu0 %v851
    %879 = vmatprep.subr.mxu0 0.0
    %880 = vmatpush1.msra.mxu0 %v853
    %881 = vmatprep.subr.mxu0 0.0
    %882 = vmatpush1.msra.mxu0 %v855
    %883 = vmatprep.subr.mxu0 0.0
    %884 = vmatpush1.msra.mxu0 %v857
    %885 = vmatprep.subr.mxu0 0.0
    %886 = vmatpush1.msra.mxu0 %v859
    %887 = vmatprep.subr.mxu0 0.0
    %888 = vmatpush1.msra.mxu0 %v861
    %889 = vmatprep.subr.mxu0 0.0
    %890 = vmatpush1.msra.mxu0 0.0
    %891 = vmatprep.subr.mxu0 0.0
    %892 = vmatpush1.msra.mxu0 0.0
    %893 = vmatprep.subr.mxu0 0.0
    %894 = vmatpush1.msra.mxu0 0.0
    %895 = vmatprep.subr.mxu0 0.0
    %896 = vmatpush1.msra.mxu0 0.0
    %897 = vmatprep.subr.mxu0 0.0
    %898 = vmatpush1.msra.mxu0 0.0
    %899 = vmatprep.subr.mxu0 0.0
    %900 = vmatpush1.msra.mxu0 0.0
    %901 = vmatprep.subr.mxu0 0.0
    %902 = vmatpush1.msra.mxu0 0.0
    %903 = vmatprep.subr.mxu0 0.0
    %904 = vmatpush1.msra.mxu0 0.0
    %905 = vmatprep.subr.mxu0 0.0
    %906 = vmatpush1.msra.mxu0 0.0
    %907 = vmatprep.subr.mxu0 0.0
    %908 = vmatpush1.msra.mxu0 0.0
    %909 = vmatprep.subr.mxu0 0.0
    %910 = vmatpush1.msra.mxu0 0.0
    %911 = vmatprep.subr.mxu0 0.0
    %912 = vmatpush1.msra.mxu0 0.0
    %913 = vmatprep.subr.mxu0 0.0
    %914 = vmatpush1.msra.mxu0 0.0
    %915 = vmatprep.subr.mxu0 0.0
    %916 = vmatpush1.msra.mxu0 0.0
    %917 = vmatprep.subr.mxu0 0.0
    %918 = vmatpush1.msra.mxu0 0.0
    %919 = vmatprep.subr.mxu0 0.0
    %920 = vmatpush1.msra.mxu0 0.0
    %921 = vmatprep.subr.mxu0 0.0
    %922 = vmatpush1.msra.mxu0 0.0
    %923 = vmatprep.subr.mxu0 0.0
    %924 = vmatpush1.msra.mxu0 0.0
    %925 = vmatprep.subr.mxu0 0.0
    %926 = vmatpush1.msra.mxu0 0.0
    %927 = vmatprep.subr.mxu0 0.0
    %928 = vmatpush1.msra.mxu0 0.0
    %929 = vmatprep.subr.mxu0 0.0
    %930 = vmatpush1.msra.mxu0 0.0
    %931 = vmatprep.subr.mxu0 0.0
    %932 = vmatpush1.msra.mxu0 0.0
    %933 = vmatprep.subr.mxu0 0.0
    %934 = vmatpush1.msra.mxu0 0.0
    %935 = vmatprep.subr.mxu0 0.0
    %936 = vmatpush1.msra.mxu0 0.0
    %937 = vmatprep.mubr.f32.mxu0 0.0
    %938 = vmatmul.mubr.f32.gmra.mrb[0].mxu0 %v871
    %v939 = vpop.f32.mrb[0].mxu0
    %v940 = vadd.f32 0.0, %v939
    %v941 = vpop.f32.mrb[0].mxu0
    %942 = vdwg.mxu0
    %v944 = vsel %vm385, %v940, 0
    %946 = vmatprep.subr.mxu0 0.0
    %947 = vmatpush1.msra.mxu0 %v179
    %948 = vmatprep.subr.mxu0 0.0
    %949 = vmatpush1.msra.mxu0 0.0
    %950 = vmatprep.subr.mxu0 0.0
    %951 = vmatpush1.msra.mxu0 0.0
    %952 = vmatprep.subr.mxu0 0.0
    %953 = vmatpush1.msra.mxu0 0.0
    %954 = vmatprep.subr.mxu0 0.0
    %955 = vmatpush1.msra.mxu0 0.0
    %956 = vmatprep.subr.mxu0 0.0
    %957 = vmatpush1.msra.mxu0 0.0
    %958 = vmatprep.subr.mxu0 0.0
    %959 = vmatpush1.msra.mxu0 0.0
    %960 = vmatprep.subr.mxu0 0.0
    %961 = vmatpush1.msra.mxu0 0.0
    %962 = vmatprep.subr.mxu0 0.0
    %963 = vmatpush1.msra.mxu0 0.0
    %964 = vmatprep.subr.mxu0 0.0
    %965 = vmatpush1.msra.mxu0 0.0
    %966 = vmatprep.subr.mxu0 0.0
    %967 = vmatpush1.msra.mxu0 0.0
    %968 = vmatprep.subr.mxu0 0.0
    %969 = vmatpush1.msra.mxu0 0.0
    %970 = vmatprep.subr.mxu0 0.0
    %971 = vmatpush1.msra.mxu0 0.0
    %972 = vmatprep.subr.mxu0 0.0
    %973 = vmatpush1.msra.mxu0 0.0
    %974 = vmatprep.subr.mxu0 0.0
    %975 = vmatpush1.msra.mxu0 0.0
    %976 = vmatprep.subr.mxu0 0.0
    %977 = vmatpush1.msra.mxu0 0.0
    %978 = vmatprep.subr.mxu0 0.0
    %979 = vmatpush1.msra.mxu0 0.0
    %980 = vmatprep.subr.mxu0 0.0
    %981 = vmatpush1.msra.mxu0 0.0
    %982 = vmatprep.subr.mxu0 0.0
    %983 = vmatpush1.msra.mxu0 0.0
    %984 = vmatprep.subr.mxu0 0.0
    %985 = vmatpush1.msra.mxu0 0.0
    %986 = vmatprep.subr.mxu0 0.0
    %987 = vmatpush1.msra.mxu0 0.0
    %988 = vmatprep.subr.mxu0 0.0
    %989 = vmatpush1.msra.mxu0 0.0
    %990 = vmatprep.subr.mxu0 0.0
    %991 = vmatpush1.msra.mxu0 0.0
    %992 = vmatprep.subr.mxu0 0.0
    %993 = vmatpush1.msra.mxu0 0.0
    %994 = vmatprep.subr.mxu0 0.0
    %995 = vmatpush1.msra.mxu0 0.0
    %996 = vmatprep.subr.mxu0 0.0
    %997 = vmatpush1.msra.mxu0 0.0
    %998 = vmatprep.subr.mxu0 0.0
    %999 = vmatpush1.msra.mxu0 0.0
    %1000 = vmatprep.subr.mxu0 0.0
    %1001 = vmatpush1.msra.mxu0 0.0
    %1002 = vmatprep.subr.mxu0 0.0
    %1003 = vmatpush1.msra.mxu0 0.0
    %1004 = vmatprep.subr.mxu0 0.0
    %1005 = vmatpush1.msra.mxu0 0.0
    %1006 = vmatprep.subr.mxu0 0.0
    %1007 = vmatpush1.msra.mxu0 0.0
    %1008 = vmatprep.subr.mxu0 0.0
    %1009 = vmatpush1.msra.mxu0 0.0
    %1010 = vmatprep.mubr.f32.mxu0 0.0
    %1011 = vmatmul.mubr.f32.gmra.mrb[0].mxu0 %v944
    %v1012 = vpop.f32.mrb[0].mxu0
    %v1013 = vadd.f32 0.0, %v1012
    %v1014 = vpop.f32.mrb[0].mxu0
    %1015 = vdwg.mxu0
    %v1016 = vadd.f32 %v162, %v1013
    %1017 = vrot.lane.b32.xlu0 %v347, 88
    %v1018 = vpop.permute.xlu0 %1017
    %1019 = vrot.lane.b32.xlu0 %v352, 88
    %v1020 = vpop.permute.xlu0 %1019
    %1021 = vrot.lane.b32.xlu0 %v357, 88
    %v1022 = vpop.permute.xlu0 %1021
    %1023 = vrot.lane.b32.xlu0 %v362, 88
    %v1024 = vpop.permute.xlu0 %1023
    %1025 = vrot.lane.b32.xlu0 %v367, 88
    %v1026 = vpop.permute.xlu0 %1025
    %1027 = vrot.lane.b32.xlu0 %v372, 88
    %v1028 = vpop.permute.xlu0 %1027
    %1029 = vrot.lane.b32.xlu0 %v377, 88
    %v1030 = vpop.permute.xlu0 %1029
    %1031 = vrot.lane.b32.xlu0 %v382, 88
    %v1032 = vpop.permute.xlu0 %1031
    %v1042 = vsel %vm801, %v843, 0
    %1044 = vmatprep.subr.mxu0 0.0
    %1045 = vmatpush1.msra.mxu0 %v1018
    %1046 = vmatprep.subr.mxu0 0.0
    %1047 = vmatpush1.msra.mxu0 %v1020
    %1048 = vmatprep.subr.mxu0 0.0
    %1049 = vmatpush1.msra.mxu0 %v1022
    %1050 = vmatprep.subr.mxu0 0.0
    %1051 = vmatpush1.msra.mxu0 %v1024
    %1052 = vmatprep.subr.mxu0 0.0
    %1053 = vmatpush1.msra.mxu0 %v1026
    %1054 = vmatprep.subr.mxu0 0.0
    %1055 = vmatpush1.msra.mxu0 %v1028
    %1056 = vmatprep.subr.mxu0 0.0
    %1057 = vmatpush1.msra.mxu0 %v1030
    %1058 = vmatprep.subr.mxu0 0.0
    %1059 = vmatpush1.msra.mxu0 %v1032
    %1060 = vmatprep.subr.mxu0 0.0
    %1061 = vmatpush1.msra.mxu0 0.0
    %1062 = vmatprep.subr.mxu0 0.0
    %1063 = vmatpush1.msra.mxu0 0.0
    %1064 = vmatprep.subr.mxu0 0.0
    %1065 = vmatpush1.msra.mxu0 0.0
    %1066 = vmatprep.subr.mxu0 0.0
    %1067 = vmatpush1.msra.mxu0 0.0
    %1068 = vmatprep.subr.mxu0 0.0
    %1069 = vmatpush1.msra.mxu0 0.0
    %1070 = vmatprep.subr.mxu0 0.0
    %1071 = vmatpush1.msra.mxu0 0.0
    %1072 = vmatprep.subr.mxu0 0.0
    %1073 = vmatpush1.msra.mxu0 0.0
    %1074 = vmatprep.subr.mxu0 0.0
    %1075 = vmatpush1.msra.mxu0 0.0
    %1076 = vmatprep.subr.mxu0 0.0
    %1077 = vmatpush1.msra.mxu0 0.0
    %1078 = vmatprep.subr.mxu0 0.0
    %1079 = vmatpush1.msra.mxu0 0.0
    %1080 = vmatprep.subr.mxu0 0.0
    %1081 = vmatpush1.msra.mxu0 0.0
    %1082 = vmatprep.subr.mxu0 0.0
    %1083 = vmatpush1.msra.mxu0 0.0
    %1084 = vmatprep.subr.mxu0 0.0
    %1085 = vmatpush1.msra.mxu0 0.0
    %1086 = vmatprep.subr.mxu0 0.0
    %1087 = vmatpush1.msra.mxu0 0.0
    %1088 = vmatprep.subr.mxu0 0.0
    %1089 = vmatpush1.msra.mxu0 0.0
    %1090 = vmatprep.subr.mxu0 0.0
    %1091 = vmatpush1.msra.mxu0 0.0
    %1092 = vmatprep.subr.mxu0 0.0
    %1093 = vmatpush1.msra.mxu0 0.0
    %1094 = vmatprep.subr.mxu0 0.0
    %1095 = vmatpush1.msra.mxu0 0.0
    %1096 = vmatprep.subr.mxu0 0.0
    %1097 = vmatpush1.msra.mxu0 0.0
    %1098 = vmatprep.subr.mxu0 0.0
    %1099 = vmatpush1.msra.mxu0 0.0
    %1100 = vmatprep.subr.mxu0 0.0
    %1101 = vmatpush1.msra.mxu0 0.0
    %1102 = vmatprep.subr.mxu0 0.0
    %1103 = vmatpush1.msra.mxu0 0.0
    %1104 = vmatprep.subr.mxu0 0.0
    %1105 = vmatpush1.msra.mxu0 0.0
    %1106 = vmatprep.subr.mxu0 0.0
    %1107 = vmatpush1.msra.mxu0 0.0
    %1108 = vmatprep.mubr.f32.mxu0 0.0
    %1109 = vmatmul.mubr.f32.gmra.mrb[0].mxu0 %v1042
    %v1110 = vpop.f32.mrb[0].mxu0
    %v1111 = vadd.f32 0.0, %v1110
    %v1112 = vpop.f32.mrb[0].mxu0
    %1113 = vdwg.mxu0
    %v1115 = vsel %vm385, %v1111, 0
    %1117 = vmatprep.subr.mxu0 0.0
    %1118 = vmatpush1.msra.mxu0 %v180
    %1119 = vmatprep.subr.mxu0 0.0
    %1120 = vmatpush1.msra.mxu0 0.0
    %1121 = vmatprep.subr.mxu0 0.0
    %1122 = vmatpush1.msra.mxu0 0.0
    %1123 = vmatprep.subr.mxu0 0.0
    %1124 = vmatpush1.msra.mxu0 0.0
    %1125 = vmatprep.subr.mxu0 0.0
    %1126 = vmatpush1.msra.mxu0 0.0
    %1127 = vmatprep.subr.mxu0 0.0
    %1128 = vmatpush1.msra.mxu0 0.0
    %1129 = vmatprep.subr.mxu0 0.0
    %1130 = vmatpush1.msra.mxu0 0.0
    %1131 = vmatprep.subr.mxu0 0.0
    %1132 = vmatpush1.msra.mxu0 0.0
    %1133 = vmatprep.subr.mxu0 0.0
    %1134 = vmatpush1.msra.mxu0 0.0
    %1135 = vmatprep.subr.mxu0 0.0
    %1136 = vmatpush1.msra.mxu0 0.0
    %1137 = vmatprep.subr.mxu0 0.0
    %1138 = vmatpush1.msra.mxu0 0.0
    %1139 = vmatprep.subr.mxu0 0.0
    %1140 = vmatpush1.msra.mxu0 0.0
    %1141 = vmatprep.subr.mxu0 0.0
    %1142 = vmatpush1.msra.mxu0 0.0
    %1143 = vmatprep.subr.mxu0 0.0
    %1144 = vmatpush1.msra.mxu0 0.0
    %1145 = vmatprep.subr.mxu0 0.0
    %1146 = vmatpush1.msra.mxu0 0.0
    %1147 = vmatprep.subr.mxu0 0.0
    %1148 = vmatpush1.msra.mxu0 0.0
    %1149 = vmatprep.subr.mxu0 0.0
    %1150 = vmatpush1.msra.mxu0 0.0
    %1151 = vmatprep.subr.mxu0 0.0
    %1152 = vmatpush1.msra.mxu0 0.0
    %1153 = vmatprep.subr.mxu0 0.0
    %1154 = vmatpush1.msra.mxu0 0.0
    %1155 = vmatprep.subr.mxu0 0.0
    %1156 = vmatpush1.msra.mxu0 0.0
    %1157 = vmatprep.subr.mxu0 0.0
    %1158 = vmatpush1.msra.mxu0 0.0
    %1159 = vmatprep.subr.mxu0 0.0
    %1160 = vmatpush1.msra.mxu0 0.0
    %1161 = vmatprep.subr.mxu0 0.0
    %1162 = vmatpush1.msra.mxu0 0.0
    %1163 = vmatprep.subr.mxu0 0.0
    %1164 = vmatpush1.msra.mxu0 0.0
    %1165 = vmatprep.subr.mxu0 0.0
    %1166 = vmatpush1.msra.mxu0 0.0
    %1167 = vmatprep.subr.mxu0 0.0
    %1168 = vmatpush1.msra.mxu0 0.0
    %1169 = vmatprep.subr.mxu0 0.0
    %1170 = vmatpush1.msra.mxu0 0.0
    %1171 = vmatprep.subr.mxu0 0.0
    %1172 = vmatpush1.msra.mxu0 0.0
    %1173 = vmatprep.subr.mxu0 0.0
    %1174 = vmatpush1.msra.mxu0 0.0
    %1175 = vmatprep.subr.mxu0 0.0
    %1176 = vmatpush1.msra.mxu0 0.0
    %1177 = vmatprep.subr.mxu0 0.0
    %1178 = vmatpush1.msra.mxu0 0.0
    %1179 = vmatprep.subr.mxu0 0.0
    %1180 = vmatpush1.msra.mxu0 0.0
    %1181 = vmatprep.mubr.f32.mxu0 0.0
    %1182 = vmatmul.mubr.f32.gmra.mrb[0].mxu0 %v1115
    %v1183 = vpop.f32.mrb[0].mxu0
    %v1184 = vadd.f32 0.0, %v1183
    %v1185 = vpop.f32.mrb[0].mxu0
    %1186 = vdwg.mxu0
    %v1187 = vadd.f32 %v1016, %v1184
    %1188 = vrot.lane.b32.xlu0 %v347, 80
    %v1189 = vpop.permute.xlu0 %1188
    %1190 = vrot.lane.b32.xlu0 %v352, 80
    %v1191 = vpop.permute.xlu0 %1190
    %1192 = vrot.lane.b32.xlu0 %v357, 80
    %v1193 = vpop.permute.xlu0 %1192
    %1194 = vrot.lane.b32.xlu0 %v362, 80
    %v1195 = vpop.permute.xlu0 %1194
    %1196 = vrot.lane.b32.xlu0 %v367, 80
    %v1197 = vpop.permute.xlu0 %1196
    %1198 = vrot.lane.b32.xlu0 %v372, 80
    %v1199 = vpop.permute.xlu0 %1198
    %1200 = vrot.lane.b32.xlu0 %v377, 80
    %v1201 = vpop.permute.xlu0 %1200
    %1202 = vrot.lane.b32.xlu0 %v382, 80
    %v1203 = vpop.permute.xlu0 %1202
    %v1213 = vsel %vm801, %v844, 0
    %1215 = vmatprep.subr.mxu0 0.0
    %1216 = vmatpush1.msra.mxu0 %v1189
    %1217 = vmatprep.subr.mxu0 0.0
    %1218 = vmatpush1.msra.mxu0 %v1191
    %1219 = vmatprep.subr.mxu0 0.0
    %1220 = vmatpush1.msra.mxu0 %v1193
    %1221 = vmatprep.subr.mxu0 0.0
    %1222 = vmatpush1.msra.mxu0 %v1195
    %1223 = vmatprep.subr.mxu0 0.0
    %1224 = vmatpush1.msra.mxu0 %v1197
    %1225 = vmatprep.subr.mxu0 0.0
    %1226 = vmatpush1.msra.mxu0 %v1199
    %1227 = vmatprep.subr.mxu0 0.0
    %1228 = vmatpush1.msra.mxu0 %v1201
    %1229 = vmatprep.subr.mxu0 0.0
    %1230 = vmatpush1.msra.mxu0 %v1203
    %1231 = vmatprep.subr.mxu0 0.0
    %1232 = vmatpush1.msra.mxu0 0.0
    %1233 = vmatprep.subr.mxu0 0.0
    %1234 = vmatpush1.msra.mxu0 0.0
    %1235 = vmatprep.subr.mxu0 0.0
    %1236 = vmatpush1.msra.mxu0 0.0
    %1237 = vmatprep.subr.mxu0 0.0
    %1238 = vmatpush1.msra.mxu0 0.0
    %1239 = vmatprep.subr.mxu0 0.0
    %1240 = vmatpush1.msra.mxu0 0.0
    %1241 = vmatprep.subr.mxu0 0.0
    %1242 = vmatpush1.msra.mxu0 0.0
    %1243 = vmatprep.subr.mxu0 0.0
    %1244 = vmatpush1.msra.mxu0 0.0
    %1245 = vmatprep.subr.mxu0 0.0
    %1246 = vmatpush1.msra.mxu0 0.0
    %1247 = vmatprep.subr.mxu0 0.0
    %1248 = vmatpush1.msra.mxu0 0.0
    %1249 = vmatprep.subr.mxu0 0.0
    %1250 = vmatpush1.msra.mxu0 0.0
    %1251 = vmatprep.subr.mxu0 0.0
    %1252 = vmatpush1.msra.mxu0 0.0
    %1253 = vmatprep.subr.mxu0 0.0
    %1254 = vmatpush1.msra.mxu0 0.0
    %1255 = vmatprep.subr.mxu0 0.0
    %1256 = vmatpush1.msra.mxu0 0.0
    %1257 = vmatprep.subr.mxu0 0.0
    %1258 = vmatpush1.msra.mxu0 0.0
    %1259 = vmatprep.subr.mxu0 0.0
    %1260 = vmatpush1.msra.mxu0 0.0
    %1261 = vmatprep.subr.mxu0 0.0
    %1262 = vmatpush1.msra.mxu0 0.0
    %1263 = vmatprep.subr.mxu0 0.0
    %1264 = vmatpush1.msra.mxu0 0.0
    %1265 = vmatprep.subr.mxu0 0.0
    %1266 = vmatpush1.msra.mxu0 0.0
    %1267 = vmatprep.subr.mxu0 0.0
    %1268 = vmatpush1.msra.mxu0 0.0
    %1269 = vmatprep.subr.mxu0 0.0
    %1270 = vmatpush1.msra.mxu0 0.0
    %1271 = vmatprep.subr.mxu0 0.0
    %1272 = vmatpush1.msra.mxu0 0.0
    %1273 = vmatprep.subr.mxu0 0.0
    %1274 = vmatpush1.msra.mxu0 0.0
    %1275 = vmatprep.subr.mxu0 0.0
    %1276 = vmatpush1.msra.mxu0 0.0
    %1277 = vmatprep.subr.mxu0 0.0
    %1278 = vmatpush1.msra.mxu0 0.0
    %1279 = vmatprep.mubr.f32.mxu0 0.0
    %1280 = vmatmul.mubr.f32.gmra.mrb[0].mxu0 %v1213
    %v1281 = vpop.f32.mrb[0].mxu0
    %v1282 = vadd.f32 0.0, %v1281
    %v1283 = vpop.f32.mrb[0].mxu0
    %1284 = vdwg.mxu0
    %v1286 = vsel %vm385, %v1282, 0
    %1288 = vmatprep.subr.mxu0 0.0
    %1289 = vmatpush1.msra.mxu0 %v181
    %1290 = vmatprep.subr.mxu0 0.0
    %1291 = vmatpush1.msra.mxu0 0.0
    %1292 = vmatprep.subr.mxu0 0.0
    %1293 = vmatpush1.msra.mxu0 0.0
    %1294 = vmatprep.subr.mxu0 0.0
    %1295 = vmatpush1.msra.mxu0 0.0
    %1296 = vmatprep.subr.mxu0 0.0
    %1297 = vmatpush1.msra.mxu0 0.0
    %1298 = vmatprep.subr.mxu0 0.0
    %1299 = vmatpush1.msra.mxu0 0.0
    %1300 = vmatprep.subr.mxu0 0.0
    %1301 = vmatpush1.msra.mxu0 0.0
    %1302 = vmatprep.subr.mxu0 0.0
    %1303 = vmatpush1.msra.mxu0 0.0
    %1304 = vmatprep.subr.mxu0 0.0
    %1305 = vmatpush1.msra.mxu0 0.0
    %1306 = vmatprep.subr.mxu0 0.0
    %1307 = vmatpush1.msra.mxu0 0.0
    %1308 = vmatprep.subr.mxu0 0.0
    %1309 = vmatpush1.msra.mxu0 0.0
    %1310 = vmatprep.subr.mxu0 0.0
    %1311 = vmatpush1.msra.mxu0 0.0
    %1312 = vmatprep.subr.mxu0 0.0
    %1313 = vmatpush1.msra.mxu0 0.0
    %1314 = vmatprep.subr.mxu0 0.0
    %1315 = vmatpush1.msra.mxu0 0.0
    %1316 = vmatprep.subr.mxu0 0.0
    %1317 = vmatpush1.msra.mxu0 0.0
    %1318 = vmatprep.subr.mxu0 0.0
    %1319 = vmatpush1.msra.mxu0 0.0
    %1320 = vmatprep.subr.mxu0 0.0
    %1321 = vmatpush1.msra.mxu0 0.0
    %1322 = vmatprep.subr.mxu0 0.0
    %1323 = vmatpush1.msra.mxu0 0.0
    %1324 = vmatprep.subr.mxu0 0.0
    %1325 = vmatpush1.msra.mxu0 0.0
    %1326 = vmatprep.subr.mxu0 0.0
    %1327 = vmatpush1.msra.mxu0 0.0
    %1328 = vmatprep.subr.mxu0 0.0
    %1329 = vmatpush1.msra.mxu0 0.0
    %1330 = vmatprep.subr.mxu0 0.0
    %1331 = vmatpush1.msra.mxu0 0.0
    %1332 = vmatprep.subr.mxu0 0.0
    %1333 = vmatpush1.msra.mxu0 0.0
    %1334 = vmatprep.subr.mxu0 0.0
    %1335 = vmatpush1.msra.mxu0 0.0
    %1336 = vmatprep.subr.mxu0 0.0
    %1337 = vmatpush1.msra.mxu0 0.0
    %1338 = vmatprep.subr.mxu0 0.0
    %1339 = vmatpush1.msra.mxu0 0.0
    %1340 = vmatprep.subr.mxu0 0.0
    %1341 = vmatpush1.msra.mxu0 0.0
    %1342 = vmatprep.subr.mxu0 0.0
    %1343 = vmatpush1.msra.mxu0 0.0
    %1344 = vmatprep.subr.mxu0 0.0
    %1345 = vmatpush1.msra.mxu0 0.0
    %1346 = vmatprep.subr.mxu0 0.0
    %1347 = vmatpush1.msra.mxu0 0.0
    %1348 = vmatprep.subr.mxu0 0.0
    %1349 = vmatpush1.msra.mxu0 0.0
    %1350 = vmatprep.subr.mxu0 0.0
    %1351 = vmatpush1.msra.mxu0 0.0
    %1352 = vmatprep.mubr.f32.mxu0 0.0
    %1353 = vmatmul.mubr.f32.gmra.mrb[0].mxu0 %v1286
    %v1354 = vpop.f32.mrb[0].mxu0
    %v1355 = vadd.f32 0.0, %v1354
    %v1356 = vpop.f32.mrb[0].mxu0
    %1357 = vdwg.mxu0
    %v1358 = vadd.f32 %v1187, %v1355
    %1359 = vrot.lane.b32.xlu0 %v347, 72
    %v1360 = vpop.permute.xlu0 %1359
    %1361 = vrot.lane.b32.xlu0 %v352, 72
    %v1362 = vpop.permute.xlu0 %1361
    %1363 = vrot.lane.b32.xlu0 %v357, 72
    %v1364 = vpop.permute.xlu0 %1363
    %1365 = vrot.lane.b32.xlu0 %v362, 72
    %v1366 = vpop.permute.xlu0 %1365
    %1367 = vrot.lane.b32.xlu0 %v367, 72
    %v1368 = vpop.permute.xlu0 %1367
    %1369 = vrot.lane.b32.xlu0 %v372, 72
    %v1370 = vpop.permute.xlu0 %1369
    %1371 = vrot.lane.b32.xlu0 %v377, 72
    %v1372 = vpop.permute.xlu0 %1371
    %1373 = vrot.lane.b32.xlu0 %v382, 72
    %v1374 = vpop.permute.xlu0 %1373
    %v1384 = vsel %vm801, %v845, 0
    %1386 = vmatprep.subr.mxu0 0.0
    %1387 = vmatpush1.msra.mxu0 %v1360
    %1388 = vmatprep.subr.mxu0 0.0
    %1389 = vmatpush1.msra.mxu0 %v1362
    %1390 = vmatprep.subr.mxu0 0.0
    %1391 = vmatpush1.msra.mxu0 %v1364
    %1392 = vmatprep.subr.mxu0 0.0
    %1393 = vmatpush1.msra.mxu0 %v1366
    %1394 = vmatprep.subr.mxu0 0.0
    %1395 = vmatpush1.msra.mxu0 %v1368
    %1396 = vmatprep.subr.mxu0 0.0
    %1397 = vmatpush1.msra.mxu0 %v1370
    %1398 = vmatprep.subr.mxu0 0.0
    %1399 = vmatpush1.msra.mxu0 %v1372
    %1400 = vmatprep.subr.mxu0 0.0
    %1401 = vmatpush1.msra.mxu0 %v1374
    %1402 = vmatprep.subr.mxu0 0.0
    %1403 = vmatpush1.msra.mxu0 0.0
    %1404 = vmatprep.subr.mxu0 0.0
    %1405 = vmatpush1.msra.mxu0 0.0
    %1406 = vmatprep.subr.mxu0 0.0
    %1407 = vmatpush1.msra.mxu0 0.0
    %1408 = vmatprep.subr.mxu0 0.0
    %1409 = vmatpush1.msra.mxu0 0.0
    %1410 = vmatprep.subr.mxu0 0.0
    %1411 = vmatpush1.msra.mxu0 0.0
    %1412 = vmatprep.subr.mxu0 0.0
    %1413 = vmatpush1.msra.mxu0 0.0
    %1414 = vmatprep.subr.mxu0 0.0
    %1415 = vmatpush1.msra.mxu0 0.0
    %1416 = vmatprep.subr.mxu0 0.0
    %1417 = vmatpush1.msra.mxu0 0.0
    %1418 = vmatprep.subr.mxu0 0.0
    %1419 = vmatpush1.msra.mxu0 0.0
    %1420 = vmatprep.subr.mxu0 0.0
    %1421 = vmatpush1.msra.mxu0 0.0
    %1422 = vmatprep.subr.mxu0 0.0
    %1423 = vmatpush1.msra.mxu0 0.0
    %1424 = vmatprep.subr.mxu0 0.0
    %1425 = vmatpush1.msra.mxu0 0.0
    %1426 = vmatprep.subr.mxu0 0.0
    %1427 = vmatpush1.msra.mxu0 0.0
    %1428 = vmatprep.subr.mxu0 0.0
    %1429 = vmatpush1.msra.mxu0 0.0
    %1430 = vmatprep.subr.mxu0 0.0
    %1431 = vmatpush1.msra.mxu0 0.0
    %1432 = vmatprep.subr.mxu0 0.0
    %1433 = vmatpush1.msra.mxu0 0.0
    %1434 = vmatprep.subr.mxu0 0.0
    %1435 = vmatpush1.msra.mxu0 0.0
    %1436 = vmatprep.subr.mxu0 0.0
    %1437 = vmatpush1.msra.mxu0 0.0
    %1438 = vmatprep.subr.mxu0 0.0
    %1439 = vmatpush1.msra.mxu0 0.0
    %1440 = vmatprep.subr.mxu0 0.0
    %1441 = vmatpush1.msra.mxu0 0.0
    %1442 = vmatprep.subr.mxu0 0.0
    %1443 = vmatpush1.msra.mxu0 0.0
    %1444 = vmatprep.subr.mxu0 0.0
    %1445 = vmatpush1.msra.mxu0 0.0
    %1446 = vmatprep.subr.mxu0 0.0
    %1447 = vmatpush1.msra.mxu0 0.0
    %1448 = vmatprep.subr.mxu0 0.0
    %1449 = vmatpush1.msra.mxu0 0.0
    %1450 = vmatprep.mubr.f32.mxu0 0.0
    %1451 = vmatmul.mubr.f32.gmra.mrb[0].mxu0 %v1384
    %v1452 = vpop.f32.mrb[0].mxu0
    %v1453 = vadd.f32 0.0, %v1452
    %v1454 = vpop.f32.mrb[0].mxu0
    %1455 = vdwg.mxu0
    %v1457 = vsel %vm385, %v1453, 0
    %1459 = vmatprep.subr.mxu0 0.0
    %1460 = vmatpush1.msra.mxu0 %v182
    %1461 = vmatprep.subr.mxu0 0.0
    %1462 = vmatpush1.msra.mxu0 0.0
    %1463 = vmatprep.subr.mxu0 0.0
    %1464 = vmatpush1.msra.mxu0 0.0
    %1465 = vmatprep.subr.mxu0 0.0
    %1466 = vmatpush1.msra.mxu0 0.0
    %1467 = vmatprep.subr.mxu0 0.0
    %1468 = vmatpush1.msra.mxu0 0.0
    %1469 = vmatprep.subr.mxu0 0.0
    %1470 = vmatpush1.msra.mxu0 0.0
    %1471 = vmatprep.subr.mxu0 0.0
    %1472 = vmatpush1.msra.mxu0 0.0
    %1473 = vmatprep.subr.mxu0 0.0
    %1474 = vmatpush1.msra.mxu0 0.0
    %1475 = vmatprep.subr.mxu0 0.0
    %1476 = vmatpush1.msra.mxu0 0.0
    %1477 = vmatprep.subr.mxu0 0.0
    %1478 = vmatpush1.msra.mxu0 0.0
    %1479 = vmatprep.subr.mxu0 0.0
    %1480 = vmatpush1.msra.mxu0 0.0
    %1481 = vmatprep.subr.mxu0 0.0
    %1482 = vmatpush1.msra.mxu0 0.0
    %1483 = vmatprep.subr.mxu0 0.0
    %1484 = vmatpush1.msra.mxu0 0.0
    %1485 = vmatprep.subr.mxu0 0.0
    %1486 = vmatpush1.msra.mxu0 0.0
    %1487 = vmatprep.subr.mxu0 0.0
    %1488 = vmatpush1.msra.mxu0 0.0
    %1489 = vmatprep.subr.mxu0 0.0
    %1490 = vmatpush1.msra.mxu0 0.0
    %1491 = vmatprep.subr.mxu0 0.0
    %1492 = vmatpush1.msra.mxu0 0.0
    %1493 = vmatprep.subr.mxu0 0.0
    %1494 = vmatpush1.msra.mxu0 0.0
    %1495 = vmatprep.subr.mxu0 0.0
    %1496 = vmatpush1.msra.mxu0 0.0
    %1497 = vmatprep.subr.mxu0 0.0
    %1498 = vmatpush1.msra.mxu0 0.0
    %1499 = vmatprep.subr.mxu0 0.0
    %1500 = vmatpush1.msra.mxu0 0.0
    %1501 = vmatprep.subr.mxu0 0.0
    %1502 = vmatpush1.msra.mxu0 0.0
    %1503 = vmatprep.subr.mxu0 0.0
    %1504 = vmatpush1.msra.mxu0 0.0
    %1505 = vmatprep.subr.mxu0 0.0
    %1506 = vmatpush1.msra.mxu0 0.0
    %1507 = vmatprep.subr.mxu0 0.0
    %1508 = vmatpush1.msra.mxu0 0.0
    %1509 = vmatprep.subr.mxu0 0.0
    %1510 = vmatpush1.msra.mxu0 0.0
    %1511 = vmatprep.subr.mxu0 0.0
    %1512 = vmatpush1.msra.mxu0 0.0
    %1513 = vmatprep.subr.mxu0 0.0
    %1514 = vmatpush1.msra.mxu0 0.0
    %1515 = vmatprep.subr.mxu0 0.0
    %1516 = vmatpush1.msra.mxu0 0.0
    %1517 = vmatprep.subr.mxu0 0.0
    %1518 = vmatpush1.msra.mxu0 0.0
    %1519 = vmatprep.subr.mxu0 0.0
    %1520 = vmatpush1.msra.mxu0 0.0
    %1521 = vmatprep.subr.mxu0 0.0
    %1522 = vmatpush1.msra.mxu0 0.0
    %1523 = vmatprep.mubr.f32.mxu0 0.0
    %1524 = vmatmul.mubr.f32.gmra.mrb[0].mxu0 %v1457
    %v1525 = vpop.f32.mrb[0].mxu0
    %v1526 = vadd.f32 0.0, %v1525
    %v1527 = vpop.f32.mrb[0].mxu0
    %1528 = vdwg.mxu0
    %v1529 = vadd.f32 %v1358, %v1526
    %1530 = vmatprep.subr.mxu0 0.0
    %1531 = vmatpush1.msra.mxu0 %v171
    %1532 = vmatprep.subr.mxu0 0.0
    %1533 = vmatpush1.msra.mxu0 %v172
    %1534 = vmatprep.subr.mxu0 0.0
    %1535 = vmatpush1.msra.mxu0 %v173
    %1536 = vmatprep.subr.mxu0 0.0
    %1537 = vmatpush1.msra.mxu0 %v174
    %1538 = vmatprep.subr.mxu0 0.0
    %1539 = vmatpush1.msra.mxu0 0.0
    %1540 = vmatprep.subr.mxu0 0.0
    %1541 = vmatpush1.msra.mxu0 0.0
    %1542 = vmatprep.subr.mxu0 0.0
    %1543 = vmatpush1.msra.mxu0 0.0
    %1544 = vmatprep.subr.mxu0 0.0
    %1545 = vmatpush1.msra.mxu0 0.0
    %1546 = vmatprep.subr.mxu0 0.0
    %1547 = vmatpush1.msra.mxu0 0.0
    %1548 = vmatprep.subr.mxu0 0.0
    %1549 = vmatpush1.msra.mxu0 0.0
    %1550 = vmatprep.subr.mxu0 0.0
    %1551 = vmatpush1.msra.mxu0 0.0
    %1552 = vmatprep.subr.mxu0 0.0
    %1553 = vmatpush1.msra.mxu0 0.0
    %1554 = vmatprep.subr.mxu0 0.0
    %1555 = vmatpush1.msra.mxu0 0.0
    %1556 = vmatprep.subr.mxu0 0.0
    %1557 = vmatpush1.msra.mxu0 0.0
    %1558 = vmatprep.subr.mxu0 0.0
    %1559 = vmatpush1.msra.mxu0 0.0
    %1560 = vmatprep.subr.mxu0 0.0
    %1561 = vmatpush1.msra.mxu0 0.0
    %1562 = vmatprep.subr.mxu0 0.0
    %1563 = vmatpush1.msra.mxu0 0.0
    %1564 = vmatprep.subr.mxu0 0.0
    %1565 = vmatpush1.msra.mxu0 0.0
    %1566 = vmatprep.subr.mxu0 0.0
    %1567 = vmatpush1.msra.mxu0 0.0
    %1568 = vmatprep.subr.mxu0 0.0
    %1569 = vmatpush1.msra.mxu0 0.0
    %1570 = vmatprep.subr.mxu0 0.0
    %1571 = vmatpush1.msra.mxu0 0.0
    %1572 = vmatprep.subr.mxu0 0.0
    %1573 = vmatpush1.msra.mxu0 0.0
    %1574 = vmatprep.subr.mxu0 0.0
    %1575 = vmatpush1.msra.mxu0 0.0
    %1576 = vmatprep.subr.mxu0 0.0
    %1577 = vmatpush1.msra.mxu0 0.0
    %1578 = vmatprep.subr.mxu0 0.0
    %1579 = vmatpush1.msra.mxu0 0.0
    %1580 = vmatprep.subr.mxu0 0.0
    %1581 = vmatpush1.msra.mxu0 0.0
    %1582 = vmatprep.subr.mxu0 0.0
    %1583 = vmatpush1.msra.mxu0 0.0
    %1584 = vmatprep.subr.mxu0 0.0
    %1585 = vmatpush1.msra.mxu0 0.0
    %1586 = vmatprep.subr.mxu0 0.0
    %1587 = vmatpush1.msra.mxu0 0.0
    %1588 = vmatprep.subr.mxu0 0.0
    %1589 = vmatpush1.msra.mxu0 0.0
    %1590 = vmatprep.subr.mxu0 0.0
    %1591 = vmatpush1.msra.mxu0 0.0
    %1592 = vmatprep.subr.mxu0 0.0
    %1593 = vmatpush1.msra.mxu0 0.0
    %1594 = vmatprep.mubr.f32.mxu0 0.0
    %1595 = vmatmul.mubr.f32.gmra.mrb[0].mxu0 %v257
    %v1596 = vpop.f32.mrb[0].mxu0
    %v1597 = vadd.f32 0.0, %v1596
    %v1598 = vpop.f32.mrb[0].mxu0
    %1599 = vmatprep.mubr.f32.mxu0 0.0
    %1600 = vmatmul.mubr.f32.gmra.mrb[0].mxu0 %v260
    %v1601 = vpop.f32.mrb[0].mxu0
    %v1602 = vadd.f32 0.0, %v1601
    %v1603 = vpop.f32.mrb[0].mxu0
    %1604 = vmatprep.mubr.f32.mxu0 0.0
    %1605 = vmatmul.mubr.f32.gmra.mrb[0].mxu0 %v263
    %v1606 = vpop.f32.mrb[0].mxu0
    %v1607 = vadd.f32 0.0, %v1606
    %v1608 = vpop.f32.mrb[0].mxu0
    %1609 = vmatprep.mubr.f32.mxu0 0.0
    %1610 = vmatmul.mubr.f32.gmra.mrb[0].mxu0 %v266
    %v1611 = vpop.f32.mrb[0].mxu0
    %v1612 = vadd.f32 0.0, %v1611
    %v1613 = vpop.f32.mrb[0].mxu0
    %1614 = vmatprep.mubr.f32.mxu0 0.0
    %1615 = vmatmul.mubr.f32.gmra.mrb[0].mxu0 %v269
    %v1616 = vpop.f32.mrb[0].mxu0
    %v1617 = vadd.f32 0.0, %v1616
    %v1618 = vpop.f32.mrb[0].mxu0
    %1619 = vmatprep.mubr.f32.mxu0 0.0
    %1620 = vmatmul.mubr.f32.gmra.mrb[0].mxu0 %v272
    %v1621 = vpop.f32.mrb[0].mxu0
    %v1622 = vadd.f32 0.0, %v1621
    %v1623 = vpop.f32.mrb[0].mxu0
    %1624 = vmatprep.mubr.f32.mxu0 0.0
    %1625 = vmatmul.mubr.f32.gmra.mrb[0].mxu0 %v275
    %v1626 = vpop.f32.mrb[0].mxu0
    %v1627 = vadd.f32 0.0, %v1626
    %v1628 = vpop.f32.mrb[0].mxu0
    %1629 = vmatprep.mubr.f32.mxu0 0.0
    %1630 = vmatmul.mubr.f32.gmra.mrb[0].mxu0 %v278
    %v1631 = vpop.f32.mrb[0].mxu0
    %v1632 = vadd.f32 0.0, %v1631
    %v1633 = vpop.f32.mrb[0].mxu0
    %1634 = vdwg.mxu0
    %v1636 = vsel %vm120, %v1529, 0
    %1638 = vmatprep.subr.mxu0 0.0
    %1639 = vmatpush1.msra.mxu0 %v175
    %1640 = vmatprep.subr.mxu0 0.0
    %1641 = vmatpush1.msra.mxu0 %v176
    %1642 = vmatprep.subr.mxu0 0.0
    %1643 = vmatpush1.msra.mxu0 %v177
    %1644 = vmatprep.subr.mxu0 0.0
    %1645 = vmatpush1.msra.mxu0 %v178
    %1646 = vmatprep.subr.mxu0 0.0
    %1647 = vmatpush1.msra.mxu0 0.0
    %1648 = vmatprep.subr.mxu0 0.0
    %1649 = vmatpush1.msra.mxu0 0.0
    %1650 = vmatprep.subr.mxu0 0.0
    %1651 = vmatpush1.msra.mxu0 0.0
    %1652 = vmatprep.subr.mxu0 0.0
    %1653 = vmatpush1.msra.mxu0 0.0
    %1654 = vmatprep.subr.mxu0 0.0
    %1655 = vmatpush1.msra.mxu0 0.0
    %1656 = vmatprep.subr.mxu0 0.0
    %1657 = vmatpush1.msra.mxu0 0.0
    %1658 = vmatprep.subr.mxu0 0.0
    %1659 = vmatpush1.msra.mxu0 0.0
    %1660 = vmatprep.subr.mxu0 0.0
    %1661 = vmatpush1.msra.mxu0 0.0
    %1662 = vmatprep.subr.mxu0 0.0
    %1663 = vmatpush1.msra.mxu0 0.0
    %1664 = vmatprep.subr.mxu0 0.0
    %1665 = vmatpush1.msra.mxu0 0.0
    %1666 = vmatprep.subr.mxu0 0.0
    %1667 = vmatpush1.msra.mxu0 0.0
    %1668 = vmatprep.subr.mxu0 0.0
    %1669 = vmatpush1.msra.mxu0 0.0
    %1670 = vmatprep.subr.mxu0 0.0
    %1671 = vmatpush1.msra.mxu0 0.0
    %1672 = vmatprep.subr.mxu0 0.0
    %1673 = vmatpush1.msra.mxu0 0.0
    %1674 = vmatprep.subr.mxu0 0.0
    %1675 = vmatpush1.msra.mxu0 0.0
    %1676 = vmatprep.subr.mxu0 0.0
    %1677 = vmatpush1.msra.mxu0 0.0
    %1678 = vmatprep.subr.mxu0 0.0
    %1679 = vmatpush1.msra.mxu0 0.0
    %1680 = vmatprep.subr.mxu0 0.0
    %1681 = vmatpush1.msra.mxu0 0.0
    %1682 = vmatprep.subr.mxu0 0.0
    %1683 = vmatpush1.msra.mxu0 0.0
    %1684 = vmatprep.subr.mxu0 0.0
    %1685 = vmatpush1.msra.mxu0 0.0
    %1686 = vmatprep.subr.mxu0 0.0
    %1687 = vmatpush1.msra.mxu0 0.0
    %1688 = vmatprep.subr.mxu0 0.0
    %1689 = vmatpush1.msra.mxu0 0.0
    %1690 = vmatprep.subr.mxu0 0.0
    %1691 = vmatpush1.msra.mxu0 0.0
    %1692 = vmatprep.subr.mxu0 0.0
    %1693 = vmatpush1.msra.mxu0 0.0
    %1694 = vmatprep.subr.mxu0 0.0
    %1695 = vmatpush1.msra.mxu0 0.0
    %1696 = vmatprep.subr.mxu0 0.0
    %1697 = vmatpush1.msra.mxu0 0.0
    %1698 = vmatprep.subr.mxu0 0.0
    %1699 = vmatpush1.msra.mxu0 0.0
    %1700 = vmatprep.subr.mxu0 0.0
    %1701 = vmatpush1.msra.mxu0 0.0
    %1702 = vmatprep.mubr.f32.mxu0 0.0
    %1703 = vmatmul.mubr.f32.gmra.mrb[0].mxu0 %v1636
    %v1704 = vpop.f32.mrb[0].mxu0
    %v1705 = vadd.f32 0.0, %v1704
    %v1706 = vpop.f32.mrb[0].mxu0
    %1707 = vdwg.mxu0
    %v1709 = vsel %vm385, %v1597, 0
    %v1712 = vsel %vm385, %v1602, 0
    %v1715 = vsel %vm385, %v1607, 0
    %v1718 = vsel %vm385, %v1612, 0
    %v1721 = vsel %vm385, %v1617, 0
    %v1724 = vsel %vm385, %v1622, 0
    %v1727 = vsel %vm385, %v1627, 0
    %v1730 = vsel %vm385, %v1632, 0
    %v1733 = vsel %vm385, %v1705, 0
    %1735 = vmatprep.subr.mxu0 0.0
    %1736 = vmatpush1.xpose.msra.mxu0 %v1733
    %1737 = vmatprep.subr.mxu0 0.0
    %1738 = vmatpush1.xpose.msra.mxu0 0.0
    %1739 = vmatprep.subr.mxu0 0.0
    %1740 = vmatpush1.xpose.msra.mxu0 0.0
    %1741 = vmatprep.subr.mxu0 0.0
    %1742 = vmatpush1.xpose.msra.mxu0 0.0
    %1743 = vmatprep.subr.mxu0 0.0
    %1744 = vmatpush1.xpose.msra.mxu0 0.0
    %1745 = vmatprep.subr.mxu0 0.0
    %1746 = vmatpush1.xpose.msra.mxu0 0.0
    %1747 = vmatprep.subr.mxu0 0.0
    %1748 = vmatpush1.xpose.msra.mxu0 0.0
    %1749 = vmatprep.subr.mxu0 0.0
    %1750 = vmatpush1.xpose.msra.mxu0 0.0
    %1751 = vmatprep.subr.mxu0 0.0
    %1752 = vmatpush1.xpose.msra.mxu0 0.0
    %1753 = vmatprep.subr.mxu0 0.0
    %1754 = vmatpush1.xpose.msra.mxu0 0.0
    %1755 = vmatprep.subr.mxu0 0.0
    %1756 = vmatpush1.xpose.msra.mxu0 0.0
    %1757 = vmatprep.subr.mxu0 0.0
    %1758 = vmatpush1.xpose.msra.mxu0 0.0
    %1759 = vmatprep.subr.mxu0 0.0
    %1760 = vmatpush1.xpose.msra.mxu0 0.0
    %1761 = vmatprep.subr.mxu0 0.0
    %1762 = vmatpush1.xpose.msra.mxu0 0.0
    %1763 = vmatprep.subr.mxu0 0.0
    %1764 = vmatpush1.xpose.msra.mxu0 0.0
    %1765 = vmatprep.subr.mxu0 0.0
    %1766 = vmatpush1.xpose.msra.mxu0 0.0
    %1767 = vmatprep.subr.mxu0 0.0
    %1768 = vmatpush1.xpose.msra.mxu0 0.0
    %1769 = vmatprep.subr.mxu0 0.0
    %1770 = vmatpush1.xpose.msra.mxu0 0.0
    %1771 = vmatprep.subr.mxu0 0.0
    %1772 = vmatpush1.xpose.msra.mxu0 0.0
    %1773 = vmatprep.subr.mxu0 0.0
    %1774 = vmatpush1.xpose.msra.mxu0 0.0
    %1775 = vmatprep.subr.mxu0 0.0
    %1776 = vmatpush1.xpose.msra.mxu0 0.0
    %1777 = vmatprep.subr.mxu0 0.0
    %1778 = vmatpush1.xpose.msra.mxu0 0.0
    %1779 = vmatprep.subr.mxu0 0.0
    %1780 = vmatpush1.xpose.msra.mxu0 0.0
    %1781 = vmatprep.subr.mxu0 0.0
    %1782 = vmatpush1.xpose.msra.mxu0 0.0
    %1783 = vmatprep.subr.mxu0 0.0
    %1784 = vmatpush1.xpose.msra.mxu0 0.0
    %1785 = vmatprep.subr.mxu0 0.0
    %1786 = vmatpush1.xpose.msra.mxu0 0.0
    %1787 = vmatprep.subr.mxu0 0.0
    %1788 = vmatpush1.xpose.msra.mxu0 0.0
    %1789 = vmatprep.subr.mxu0 0.0
    %1790 = vmatpush1.xpose.msra.mxu0 0.0
    %1791 = vmatprep.subr.mxu0 0.0
    %1792 = vmatpush1.xpose.msra.mxu0 0.0
    %1793 = vmatprep.subr.mxu0 0.0
    %1794 = vmatpush1.xpose.msra.mxu0 0.0
    %1795 = vmatprep.subr.mxu0 0.0
    %1796 = vmatpush1.xpose.msra.mxu0 0.0
    %1797 = vmatprep.subr.mxu0 0.0
    %1798 = vmatpush1.xpose.msra.mxu0 0.0
    %1799 = vmatprep.mubr.f32.mxu0 0.0
    %1800 = vmatmul.mubr.f32.gmra.mrb[0].mxu0 %v1709
    %v1801 = vpop.f32.mrb[0].mxu0
    %v1802 = vadd.f32 0.0, %v1801
    %v1803 = vpop.f32.mrb[0].mxu0
    %1804 = vmatprep.mubr.f32.mxu0 0.0
    %1805 = vmatmul.mubr.f32.gmra.mrb[0].mxu0 %v1712
    %v1806 = vpop.f32.mrb[0].mxu0
    %v1807 = vadd.f32 0.0, %v1806
    %v1808 = vpop.f32.mrb[0].mxu0
    %1809 = vmatprep.mubr.f32.mxu0 0.0
    %1810 = vmatmul.mubr.f32.gmra.mrb[0].mxu0 %v1715
    %v1811 = vpop.f32.mrb[0].mxu0
    %v1812 = vadd.f32 0.0, %v1811
    %v1813 = vpop.f32.mrb[0].mxu0
    %1814 = vmatprep.mubr.f32.mxu0 0.0
    %1815 = vmatmul.mubr.f32.gmra.mrb[0].mxu0 %v1718
    %v1816 = vpop.f32.mrb[0].mxu0
    %v1817 = vadd.f32 0.0, %v1816
    %v1818 = vpop.f32.mrb[0].mxu0
    %1819 = vmatprep.mubr.f32.mxu0 0.0
    %1820 = vmatmul.mubr.f32.gmra.mrb[0].mxu0 %v1721
    %v1821 = vpop.f32.mrb[0].mxu0
    %v1822 = vadd.f32 0.0, %v1821
    %v1823 = vpop.f32.mrb[0].mxu0
    %1824 = vmatprep.mubr.f32.mxu0 0.0
    %1825 = vmatmul.mubr.f32.gmra.mrb[0].mxu0 %v1724
    %v1826 = vpop.f32.mrb[0].mxu0
    %v1827 = vadd.f32 0.0, %v1826
    %v1828 = vpop.f32.mrb[0].mxu0
    %1829 = vmatprep.mubr.f32.mxu0 0.0
    %1830 = vmatmul.mubr.f32.gmra.mrb[0].mxu0 %v1727
    %v1831 = vpop.f32.mrb[0].mxu0
    %v1832 = vadd.f32 0.0, %v1831
    %v1833 = vpop.f32.mrb[0].mxu0
    %1834 = vmatprep.mubr.f32.mxu0 0.0
    %1835 = vmatmul.mubr.f32.gmra.mrb[0].mxu0 %v1730
    %v1836 = vpop.f32.mrb[0].mxu0
    %v1837 = vadd.f32 0.0, %v1836
    %v1838 = vpop.f32.mrb[0].mxu0
    %1839 = vdwg.mxu0
    %1840 = vrot.lane.b32.xlu0 %v1597, 120
    %v1841 = vpop.permute.xlu0 %1840
    %1842 = vrot.lane.b32.xlu0 %v1602, 120
    %v1843 = vpop.permute.xlu0 %1842
    %1844 = vrot.lane.b32.xlu0 %v1607, 120
    %v1845 = vpop.permute.xlu0 %1844
    %1846 = vrot.lane.b32.xlu0 %v1612, 120
    %v1847 = vpop.permute.xlu0 %1846
    %1848 = vrot.lane.b32.xlu0 %v1617, 120
    %v1849 = vpop.permute.xlu0 %1848
    %1850 = vrot.lane.b32.xlu0 %v1622, 120
    %v1851 = vpop.permute.xlu0 %1850
    %1852 = vrot.lane.b32.xlu0 %v1627, 120
    %v1853 = vpop.permute.xlu0 %1852
    %1854 = vrot.lane.b32.xlu0 %v1632, 120
    %v1855 = vpop.permute.xlu0 %1854
    %1856 = vrot.lane.b32.xlu0 %v1705, 120
    %v1857 = vpop.permute.xlu0 %1856
    %v1858 = vsel %vm385, %v1841, 0
    %v1860 = vsel %vm385, %v1843, 0
    %v1862 = vsel %vm385, %v1845, 0
    %v1864 = vsel %vm385, %v1847, 0
    %v1866 = vsel %vm385, %v1849, 0
    %v1868 = vsel %vm385, %v1851, 0
    %v1870 = vsel %vm385, %v1853, 0
    %v1872 = vsel %vm385, %v1855, 0
    %v1874 = vsel %vm385, %v1857, 0
    %1876 = vmatprep.subr.mxu0 0.0
    %1877 = vmatpush1.xpose.msra.mxu0 %v1874
    %1878 = vmatprep.subr.mxu0 0.0
    %1879 = vmatpush1.xpose.msra.mxu0 0.0
    %1880 = vmatprep.subr.mxu0 0.0
    %1881 = vmatpush1.xpose.msra.mxu0 0.0
    %1882 = vmatprep.subr.mxu0 0.0
    %1883 = vmatpush1.xpose.msra.mxu0 0.0
    %1884 = vmatprep.subr.mxu0 0.0
    %1885 = vmatpush1.xpose.msra.mxu0 0.0
    %1886 = vmatprep.subr.mxu0 0.0
    %1887 = vmatpush1.xpose.msra.mxu0 0.0
    %1888 = vmatprep.subr.mxu0 0.0
    %1889 = vmatpush1.xpose.msra.mxu0 0.0
    %1890 = vmatprep.subr.mxu0 0.0
    %1891 = vmatpush1.xpose.msra.mxu0 0.0
    %1892 = vmatprep.subr.mxu0 0.0
    %1893 = vmatpush1.xpose.msra.mxu0 0.0
    %1894 = vmatprep.subr.mxu0 0.0
    %1895 = vmatpush1.xpose.msra.mxu0 0.0
    %1896 = vmatprep.subr.mxu0 0.0
    %1897 = vmatpush1.xpose.msra.mxu0 0.0
    %1898 = vmatprep.subr.mxu0 0.0
    %1899 = vmatpush1.xpose.msra.mxu0 0.0
    %1900 = vmatprep.subr.mxu0 0.0
    %1901 = vmatpush1.xpose.msra.mxu0 0.0
    %1902 = vmatprep.subr.mxu0 0.0
    %1903 = vmatpush1.xpose.msra.mxu0 0.0
    %1904 = vmatprep.subr.mxu0 0.0
    %1905 = vmatpush1.xpose.msra.mxu0 0.0
    %1906 = vmatprep.subr.mxu0 0.0
    %1907 = vmatpush1.xpose.msra.mxu0 0.0
    %1908 = vmatprep.subr.mxu0 0.0
    %1909 = vmatpush1.xpose.msra.mxu0 0.0
    %1910 = vmatprep.subr.mxu0 0.0
    %1911 = vmatpush1.xpose.msra.mxu0 0.0
    %1912 = vmatprep.subr.mxu0 0.0
    %1913 = vmatpush1.xpose.msra.mxu0 0.0
    %1914 = vmatprep.subr.mxu0 0.0
    %1915 = vmatpush1.xpose.msra.mxu0 0.0
    %1916 = vmatprep.subr.mxu0 0.0
    %1917 = vmatpush1.xpose.msra.mxu0 0.0
    %1918 = vmatprep.subr.mxu0 0.0
    %1919 = vmatpush1.xpose.msra.mxu0 0.0
    %1920 = vmatprep.subr.mxu0 0.0
    %1921 = vmatpush1.xpose.msra.mxu0 0.0
    %1922 = vmatprep.subr.mxu0 0.0
    %1923 = vmatpush1.xpose.msra.mxu0 0.0
    %1924 = vmatprep.subr.mxu0 0.0
    %1925 = vmatpush1.xpose.msra.mxu0 0.0
    %1926 = vmatprep.subr.mxu0 0.0
    %1927 = vmatpush1.xpose.msra.mxu0 0.0
    %1928 = vmatprep.subr.mxu0 0.0
    %1929 = vmatpush1.xpose.msra.mxu0 0.0
    %1930 = vmatprep.subr.mxu0 0.0
    %1931 = vmatpush1.xpose.msra.mxu0 0.0
    %1932 = vmatprep.subr.mxu0 0.0
    %1933 = vmatpush1.xpose.msra.mxu0 0.0
    %1934 = vmatprep.subr.mxu0 0.0
    %1935 = vmatpush1.xpose.msra.mxu0 0.0
    %1936 = vmatprep.subr.mxu0 0.0
    %1937 = vmatpush1.xpose.msra.mxu0 0.0
    %1938 = vmatprep.subr.mxu0 0.0
    %1939 = vmatpush1.xpose.msra.mxu0 0.0
    %1940 = vmatprep.mubr.f32.mxu0 0.0
    %1941 = vmatmul.mubr.f32.gmra.mrb[0].mxu0 %v1858
    %v1942 = vpop.f32.mrb[0].mxu0
    %v1943 = vadd.f32 0.0, %v1942
    %v1944 = vpop.f32.mrb[0].mxu0
    %1945 = vmatprep.mubr.f32.mxu0 0.0
    %1946 = vmatmul.mubr.f32.gmra.mrb[0].mxu0 %v1860
    %v1947 = vpop.f32.mrb[0].mxu0
    %v1948 = vadd.f32 0.0, %v1947
    %v1949 = vpop.f32.mrb[0].mxu0
    %1950 = vmatprep.mubr.f32.mxu0 0.0
    %1951 = vmatmul.mubr.f32.gmra.mrb[0].mxu0 %v1862
    %v1952 = vpop.f32.mrb[0].mxu0
    %v1953 = vadd.f32 0.0, %v1952
    %v1954 = vpop.f32.mrb[0].mxu0
    %1955 = vmatprep.mubr.f32.mxu0 0.0
    %1956 = vmatmul.mubr.f32.gmra.mrb[0].mxu0 %v1864
    %v1957 = vpop.f32.mrb[0].mxu0
    %v1958 = vadd.f32 0.0, %v1957
    %v1959 = vpop.f32.mrb[0].mxu0
    %1960 = vmatprep.mubr.f32.mxu0 0.0
    %1961 = vmatmul.mubr.f32.gmra.mrb[0].mxu0 %v1866
    %v1962 = vpop.f32.mrb[0].mxu0
    %v1963 = vadd.f32 0.0, %v1962
    %v1964 = vpop.f32.mrb[0].mxu0
    %1965 = vmatprep.mubr.f32.mxu0 0.0
    %1966 = vmatmul.mubr.f32.gmra.mrb[0].mxu0 %v1868
    %v1967 = vpop.f32.mrb[0].mxu0
    %v1968 = vadd.f32 0.0, %v1967
    %v1969 = vpop.f32.mrb[0].mxu0
    %1970 = vmatprep.mubr.f32.mxu0 0.0
    %1971 = vmatmul.mubr.f32.gmra.mrb[0].mxu0 %v1870
    %v1972 = vpop.f32.mrb[0].mxu0
    %v1973 = vadd.f32 0.0, %v1972
    %v1974 = vpop.f32.mrb[0].mxu0
    %1975 = vmatprep.mubr.f32.mxu0 0.0
    %1976 = vmatmul.mubr.f32.gmra.mrb[0].mxu0 %v1872
    %v1977 = vpop.f32.mrb[0].mxu0
    %v1978 = vadd.f32 0.0, %v1977
    %v1979 = vpop.f32.mrb[0].mxu0
    %1980 = vdwg.mxu0
    %1981 = vrot.lane.b32.xlu0 %v1597, 112
    %v1982 = vpop.permute.xlu0 %1981
    %1983 = vrot.lane.b32.xlu0 %v1602, 112
    %v1984 = vpop.permute.xlu0 %1983
    %1985 = vrot.lane.b32.xlu0 %v1607, 112
    %v1986 = vpop.permute.xlu0 %1985
    %1987 = vrot.lane.b32.xlu0 %v1612, 112
    %v1988 = vpop.permute.xlu0 %1987
    %1989 = vrot.lane.b32.xlu0 %v1617, 112
    %v1990 = vpop.permute.xlu0 %1989
    %1991 = vrot.lane.b32.xlu0 %v1622, 112
    %v1992 = vpop.permute.xlu0 %1991
    %1993 = vrot.lane.b32.xlu0 %v1627, 112
    %v1994 = vpop.permute.xlu0 %1993
    %1995 = vrot.lane.b32.xlu0 %v1632, 112
    %v1996 = vpop.permute.xlu0 %1995
    %1997 = vrot.lane.b32.xlu0 %v1705, 112
    %v1998 = vpop.permute.xlu0 %1997
    %v1999 = vsel %vm385, %v1982, 0
    %v2001 = vsel %vm385, %v1984, 0
    %v2003 = vsel %vm385, %v1986, 0
    %v2005 = vsel %vm385, %v1988, 0
    %v2007 = vsel %vm385, %v1990, 0
    %v2009 = vsel %vm385, %v1992, 0
    %v2011 = vsel %vm385, %v1994, 0
    %v2013 = vsel %vm385, %v1996, 0
    %v2015 = vsel %vm385, %v1998, 0
    %2017 = vmatprep.subr.mxu0 0.0
    %2018 = vmatpush1.xpose.msra.mxu0 %v2015
    %2019 = vmatprep.subr.mxu0 0.0
    %2020 = vmatpush1.xpose.msra.mxu0 0.0
    %2021 = vmatprep.subr.mxu0 0.0
    %2022 = vmatpush1.xpose.msra.mxu0 0.0
    %2023 = vmatprep.subr.mxu0 0.0
    %2024 = vmatpush1.xpose.msra.mxu0 0.0
    %2025 = vmatprep.subr.mxu0 0.0
    %2026 = vmatpush1.xpose.msra.mxu0 0.0
    %2027 = vmatprep.subr.mxu0 0.0
    %2028 = vmatpush1.xpose.msra.mxu0 0.0
    %2029 = vmatprep.subr.mxu0 0.0
    %2030 = vmatpush1.xpose.msra.mxu0 0.0
    %2031 = vmatprep.subr.mxu0 0.0
    %2032 = vmatpush1.xpose.msra.mxu0 0.0
    %2033 = vmatprep.subr.mxu0 0.0
    %2034 = vmatpush1.xpose.msra.mxu0 0.0
    %2035 = vmatprep.subr.mxu0 0.0
    %2036 = vmatpush1.xpose.msra.mxu0 0.0
    %2037 = vmatprep.subr.mxu0 0.0
    %2038 = vmatpush1.xpose.msra.mxu0 0.0
    %2039 = vmatprep.subr.mxu0 0.0
    %2040 = vmatpush1.xpose.msra.mxu0 0.0
    %2041 = vmatprep.subr.mxu0 0.0
    %2042 = vmatpush1.xpose.msra.mxu0 0.0
    %2043 = vmatprep.subr.mxu0 0.0
    %2044 = vmatpush1.xpose.msra.mxu0 0.0
    %2045 = vmatprep.subr.mxu0 0.0
    %2046 = vmatpush1.xpose.msra.mxu0 0.0
    %2047 = vmatprep.subr.mxu0 0.0
    %2048 = vmatpush1.xpose.msra.mxu0 0.0
    %2049 = vmatprep.subr.mxu0 0.0
    %2050 = vmatpush1.xpose.msra.mxu0 0.0
    %2051 = vmatprep.subr.mxu0 0.0
    %2052 = vmatpush1.xpose.msra.mxu0 0.0
    %2053 = vmatprep.subr.mxu0 0.0
    %2054 = vmatpush1.xpose.msra.mxu0 0.0
    %2055 = vmatprep.subr.mxu0 0.0
    %2056 = vmatpush1.xpose.msra.mxu0 0.0
    %2057 = vmatprep.subr.mxu0 0.0
    %2058 = vmatpush1.xpose.msra.mxu0 0.0
    %2059 = vmatprep.subr.mxu0 0.0
    %2060 = vmatpush1.xpose.msra.mxu0 0.0
    %2061 = vmatprep.subr.mxu0 0.0
    %2062 = vmatpush1.xpose.msra.mxu0 0.0
    %2063 = vmatprep.subr.mxu0 0.0
    %2064 = vmatpush1.xpose.msra.mxu0 0.0
    %2065 = vmatprep.subr.mxu0 0.0
    %2066 = vmatpush1.xpose.msra.mxu0 0.0
    %2067 = vmatprep.subr.mxu0 0.0
    %2068 = vmatpush1.xpose.msra.mxu0 0.0
    %2069 = vmatprep.subr.mxu0 0.0
    %2070 = vmatpush1.xpose.msra.mxu0 0.0
    %2071 = vmatprep.subr.mxu0 0.0
    %2072 = vmatpush1.xpose.msra.mxu0 0.0
    %2073 = vmatprep.subr.mxu0 0.0
    %2074 = vmatpush1.xpose.msra.mxu0 0.0
    %2075 = vmatprep.subr.mxu0 0.0
    %2076 = vmatpush1.xpose.msra.mxu0 0.0
    %2077 = vmatprep.subr.mxu0 0.0
    %2078 = vmatpush1.xpose.msra.mxu0 0.0
    %2079 = vmatprep.subr.mxu0 0.0
    %2080 = vmatpush1.xpose.msra.mxu0 0.0
    %2081 = vmatprep.mubr.f32.mxu0 0.0
    %2082 = vmatmul.mubr.f32.gmra.mrb[0].mxu0 %v1999
    %v2083 = vpop.f32.mrb[0].mxu0
    %v2084 = vadd.f32 0.0, %v2083
    %v2085 = vpop.f32.mrb[0].mxu0
    %2086 = vmatprep.mubr.f32.mxu0 0.0
    %2087 = vmatmul.mubr.f32.gmra.mrb[0].mxu0 %v2001
    %v2088 = vpop.f32.mrb[0].mxu0
    %v2089 = vadd.f32 0.0, %v2088
    %v2090 = vpop.f32.mrb[0].mxu0
    %2091 = vmatprep.mubr.f32.mxu0 0.0
    %2092 = vmatmul.mubr.f32.gmra.mrb[0].mxu0 %v2003
    %v2093 = vpop.f32.mrb[0].mxu0
    %v2094 = vadd.f32 0.0, %v2093
    %v2095 = vpop.f32.mrb[0].mxu0
    %2096 = vmatprep.mubr.f32.mxu0 0.0
    %2097 = vmatmul.mubr.f32.gmra.mrb[0].mxu0 %v2005
    %v2098 = vpop.f32.mrb[0].mxu0
    %v2099 = vadd.f32 0.0, %v2098
    %v2100 = vpop.f32.mrb[0].mxu0
    %2101 = vmatprep.mubr.f32.mxu0 0.0
    %2102 = vmatmul.mubr.f32.gmra.mrb[0].mxu0 %v2007
    %v2103 = vpop.f32.mrb[0].mxu0
    %v2104 = vadd.f32 0.0, %v2103
    %v2105 = vpop.f32.mrb[0].mxu0
    %2106 = vmatprep.mubr.f32.mxu0 0.0
    %2107 = vmatmul.mubr.f32.gmra.mrb[0].mxu0 %v2009
    %v2108 = vpop.f32.mrb[0].mxu0
    %v2109 = vadd.f32 0.0, %v2108
    %v2110 = vpop.f32.mrb[0].mxu0
    %2111 = vmatprep.mubr.f32.mxu0 0.0
    %2112 = vmatmul.mubr.f32.gmra.mrb[0].mxu0 %v2011
    %v2113 = vpop.f32.mrb[0].mxu0
    %v2114 = vadd.f32 0.0, %v2113
    %v2115 = vpop.f32.mrb[0].mxu0
    %2116 = vmatprep.mubr.f32.mxu0 0.0
    %2117 = vmatmul.mubr.f32.gmra.mrb[0].mxu0 %v2013
    %v2118 = vpop.f32.mrb[0].mxu0
    %v2119 = vadd.f32 0.0, %v2118
    %v2120 = vpop.f32.mrb[0].mxu0
    %2121 = vdwg.mxu0
    %2122 = vrot.lane.b32.xlu0 %v1597, 104
    %v2123 = vpop.permute.xlu0 %2122
    %2124 = vrot.lane.b32.xlu0 %v1602, 104
    %v2125 = vpop.permute.xlu0 %2124
    %2126 = vrot.lane.b32.xlu0 %v1607, 104
    %v2127 = vpop.permute.xlu0 %2126
    %2128 = vrot.lane.b32.xlu0 %v1612, 104
    %v2129 = vpop.permute.xlu0 %2128
    %2130 = vrot.lane.b32.xlu0 %v1617, 104
    %v2131 = vpop.permute.xlu0 %2130
    %2132 = vrot.lane.b32.xlu0 %v1622, 104
    %v2133 = vpop.permute.xlu0 %2132
    %2134 = vrot.lane.b32.xlu0 %v1627, 104
    %v2135 = vpop.permute.xlu0 %2134
    %2136 = vrot.lane.b32.xlu0 %v1632, 104
    %v2137 = vpop.permute.xlu0 %2136
    %2138 = vrot.lane.b32.xlu0 %v1705, 104
    %v2139 = vpop.permute.xlu0 %2138
    %v2140 = vsel %vm385, %v2123, 0
    %v2142 = vsel %vm385, %v2125, 0
    %v2144 = vsel %vm385, %v2127, 0
    %v2146 = vsel %vm385, %v2129, 0
    %v2148 = vsel %vm385, %v2131, 0
    %v2150 = vsel %vm385, %v2133, 0
    %v2152 = vsel %vm385, %v2135, 0
    %v2154 = vsel %vm385, %v2137, 0
    %v2156 = vsel %vm385, %v2139, 0
    %2158 = vmatprep.subr.mxu0 0.0
    %2159 = vmatpush1.xpose.msra.mxu0 %v2156
    %2160 = vmatprep.subr.mxu0 0.0
    %2161 = vmatpush1.xpose.msra.mxu0 0.0
    %2162 = vmatprep.subr.mxu0 0.0
    %2163 = vmatpush1.xpose.msra.mxu0 0.0
    %2164 = vmatprep.subr.mxu0 0.0
    %2165 = vmatpush1.xpose.msra.mxu0 0.0
    %2166 = vmatprep.subr.mxu0 0.0
    %2167 = vmatpush1.xpose.msra.mxu0 0.0
    %2168 = vmatprep.subr.mxu0 0.0
    %2169 = vmatpush1.xpose.msra.mxu0 0.0
    %2170 = vmatprep.subr.mxu0 0.0
    %2171 = vmatpush1.xpose.msra.mxu0 0.0
    %2172 = vmatprep.subr.mxu0 0.0
    %2173 = vmatpush1.xpose.msra.mxu0 0.0
    %2174 = vmatprep.subr.mxu0 0.0
    %2175 = vmatpush1.xpose.msra.mxu0 0.0
    %2176 = vmatprep.subr.mxu0 0.0
    %2177 = vmatpush1.xpose.msra.mxu0 0.0
    %2178 = vmatprep.subr.mxu0 0.0
    %2179 = vmatpush1.xpose.msra.mxu0 0.0
    %2180 = vmatprep.subr.mxu0 0.0
    %2181 = vmatpush1.xpose.msra.mxu0 0.0
    %2182 = vmatprep.subr.mxu0 0.0
    %2183 = vmatpush1.xpose.msra.mxu0 0.0
    %2184 = vmatprep.subr.mxu0 0.0
    %2185 = vmatpush1.xpose.msra.mxu0 0.0
    %2186 = vmatprep.subr.mxu0 0.0
    %2187 = vmatpush1.xpose.msra.mxu0 0.0
    %2188 = vmatprep.subr.mxu0 0.0
    %2189 = vmatpush1.xpose.msra.mxu0 0.0
    %2190 = vmatprep.subr.mxu0 0.0
    %2191 = vmatpush1.xpose.msra.mxu0 0.0
    %2192 = vmatprep.subr.mxu0 0.0
    %2193 = vmatpush1.xpose.msra.mxu0 0.0
    %2194 = vmatprep.subr.mxu0 0.0
    %2195 = vmatpush1.xpose.msra.mxu0 0.0
    %2196 = vmatprep.subr.mxu0 0.0
    %2197 = vmatpush1.xpose.msra.mxu0 0.0
    %2198 = vmatprep.subr.mxu0 0.0
    %2199 = vmatpush1.xpose.msra.mxu0 0.0
    %2200 = vmatprep.subr.mxu0 0.0
    %2201 = vmatpush1.xpose.msra.mxu0 0.0
    %2202 = vmatprep.subr.mxu0 0.0
    %2203 = vmatpush1.xpose.msra.mxu0 0.0
    %2204 = vmatprep.subr.mxu0 0.0
    %2205 = vmatpush1.xpose.msra.mxu0 0.0
    %2206 = vmatprep.subr.mxu0 0.0
    %2207 = vmatpush1.xpose.msra.mxu0 0.0
    %2208 = vmatprep.subr.mxu0 0.0
    %2209 = vmatpush1.xpose.msra.mxu0 0.0
    %2210 = vmatprep.subr.mxu0 0.0
    %2211 = vmatpush1.xpose.msra.mxu0 0.0
    %2212 = vmatprep.subr.mxu0 0.0
    %2213 = vmatpush1.xpose.msra.mxu0 0.0
    %2214 = vmatprep.subr.mxu0 0.0
    %2215 = vmatpush1.xpose.msra.mxu0 0.0
    %2216 = vmatprep.subr.mxu0 0.0
    %2217 = vmatpush1.xpose.msra.mxu0 0.0
    %2218 = vmatprep.subr.mxu0 0.0
    %2219 = vmatpush1.xpose.msra.mxu0 0.0
    %2220 = vmatprep.subr.mxu0 0.0
    %2221 = vmatpush1.xpose.msra.mxu0 0.0
    %2222 = vmatprep.mubr.f32.mxu0 0.0
    %2223 = vmatmul.mubr.f32.gmra.mrb[0].mxu0 %v2140
    %v2224 = vpop.f32.mrb[0].mxu0
    %v2225 = vadd.f32 0.0, %v2224
    %v2226 = vpop.f32.mrb[0].mxu0
    %2227 = vmatprep.mubr.f32.mxu0 0.0
    %2228 = vmatmul.mubr.f32.gmra.mrb[0].mxu0 %v2142
    %v2229 = vpop.f32.mrb[0].mxu0
    %v2230 = vadd.f32 0.0, %v2229
    %v2231 = vpop.f32.mrb[0].mxu0
    %2232 = vmatprep.mubr.f32.mxu0 0.0
    %2233 = vmatmul.mubr.f32.gmra.mrb[0].mxu0 %v2144
    %v2234 = vpop.f32.mrb[0].mxu0
    %v2235 = vadd.f32 0.0, %v2234
    %v2236 = vpop.f32.mrb[0].mxu0
    %2237 = vmatprep.mubr.f32.mxu0 0.0
    %2238 = vmatmul.mubr.f32.gmra.mrb[0].mxu0 %v2146
    %v2239 = vpop.f32.mrb[0].mxu0
    %v2240 = vadd.f32 0.0, %v2239
    %v2241 = vpop.f32.mrb[0].mxu0
    %2242 = vmatprep.mubr.f32.mxu0 0.0
    %2243 = vmatmul.mubr.f32.gmra.mrb[0].mxu0 %v2148
    %v2244 = vpop.f32.mrb[0].mxu0
    %v2245 = vadd.f32 0.0, %v2244
    %v2246 = vpop.f32.mrb[0].mxu0
    %2247 = vmatprep.mubr.f32.mxu0 0.0
    %2248 = vmatmul.mubr.f32.gmra.mrb[0].mxu0 %v2150
    %v2249 = vpop.f32.mrb[0].mxu0
    %v2250 = vadd.f32 0.0, %v2249
    %v2251 = vpop.f32.mrb[0].mxu0
    %2252 = vmatprep.mubr.f32.mxu0 0.0
    %2253 = vmatmul.mubr.f32.gmra.mrb[0].mxu0 %v2152
    %v2254 = vpop.f32.mrb[0].mxu0
    %v2255 = vadd.f32 0.0, %v2254
    %v2256 = vpop.f32.mrb[0].mxu0
    %2257 = vmatprep.mubr.f32.mxu0 0.0
    %2258 = vmatmul.mubr.f32.gmra.mrb[0].mxu0 %v2154
    %v2259 = vpop.f32.mrb[0].mxu0
    %v2260 = vadd.f32 0.0, %v2259
    %v2261 = vpop.f32.mrb[0].mxu0
    %2262 = vdwg.mxu0
    %v2263 = vsel %vm385, %v1802, -inf
    %2264 = vmax.xlane.f32.xlu0 %v2263
    %v2265 = vpop.xlane.xlu0 %2264
    %v2266 = vsel %vm385, %v1807, -inf
    %2267 = vmax.xlane.f32.xlu0 %v2266
    %v2268 = vpop.xlane.xlu0 %2267
    %v2269 = vsel %vm385, %v1812, -inf
    %2270 = vmax.xlane.f32.xlu0 %v2269
    %v2271 = vpop.xlane.xlu0 %2270
    %v2272 = vsel %vm385, %v1817, -inf
    %2273 = vmax.xlane.f32.xlu0 %v2272
    %v2274 = vpop.xlane.xlu0 %2273
    %v2275 = vsel %vm385, %v1822, -inf
    %2276 = vmax.xlane.f32.xlu0 %v2275
    %v2277 = vpop.xlane.xlu0 %2276
    %v2278 = vsel %vm385, %v1827, -inf
    %2279 = vmax.xlane.f32.xlu0 %v2278
    %v2280 = vpop.xlane.xlu0 %2279
    %v2281 = vsel %vm385, %v1832, -inf
    %2282 = vmax.xlane.f32.xlu0 %v2281
    %v2283 = vpop.xlane.xlu0 %2282
    %v2284 = vsel %vm385, %v1837, -inf
    %2285 = vmax.xlane.f32.xlu0 %v2284
    %v2286 = vpop.xlane.xlu0 %2285
    %v2287 = vsel %vm385, %v1943, -inf
    %2288 = vmax.xlane.f32.xlu0 %v2287
    %v2289 = vpop.xlane.xlu0 %2288
    %v2290 = vsel %vm385, %v1948, -inf
    %2291 = vmax.xlane.f32.xlu0 %v2290
    %v2292 = vpop.xlane.xlu0 %2291
    %v2293 = vsel %vm385, %v1953, -inf
    %2294 = vmax.xlane.f32.xlu0 %v2293
    %v2295 = vpop.xlane.xlu0 %2294
    %v2296 = vsel %vm385, %v1958, -inf
    %2297 = vmax.xlane.f32.xlu0 %v2296
    %v2298 = vpop.xlane.xlu0 %2297
    %v2299 = vsel %vm385, %v1963, -inf
    %2300 = vmax.xlane.f32.xlu0 %v2299
    %v2301 = vpop.xlane.xlu0 %2300
    %v2302 = vsel %vm385, %v1968, -inf
    %2303 = vmax.xlane.f32.xlu0 %v2302
    %v2304 = vpop.xlane.xlu0 %2303
    %v2305 = vsel %vm385, %v1973, -inf
    %2306 = vmax.xlane.f32.xlu0 %v2305
    %v2307 = vpop.xlane.xlu0 %2306
    %v2308 = vsel %vm385, %v1978, -inf
    %2309 = vmax.xlane.f32.xlu0 %v2308
    %v2310 = vpop.xlane.xlu0 %2309
    %v2311 = vsel %vm385, %v2084, -inf
    %2312 = vmax.xlane.f32.xlu0 %v2311
    %v2313 = vpop.xlane.xlu0 %2312
    %v2314 = vsel %vm385, %v2089, -inf
    %2315 = vmax.xlane.f32.xlu0 %v2314
    %v2316 = vpop.xlane.xlu0 %2315
    %v2317 = vsel %vm385, %v2094, -inf
    %2318 = vmax.xlane.f32.xlu0 %v2317
    %v2319 = vpop.xlane.xlu0 %2318
    %v2320 = vsel %vm385, %v2099, -inf
    %2321 = vmax.xlane.f32.xlu0 %v2320
    %v2322 = vpop.xlane.xlu0 %2321
    %v2323 = vsel %vm385, %v2104, -inf
    %2324 = vmax.xlane.f32.xlu0 %v2323
    %v2325 = vpop.xlane.xlu0 %2324
    %v2326 = vsel %vm385, %v2109, -inf
    %2327 = vmax.xlane.f32.xlu0 %v2326
    %v2328 = vpop.xlane.xlu0 %2327
    %v2329 = vsel %vm385, %v2114, -inf
    %2330 = vmax.xlane.f32.xlu0 %v2329
    %v2331 = vpop.xlane.xlu0 %2330
    %v2332 = vsel %vm385, %v2119, -inf
    %2333 = vmax.xlane.f32.xlu0 %v2332
    %v2334 = vpop.xlane.xlu0 %2333
    %v2335 = vsel %vm385, %v2225, -inf
    %2336 = vmax.xlane.f32.xlu0 %v2335
    %v2337 = vpop.xlane.xlu0 %2336
    %v2338 = vsel %vm385, %v2230, -inf
    %2339 = vmax.xlane.f32.xlu0 %v2338
    %v2340 = vpop.xlane.xlu0 %2339
    %v2341 = vsel %vm385, %v2235, -inf
    %2342 = vmax.xlane.f32.xlu0 %v2341
    %v2343 = vpop.xlane.xlu0 %2342
    %v2344 = vsel %vm385, %v2240, -inf
    %2345 = vmax.xlane.f32.xlu0 %v2344
    %v2346 = vpop.xlane.xlu0 %2345
    %v2347 = vsel %vm385, %v2245, -inf
    %2348 = vmax.xlane.f32.xlu0 %v2347
    %v2349 = vpop.xlane.xlu0 %2348
    %v2350 = vsel %vm385, %v2250, -inf
    %2351 = vmax.xlane.f32.xlu0 %v2350
    %v2352 = vpop.xlane.xlu0 %2351
    %v2353 = vsel %vm385, %v2255, -inf
    %2354 = vmax.xlane.f32.xlu0 %v2353
    %v2355 = vpop.xlane.xlu0 %2354
    %v2356 = vsel %vm385, %v2260, -inf
    %2357 = vmax.xlane.f32.xlu0 %v2356
    %v2358 = vpop.xlane.xlu0 %2357
    %v2359 = vsub.f32 %v1802, %v2265
    %v2360 = vsub.f32 %v1807, %v2268
    %v2361 = vsub.f32 %v1812, %v2271
    %v2362 = vsub.f32 %v1817, %v2274
    %v2363 = vsub.f32 %v1822, %v2277
    %v2364 = vsub.f32 %v1827, %v2280
    %v2365 = vsub.f32 %v1832, %v2283
    %v2366 = vsub.f32 %v1837, %v2286
    %v2367 = vsub.f32 %v1943, %v2289
    %v2368 = vsub.f32 %v1948, %v2292
    %v2369 = vsub.f32 %v1953, %v2295
    %v2370 = vsub.f32 %v1958, %v2298
    %v2371 = vsub.f32 %v1963, %v2301
    %v2372 = vsub.f32 %v1968, %v2304
    %v2373 = vsub.f32 %v1973, %v2307
    %v2374 = vsub.f32 %v1978, %v2310
    %v2375 = vsub.f32 %v2084, %v2313
    %v2376 = vsub.f32 %v2089, %v2316
    %v2377 = vsub.f32 %v2094, %v2319
    %v2378 = vsub.f32 %v2099, %v2322
    %v2379 = vsub.f32 %v2104, %v2325
    %v2380 = vsub.f32 %v2109, %v2328
    %v2381 = vsub.f32 %v2114, %v2331
    %v2382 = vsub.f32 %v2119, %v2334
    %v2383 = vsub.f32 %v2225, %v2337
    %v2384 = vsub.f32 %v2230, %v2340
    %v2385 = vsub.f32 %v2235, %v2343
    %v2386 = vsub.f32 %v2240, %v2346
    %v2387 = vsub.f32 %v2245, %v2349
    %v2388 = vsub.f32 %v2250, %v2352
    %v2389 = vsub.f32 %v2255, %v2355
    %v2390 = vsub.f32 %v2260, %v2358
    %v2391 = vmul.f32 %v2359, 1.442695
    %v2392 = vpow.pop %v2391
    %v2393 = vmul.f32 %v2360, 1.442695
    %v2394 = vpow.pop %v2393
    %v2395 = vmul.f32 %v2361, 1.442695
    %v2396 = vpow.pop %v2395
    %v2397 = vmul.f32 %v2362, 1.442695
    %v2398 = vpow.pop %v2397
    %v2399 = vmul.f32 %v2363, 1.442695
    %v2400 = vpow.pop %v2399
    %v2401 = vmul.f32 %v2364, 1.442695
    %v2402 = vpow.pop %v2401
    %v2403 = vmul.f32 %v2365, 1.442695
    %v2404 = vpow.pop %v2403
    %v2405 = vmul.f32 %v2366, 1.442695
    %v2406 = vpow.pop %v2405
    %v2407 = vmul.f32 %v2367, 1.442695
    %v2408 = vpow.pop %v2407
    %v2409 = vmul.f32 %v2368, 1.442695
    %v2410 = vpow.pop %v2409
    %v2411 = vmul.f32 %v2369, 1.442695
    %v2412 = vpow.pop %v2411
    %v2413 = vmul.f32 %v2370, 1.442695
    %v2414 = vpow.pop %v2413
    %v2415 = vmul.f32 %v2371, 1.442695
    %v2416 = vpow.pop %v2415
    %v2417 = vmul.f32 %v2372, 1.442695
    %v2418 = vpow.pop %v2417
    %v2419 = vmul.f32 %v2373, 1.442695
    %v2420 = vpow.pop %v2419
    %v2421 = vmul.f32 %v2374, 1.442695
    %v2422 = vpow.pop %v2421
    %v2423 = vmul.f32 %v2375, 1.442695
    %v2424 = vpow.pop %v2423
    %v2425 = vmul.f32 %v2376, 1.442695
    %v2426 = vpow.pop %v2425
    %v2427 = vmul.f32 %v2377, 1.442695
    %v2428 = vpow.pop %v2427
    %v2429 = vmul.f32 %v2378, 1.442695
    %v2430 = vpow.pop %v2429
    %v2431 = vmul.f32 %v2379, 1.442695
    %v2432 = vpow.pop %v2431
    %v2433 = vmul.f32 %v2380, 1.442695
    %v2434 = vpow.pop %v2433
    %v2435 = vmul.f32 %v2381, 1.442695
    %v2436 = vpow.pop %v2435
    %v2437 = vmul.f32 %v2382, 1.442695
    %v2438 = vpow.pop %v2437
    %v2439 = vmul.f32 %v2383, 1.442695
    %v2440 = vpow.pop %v2439
    %v2441 = vmul.f32 %v2384, 1.442695
    %v2442 = vpow.pop %v2441
    %v2443 = vmul.f32 %v2385, 1.442695
    %v2444 = vpow.pop %v2443
    %v2445 = vmul.f32 %v2386, 1.442695
    %v2446 = vpow.pop %v2445
    %v2447 = vmul.f32 %v2387, 1.442695
    %v2448 = vpow.pop %v2447
    %v2449 = vmul.f32 %v2388, 1.442695
    %v2450 = vpow.pop %v2449
    %v2451 = vmul.f32 %v2389, 1.442695
    %v2452 = vpow.pop %v2451
    %v2453 = vmul.f32 %v2390, 1.442695
    %v2454 = vpow.pop %v2453
    %v2455 = vsel %vm385, %v2392, 0.0
    %2456 = vadd.xlane.f32.xlu0 %v2455
    %v2457 = vpop.xlane.xlu0 %2456
    %v2458 = vsel %vm385, %v2394, 0.0
    %2459 = vadd.xlane.f32.xlu0 %v2458
    %v2460 = vpop.xlane.xlu0 %2459
    %v2461 = vsel %vm385, %v2396, 0.0
    %2462 = vadd.xlane.f32.xlu0 %v2461
    %v2463 = vpop.xlane.xlu0 %2462
    %v2464 = vsel %vm385, %v2398, 0.0
    %2465 = vadd.xlane.f32.xlu0 %v2464
    %v2466 = vpop.xlane.xlu0 %2465
    %v2467 = vsel %vm385, %v2400, 0.0
    %2468 = vadd.xlane.f32.xlu0 %v2467
    %v2469 = vpop.xlane.xlu0 %2468
    %v2470 = vsel %vm385, %v2402, 0.0
    %2471 = vadd.xlane.f32.xlu0 %v2470
    %v2472 = vpop.xlane.xlu0 %2471
    %v2473 = vsel %vm385, %v2404, 0.0
    %2474 = vadd.xlane.f32.xlu0 %v2473
    %v2475 = vpop.xlane.xlu0 %2474
    %v2476 = vsel %vm385, %v2406, 0.0
    %2477 = vadd.xlane.f32.xlu0 %v2476
    %v2478 = vpop.xlane.xlu0 %2477
    %v2479 = vsel %vm385, %v2408, 0.0
    %2480 = vadd.xlane.f32.xlu0 %v2479
    %v2481 = vpop.xlane.xlu0 %2480
    %v2482 = vsel %vm385, %v2410, 0.0
    %2483 = vadd.xlane.f32.xlu0 %v2482
    %v2484 = vpop.xlane.xlu0 %2483
    %v2485 = vsel %vm385, %v2412, 0.0
    %2486 = vadd.xlane.f32.xlu0 %v2485
    %v2487 = vpop.xlane.xlu0 %2486
    %v2488 = vsel %vm385, %v2414, 0.0
    %2489 = vadd.xlane.f32.xlu0 %v2488
    %v2490 = vpop.xlane.xlu0 %2489
    %v2491 = vsel %vm385, %v2416, 0.0
    %2492 = vadd.xlane.f32.xlu0 %v2491
    %v2493 = vpop.xlane.xlu0 %2492
    %v2494 = vsel %vm385, %v2418, 0.0
    %2495 = vadd.xlane.f32.xlu0 %v2494
    %v2496 = vpop.xlane.xlu0 %2495
    %v2497 = vsel %vm385, %v2420, 0.0
    %2498 = vadd.xlane.f32.xlu0 %v2497
    %v2499 = vpop.xlane.xlu0 %2498
    %v2500 = vsel %vm385, %v2422, 0.0
    %2501 = vadd.xlane.f32.xlu0 %v2500
    %v2502 = vpop.xlane.xlu0 %2501
    %v2503 = vsel %vm385, %v2424, 0.0
    %2504 = vadd.xlane.f32.xlu0 %v2503
    %v2505 = vpop.xlane.xlu0 %2504
    %v2506 = vsel %vm385, %v2426, 0.0
    %2507 = vadd.xlane.f32.xlu0 %v2506
    %v2508 = vpop.xlane.xlu0 %2507
    %v2509 = vsel %vm385, %v2428, 0.0
    %2510 = vadd.xlane.f32.xlu0 %v2509
    %v2511 = vpop.xlane.xlu0 %2510
    %v2512 = vsel %vm385, %v2430, 0.0
    %2513 = vadd.xlane.f32.xlu0 %v2512
    %v2514 = vpop.xlane.xlu0 %2513
    %v2515 = vsel %vm385, %v2432, 0.0
    %2516 = vadd.xlane.f32.xlu0 %v2515
    %v2517 = vpop.xlane.xlu0 %2516
    %v2518 = vsel %vm385, %v2434, 0.0
    %2519 = vadd.xlane.f32.xlu0 %v2518
    %v2520 = vpop.xlane.xlu0 %2519
    %v2521 = vsel %vm385, %v2436, 0.0
    %2522 = vadd.xlane.f32.xlu0 %v2521
    %v2523 = vpop.xlane.xlu0 %2522
    %v2524 = vsel %vm385, %v2438, 0.0
    %2525 = vadd.xlane.f32.xlu0 %v2524
    %v2526 = vpop.xlane.xlu0 %2525
    %v2527 = vsel %vm385, %v2440, 0.0
    %2528 = vadd.xlane.f32.xlu0 %v2527
    %v2529 = vpop.xlane.xlu0 %2528
    %v2530 = vsel %vm385, %v2442, 0.0
    %2531 = vadd.xlane.f32.xlu0 %v2530
    %v2532 = vpop.xlane.xlu0 %2531
    %v2533 = vsel %vm385, %v2444, 0.0
    %2534 = vadd.xlane.f32.xlu0 %v2533
    %v2535 = vpop.xlane.xlu0 %2534
    %v2536 = vsel %vm385, %v2446, 0.0
    %2537 = vadd.xlane.f32.xlu0 %v2536
    %v2538 = vpop.xlane.xlu0 %2537
    %v2539 = vsel %vm385, %v2448, 0.0
    %2540 = vadd.xlane.f32.xlu0 %v2539
    %v2541 = vpop.xlane.xlu0 %2540
    %v2542 = vsel %vm385, %v2450, 0.0
    %2543 = vadd.xlane.f32.xlu0 %v2542
    %v2544 = vpop.xlane.xlu0 %2543
    %v2545 = vsel %vm385, %v2452, 0.0
    %2546 = vadd.xlane.f32.xlu0 %v2545
    %v2547 = vpop.xlane.xlu0 %2546
    %v2548 = vsel %vm385, %v2454, 0.0
    %2549 = vadd.xlane.f32.xlu0 %v2548
    %v2550 = vpop.xlane.xlu0 %2549
    %v2551 = vrcp.pop %v2457
    %v2552 = vrcp.pop %v2460
    %v2553 = vrcp.pop %v2463
    %v2554 = vrcp.pop %v2466
    %v2555 = vrcp.pop %v2469
    %v2556 = vrcp.pop %v2472
    %v2557 = vrcp.pop %v2475
    %v2558 = vrcp.pop %v2478
    %v2559 = vrcp.pop %v2481
    %v2560 = vrcp.pop %v2484
    %v2561 = vrcp.pop %v2487
    %v2562 = vrcp.pop %v2490
    %v2563 = vrcp.pop %v2493
    %v2564 = vrcp.pop %v2496
    %v2565 = vrcp.pop %v2499
    %v2566 = vrcp.pop %v2502
    %v2567 = vrcp.pop %v2505
    %v2568 = vrcp.pop %v2508
    %v2569 = vrcp.pop %v2511
    %v2570 = vrcp.pop %v2514
    %v2571 = vrcp.pop %v2517
    %v2572 = vrcp.pop %v2520
    %v2573 = vrcp.pop %v2523
    %v2574 = vrcp.pop %v2526
    %v2575 = vrcp.pop %v2529
    %v2576 = vrcp.pop %v2532
    %v2577 = vrcp.pop %v2535
    %v2578 = vrcp.pop %v2538
    %v2579 = vrcp.pop %v2541
    %v2580 = vrcp.pop %v2544
    %v2581 = vrcp.pop %v2547
    %v2582 = vrcp.pop %v2550
    %v2583 = vmul.f32 %v2392, %v2551
    %v2584 = vmul.f32 %v2394, %v2552
    %v2585 = vmul.f32 %v2396, %v2553
    %v2586 = vmul.f32 %v2398, %v2554
    %v2587 = vmul.f32 %v2400, %v2555
    %v2588 = vmul.f32 %v2402, %v2556
    %v2589 = vmul.f32 %v2404, %v2557
    %v2590 = vmul.f32 %v2406, %v2558
    %v2591 = vmul.f32 %v2408, %v2559
    %v2592 = vmul.f32 %v2410, %v2560
    %v2593 = vmul.f32 %v2412, %v2561
    %v2594 = vmul.f32 %v2414, %v2562
    %v2595 = vmul.f32 %v2416, %v2563
    %v2596 = vmul.f32 %v2418, %v2564
    %v2597 = vmul.f32 %v2420, %v2565
    %v2598 = vmul.f32 %v2422, %v2566
    %v2599 = vmul.f32 %v2424, %v2567
    %v2600 = vmul.f32 %v2426, %v2568
    %v2601 = vmul.f32 %v2428, %v2569
    %v2602 = vmul.f32 %v2430, %v2570
    %v2603 = vmul.f32 %v2432, %v2571
    %v2604 = vmul.f32 %v2434, %v2572
    %v2605 = vmul.f32 %v2436, %v2573
    %v2606 = vmul.f32 %v2438, %v2574
    %v2607 = vmul.f32 %v2440, %v2575
    %v2608 = vmul.f32 %v2442, %v2576
    %v2609 = vmul.f32 %v2444, %v2577
    %v2610 = vmul.f32 %v2446, %v2578
    %v2611 = vmul.f32 %v2448, %v2579
    %v2612 = vmul.f32 %v2450, %v2580
    %v2613 = vmul.f32 %v2452, %v2581
    %v2614 = vmul.f32 %v2454, %v2582
    %2615 = vrot.lane.b32.xlu0 %v1705, 96
    %v2616 = vpop.permute.xlu0 %2615
    %v2619 = vsel %vm385, %v2583, 0
    %v2622 = vsel %vm385, %v2584, 0
    %v2625 = vsel %vm385, %v2585, 0
    %v2628 = vsel %vm385, %v2586, 0
    %v2631 = vsel %vm385, %v2587, 0
    %v2634 = vsel %vm385, %v2588, 0
    %v2637 = vsel %vm385, %v2589, 0
    %v2640 = vsel %vm385, %v2590, 0
    %2642 = vmatprep.subr.mxu0 0.0
    %2643 = vmatpush1.msra.mxu0 %v2616
    %2644 = vmatprep.subr.mxu0 0.0
    %2645 = vmatpush1.msra.mxu0 0.0
    %2646 = vmatprep.subr.mxu0 0.0
    %2647 = vmatpush1.msra.mxu0 0.0
    %2648 = vmatprep.subr.mxu0 0.0
    %2649 = vmatpush1.msra.mxu0 0.0
    %2650 = vmatprep.subr.mxu0 0.0
    %2651 = vmatpush1.msra.mxu0 0.0
    %2652 = vmatprep.subr.mxu0 0.0
    %2653 = vmatpush1.msra.mxu0 0.0
    %2654 = vmatprep.subr.mxu0 0.0
    %2655 = vmatpush1.msra.mxu0 0.0
    %2656 = vmatprep.subr.mxu0 0.0
    %2657 = vmatpush1.msra.mxu0 0.0
    %2658 = vmatprep.subr.mxu0 0.0
    %2659 = vmatpush1.msra.mxu0 0.0
    %2660 = vmatprep.subr.mxu0 0.0
    %2661 = vmatpush1.msra.mxu0 0.0
    %2662 = vmatprep.subr.mxu0 0.0
    %2663 = vmatpush1.msra.mxu0 0.0
    %2664 = vmatprep.subr.mxu0 0.0
    %2665 = vmatpush1.msra.mxu0 0.0
    %2666 = vmatprep.subr.mxu0 0.0
    %2667 = vmatpush1.msra.mxu0 0.0
    %2668 = vmatprep.subr.mxu0 0.0
    %2669 = vmatpush1.msra.mxu0 0.0
    %2670 = vmatprep.subr.mxu0 0.0
    %2671 = vmatpush1.msra.mxu0 0.0
    %2672 = vmatprep.subr.mxu0 0.0
    %2673 = vmatpush1.msra.mxu0 0.0
    %2674 = vmatprep.subr.mxu0 0.0
    %2675 = vmatpush1.msra.mxu0 0.0
    %2676 = vmatprep.subr.mxu0 0.0
    %2677 = vmatpush1.msra.mxu0 0.0
    %2678 = vmatprep.subr.mxu0 0.0
    %2679 = vmatpush1.msra.mxu0 0.0
    %2680 = vmatprep.subr.mxu0 0.0
    %2681 = vmatpush1.msra.mxu0 0.0
    %2682 = vmatprep.subr.mxu0 0.0
    %2683 = vmatpush1.msra.mxu0 0.0
    %2684 = vmatprep.subr.mxu0 0.0
    %2685 = vmatpush1.msra.mxu0 0.0
    %2686 = vmatprep.subr.mxu0 0.0
    %2687 = vmatpush1.msra.mxu0 0.0
    %2688 = vmatprep.subr.mxu0 0.0
    %2689 = vmatpush1.msra.mxu0 0.0
    %2690 = vmatprep.subr.mxu0 0.0
    %2691 = vmatpush1.msra.mxu0 0.0
    %2692 = vmatprep.subr.mxu0 0.0
    %2693 = vmatpush1.msra.mxu0 0.0
    %2694 = vmatprep.subr.mxu0 0.0
    %2695 = vmatpush1.msra.mxu0 0.0
    %2696 = vmatprep.subr.mxu0 0.0
    %2697 = vmatpush1.msra.mxu0 0.0
    %2698 = vmatprep.subr.mxu0 0.0
    %2699 = vmatpush1.msra.mxu0 0.0
    %2700 = vmatprep.subr.mxu0 0.0
    %2701 = vmatpush1.msra.mxu0 0.0
    %2702 = vmatprep.subr.mxu0 0.0
    %2703 = vmatpush1.msra.mxu0 0.0
    %2704 = vmatprep.subr.mxu0 0.0
    %2705 = vmatpush1.msra.mxu0 0.0
    %2706 = vmatprep.mubr.f32.mxu0 0.0
    %2707 = vmatmul.mubr.f32.gmra.mrb[0].mxu0 %v2619
    %v2708 = vpop.f32.mrb[0].mxu0
    %v2709 = vadd.f32 0.0, %v2708
    %v2710 = vpop.f32.mrb[0].mxu0
    %2711 = vmatprep.mubr.f32.mxu0 0.0
    %2712 = vmatmul.mubr.f32.gmra.mrb[0].mxu0 %v2622
    %v2713 = vpop.f32.mrb[0].mxu0
    %v2714 = vadd.f32 0.0, %v2713
    %v2715 = vpop.f32.mrb[0].mxu0
    %2716 = vmatprep.mubr.f32.mxu0 0.0
    %2717 = vmatmul.mubr.f32.gmra.mrb[0].mxu0 %v2625
    %v2718 = vpop.f32.mrb[0].mxu0
    %v2719 = vadd.f32 0.0, %v2718
    %v2720 = vpop.f32.mrb[0].mxu0
    %2721 = vmatprep.mubr.f32.mxu0 0.0
    %2722 = vmatmul.mubr.f32.gmra.mrb[0].mxu0 %v2628
    %v2723 = vpop.f32.mrb[0].mxu0
    %v2724 = vadd.f32 0.0, %v2723
    %v2725 = vpop.f32.mrb[0].mxu0
    %2726 = vmatprep.mubr.f32.mxu0 0.0
    %2727 = vmatmul.mubr.f32.gmra.mrb[0].mxu0 %v2631
    %v2728 = vpop.f32.mrb[0].mxu0
    %v2729 = vadd.f32 0.0, %v2728
    %v2730 = vpop.f32.mrb[0].mxu0
    %2731 = vmatprep.mubr.f32.mxu0 0.0
    %2732 = vmatmul.mubr.f32.gmra.mrb[0].mxu0 %v2634
    %v2733 = vpop.f32.mrb[0].mxu0
    %v2734 = vadd.f32 0.0, %v2733
    %v2735 = vpop.f32.mrb[0].mxu0
    %2736 = vmatprep.mubr.f32.mxu0 0.0
    %2737 = vmatmul.mubr.f32.gmra.mrb[0].mxu0 %v2637
    %v2738 = vpop.f32.mrb[0].mxu0
    %v2739 = vadd.f32 0.0, %v2738
    %v2740 = vpop.f32.mrb[0].mxu0
    %2741 = vmatprep.mubr.f32.mxu0 0.0
    %2742 = vmatmul.mubr.f32.gmra.mrb[0].mxu0 %v2640
    %v2743 = vpop.f32.mrb[0].mxu0
    %v2744 = vadd.f32 0.0, %v2743
    %v2745 = vpop.f32.mrb[0].mxu0
    %2746 = vdwg.mxu0
    %v2748 = vsel %vm385, %v2709, 0
    %v2751 = vsel %vm385, %v2714, 0
    %v2754 = vsel %vm385, %v2719, 0
    %v2757 = vsel %vm385, %v2724, 0
    %v2760 = vsel %vm385, %v2729, 0
    %v2763 = vsel %vm385, %v2734, 0
    %v2766 = vsel %vm385, %v2739, 0
    %v2769 = vsel %vm385, %v2744, 0
    %2771 = vmatprep.subr.mxu0 0.0
    %2772 = vmatpush1.msra.mxu0 %v179
    %2773 = vmatprep.subr.mxu0 0.0
    %2774 = vmatpush1.msra.mxu0 0.0
    %2775 = vmatprep.subr.mxu0 0.0
    %2776 = vmatpush1.msra.mxu0 0.0
    %2777 = vmatprep.subr.mxu0 0.0
    %2778 = vmatpush1.msra.mxu0 0.0
    %2779 = vmatprep.subr.mxu0 0.0
    %2780 = vmatpush1.msra.mxu0 0.0
    %2781 = vmatprep.subr.mxu0 0.0
    %2782 = vmatpush1.msra.mxu0 0.0
    %2783 = vmatprep.subr.mxu0 0.0
    %2784 = vmatpush1.msra.mxu0 0.0
    %2785 = vmatprep.subr.mxu0 0.0
    %2786 = vmatpush1.msra.mxu0 0.0
    %2787 = vmatprep.subr.mxu0 0.0
    %2788 = vmatpush1.msra.mxu0 0.0
    %2789 = vmatprep.subr.mxu0 0.0
    %2790 = vmatpush1.msra.mxu0 0.0
    %2791 = vmatprep.subr.mxu0 0.0
    %2792 = vmatpush1.msra.mxu0 0.0
    %2793 = vmatprep.subr.mxu0 0.0
    %2794 = vmatpush1.msra.mxu0 0.0
    %2795 = vmatprep.subr.mxu0 0.0
    %2796 = vmatpush1.msra.mxu0 0.0
    %2797 = vmatprep.subr.mxu0 0.0
    %2798 = vmatpush1.msra.mxu0 0.0
    %2799 = vmatprep.subr.mxu0 0.0
    %2800 = vmatpush1.msra.mxu0 0.0
    %2801 = vmatprep.subr.mxu0 0.0
    %2802 = vmatpush1.msra.mxu0 0.0
    %2803 = vmatprep.subr.mxu0 0.0
    %2804 = vmatpush1.msra.mxu0 0.0
    %2805 = vmatprep.subr.mxu0 0.0
    %2806 = vmatpush1.msra.mxu0 0.0
    %2807 = vmatprep.subr.mxu0 0.0
    %2808 = vmatpush1.msra.mxu0 0.0
    %2809 = vmatprep.subr.mxu0 0.0
    %2810 = vmatpush1.msra.mxu0 0.0
    %2811 = vmatprep.subr.mxu0 0.0
    %2812 = vmatpush1.msra.mxu0 0.0
    %2813 = vmatprep.subr.mxu0 0.0
    %2814 = vmatpush1.msra.mxu0 0.0
    %2815 = vmatprep.subr.mxu0 0.0
    %2816 = vmatpush1.msra.mxu0 0.0
    %2817 = vmatprep.subr.mxu0 0.0
    %2818 = vmatpush1.msra.mxu0 0.0
    %2819 = vmatprep.subr.mxu0 0.0
    %2820 = vmatpush1.msra.mxu0 0.0
    %2821 = vmatprep.subr.mxu0 0.0
    %2822 = vmatpush1.msra.mxu0 0.0
    %2823 = vmatprep.subr.mxu0 0.0
    %2824 = vmatpush1.msra.mxu0 0.0
    %2825 = vmatprep.subr.mxu0 0.0
    %2826 = vmatpush1.msra.mxu0 0.0
    %2827 = vmatprep.subr.mxu0 0.0
    %2828 = vmatpush1.msra.mxu0 0.0
    %2829 = vmatprep.subr.mxu0 0.0
    %2830 = vmatpush1.msra.mxu0 0.0
    %2831 = vmatprep.subr.mxu0 0.0
    %2832 = vmatpush1.msra.mxu0 0.0
    %2833 = vmatprep.subr.mxu0 0.0
    %2834 = vmatpush1.msra.mxu0 0.0
    %2835 = vmatprep.mubr.f32.mxu0 0.0
    %2836 = vmatmul.mubr.f32.gmra.mrb[0].mxu0 %v2748
    %v2837 = vpop.f32.mrb[0].mxu0
    %v2838 = vadd.f32 0.0, %v2837
    %v2839 = vpop.f32.mrb[0].mxu0
    %2840 = vmatprep.mubr.f32.mxu0 0.0
    %2841 = vmatmul.mubr.f32.gmra.mrb[0].mxu0 %v2751
    %v2842 = vpop.f32.mrb[0].mxu0
    %v2843 = vadd.f32 0.0, %v2842
    %v2844 = vpop.f32.mrb[0].mxu0
    %2845 = vmatprep.mubr.f32.mxu0 0.0
    %2846 = vmatmul.mubr.f32.gmra.mrb[0].mxu0 %v2754
    %v2847 = vpop.f32.mrb[0].mxu0
    %v2848 = vadd.f32 0.0, %v2847
    %v2849 = vpop.f32.mrb[0].mxu0
    %2850 = vmatprep.mubr.f32.mxu0 0.0
    %2851 = vmatmul.mubr.f32.gmra.mrb[0].mxu0 %v2757
    %v2852 = vpop.f32.mrb[0].mxu0
    %v2853 = vadd.f32 0.0, %v2852
    %v2854 = vpop.f32.mrb[0].mxu0
    %2855 = vmatprep.mubr.f32.mxu0 0.0
    %2856 = vmatmul.mubr.f32.gmra.mrb[0].mxu0 %v2760
    %v2857 = vpop.f32.mrb[0].mxu0
    %v2858 = vadd.f32 0.0, %v2857
    %v2859 = vpop.f32.mrb[0].mxu0
    %2860 = vmatprep.mubr.f32.mxu0 0.0
    %2861 = vmatmul.mubr.f32.gmra.mrb[0].mxu0 %v2763
    %v2862 = vpop.f32.mrb[0].mxu0
    %v2863 = vadd.f32 0.0, %v2862
    %v2864 = vpop.f32.mrb[0].mxu0
    %2865 = vmatprep.mubr.f32.mxu0 0.0
    %2866 = vmatmul.mubr.f32.gmra.mrb[0].mxu0 %v2766
    %v2867 = vpop.f32.mrb[0].mxu0
    %v2868 = vadd.f32 0.0, %v2867
    %v2869 = vpop.f32.mrb[0].mxu0
    %2870 = vmatprep.mubr.f32.mxu0 0.0
    %2871 = vmatmul.mubr.f32.gmra.mrb[0].mxu0 %v2769
    %v2872 = vpop.f32.mrb[0].mxu0
    %v2873 = vadd.f32 0.0, %v2872
    %v2874 = vpop.f32.mrb[0].mxu0
    %2875 = vdwg.mxu0
    %v2876 = vadd.f32 %v163, %v2838
    %v2877 = vadd.f32 %v164, %v2843
    %v2878 = vadd.f32 %v165, %v2848
    %v2879 = vadd.f32 %v166, %v2853
    %v2880 = vadd.f32 %v167, %v2858
    %v2881 = vadd.f32 %v168, %v2863
    %v2882 = vadd.f32 %v169, %v2868
    %v2883 = vadd.f32 %v170, %v2873
    %2884 = vrot.lane.b32.xlu0 %v1705, 88
    %v2885 = vpop.permute.xlu0 %2884
    %v2888 = vsel %vm385, %v2591, 0
    %v2891 = vsel %vm385, %v2592, 0
    %v2894 = vsel %vm385, %v2593, 0
    %v2897 = vsel %vm385, %v2594, 0
    %v2900 = vsel %vm385, %v2595, 0
    %v2903 = vsel %vm385, %v2596, 0
    %v2906 = vsel %vm385, %v2597, 0
    %v2909 = vsel %vm385, %v2598, 0
    %2911 = vmatprep.subr.mxu0 0.0
    %2912 = vmatpush1.msra.mxu0 %v2885
    %2913 = vmatprep.subr.mxu0 0.0
    %2914 = vmatpush1.msra.mxu0 0.0
    %2915 = vmatprep.subr.mxu0 0.0
    %2916 = vmatpush1.msra.mxu0 0.0
    %2917 = vmatprep.subr.mxu0 0.0
    %2918 = vmatpush1.msra.mxu0 0.0
    %2919 = vmatprep.subr.mxu0 0.0
    %2920 = vmatpush1.msra.mxu0 0.0
    %2921 = vmatprep.subr.mxu0 0.0
    %2922 = vmatpush1.msra.mxu0 0.0
    %2923 = vmatprep.subr.mxu0 0.0
    %2924 = vmatpush1.msra.mxu0 0.0
    %2925 = vmatprep.subr.mxu0 0.0
    %2926 = vmatpush1.msra.mxu0 0.0
    %2927 = vmatprep.subr.mxu0 0.0
    %2928 = vmatpush1.msra.mxu0 0.0
    %2929 = vmatprep.subr.mxu0 0.0
    %2930 = vmatpush1.msra.mxu0 0.0
    %2931 = vmatprep.subr.mxu0 0.0
    %2932 = vmatpush1.msra.mxu0 0.0
    %2933 = vmatprep.subr.mxu0 0.0
    %2934 = vmatpush1.msra.mxu0 0.0
    %2935 = vmatprep.subr.mxu0 0.0
    %2936 = vmatpush1.msra.mxu0 0.0
    %2937 = vmatprep.subr.mxu0 0.0
    %2938 = vmatpush1.msra.mxu0 0.0
    %2939 = vmatprep.subr.mxu0 0.0
    %2940 = vmatpush1.msra.mxu0 0.0
    %2941 = vmatprep.subr.mxu0 0.0
    %2942 = vmatpush1.msra.mxu0 0.0
    %2943 = vmatprep.subr.mxu0 0.0
    %2944 = vmatpush1.msra.mxu0 0.0
    %2945 = vmatprep.subr.mxu0 0.0
    %2946 = vmatpush1.msra.mxu0 0.0
    %2947 = vmatprep.subr.mxu0 0.0
    %2948 = vmatpush1.msra.mxu0 0.0
    %2949 = vmatprep.subr.mxu0 0.0
    %2950 = vmatpush1.msra.mxu0 0.0
    %2951 = vmatprep.subr.mxu0 0.0
    %2952 = vmatpush1.msra.mxu0 0.0
    %2953 = vmatprep.subr.mxu0 0.0
    %2954 = vmatpush1.msra.mxu0 0.0
    %2955 = vmatprep.subr.mxu0 0.0
    %2956 = vmatpush1.msra.mxu0 0.0
    %2957 = vmatprep.subr.mxu0 0.0
    %2958 = vmatpush1.msra.mxu0 0.0
    %2959 = vmatprep.subr.mxu0 0.0
    %2960 = vmatpush1.msra.mxu0 0.0
    %2961 = vmatprep.subr.mxu0 0.0
    %2962 = vmatpush1.msra.mxu0 0.0
    %2963 = vmatprep.subr.mxu0 0.0
    %2964 = vmatpush1.msra.mxu0 0.0
    %2965 = vmatprep.subr.mxu0 0.0
    %2966 = vmatpush1.msra.mxu0 0.0
    %2967 = vmatprep.subr.mxu0 0.0
    %2968 = vmatpush1.msra.mxu0 0.0
    %2969 = vmatprep.subr.mxu0 0.0
    %2970 = vmatpush1.msra.mxu0 0.0
    %2971 = vmatprep.subr.mxu0 0.0
    %2972 = vmatpush1.msra.mxu0 0.0
    %2973 = vmatprep.subr.mxu0 0.0
    %2974 = vmatpush1.msra.mxu0 0.0
    %2975 = vmatprep.mubr.f32.mxu0 0.0
    %2976 = vmatmul.mubr.f32.gmra.mrb[0].mxu0 %v2888
    %v2977 = vpop.f32.mrb[0].mxu0
    %v2978 = vadd.f32 0.0, %v2977
    %v2979 = vpop.f32.mrb[0].mxu0
    %2980 = vmatprep.mubr.f32.mxu0 0.0
    %2981 = vmatmul.mubr.f32.gmra.mrb[0].mxu0 %v2891
    %v2982 = vpop.f32.mrb[0].mxu0
    %v2983 = vadd.f32 0.0, %v2982
    %v2984 = vpop.f32.mrb[0].mxu0
    %2985 = vmatprep.mubr.f32.mxu0 0.0
    %2986 = vmatmul.mubr.f32.gmra.mrb[0].mxu0 %v2894
    %v2987 = vpop.f32.mrb[0].mxu0
    %v2988 = vadd.f32 0.0, %v2987
    %v2989 = vpop.f32.mrb[0].mxu0
    %2990 = vmatprep.mubr.f32.mxu0 0.0
    %2991 = vmatmul.mubr.f32.gmra.mrb[0].mxu0 %v2897
    %v2992 = vpop.f32.mrb[0].mxu0
    %v2993 = vadd.f32 0.0, %v2992
    %v2994 = vpop.f32.mrb[0].mxu0
    %2995 = vmatprep.mubr.f32.mxu0 0.0
    %2996 = vmatmul.mubr.f32.gmra.mrb[0].mxu0 %v2900
    %v2997 = vpop.f32.mrb[0].mxu0
    %v2998 = vadd.f32 0.0, %v2997
    %v2999 = vpop.f32.mrb[0].mxu0
    %3000 = vmatprep.mubr.f32.mxu0 0.0
    %3001 = vmatmul.mubr.f32.gmra.mrb[0].mxu0 %v2903
    %v3002 = vpop.f32.mrb[0].mxu0
    %v3003 = vadd.f32 0.0, %v3002
    %v3004 = vpop.f32.mrb[0].mxu0
    %3005 = vmatprep.mubr.f32.mxu0 0.0
    %3006 = vmatmul.mubr.f32.gmra.mrb[0].mxu0 %v2906
    %v3007 = vpop.f32.mrb[0].mxu0
    %v3008 = vadd.f32 0.0, %v3007
    %v3009 = vpop.f32.mrb[0].mxu0
    %3010 = vmatprep.mubr.f32.mxu0 0.0
    %3011 = vmatmul.mubr.f32.gmra.mrb[0].mxu0 %v2909
    %v3012 = vpop.f32.mrb[0].mxu0
    %v3013 = vadd.f32 0.0, %v3012
    %v3014 = vpop.f32.mrb[0].mxu0
    %3015 = vdwg.mxu0
    %v3017 = vsel %vm385, %v2978, 0
    %v3020 = vsel %vm385, %v2983, 0
    %v3023 = vsel %vm385, %v2988, 0
    %v3026 = vsel %vm385, %v2993, 0
    %v3029 = vsel %vm385, %v2998, 0
    %v3032 = vsel %vm385, %v3003, 0
    %v3035 = vsel %vm385, %v3008, 0
    %v3038 = vsel %vm385, %v3013, 0
    %3040 = vmatprep.subr.mxu0 0.0
    %3041 = vmatpush1.msra.mxu0 %v180
    %3042 = vmatprep.subr.mxu0 0.0
    %3043 = vmatpush1.msra.mxu0 0.0
    %3044 = vmatprep.subr.mxu0 0.0
    %3045 = vmatpush1.msra.mxu0 0.0
    %3046 = vmatprep.subr.mxu0 0.0
    %3047 = vmatpush1.msra.mxu0 0.0
    %3048 = vmatprep.subr.mxu0 0.0
    %3049 = vmatpush1.msra.mxu0 0.0
    %3050 = vmatprep.subr.mxu0 0.0
    %3051 = vmatpush1.msra.mxu0 0.0
    %3052 = vmatprep.subr.mxu0 0.0
    %3053 = vmatpush1.msra.mxu0 0.0
    %3054 = vmatprep.subr.mxu0 0.0
    %3055 = vmatpush1.msra.mxu0 0.0
    %3056 = vmatprep.subr.mxu0 0.0
    %3057 = vmatpush1.msra.mxu0 0.0
    %3058 = vmatprep.subr.mxu0 0.0
    %3059 = vmatpush1.msra.mxu0 0.0
    %3060 = vmatprep.subr.mxu0 0.0
    %3061 = vmatpush1.msra.mxu0 0.0
    %3062 = vmatprep.subr.mxu0 0.0
    %3063 = vmatpush1.msra.mxu0 0.0
    %3064 = vmatprep.subr.mxu0 0.0
    %3065 = vmatpush1.msra.mxu0 0.0
    %3066 = vmatprep.subr.mxu0 0.0
    %3067 = vmatpush1.msra.mxu0 0.0
    %3068 = vmatprep.subr.mxu0 0.0
    %3069 = vmatpush1.msra.mxu0 0.0
    %3070 = vmatprep.subr.mxu0 0.0
    %3071 = vmatpush1.msra.mxu0 0.0
    %3072 = vmatprep.subr.mxu0 0.0
    %3073 = vmatpush1.msra.mxu0 0.0
    %3074 = vmatprep.subr.mxu0 0.0
    %3075 = vmatpush1.msra.mxu0 0.0
    %3076 = vmatprep.subr.mxu0 0.0
    %3077 = vmatpush1.msra.mxu0 0.0
    %3078 = vmatprep.subr.mxu0 0.0
    %3079 = vmatpush1.msra.mxu0 0.0
    %3080 = vmatprep.subr.mxu0 0.0
    %3081 = vmatpush1.msra.mxu0 0.0
    %3082 = vmatprep.subr.mxu0 0.0
    %3083 = vmatpush1.msra.mxu0 0.0
    %3084 = vmatprep.subr.mxu0 0.0
    %3085 = vmatpush1.msra.mxu0 0.0
    %3086 = vmatprep.subr.mxu0 0.0
    %3087 = vmatpush1.msra.mxu0 0.0
    %3088 = vmatprep.subr.mxu0 0.0
    %3089 = vmatpush1.msra.mxu0 0.0
    %3090 = vmatprep.subr.mxu0 0.0
    %3091 = vmatpush1.msra.mxu0 0.0
    %3092 = vmatprep.subr.mxu0 0.0
    %3093 = vmatpush1.msra.mxu0 0.0
    %3094 = vmatprep.subr.mxu0 0.0
    %3095 = vmatpush1.msra.mxu0 0.0
    %3096 = vmatprep.subr.mxu0 0.0
    %3097 = vmatpush1.msra.mxu0 0.0
    %3098 = vmatprep.subr.mxu0 0.0
    %3099 = vmatpush1.msra.mxu0 0.0
    %3100 = vmatprep.subr.mxu0 0.0
    %3101 = vmatpush1.msra.mxu0 0.0
    %3102 = vmatprep.subr.mxu0 0.0
    %3103 = vmatpush1.msra.mxu0 0.0
    %3104 = vmatprep.mubr.f32.mxu0 0.0
    %3105 = vmatmul.mubr.f32.gmra.mrb[0].mxu0 %v3017
    %v3106 = vpop.f32.mrb[0].mxu0
    %v3107 = vadd.f32 0.0, %v3106
    %v3108 = vpop.f32.mrb[0].mxu0
    %3109 = vmatprep.mubr.f32.mxu0 0.0
    %3110 = vmatmul.mubr.f32.gmra.mrb[0].mxu0 %v3020
    %v3111 = vpop.f32.mrb[0].mxu0
    %v3112 = vadd.f32 0.0, %v3111
    %v3113 = vpop.f32.mrb[0].mxu0
    %3114 = vmatprep.mubr.f32.mxu0 0.0
    %3115 = vmatmul.mubr.f32.gmra.mrb[0].mxu0 %v3023
    %v3116 = vpop.f32.mrb[0].mxu0
    %v3117 = vadd.f32 0.0, %v3116
    %v3118 = vpop.f32.mrb[0].mxu0
    %3119 = vmatprep.mubr.f32.mxu0 0.0
    %3120 = vmatmul.mubr.f32.gmra.mrb[0].mxu0 %v3026
    %v3121 = vpop.f32.mrb[0].mxu0
    %v3122 = vadd.f32 0.0, %v3121
    %v3123 = vpop.f32.mrb[0].mxu0
    %3124 = vmatprep.mubr.f32.mxu0 0.0
    %3125 = vmatmul.mubr.f32.gmra.mrb[0].mxu0 %v3029
    %v3126 = vpop.f32.mrb[0].mxu0
    %v3127 = vadd.f32 0.0, %v3126
    %v3128 = vpop.f32.mrb[0].mxu0
    %3129 = vmatprep.mubr.f32.mxu0 0.0
    %3130 = vmatmul.mubr.f32.gmra.mrb[0].mxu0 %v3032
    %v3131 = vpop.f32.mrb[0].mxu0
    %v3132 = vadd.f32 0.0, %v3131
    %v3133 = vpop.f32.mrb[0].mxu0
    %3134 = vmatprep.mubr.f32.mxu0 0.0
    %3135 = vmatmul.mubr.f32.gmra.mrb[0].mxu0 %v3035
    %v3136 = vpop.f32.mrb[0].mxu0
    %v3137 = vadd.f32 0.0, %v3136
    %v3138 = vpop.f32.mrb[0].mxu0
    %3139 = vmatprep.mubr.f32.mxu0 0.0
    %3140 = vmatmul.mubr.f32.gmra.mrb[0].mxu0 %v3038
    %v3141 = vpop.f32.mrb[0].mxu0
    %v3142 = vadd.f32 0.0, %v3141
    %v3143 = vpop.f32.mrb[0].mxu0
    %3144 = vdwg.mxu0
    %v3145 = vadd.f32 %v2876, %v3107
    %v3146 = vadd.f32 %v2877, %v3112
    %v3147 = vadd.f32 %v2878, %v3117
    %v3148 = vadd.f32 %v2879, %v3122
    %v3149 = vadd.f32 %v2880, %v3127
    %v3150 = vadd.f32 %v2881, %v3132
    %v3151 = vadd.f32 %v2882, %v3137
    %v3152 = vadd.f32 %v2883, %v3142
    %3153 = vrot.lane.b32.xlu0 %v1705, 80
    %v3154 = vpop.permute.xlu0 %3153
    %v3157 = vsel %vm385, %v2599, 0
    %v3160 = vsel %vm385, %v2600, 0
    %v3163 = vsel %vm385, %v2601, 0
    %v3166 = vsel %vm385, %v2602, 0
    %v3169 = vsel %vm385, %v2603, 0
    %v3172 = vsel %vm385, %v2604, 0
    %v3175 = vsel %vm385, %v2605, 0
    %v3178 = vsel %vm385, %v2606, 0
    %3180 = vmatprep.subr.mxu0 0.0
    %3181 = vmatpush1.msra.mxu0 %v3154
    %3182 = vmatprep.subr.mxu0 0.0
    %3183 = vmatpush1.msra.mxu0 0.0
    %3184 = vmatprep.subr.mxu0 0.0
    %3185 = vmatpush1.msra.mxu0 0.0
    %3186 = vmatprep.subr.mxu0 0.0
    %3187 = vmatpush1.msra.mxu0 0.0
    %3188 = vmatprep.subr.mxu0 0.0
    %3189 = vmatpush1.msra.mxu0 0.0
    %3190 = vmatprep.subr.mxu0 0.0
    %3191 = vmatpush1.msra.mxu0 0.0
    %3192 = vmatprep.subr.mxu0 0.0
    %3193 = vmatpush1.msra.mxu0 0.0
    %3194 = vmatprep.subr.mxu0 0.0
    %3195 = vmatpush1.msra.mxu0 0.0
    %3196 = vmatprep.subr.mxu0 0.0
    %3197 = vmatpush1.msra.mxu0 0.0
    %3198 = vmatprep.subr.mxu0 0.0
    %3199 = vmatpush1.msra.mxu0 0.0
    %3200 = vmatprep.subr.mxu0 0.0
    %3201 = vmatpush1.msra.mxu0 0.0
    %3202 = vmatprep.subr.mxu0 0.0
    %3203 = vmatpush1.msra.mxu0 0.0
    %3204 = vmatprep.subr.mxu0 0.0
    %3205 = vmatpush1.msra.mxu0 0.0
    %3206 = vmatprep.subr.mxu0 0.0
    %3207 = vmatpush1.msra.mxu0 0.0
    %3208 = vmatprep.subr.mxu0 0.0
    %3209 = vmatpush1.msra.mxu0 0.0
    %3210 = vmatprep.subr.mxu0 0.0
    %3211 = vmatpush1.msra.mxu0 0.0
    %3212 = vmatprep.subr.mxu0 0.0
    %3213 = vmatpush1.msra.mxu0 0.0
    %3214 = vmatprep.subr.mxu0 0.0
    %3215 = vmatpush1.msra.mxu0 0.0
    %3216 = vmatprep.subr.mxu0 0.0
    %3217 = vmatpush1.msra.mxu0 0.0
    %3218 = vmatprep.subr.mxu0 0.0
    %3219 = vmatpush1.msra.mxu0 0.0
    %3220 = vmatprep.subr.mxu0 0.0
    %3221 = vmatpush1.msra.mxu0 0.0
    %3222 = vmatprep.subr.mxu0 0.0
    %3223 = vmatpush1.msra.mxu0 0.0
    %3224 = vmatprep.subr.mxu0 0.0
    %3225 = vmatpush1.msra.mxu0 0.0
    %3226 = vmatprep.subr.mxu0 0.0
    %3227 = vmatpush1.msra.mxu0 0.0
    %3228 = vmatprep.subr.mxu0 0.0
    %3229 = vmatpush1.msra.mxu0 0.0
    %3230 = vmatprep.subr.mxu0 0.0
    %3231 = vmatpush1.msra.mxu0 0.0
    %3232 = vmatprep.subr.mxu0 0.0
    %3233 = vmatpush1.msra.mxu0 0.0
    %3234 = vmatprep.subr.mxu0 0.0
    %3235 = vmatpush1.msra.mxu0 0.0
    %3236 = vmatprep.subr.mxu0 0.0
    %3237 = vmatpush1.msra.mxu0 0.0
    %3238 = vmatprep.subr.mxu0 0.0
    %3239 = vmatpush1.msra.mxu0 0.0
    %3240 = vmatprep.subr.mxu0 0.0
    %3241 = vmatpush1.msra.mxu0 0.0
    %3242 = vmatprep.subr.mxu0 0.0
    %3243 = vmatpush1.msra.mxu0 0.0
    %3244 = vmatprep.mubr.f32.mxu0 0.0
    %3245 = vmatmul.mubr.f32.gmra.mrb[0].mxu0 %v3157
    %v3246 = vpop.f32.mrb[0].mxu0
    %v3247 = vadd.f32 0.0, %v3246
    %v3248 = vpop.f32.mrb[0].mxu0
    %3249 = vmatprep.mubr.f32.mxu0 0.0
    %3250 = vmatmul.mubr.f32.gmra.mrb[0].mxu0 %v3160
    %v3251 = vpop.f32.mrb[0].mxu0
    %v3252 = vadd.f32 0.0, %v3251
    %v3253 = vpop.f32.mrb[0].mxu0
    %3254 = vmatprep.mubr.f32.mxu0 0.0
    %3255 = vmatmul.mubr.f32.gmra.mrb[0].mxu0 %v3163
    %v3256 = vpop.f32.mrb[0].mxu0
    %v3257 = vadd.f32 0.0, %v3256
    %v3258 = vpop.f32.mrb[0].mxu0
    %3259 = vmatprep.mubr.f32.mxu0 0.0
    %3260 = vmatmul.mubr.f32.gmra.mrb[0].mxu0 %v3166
    %v3261 = vpop.f32.mrb[0].mxu0
    %v3262 = vadd.f32 0.0, %v3261
    %v3263 = vpop.f32.mrb[0].mxu0
    %3264 = vmatprep.mubr.f32.mxu0 0.0
    %3265 = vmatmul.mubr.f32.gmra.mrb[0].mxu0 %v3169
    %v3266 = vpop.f32.mrb[0].mxu0
    %v3267 = vadd.f32 0.0, %v3266
    %v3268 = vpop.f32.mrb[0].mxu0
    %3269 = vmatprep.mubr.f32.mxu0 0.0
    %3270 = vmatmul.mubr.f32.gmra.mrb[0].mxu0 %v3172
    %v3271 = vpop.f32.mrb[0].mxu0
    %v3272 = vadd.f32 0.0, %v3271
    %v3273 = vpop.f32.mrb[0].mxu0
    %3274 = vmatprep.mubr.f32.mxu0 0.0
    %3275 = vmatmul.mubr.f32.gmra.mrb[0].mxu0 %v3175
    %v3276 = vpop.f32.mrb[0].mxu0
    %v3277 = vadd.f32 0.0, %v3276
    %v3278 = vpop.f32.mrb[0].mxu0
    %3279 = vmatprep.mubr.f32.mxu0 0.0
    %3280 = vmatmul.mubr.f32.gmra.mrb[0].mxu0 %v3178
    %v3281 = vpop.f32.mrb[0].mxu0
    %v3282 = vadd.f32 0.0, %v3281
    %v3283 = vpop.f32.mrb[0].mxu0
    %3284 = vdwg.mxu0
    %v3286 = vsel %vm385, %v3247, 0
    %v3289 = vsel %vm385, %v3252, 0
    %v3292 = vsel %vm385, %v3257, 0
    %v3295 = vsel %vm385, %v3262, 0
    %v3298 = vsel %vm385, %v3267, 0
    %v3301 = vsel %vm385, %v3272, 0
    %v3304 = vsel %vm385, %v3277, 0
    %v3307 = vsel %vm385, %v3282, 0
    %3309 = vmatprep.subr.mxu0 0.0
    %3310 = vmatpush1.msra.mxu0 %v181
    %3311 = vmatprep.subr.mxu0 0.0
    %3312 = vmatpush1.msra.mxu0 0.0
    %3313 = vmatprep.subr.mxu0 0.0
    %3314 = vmatpush1.msra.mxu0 0.0
    %3315 = vmatprep.subr.mxu0 0.0
    %3316 = vmatpush1.msra.mxu0 0.0
    %3317 = vmatprep.subr.mxu0 0.0
    %3318 = vmatpush1.msra.mxu0 0.0
    %3319 = vmatprep.subr.mxu0 0.0
    %3320 = vmatpush1.msra.mxu0 0.0
    %3321 = vmatprep.subr.mxu0 0.0
    %3322 = vmatpush1.msra.mxu0 0.0
    %3323 = vmatprep.subr.mxu0 0.0
    %3324 = vmatpush1.msra.mxu0 0.0
    %3325 = vmatprep.subr.mxu0 0.0
    %3326 = vmatpush1.msra.mxu0 0.0
    %3327 = vmatprep.subr.mxu0 0.0
    %3328 = vmatpush1.msra.mxu0 0.0
    %3329 = vmatprep.subr.mxu0 0.0
    %3330 = vmatpush1.msra.mxu0 0.0
    %3331 = vmatprep.subr.mxu0 0.0
    %3332 = vmatpush1.msra.mxu0 0.0
    %3333 = vmatprep.subr.mxu0 0.0
    %3334 = vmatpush1.msra.mxu0 0.0
    %3335 = vmatprep.subr.mxu0 0.0
    %3336 = vmatpush1.msra.mxu0 0.0
    %3337 = vmatprep.subr.mxu0 0.0
    %3338 = vmatpush1.msra.mxu0 0.0
    %3339 = vmatprep.subr.mxu0 0.0
    %3340 = vmatpush1.msra.mxu0 0.0
    %3341 = vmatprep.subr.mxu0 0.0
    %3342 = vmatpush1.msra.mxu0 0.0
    %3343 = vmatprep.subr.mxu0 0.0
    %3344 = vmatpush1.msra.mxu0 0.0
    %3345 = vmatprep.subr.mxu0 0.0
    %3346 = vmatpush1.msra.mxu0 0.0
    %3347 = vmatprep.subr.mxu0 0.0
    %3348 = vmatpush1.msra.mxu0 0.0
    %3349 = vmatprep.subr.mxu0 0.0
    %3350 = vmatpush1.msra.mxu0 0.0
    %3351 = vmatprep.subr.mxu0 0.0
    %3352 = vmatpush1.msra.mxu0 0.0
    %3353 = vmatprep.subr.mxu0 0.0
    %3354 = vmatpush1.msra.mxu0 0.0
    %3355 = vmatprep.subr.mxu0 0.0
    %3356 = vmatpush1.msra.mxu0 0.0
    %3357 = vmatprep.subr.mxu0 0.0
    %3358 = vmatpush1.msra.mxu0 0.0
    %3359 = vmatprep.subr.mxu0 0.0
    %3360 = vmatpush1.msra.mxu0 0.0
    %3361 = vmatprep.subr.mxu0 0.0
    %3362 = vmatpush1.msra.mxu0 0.0
    %3363 = vmatprep.subr.mxu0 0.0
    %3364 = vmatpush1.msra.mxu0 0.0
    %3365 = vmatprep.subr.mxu0 0.0
    %3366 = vmatpush1.msra.mxu0 0.0
    %3367 = vmatprep.subr.mxu0 0.0
    %3368 = vmatpush1.msra.mxu0 0.0
    %3369 = vmatprep.subr.mxu0 0.0
    %3370 = vmatpush1.msra.mxu0 0.0
    %3371 = vmatprep.subr.mxu0 0.0
    %3372 = vmatpush1.msra.mxu0 0.0
    %3373 = vmatprep.mubr.f32.mxu0 0.0
    %3374 = vmatmul.mubr.f32.gmra.mrb[0].mxu0 %v3286
    %v3375 = vpop.f32.mrb[0].mxu0
    %v3376 = vadd.f32 0.0, %v3375
    %v3377 = vpop.f32.mrb[0].mxu0
    %3378 = vmatprep.mubr.f32.mxu0 0.0
    %3379 = vmatmul.mubr.f32.gmra.mrb[0].mxu0 %v3289
    %v3380 = vpop.f32.mrb[0].mxu0
    %v3381 = vadd.f32 0.0, %v3380
    %v3382 = vpop.f32.mrb[0].mxu0
    %3383 = vmatprep.mubr.f32.mxu0 0.0
    %3384 = vmatmul.mubr.f32.gmra.mrb[0].mxu0 %v3292
    %v3385 = vpop.f32.mrb[0].mxu0
    %v3386 = vadd.f32 0.0, %v3385
    %v3387 = vpop.f32.mrb[0].mxu0
    %3388 = vmatprep.mubr.f32.mxu0 0.0
    %3389 = vmatmul.mubr.f32.gmra.mrb[0].mxu0 %v3295
    %v3390 = vpop.f32.mrb[0].mxu0
    %v3391 = vadd.f32 0.0, %v3390
    %v3392 = vpop.f32.mrb[0].mxu0
    %3393 = vmatprep.mubr.f32.mxu0 0.0
    %3394 = vmatmul.mubr.f32.gmra.mrb[0].mxu0 %v3298
    %v3395 = vpop.f32.mrb[0].mxu0
    %v3396 = vadd.f32 0.0, %v3395
    %v3397 = vpop.f32.mrb[0].mxu0
    %3398 = vmatprep.mubr.f32.mxu0 0.0
    %3399 = vmatmul.mubr.f32.gmra.mrb[0].mxu0 %v3301
    %v3400 = vpop.f32.mrb[0].mxu0
    %v3401 = vadd.f32 0.0, %v3400
    %v3402 = vpop.f32.mrb[0].mxu0
    %3403 = vmatprep.mubr.f32.mxu0 0.0
    %3404 = vmatmul.mubr.f32.gmra.mrb[0].mxu0 %v3304
    %v3405 = vpop.f32.mrb[0].mxu0
    %v3406 = vadd.f32 0.0, %v3405
    %v3407 = vpop.f32.mrb[0].mxu0
    %3408 = vmatprep.mubr.f32.mxu0 0.0
    %3409 = vmatmul.mubr.f32.gmra.mrb[0].mxu0 %v3307
    %v3410 = vpop.f32.mrb[0].mxu0
    %v3411 = vadd.f32 0.0, %v3410
    %v3412 = vpop.f32.mrb[0].mxu0
    %3413 = vdwg.mxu0
    %v3414 = vadd.f32 %v3145, %v3376
    %v3415 = vadd.f32 %v3146, %v3381
    %v3416 = vadd.f32 %v3147, %v3386
    %v3417 = vadd.f32 %v3148, %v3391
    %v3418 = vadd.f32 %v3149, %v3396
    %v3419 = vadd.f32 %v3150, %v3401
    %v3420 = vadd.f32 %v3151, %v3406
    %v3421 = vadd.f32 %v3152, %v3411
    %3422 = vrot.lane.b32.xlu0 %v1705, 72
    %v3423 = vpop.permute.xlu0 %3422
    %v3426 = vsel %vm385, %v2607, 0
    %v3429 = vsel %vm385, %v2608, 0
    %v3432 = vsel %vm385, %v2609, 0
    %v3435 = vsel %vm385, %v2610, 0
    %v3438 = vsel %vm385, %v2611, 0
    %v3441 = vsel %vm385, %v2612, 0
    %v3444 = vsel %vm385, %v2613, 0
    %v3447 = vsel %vm385, %v2614, 0
    %3449 = vmatprep.subr.mxu0 0.0
    %3450 = vmatpush1.msra.mxu0 %v3423
    %3451 = vmatprep.subr.mxu0 0.0
    %3452 = vmatpush1.msra.mxu0 0.0
    %3453 = vmatprep.subr.mxu0 0.0
    %3454 = vmatpush1.msra.mxu0 0.0
    %3455 = vmatprep.subr.mxu0 0.0
    %3456 = vmatpush1.msra.mxu0 0.0
    %3457 = vmatprep.subr.mxu0 0.0
    %3458 = vmatpush1.msra.mxu0 0.0
    %3459 = vmatprep.subr.mxu0 0.0
    %3460 = vmatpush1.msra.mxu0 0.0
    %3461 = vmatprep.subr.mxu0 0.0
    %3462 = vmatpush1.msra.mxu0 0.0
    %3463 = vmatprep.subr.mxu0 0.0
    %3464 = vmatpush1.msra.mxu0 0.0
    %3465 = vmatprep.subr.mxu0 0.0
    %3466 = vmatpush1.msra.mxu0 0.0
    %3467 = vmatprep.subr.mxu0 0.0
    %3468 = vmatpush1.msra.mxu0 0.0
    %3469 = vmatprep.subr.mxu0 0.0
    %3470 = vmatpush1.msra.mxu0 0.0
    %3471 = vmatprep.subr.mxu0 0.0
    %3472 = vmatpush1.msra.mxu0 0.0
    %3473 = vmatprep.subr.mxu0 0.0
    %3474 = vmatpush1.msra.mxu0 0.0
    %3475 = vmatprep.subr.mxu0 0.0
    %3476 = vmatpush1.msra.mxu0 0.0
    %3477 = vmatprep.subr.mxu0 0.0
    %3478 = vmatpush1.msra.mxu0 0.0
    %3479 = vmatprep.subr.mxu0 0.0
    %3480 = vmatpush1.msra.mxu0 0.0
    %3481 = vmatprep.subr.mxu0 0.0
    %3482 = vmatpush1.msra.mxu0 0.0
    %3483 = vmatprep.subr.mxu0 0.0
    %3484 = vmatpush1.msra.mxu0 0.0
    %3485 = vmatprep.subr.mxu0 0.0
    %3486 = vmatpush1.msra.mxu0 0.0
    %3487 = vmatprep.subr.mxu0 0.0
    %3488 = vmatpush1.msra.mxu0 0.0
    %3489 = vmatprep.subr.mxu0 0.0
    %3490 = vmatpush1.msra.mxu0 0.0
    %3491 = vmatprep.subr.mxu0 0.0
    %3492 = vmatpush1.msra.mxu0 0.0
    %3493 = vmatprep.subr.mxu0 0.0
    %3494 = vmatpush1.msra.mxu0 0.0
    %3495 = vmatprep.subr.mxu0 0.0
    %3496 = vmatpush1.msra.mxu0 0.0
    %3497 = vmatprep.subr.mxu0 0.0
    %3498 = vmatpush1.msra.mxu0 0.0
    %3499 = vmatprep.subr.mxu0 0.0
    %3500 = vmatpush1.msra.mxu0 0.0
    %3501 = vmatprep.subr.mxu0 0.0
    %3502 = vmatpush1.msra.mxu0 0.0
    %3503 = vmatprep.subr.mxu0 0.0
    %3504 = vmatpush1.msra.mxu0 0.0
    %3505 = vmatprep.subr.mxu0 0.0
    %3506 = vmatpush1.msra.mxu0 0.0
    %3507 = vmatprep.subr.mxu0 0.0
    %3508 = vmatpush1.msra.mxu0 0.0
    %3509 = vmatprep.subr.mxu0 0.0
    %3510 = vmatpush1.msra.mxu0 0.0
    %3511 = vmatprep.subr.mxu0 0.0
    %3512 = vmatpush1.msra.mxu0 0.0
    %3513 = vmatprep.mubr.f32.mxu0 0.0
    %3514 = vmatmul.mubr.f32.gmra.mrb[0].mxu0 %v3426
    %v3515 = vpop.f32.mrb[0].mxu0
    %v3516 = vadd.f32 0.0, %v3515
    %v3517 = vpop.f32.mrb[0].mxu0
    %3518 = vmatprep.mubr.f32.mxu0 0.0
    %3519 = vmatmul.mubr.f32.gmra.mrb[0].mxu0 %v3429
    %v3520 = vpop.f32.mrb[0].mxu0
    %v3521 = vadd.f32 0.0, %v3520
    %v3522 = vpop.f32.mrb[0].mxu0
    %3523 = vmatprep.mubr.f32.mxu0 0.0
    %3524 = vmatmul.mubr.f32.gmra.mrb[0].mxu0 %v3432
    %v3525 = vpop.f32.mrb[0].mxu0
    %v3526 = vadd.f32 0.0, %v3525
    %v3527 = vpop.f32.mrb[0].mxu0
    %3528 = vmatprep.mubr.f32.mxu0 0.0
    %3529 = vmatmul.mubr.f32.gmra.mrb[0].mxu0 %v3435
    %v3530 = vpop.f32.mrb[0].mxu0
    %v3531 = vadd.f32 0.0, %v3530
    %v3532 = vpop.f32.mrb[0].mxu0
    %3533 = vmatprep.mubr.f32.mxu0 0.0
    %3534 = vmatmul.mubr.f32.gmra.mrb[0].mxu0 %v3438
    %v3535 = vpop.f32.mrb[0].mxu0
    %v3536 = vadd.f32 0.0, %v3535
    %v3537 = vpop.f32.mrb[0].mxu0
    %3538 = vmatprep.mubr.f32.mxu0 0.0
    %3539 = vmatmul.mubr.f32.gmra.mrb[0].mxu0 %v3441
    %v3540 = vpop.f32.mrb[0].mxu0
    %v3541 = vadd.f32 0.0, %v3540
    %v3542 = vpop.f32.mrb[0].mxu0
    %3543 = vmatprep.mubr.f32.mxu0 0.0
    %3544 = vmatmul.mubr.f32.gmra.mrb[0].mxu0 %v3444
    %v3545 = vpop.f32.mrb[0].mxu0
    %v3546 = vadd.f32 0.0, %v3545
    %v3547 = vpop.f32.mrb[0].mxu0
    %3548 = vmatprep.mubr.f32.mxu0 0.0
    %3549 = vmatmul.mubr.f32.gmra.mrb[0].mxu0 %v3447
    %v3550 = vpop.f32.mrb[0].mxu0
    %v3551 = vadd.f32 0.0, %v3550
    %v3552 = vpop.f32.mrb[0].mxu0
    %3553 = vdwg.mxu0
    %v3555 = vsel %vm385, %v3516, 0
    %v3558 = vsel %vm385, %v3521, 0
    %v3561 = vsel %vm385, %v3526, 0
    %v3564 = vsel %vm385, %v3531, 0
    %v3567 = vsel %vm385, %v3536, 0
    %v3570 = vsel %vm385, %v3541, 0
    %v3573 = vsel %vm385, %v3546, 0
    %v3576 = vsel %vm385, %v3551, 0
    %3578 = vmatprep.subr.mxu0 0.0
    %3579 = vmatpush1.msra.mxu0 %v182
    %3580 = vmatprep.subr.mxu0 0.0
    %3581 = vmatpush1.msra.mxu0 0.0
    %3582 = vmatprep.subr.mxu0 0.0
    %3583 = vmatpush1.msra.mxu0 0.0
    %3584 = vmatprep.subr.mxu0 0.0
    %3585 = vmatpush1.msra.mxu0 0.0
    %3586 = vmatprep.subr.mxu0 0.0
    %3587 = vmatpush1.msra.mxu0 0.0
    %3588 = vmatprep.subr.mxu0 0.0
    %3589 = vmatpush1.msra.mxu0 0.0
    %3590 = vmatprep.subr.mxu0 0.0
    %3591 = vmatpush1.msra.mxu0 0.0
    %3592 = vmatprep.subr.mxu0 0.0
    %3593 = vmatpush1.msra.mxu0 0.0
    %3594 = vmatprep.subr.mxu0 0.0
    %3595 = vmatpush1.msra.mxu0 0.0
    %3596 = vmatprep.subr.mxu0 0.0
    %3597 = vmatpush1.msra.mxu0 0.0
    %3598 = vmatprep.subr.mxu0 0.0
    %3599 = vmatpush1.msra.mxu0 0.0
    %3600 = vmatprep.subr.mxu0 0.0
    %3601 = vmatpush1.msra.mxu0 0.0
    %3602 = vmatprep.subr.mxu0 0.0
    %3603 = vmatpush1.msra.mxu0 0.0
    %3604 = vmatprep.subr.mxu0 0.0
    %3605 = vmatpush1.msra.mxu0 0.0
    %3606 = vmatprep.subr.mxu0 0.0
    %3607 = vmatpush1.msra.mxu0 0.0
    %3608 = vmatprep.subr.mxu0 0.0
    %3609 = vmatpush1.msra.mxu0 0.0
    %3610 = vmatprep.subr.mxu0 0.0
    %3611 = vmatpush1.msra.mxu0 0.0
    %3612 = vmatprep.subr.mxu0 0.0
    %3613 = vmatpush1.msra.mxu0 0.0
    %3614 = vmatprep.subr.mxu0 0.0
    %3615 = vmatpush1.msra.mxu0 0.0
    %3616 = vmatprep.subr.mxu0 0.0
    %3617 = vmatpush1.msra.mxu0 0.0
    %3618 = vmatprep.subr.mxu0 0.0
    %3619 = vmatpush1.msra.mxu0 0.0
    %3620 = vmatprep.subr.mxu0 0.0
    %3621 = vmatpush1.msra.mxu0 0.0
    %3622 = vmatprep.subr.mxu0 0.0
    %3623 = vmatpush1.msra.mxu0 0.0
    %3624 = vmatprep.subr.mxu0 0.0
    %3625 = vmatpush1.msra.mxu0 0.0
    %3626 = vmatprep.subr.mxu0 0.0
    %3627 = vmatpush1.msra.mxu0 0.0
    %3628 = vmatprep.subr.mxu0 0.0
    %3629 = vmatpush1.msra.mxu0 0.0
    %3630 = vmatprep.subr.mxu0 0.0
    %3631 = vmatpush1.msra.mxu0 0.0
    %3632 = vmatprep.subr.mxu0 0.0
    %3633 = vmatpush1.msra.mxu0 0.0
    %3634 = vmatprep.subr.mxu0 0.0
    %3635 = vmatpush1.msra.mxu0 0.0
    %3636 = vmatprep.subr.mxu0 0.0
    %3637 = vmatpush1.msra.mxu0 0.0
    %3638 = vmatprep.subr.mxu0 0.0
    %3639 = vmatpush1.msra.mxu0 0.0
    %3640 = vmatprep.subr.mxu0 0.0
    %3641 = vmatpush1.msra.mxu0 0.0
    %3642 = vmatprep.mubr.f32.mxu0 0.0
    %3643 = vmatmul.mubr.f32.gmra.mrb[0].mxu0 %v3555
    %v3644 = vpop.f32.mrb[0].mxu0
    %v3645 = vadd.f32 0.0, %v3644
    %v3646 = vpop.f32.mrb[0].mxu0
    %3647 = vmatprep.mubr.f32.mxu0 0.0
    %3648 = vmatmul.mubr.f32.gmra.mrb[0].mxu0 %v3558
    %v3649 = vpop.f32.mrb[0].mxu0
    %v3650 = vadd.f32 0.0, %v3649
    %v3651 = vpop.f32.mrb[0].mxu0
    %3652 = vmatprep.mubr.f32.mxu0 0.0
    %3653 = vmatmul.mubr.f32.gmra.mrb[0].mxu0 %v3561
    %v3654 = vpop.f32.mrb[0].mxu0
    %v3655 = vadd.f32 0.0, %v3654
    %v3656 = vpop.f32.mrb[0].mxu0
    %3657 = vmatprep.mubr.f32.mxu0 0.0
    %3658 = vmatmul.mubr.f32.gmra.mrb[0].mxu0 %v3564
    %v3659 = vpop.f32.mrb[0].mxu0
    %v3660 = vadd.f32 0.0, %v3659
    %v3661 = vpop.f32.mrb[0].mxu0
    %3662 = vmatprep.mubr.f32.mxu0 0.0
    %3663 = vmatmul.mubr.f32.gmra.mrb[0].mxu0 %v3567
    %v3664 = vpop.f32.mrb[0].mxu0
    %v3665 = vadd.f32 0.0, %v3664
    %v3666 = vpop.f32.mrb[0].mxu0
    %3667 = vmatprep.mubr.f32.mxu0 0.0
    %3668 = vmatmul.mubr.f32.gmra.mrb[0].mxu0 %v3570
    %v3669 = vpop.f32.mrb[0].mxu0
    %v3670 = vadd.f32 0.0, %v3669
    %v3671 = vpop.f32.mrb[0].mxu0
    %3672 = vmatprep.mubr.f32.mxu0 0.0
    %3673 = vmatmul.mubr.f32.gmra.mrb[0].mxu0 %v3573
    %v3674 = vpop.f32.mrb[0].mxu0
    %v3675 = vadd.f32 0.0, %v3674
    %v3676 = vpop.f32.mrb[0].mxu0
    %3677 = vmatprep.mubr.f32.mxu0 0.0
    %3678 = vmatmul.mubr.f32.gmra.mrb[0].mxu0 %v3576
    %v3679 = vpop.f32.mrb[0].mxu0
    %v3680 = vadd.f32 0.0, %v3679
    %v3681 = vpop.f32.mrb[0].mxu0
    %3682 = vdwg.mxu0
    %v3683 = vadd.f32 %v3414, %v3645
    %v3684 = vadd.f32 %v3415, %v3650
    %v3685 = vadd.f32 %v3416, %v3655
    %v3686 = vadd.f32 %v3417, %v3660
    %v3687 = vadd.f32 %v3418, %v3665
    %v3688 = vadd.f32 %v3419, %v3670
    %v3689 = vadd.f32 %v3420, %v3675
    %v3690 = vadd.f32 %v3421, %v3680
    %v3691 = vld [vmem:[%s9] sm:$0x1]
    %v3692 = vld [vmem:[%s10] sm:$0x1]
    %v3693 = vsel %vm120, %v3683, 0.0
    %3694 = vadd.xlane.f32.xlu0 %v3693
    %v3695 = vpop.xlane.xlu0 %3694
    %v3696 = vsel %vm120, %v3684, 0.0
    %3697 = vadd.xlane.f32.xlu0 %v3696
    %v3698 = vpop.xlane.xlu0 %3697
    %v3699 = vsel %vm120, %v3685, 0.0
    %3700 = vadd.xlane.f32.xlu0 %v3699
    %v3701 = vpop.xlane.xlu0 %3700
    %v3702 = vsel %vm120, %v3686, 0.0
    %3703 = vadd.xlane.f32.xlu0 %v3702
    %v3704 = vpop.xlane.xlu0 %3703
    %v3705 = vsel %vm120, %v3687, 0.0
    %3706 = vadd.xlane.f32.xlu0 %v3705
    %v3707 = vpop.xlane.xlu0 %3706
    %v3708 = vsel %vm120, %v3688, 0.0
    %3709 = vadd.xlane.f32.xlu0 %v3708
    %v3710 = vpop.xlane.xlu0 %3709
    %v3711 = vsel %vm120, %v3689, 0.0
    %3712 = vadd.xlane.f32.xlu0 %v3711
    %v3713 = vpop.xlane.xlu0 %3712
    %v3714 = vsel %vm120, %v3690, 0.0
    %3715 = vadd.xlane.f32.xlu0 %v3714
    %v3716 = vpop.xlane.xlu0 %3715
    %v3717 = vrcp.pop 32.0
    %v3718 = vmul.f32 %v3695, %v3717
    %v3719 = vmul.f32 %v3698, %v3717
    %v3720 = vmul.f32 %v3701, %v3717
    %v3721 = vmul.f32 %v3704, %v3717
    %v3722 = vmul.f32 %v3707, %v3717
    %v3723 = vmul.f32 %v3710, %v3717
    %v3724 = vmul.f32 %v3713, %v3717
    %v3725 = vmul.f32 %v3716, %v3717
    %v3726 = vsub.f32 %v3683, %v3718
    %v3727 = vsub.f32 %v3684, %v3719
    %v3728 = vsub.f32 %v3685, %v3720
    %v3729 = vsub.f32 %v3686, %v3721
    %v3730 = vsub.f32 %v3687, %v3722
    %v3731 = vsub.f32 %v3688, %v3723
    %v3732 = vsub.f32 %v3689, %v3724
    %v3733 = vsub.f32 %v3690, %v3725
    %v3734 = vmul.f32 %v3726, %v3726
    %v3735 = vmul.f32 %v3727, %v3727
    %v3736 = vmul.f32 %v3728, %v3728
    %v3737 = vmul.f32 %v3729, %v3729
    %v3738 = vmul.f32 %v3730, %v3730
    %v3739 = vmul.f32 %v3731, %v3731
    %v3740 = vmul.f32 %v3732, %v3732
    %v3741 = vmul.f32 %v3733, %v3733
    %v3742 = vsel %vm120, %v3734, 0.0
    %3743 = vadd.xlane.f32.xlu0 %v3742
    %v3744 = vpop.xlane.xlu0 %3743
    %v3745 = vsel %vm120, %v3735, 0.0
    %3746 = vadd.xlane.f32.xlu0 %v3745
    %v3747 = vpop.xlane.xlu0 %3746
    %v3748 = vsel %vm120, %v3736, 0.0
    %3749 = vadd.xlane.f32.xlu0 %v3748
    %v3750 = vpop.xlane.xlu0 %3749
    %v3751 = vsel %vm120, %v3737, 0.0
    %3752 = vadd.xlane.f32.xlu0 %v3751
    %v3753 = vpop.xlane.xlu0 %3752
    %v3754 = vsel %vm120, %v3738, 0.0
    %3755 = vadd.xlane.f32.xlu0 %v3754
    %v3756 = vpop.xlane.xlu0 %3755
    %v3757 = vsel %vm120, %v3739, 0.0
    %3758 = vadd.xlane.f32.xlu0 %v3757
    %v3759 = vpop.xlane.xlu0 %3758
    %v3760 = vsel %vm120, %v3740, 0.0
    %3761 = vadd.xlane.f32.xlu0 %v3760
    %v3762 = vpop.xlane.xlu0 %3761
    %v3763 = vsel %vm120, %v3741, 0.0
    %3764 = vadd.xlane.f32.xlu0 %v3763
    %v3765 = vpop.xlane.xlu0 %3764
    %v3766 = vmul.f32 %v3744, %v3717
    %v3767 = vmul.f32 %v3747, %v3717
    %v3768 = vmul.f32 %v3750, %v3717
    %v3769 = vmul.f32 %v3753, %v3717
    %v3770 = vmul.f32 %v3756, %v3717
    %v3771 = vmul.f32 %v3759, %v3717
    %v3772 = vmul.f32 %v3762, %v3717
    %v3773 = vmul.f32 %v3765, %v3717
    %v3774 = vadd.f32 %v3766, 1e-05
    %v3775 = vadd.f32 %v3767, 1e-05
    %v3776 = vadd.f32 %v3768, 1e-05
    %v3777 = vadd.f32 %v3769, 1e-05
    %v3778 = vadd.f32 %v3770, 1e-05
    %v3779 = vadd.f32 %v3771, 1e-05
    %v3780 = vadd.f32 %v3772, 1e-05
    %v3781 = vadd.f32 %v3773, 1e-05
    %v3782 = vrsqrt.pop %v3774
    %v3783 = vrsqrt.pop %v3775
    %v3784 = vrsqrt.pop %v3776
    %v3785 = vrsqrt.pop %v3777
    %v3786 = vrsqrt.pop %v3778
    %v3787 = vrsqrt.pop %v3779
    %v3788 = vrsqrt.pop %v3780
    %v3789 = vrsqrt.pop %v3781
    %v3790 = vmul.f32 %v3726, %v3782
    %v3791 = vmul.f32 %v3727, %v3783
    %v3792 = vmul.f32 %v3728, %v3784
    %v3793 = vmul.f32 %v3729, %v3785
    %v3794 = vmul.f32 %v3730, %v3786
    %v3795 = vmul.f32 %v3731, %v3787
    %v3796 = vmul.f32 %v3732, %v3788
    %v3797 = vmul.f32 %v3733, %v3789
    %v3799 = vlaneseq
    %v3800 = vshrl.u32 %v3799, 7
    %v3801 = vsub.s32 0, %v3800
    %v3802 = vrot.slane %v3691, %v3801
    %v3804 = vmul.f32 %v3790, %v3802
    %v3805 = vmul.f32 %v3791, %v3802
    %v3806 = vmul.f32 %v3792, %v3802
    %v3807 = vmul.f32 %v3793, %v3802
    %v3808 = vmul.f32 %v3794, %v3802
    %v3809 = vmul.f32 %v3795, %v3802
    %v3810 = vmul.f32 %v3796, %v3802
    %v3811 = vmul.f32 %v3797, %v3802
    %v3813 = vlaneseq
    %v3814 = vshrl.u32 %v3813, 7
    %v3815 = vsub.s32 0, %v3814
    %v3816 = vrot.slane %v3692, %v3815
    %v3818 = vadd.f32 %v3804, %v3816
    %v3819 = vadd.f32 %v3805, %v3816
    %v3820 = vadd.f32 %v3806, %v3816
    %v3821 = vadd.f32 %v3807, %v3816
    %v3822 = vadd.f32 %v3808, %v3816
    %v3823 = vadd.f32 %v3809, %v3816
    %v3824 = vadd.f32 %v3810, %v3816
    %v3825 = vadd.f32 %v3811, %v3816
    %v3826 = vld [vmem:[#allocation9] sm:$0xff]
    %v3827 = vld [vmem:[#allocation9 + $0x8] sm:$0xff]
    %v3828 = vld [vmem:[#allocation9 + $0x10] sm:$0xff]
    %v3829 = vld [vmem:[#allocation9 + $0x18] sm:$0xff]
    %v3830 = vld [vmem:[%s6] sm:$0x1]
    %v3832 = vlaneseq
    %v3833 = vshrl.u32 %v3832, 7
    %v3834 = vsub.s32 0, %v3833
    %v3835 = vrot.slane %v3830, %v3834
    %v3838 = vsel %vm120, %v3818, 0
    %v3841 = vsel %vm120, %v3819, 0
    %v3844 = vsel %vm120, %v3820, 0
    %v3847 = vsel %vm120, %v3821, 0
    %v3850 = vsel %vm120, %v3822, 0
    %v3853 = vsel %vm120, %v3823, 0
    %v3856 = vsel %vm120, %v3824, 0
    %v3859 = vsel %vm120, %v3825, 0
    %3861 = vmatprep.subr.mxu0 0.0
    %3862 = vmatpush1.msra.mxu0 %v3826
    %3863 = vmatprep.subr.mxu0 0.0
    %3864 = vmatpush1.msra.mxu0 %v3827
    %3865 = vmatprep.subr.mxu0 0.0
    %3866 = vmatpush1.msra.mxu0 %v3828
    %3867 = vmatprep.subr.mxu0 0.0
    %3868 = vmatpush1.msra.mxu0 %v3829
    %3869 = vmatprep.subr.mxu0 0.0
    %3870 = vmatpush1.msra.mxu0 0.0
    %3871 = vmatprep.subr.mxu0 0.0
    %3872 = vmatpush1.msra.mxu0 0.0
    %3873 = vmatprep.subr.mxu0 0.0
    %3874 = vmatpush1.msra.mxu0 0.0
    %3875 = vmatprep.subr.mxu0 0.0
    %3876 = vmatpush1.msra.mxu0 0.0
    %3877 = vmatprep.subr.mxu0 0.0
    %3878 = vmatpush1.msra.mxu0 0.0
    %3879 = vmatprep.subr.mxu0 0.0
    %3880 = vmatpush1.msra.mxu0 0.0
    %3881 = vmatprep.subr.mxu0 0.0
    %3882 = vmatpush1.msra.mxu0 0.0
    %3883 = vmatprep.subr.mxu0 0.0
    %3884 = vmatpush1.msra.mxu0 0.0
    %3885 = vmatprep.subr.mxu0 0.0
    %3886 = vmatpush1.msra.mxu0 0.0
    %3887 = vmatprep.subr.mxu0 0.0
    %3888 = vmatpush1.msra.mxu0 0.0
    %3889 = vmatprep.subr.mxu0 0.0
    %3890 = vmatpush1.msra.mxu0 0.0
    %3891 = vmatprep.subr.mxu0 0.0
    %3892 = vmatpush1.msra.mxu0 0.0
    %3893 = vmatprep.subr.mxu0 0.0
    %3894 = vmatpush1.msra.mxu0 0.0
    %3895 = vmatprep.subr.mxu0 0.0
    %3896 = vmatpush1.msra.mxu0 0.0
    %3897 = vmatprep.subr.mxu0 0.0
    %3898 = vmatpush1.msra.mxu0 0.0
    %3899 = vmatprep.subr.mxu0 0.0
    %3900 = vmatpush1.msra.mxu0 0.0
    %3901 = vmatprep.subr.mxu0 0.0
    %3902 = vmatpush1.msra.mxu0 0.0
    %3903 = vmatprep.subr.mxu0 0.0
    %3904 = vmatpush1.msra.mxu0 0.0
    %3905 = vmatprep.subr.mxu0 0.0
    %3906 = vmatpush1.msra.mxu0 0.0
    %3907 = vmatprep.subr.mxu0 0.0
    %3908 = vmatpush1.msra.mxu0 0.0
    %3909 = vmatprep.subr.mxu0 0.0
    %3910 = vmatpush1.msra.mxu0 0.0
    %3911 = vmatprep.subr.mxu0 0.0
    %3912 = vmatpush1.msra.mxu0 0.0
    %3913 = vmatprep.subr.mxu0 0.0
    %3914 = vmatpush1.msra.mxu0 0.0
    %3915 = vmatprep.subr.mxu0 0.0
    %3916 = vmatpush1.msra.mxu0 0.0
    %3917 = vmatprep.subr.mxu0 0.0
    %3918 = vmatpush1.msra.mxu0 0.0
    %3919 = vmatprep.subr.mxu0 0.0
    %3920 = vmatpush1.msra.mxu0 0.0
    %3921 = vmatprep.subr.mxu0 0.0
    %3922 = vmatpush1.msra.mxu0 0.0
    %3923 = vmatprep.subr.mxu0 0.0
    %3924 = vmatpush1.msra.mxu0 0.0
    %3925 = vmatprep.mubr.f32.mxu0 0.0
    %3926 = vmatmul.mubr.f32.gmra.mrb[0].mxu0 %v3838
    %v3927 = vpop.f32.mrb[0].mxu0
    %v3928 = vadd.f32 %v3835, %v3927
    %v3929 = vpop.f32.mrb[0].mxu0
    %3930 = vmatprep.mubr.f32.mxu0 0.0
    %3931 = vmatmul.mubr.f32.gmra.mrb[0].mxu0 %v3841
    %v3932 = vpop.f32.mrb[0].mxu0
    %v3933 = vadd.f32 %v3835, %v3932
    %v3934 = vpop.f32.mrb[0].mxu0
    %3935 = vmatprep.mubr.f32.mxu0 0.0
    %3936 = vmatmul.mubr.f32.gmra.mrb[0].mxu0 %v3844
    %v3937 = vpop.f32.mrb[0].mxu0
    %v3938 = vadd.f32 %v3835, %v3937
    %v3939 = vpop.f32.mrb[0].mxu0
    %3940 = vmatprep.mubr.f32.mxu0 0.0
    %3941 = vmatmul.mubr.f32.gmra.mrb[0].mxu0 %v3847
    %v3942 = vpop.f32.mrb[0].mxu0
    %v3943 = vadd.f32 %v3835, %v3942
    %v3944 = vpop.f32.mrb[0].mxu0
    %3945 = vmatprep.mubr.f32.mxu0 0.0
    %3946 = vmatmul.mubr.f32.gmra.mrb[0].mxu0 %v3850
    %v3947 = vpop.f32.mrb[0].mxu0
    %v3948 = vadd.f32 %v3835, %v3947
    %v3949 = vpop.f32.mrb[0].mxu0
    %3950 = vmatprep.mubr.f32.mxu0 0.0
    %3951 = vmatmul.mubr.f32.gmra.mrb[0].mxu0 %v3853
    %v3952 = vpop.f32.mrb[0].mxu0
    %v3953 = vadd.f32 %v3835, %v3952
    %v3954 = vpop.f32.mrb[0].mxu0
    %3955 = vmatprep.mubr.f32.mxu0 0.0
    %3956 = vmatmul.mubr.f32.gmra.mrb[0].mxu0 %v3856
    %v3957 = vpop.f32.mrb[0].mxu0
    %v3958 = vadd.f32 %v3835, %v3957
    %v3959 = vpop.f32.mrb[0].mxu0
    %3960 = vmatprep.mubr.f32.mxu0 0.0
    %3961 = vmatmul.mubr.f32.gmra.mrb[0].mxu0 %v3859
    %v3962 = vpop.f32.mrb[0].mxu0
    %v3963 = vadd.f32 %v3835, %v3962
    %v3964 = vpop.f32.mrb[0].mxu0
    %3965 = vdwg.mxu0
    %v3966 = vmax.f32 %v3928, 0.0
    %v3967 = vmax.f32 %v3933, 0.0
    %v3968 = vmax.f32 %v3938, 0.0
    %v3969 = vmax.f32 %v3943, 0.0
    %v3970 = vmax.f32 %v3948, 0.0
    %v3971 = vmax.f32 %v3953, 0.0
    %v3972 = vmax.f32 %v3958, 0.0
    %v3973 = vmax.f32 %v3963, 0.0
    %v3974 = vld [vmem:[#allocation10] sm:$0xff]
    %v3975 = vld [vmem:[#allocation10 + $0x8] sm:$0xff]
    %v3976 = vld [vmem:[#allocation10 + $0x10] sm:$0xff]
    %v3977 = vld [vmem:[#allocation10 + $0x18] sm:$0xff]
    %v3978 = vld [vmem:[%s8] sm:$0x1]
    %v3980 = vlaneseq
    %v3981 = vshrl.u32 %v3980, 7
    %v3982 = vsub.s32 0, %v3981
    %v3983 = vrot.slane %v3978, %v3982
    %v3986 = vsel %vm120, %v3966, 0
    %v3989 = vsel %vm120, %v3967, 0
    %v3992 = vsel %vm120, %v3968, 0
    %v3995 = vsel %vm120, %v3969, 0
    %v3998 = vsel %vm120, %v3970, 0
    %v4001 = vsel %vm120, %v3971, 0
    %v4004 = vsel %vm120, %v3972, 0
    %v4007 = vsel %vm120, %v3973, 0
    %4009 = vmatprep.subr.mxu0 0.0
    %4010 = vmatpush1.msra.mxu0 %v3974
    %4011 = vmatprep.subr.mxu0 0.0
    %4012 = vmatpush1.msra.mxu0 %v3975
    %4013 = vmatprep.subr.mxu0 0.0
    %4014 = vmatpush1.msra.mxu0 %v3976
    %4015 = vmatprep.subr.mxu0 0.0
    %4016 = vmatpush1.msra.mxu0 %v3977
    %4017 = vmatprep.subr.mxu0 0.0
    %4018 = vmatpush1.msra.mxu0 0.0
    %4019 = vmatprep.subr.mxu0 0.0
    %4020 = vmatpush1.msra.mxu0 0.0
    %4021 = vmatprep.subr.mxu0 0.0
    %4022 = vmatpush1.msra.mxu0 0.0
    %4023 = vmatprep.subr.mxu0 0.0
    %4024 = vmatpush1.msra.mxu0 0.0
    %4025 = vmatprep.subr.mxu0 0.0
    %4026 = vmatpush1.msra.mxu0 0.0
    %4027 = vmatprep.subr.mxu0 0.0
    %4028 = vmatpush1.msra.mxu0 0.0
    %4029 = vmatprep.subr.mxu0 0.0
    %4030 = vmatpush1.msra.mxu0 0.0
    %4031 = vmatprep.subr.mxu0 0.0
    %4032 = vmatpush1.msra.mxu0 0.0
    %4033 = vmatprep.subr.mxu0 0.0
    %4034 = vmatpush1.msra.mxu0 0.0
    %4035 = vmatprep.subr.mxu0 0.0
    %4036 = vmatpush1.msra.mxu0 0.0
    %4037 = vmatprep.subr.mxu0 0.0
    %4038 = vmatpush1.msra.mxu0 0.0
    %4039 = vmatprep.subr.mxu0 0.0
    %4040 = vmatpush1.msra.mxu0 0.0
    %4041 = vmatprep.subr.mxu0 0.0
    %4042 = vmatpush1.msra.mxu0 0.0
    %4043 = vmatprep.subr.mxu0 0.0
    %4044 = vmatpush1.msra.mxu0 0.0
    %4045 = vmatprep.subr.mxu0 0.0
    %4046 = vmatpush1.msra.mxu0 0.0
    %4047 = vmatprep.subr.mxu0 0.0
    %4048 = vmatpush1.msra.mxu0 0.0
    %4049 = vmatprep.subr.mxu0 0.0
    %4050 = vmatpush1.msra.mxu0 0.0
    %4051 = vmatprep.subr.mxu0 0.0
    %4052 = vmatpush1.msra.mxu0 0.0
    %4053 = vmatprep.subr.mxu0 0.0
    %4054 = vmatpush1.msra.mxu0 0.0
    %4055 = vmatprep.subr.mxu0 0.0
    %4056 = vmatpush1.msra.mxu0 0.0
    %4057 = vmatprep.subr.mxu0 0.0
    %4058 = vmatpush1.msra.mxu0 0.0
    %4059 = vmatprep.subr.mxu0 0.0
    %4060 = vmatpush1.msra.mxu0 0.0
    %4061 = vmatprep.subr.mxu0 0.0
    %4062 = vmatpush1.msra.mxu0 0.0
    %4063 = vmatprep.subr.mxu0 0.0
    %4064 = vmatpush1.msra.mxu0 0.0
    %4065 = vmatprep.subr.mxu0 0.0
    %4066 = vmatpush1.msra.mxu0 0.0
    %4067 = vmatprep.subr.mxu0 0.0
    %4068 = vmatpush1.msra.mxu0 0.0
    %4069 = vmatprep.subr.mxu0 0.0
    %4070 = vmatpush1.msra.mxu0 0.0
    %4071 = vmatprep.subr.mxu0 0.0
    %4072 = vmatpush1.msra.mxu0 0.0
    %4073 = vmatprep.mubr.f32.mxu0 0.0
    %4074 = vmatmul.mubr.f32.gmra.mrb[0].mxu0 %v3986
    %v4075 = vpop.f32.mrb[0].mxu0
    %v4076 = vadd.f32 %v3983, %v4075
    %v4077 = vpop.f32.mrb[0].mxu0
    %4078 = vmatprep.mubr.f32.mxu0 0.0
    %4079 = vmatmul.mubr.f32.gmra.mrb[0].mxu0 %v3989
    %v4080 = vpop.f32.mrb[0].mxu0
    %v4081 = vadd.f32 %v3983, %v4080
    %v4082 = vpop.f32.mrb[0].mxu0
    %4083 = vmatprep.mubr.f32.mxu0 0.0
    %4084 = vmatmul.mubr.f32.gmra.mrb[0].mxu0 %v3992
    %v4085 = vpop.f32.mrb[0].mxu0
    %v4086 = vadd.f32 %v3983, %v4085
    %v4087 = vpop.f32.mrb[0].mxu0
    %4088 = vmatprep.mubr.f32.mxu0 0.0
    %4089 = vmatmul.mubr.f32.gmra.mrb[0].mxu0 %v3995
    %v4090 = vpop.f32.mrb[0].mxu0
    %v4091 = vadd.f32 %v3983, %v4090
    %v4092 = vpop.f32.mrb[0].mxu0
    %4093 = vmatprep.mubr.f32.mxu0 0.0
    %4094 = vmatmul.mubr.f32.gmra.mrb[0].mxu0 %v3998
    %v4095 = vpop.f32.mrb[0].mxu0
    %v4096 = vadd.f32 %v3983, %v4095
    %v4097 = vpop.f32.mrb[0].mxu0
    %4098 = vmatprep.mubr.f32.mxu0 0.0
    %4099 = vmatmul.mubr.f32.gmra.mrb[0].mxu0 %v4001
    %v4100 = vpop.f32.mrb[0].mxu0
    %v4101 = vadd.f32 %v3983, %v4100
    %v4102 = vpop.f32.mrb[0].mxu0
    %4103 = vmatprep.mubr.f32.mxu0 0.0
    %4104 = vmatmul.mubr.f32.gmra.mrb[0].mxu0 %v4004
    %v4105 = vpop.f32.mrb[0].mxu0
    %v4106 = vadd.f32 %v3983, %v4105
    %v4107 = vpop.f32.mrb[0].mxu0
    %4108 = vmatprep.mubr.f32.mxu0 0.0
    %4109 = vmatmul.mubr.f32.gmra.mrb[0].mxu0 %v4007
    %v4110 = vpop.f32.mrb[0].mxu0
    %v4111 = vadd.f32 %v3983, %v4110
    %v4112 = vpop.f32.mrb[0].mxu0
    %4113 = vdwg.mxu0
    %v4114 = vmax.f32 %v4076, 0.0
    %v4115 = vmax.f32 %v4081, 0.0
    %v4116 = vmax.f32 %v4086, 0.0
    %v4117 = vmax.f32 %v4091, 0.0
    %v4118 = vmax.f32 %v4096, 0.0
    %v4119 = vmax.f32 %v4101, 0.0
    %v4120 = vmax.f32 %v4106, 0.0
    %v4121 = vmax.f32 %v4111, 0.0
    %v4122 = vadd.f32 %v3818, %v4114
    %v4123 = vadd.f32 %v3819, %v4115
    %v4124 = vadd.f32 %v3820, %v4116
    %v4125 = vadd.f32 %v3821, %v4117
    %v4126 = vadd.f32 %v3822, %v4118
    %v4127 = vadd.f32 %v3823, %v4119
    %v4128 = vadd.f32 %v3824, %v4120
    %v4129 = vadd.f32 %v3825, %v4121
    %v4130 = vld [vmem:[%s11] sm:$0x1]
    %v4131 = vld [vmem:[%s12] sm:$0x1]
    %v4132 = vsel %vm120, %v4122, 0.0
    %4133 = vadd.xlane.f32.xlu0 %v4132
    %v4134 = vpop.xlane.xlu0 %4133
    %v4135 = vsel %vm120, %v4123, 0.0
    %4136 = vadd.xlane.f32.xlu0 %v4135
    %v4137 = vpop.xlane.xlu0 %4136
    %v4138 = vsel %vm120, %v4124, 0.0
    %4139 = vadd.xlane.f32.xlu0 %v4138
    %v4140 = vpop.xlane.xlu0 %4139
    %v4141 = vsel %vm120, %v4125, 0.0
    %4142 = vadd.xlane.f32.xlu0 %v4141
    %v4143 = vpop.xlane.xlu0 %4142
    %v4144 = vsel %vm120, %v4126, 0.0
    %4145 = vadd.xlane.f32.xlu0 %v4144
    %v4146 = vpop.xlane.xlu0 %4145
    %v4147 = vsel %vm120, %v4127, 0.0
    %4148 = vadd.xlane.f32.xlu0 %v4147
    %v4149 = vpop.xlane.xlu0 %4148
    %v4150 = vsel %vm120, %v4128, 0.0
    %4151 = vadd.xlane.f32.xlu0 %v4150
    %v4152 = vpop.xlane.xlu0 %4151
    %v4153 = vsel %vm120, %v4129, 0.0
    %4154 = vadd.xlane.f32.xlu0 %v4153
    %v4155 = vpop.xlane.xlu0 %4154
    %v4156 = vmul.f32 %v4134, %v3717
    %v4157 = vmul.f32 %v4137, %v3717
    %v4158 = vmul.f32 %v4140, %v3717
    %v4159 = vmul.f32 %v4143, %v3717
    %v4160 = vmul.f32 %v4146, %v3717
    %v4161 = vmul.f32 %v4149, %v3717
    %v4162 = vmul.f32 %v4152, %v3717
    %v4163 = vmul.f32 %v4155, %v3717
    %v4164 = vsub.f32 %v4122, %v4156
    %v4165 = vsub.f32 %v4123, %v4157
    %v4166 = vsub.f32 %v4124, %v4158
    %v4167 = vsub.f32 %v4125, %v4159
    %v4168 = vsub.f32 %v4126, %v4160
    %v4169 = vsub.f32 %v4127, %v4161
    %v4170 = vsub.f32 %v4128, %v4162
    %v4171 = vsub.f32 %v4129, %v4163
    %v4172 = vmul.f32 %v4164, %v4164
    %v4173 = vmul.f32 %v4165, %v4165
    %v4174 = vmul.f32 %v4166, %v4166
    %v4175 = vmul.f32 %v4167, %v4167
    %v4176 = vmul.f32 %v4168, %v4168
    %v4177 = vmul.f32 %v4169, %v4169
    %v4178 = vmul.f32 %v4170, %v4170
    %v4179 = vmul.f32 %v4171, %v4171
    %v4180 = vsel %vm120, %v4172, 0.0
    %4181 = vadd.xlane.f32.xlu0 %v4180
    %v4182 = vpop.xlane.xlu0 %4181
    %v4183 = vsel %vm120, %v4173, 0.0
    %4184 = vadd.xlane.f32.xlu0 %v4183
    %v4185 = vpop.xlane.xlu0 %4184
    %v4186 = vsel %vm120, %v4174, 0.0
    %4187 = vadd.xlane.f32.xlu0 %v4186
    %v4188 = vpop.xlane.xlu0 %4187
    %v4189 = vsel %vm120, %v4175, 0.0
    %4190 = vadd.xlane.f32.xlu0 %v4189
    %v4191 = vpop.xlane.xlu0 %4190
    %v4192 = vsel %vm120, %v4176, 0.0
    %4193 = vadd.xlane.f32.xlu0 %v4192
    %v4194 = vpop.xlane.xlu0 %4193
    %v4195 = vsel %vm120, %v4177, 0.0
    %4196 = vadd.xlane.f32.xlu0 %v4195
    %v4197 = vpop.xlane.xlu0 %4196
    %v4198 = vsel %vm120, %v4178, 0.0
    %4199 = vadd.xlane.f32.xlu0 %v4198
    %v4200 = vpop.xlane.xlu0 %4199
    %v4201 = vsel %vm120, %v4179, 0.0
    %4202 = vadd.xlane.f32.xlu0 %v4201
    %v4203 = vpop.xlane.xlu0 %4202
    %v4204 = vmul.f32 %v4182, %v3717
    %v4205 = vmul.f32 %v4185, %v3717
    %v4206 = vmul.f32 %v4188, %v3717
    %v4207 = vmul.f32 %v4191, %v3717
    %v4208 = vmul.f32 %v4194, %v3717
    %v4209 = vmul.f32 %v4197, %v3717
    %v4210 = vmul.f32 %v4200, %v3717
    %v4211 = vmul.f32 %v4203, %v3717
    %v4212 = vadd.f32 %v4204, 1e-05
    %v4213 = vadd.f32 %v4205, 1e-05
    %v4214 = vadd.f32 %v4206, 1e-05
    %v4215 = vadd.f32 %v4207, 1e-05
    %v4216 = vadd.f32 %v4208, 1e-05
    %v4217 = vadd.f32 %v4209, 1e-05
    %v4218 = vadd.f32 %v4210, 1e-05
    %v4219 = vadd.f32 %v4211, 1e-05
    %v4220 = vrsqrt.pop %v4212
    %v4221 = vrsqrt.pop %v4213
    %v4222 = vrsqrt.pop %v4214
    %v4223 = vrsqrt.pop %v4215
    %v4224 = vrsqrt.pop %v4216
    %v4225 = vrsqrt.pop %v4217
    %v4226 = vrsqrt.pop %v4218
    %v4227 = vrsqrt.pop %v4219
    %v4228 = vmul.f32 %v4164, %v4220
    %v4229 = vmul.f32 %v4165, %v4221
    %v4230 = vmul.f32 %v4166, %v4222
    %v4231 = vmul.f32 %v4167, %v4223
    %v4232 = vmul.f32 %v4168, %v4224
    %v4233 = vmul.f32 %v4169, %v4225
    %v4234 = vmul.f32 %v4170, %v4226
    %v4235 = vmul.f32 %v4171, %v4227
    %v4237 = vlaneseq
    %v4238 = vshrl.u32 %v4237, 7
    %v4239 = vsub.s32 0, %v4238
    %v4240 = vrot.slane %v4130, %v4239
    %v4242 = vmul.f32 %v4228, %v4240
    %v4243 = vmul.f32 %v4229, %v4240
    %v4244 = vmul.f32 %v4230, %v4240
    %v4245 = vmul.f32 %v4231, %v4240
    %v4246 = vmul.f32 %v4232, %v4240
    %v4247 = vmul.f32 %v4233, %v4240
    %v4248 = vmul.f32 %v4234, %v4240
    %v4249 = vmul.f32 %v4235, %v4240
    %v4251 = vlaneseq
    %v4252 = vshrl.u32 %v4251, 7
    %v4253 = vsub.s32 0, %v4252
    %v4254 = vrot.slane %v4131, %v4253
    %v4256 = vadd.f32 %v4242, %v4254
    %v4257 = vadd.f32 %v4243, %v4254
    %v4258 = vadd.f32 %v4244, %v4254
    %v4259 = vadd.f32 %v4245, %v4254
    %v4260 = vadd.f32 %v4246, %v4254
    %v4261 = vadd.f32 %v4247, %v4254
    %v4262 = vadd.f32 %v4248, %v4254
    %v4263 = vadd.f32 %v4249, %v4254
    %v4264 = vmul.f32 %v4256, 0.5
    %v4265 = vmul.f32 %v4257, 0.5
    %v4266 = vmul.f32 %v4258, 0.5
    %v4267 = vmul.f32 %v4259, 0.5
    %v4268 = vmul.f32 %v4260, 0.5
    %v4269 = vmul.f32 %v4261, 0.5
    %v4270 = vmul.f32 %v4262, 0.5
    %v4271 = vmul.f32 %v4263, 0.5
    %4272 = vst.msk [vmem:[%s13] sm:$0xff] %vm120, %v4264
    %4273 = vst.msk [vmem:[%s13 + $0x8] sm:$0xff] %vm120, %v4265
    %4274 = vst.msk [vmem:[%s13 + $0x10] sm:$0xff] %vm120, %v4266
    %4275 = vst.msk [vmem:[%s13 + $0x18] sm:$0xff] %vm120, %v4267
    %4276 = vst.msk [vmem:[%s13 + $0x20] sm:$0xff] %vm120, %v4268
    %4277 = vst.msk [vmem:[%s13 + $0x28] sm:$0xff] %vm120, %v4269
    %4278 = vst.msk [vmem:[%s13 + $0x30] sm:$0xff] %vm120, %v4270
    %4279 = vst.msk [vmem:[%s13 + $0x38] sm:$0xff] %vm120, %v4271
    %s4280 = sld [smem:[#allocation3 + $0x8]]
    %s4281 = scalar_lea.vmem %s13, %s4280
    %v4282 = vld [vmem:[%s4281] sm:$0x1]
    %4283 = vst.msk [vmem:[#allocation2] sm:$0x1] %vm132, %v4282
    %s4284 = sld [smem:[#allocation3 + $0x9]]
    %s4285 = scalar_lea.vmem %s13, %s4284
    %v4286 = vld [vmem:[%s4285] sm:$0x1]
    %4287 = vst.msk [vmem:[#allocation2 + $0x1] sm:$0x1] %vm132, %v4286
    %s4288 = sld [smem:[#allocation3 + $0xa]]
    %s4289 = scalar_lea.vmem %s13, %s4288
    %v4290 = vld [vmem:[%s4289] sm:$0x1]
    %4291 = vst.msk [vmem:[#allocation2 + $0x2] sm:$0x1] %vm132, %v4290
    %s4292 = sld [smem:[#allocation3 + $0xb]]
    %s4293 = scalar_lea.vmem %s13, %s4292
    %v4294 = vld [vmem:[%s4293] sm:$0x1]
    %4295 = vst.msk [vmem:[#allocation2 + $0x3] sm:$0x1] %vm132, %v4294
    %s4296 = sld [smem:[#allocation3 + $0xc]]
    %s4297 = scalar_lea.vmem %s13, %s4296
    %v4298 = vld [vmem:[%s4297] sm:$0x1]
    %4299 = vst.msk [vmem:[#allocation2 + $0x4] sm:$0x1] %vm132, %v4298
    %s4300 = sld [smem:[#allocation3 + $0xd]]
    %s4301 = scalar_lea.vmem %s13, %s4300
    %v4302 = vld [vmem:[%s4301] sm:$0x1]
    %4303 = vst.msk [vmem:[#allocation2 + $0x5] sm:$0x1] %vm132, %v4302
    %s4304 = sld [smem:[#allocation3 + $0xe]]
    %s4305 = scalar_lea.vmem %s13, %s4304
    %v4306 = vld [vmem:[%s4305] sm:$0x1]
    %4307 = vst.msk [vmem:[#allocation2 + $0x6] sm:$0x1] %vm132, %v4306
    %s4308 = sld [smem:[#allocation3 + $0xf]]
    %s4309 = scalar_lea.vmem %s13, %s4308
    %v4310 = vld [vmem:[%s4309] sm:$0x1]
    %4311 = vst.msk [vmem:[#allocation2 + $0x7] sm:$0x1] %vm132, %v4310
    %v4312 = vld [vmem:[#allocation2] sm:$0xff]
    %v4313 = vld [vmem:[%s13] sm:$0xff]
    %v4314 = vld [vmem:[%s13 + $0x8] sm:$0xff]
    %v4315 = vld [vmem:[%s13 + $0x10] sm:$0xff]
    %v4316 = vld [vmem:[%s13 + $0x18] sm:$0xff]
    %v4317 = vld [vmem:[%s13 + $0x20] sm:$0xff]
    %v4318 = vld [vmem:[%s13 + $0x28] sm:$0xff]
    %v4319 = vld [vmem:[%s13 + $0x30] sm:$0xff]
    %v4320 = vld [vmem:[%s13 + $0x38] sm:$0xff]
    %s4321 = scalar_lea.vmem %s2, 32
    %v4322 = vld [vmem:[%s4321] sm:$0xff]
    %v4323 = vld [vmem:[%s4321 + $0x8] sm:$0xff]
    %v4324 = vld [vmem:[%s4321 + $0x10] sm:$0xff]
    %v4325 = vld [vmem:[%s4321 + $0x18] sm:$0xff]
    %s4326 = scalar_lea.vmem [#allocation6], 32
    %v4327 = vld [vmem:[%s4326] sm:$0xff]
    %v4328 = vld [vmem:[%s4326 + $0x8] sm:$0xff]
    %v4329 = vld [vmem:[%s4326 + $0x10] sm:$0xff]
    %v4330 = vld [vmem:[%s4326 + $0x18] sm:$0xff]
    %s4331 = scalar_lea.vmem [#allocation7], 32
    %v4332 = vld [vmem:[%s4331] sm:$0xff]
    %v4333 = vld [vmem:[%s4331 + $0x8] sm:$0xff]
    %v4334 = vld [vmem:[%s4331 + $0x10] sm:$0xff]
    %v4335 = vld [vmem:[%s4331 + $0x18] sm:$0xff]
    %v4337 = vsel %vm120, %v4312, 0
    %4339 = vmatprep.subr.mxu0 0.0
    %4340 = vmatpush1.msra.mxu0 %v4322
    %4341 = vmatprep.subr.mxu0 0.0
    %4342 = vmatpush1.msra.mxu0 %v4323
    %4343 = vmatprep.subr.mxu0 0.0
    %4344 = vmatpush1.msra.mxu0 %v4324
    %4345 = vmatprep.subr.mxu0 0.0
    %4346 = vmatpush1.msra.mxu0 %v4325
    %4347 = vmatprep.subr.mxu0 0.0
    %4348 = vmatpush1.msra.mxu0 0.0
    %4349 = vmatprep.subr.mxu0 0.0
    %4350 = vmatpush1.msra.mxu0 0.0
    %4351 = vmatprep.subr.mxu0 0.0
    %4352 = vmatpush1.msra.mxu0 0.0
    %4353 = vmatprep.subr.mxu0 0.0
    %4354 = vmatpush1.msra.mxu0 0.0
    %4355 = vmatprep.subr.mxu0 0.0
    %4356 = vmatpush1.msra.mxu0 0.0
    %4357 = vmatprep.subr.mxu0 0.0
    %4358 = vmatpush1.msra.mxu0 0.0
    %4359 = vmatprep.subr.mxu0 0.0
    %4360 = vmatpush1.msra.mxu0 0.0
    %4361 = vmatprep.subr.mxu0 0.0
    %4362 = vmatpush1.msra.mxu0 0.0
    %4363 = vmatprep.subr.mxu0 0.0
    %4364 = vmatpush1.msra.mxu0 0.0
    %4365 = vmatprep.subr.mxu0 0.0
    %4366 = vmatpush1.msra.mxu0 0.0
    %4367 = vmatprep.subr.mxu0 0.0
    %4368 = vmatpush1.msra.mxu0 0.0
    %4369 = vmatprep.subr.mxu0 0.0
    %4370 = vmatpush1.msra.mxu0 0.0
    %4371 = vmatprep.subr.mxu0 0.0
    %4372 = vmatpush1.msra.mxu0 0.0
    %4373 = vmatprep.subr.mxu0 0.0
    %4374 = vmatpush1.msra.mxu0 0.0
    %4375 = vmatprep.subr.mxu0 0.0
    %4376 = vmatpush1.msra.mxu0 0.0
    %4377 = vmatprep.subr.mxu0 0.0
    %4378 = vmatpush1.msra.mxu0 0.0
    %4379 = vmatprep.subr.mxu0 0.0
    %4380 = vmatpush1.msra.mxu0 0.0
    %4381 = vmatprep.subr.mxu0 0.0
    %4382 = vmatpush1.msra.mxu0 0.0
    %4383 = vmatprep.subr.mxu0 0.0
    %4384 = vmatpush1.msra.mxu0 0.0
    %4385 = vmatprep.subr.mxu0 0.0
    %4386 = vmatpush1.msra.mxu0 0.0
    %4387 = vmatprep.subr.mxu0 0.0
    %4388 = vmatpush1.msra.mxu0 0.0
    %4389 = vmatprep.subr.mxu0 0.0
    %4390 = vmatpush1.msra.mxu0 0.0
    %4391 = vmatprep.subr.mxu0 0.0
    %4392 = vmatpush1.msra.mxu0 0.0
    %4393 = vmatprep.subr.mxu0 0.0
    %4394 = vmatpush1.msra.mxu0 0.0
    %4395 = vmatprep.subr.mxu0 0.0
    %4396 = vmatpush1.msra.mxu0 0.0
    %4397 = vmatprep.subr.mxu0 0.0
    %4398 = vmatpush1.msra.mxu0 0.0
    %4399 = vmatprep.subr.mxu0 0.0
    %4400 = vmatpush1.msra.mxu0 0.0
    %4401 = vmatprep.subr.mxu0 0.0
    %4402 = vmatpush1.msra.mxu0 0.0
    %4403 = vmatprep.mubr.f32.mxu0 0.0
    %4404 = vmatmul.mubr.f32.gmra.mrb[0].mxu0 %v4337
    %v4405 = vpop.f32.mrb[0].mxu0
    %v4406 = vadd.f32 0.0, %v4405
    %v4407 = vpop.f32.mrb[0].mxu0
    %4408 = vdwg.mxu0
    %v4410 = vsel %vm120, %v4313, 0
    %v4413 = vsel %vm120, %v4314, 0
    %v4416 = vsel %vm120, %v4315, 0
    %v4419 = vsel %vm120, %v4316, 0
    %v4422 = vsel %vm120, %v4317, 0
    %v4425 = vsel %vm120, %v4318, 0
    %v4428 = vsel %vm120, %v4319, 0
    %v4431 = vsel %vm120, %v4320, 0
    %4433 = vmatprep.subr.mxu0 0.0
    %4434 = vmatpush1.msra.mxu0 %v4327
    %4435 = vmatprep.subr.mxu0 0.0
    %4436 = vmatpush1.msra.mxu0 %v4328
    %4437 = vmatprep.subr.mxu0 0.0
    %4438 = vmatpush1.msra.mxu0 %v4329
    %4439 = vmatprep.subr.mxu0 0.0
    %4440 = vmatpush1.msra.mxu0 %v4330
    %4441 = vmatprep.subr.mxu0 0.0
    %4442 = vmatpush1.msra.mxu0 0.0
    %4443 = vmatprep.subr.mxu0 0.0
    %4444 = vmatpush1.msra.mxu0 0.0
    %4445 = vmatprep.subr.mxu0 0.0
    %4446 = vmatpush1.msra.mxu0 0.0
    %4447 = vmatprep.subr.mxu0 0.0
    %4448 = vmatpush1.msra.mxu0 0.0
    %4449 = vmatprep.subr.mxu0 0.0
    %4450 = vmatpush1.msra.mxu0 0.0
    %4451 = vmatprep.subr.mxu0 0.0
    %4452 = vmatpush1.msra.mxu0 0.0
    %4453 = vmatprep.subr.mxu0 0.0
    %4454 = vmatpush1.msra.mxu0 0.0
    %4455 = vmatprep.subr.mxu0 0.0
    %4456 = vmatpush1.msra.mxu0 0.0
    %4457 = vmatprep.subr.mxu0 0.0
    %4458 = vmatpush1.msra.mxu0 0.0
    %4459 = vmatprep.subr.mxu0 0.0
    %4460 = vmatpush1.msra.mxu0 0.0
    %4461 = vmatprep.subr.mxu0 0.0
    %4462 = vmatpush1.msra.mxu0 0.0
    %4463 = vmatprep.subr.mxu0 0.0
    %4464 = vmatpush1.msra.mxu0 0.0
    %4465 = vmatprep.subr.mxu0 0.0
    %4466 = vmatpush1.msra.mxu0 0.0
    %4467 = vmatprep.subr.mxu0 0.0
    %4468 = vmatpush1.msra.mxu0 0.0
    %4469 = vmatprep.subr.mxu0 0.0
    %4470 = vmatpush1.msra.mxu0 0.0
    %4471 = vmatprep.subr.mxu0 0.0
    %4472 = vmatpush1.msra.mxu0 0.0
    %4473 = vmatprep.subr.mxu0 0.0
    %4474 = vmatpush1.msra.mxu0 0.0
    %4475 = vmatprep.subr.mxu0 0.0
    %4476 = vmatpush1.msra.mxu0 0.0
    %4477 = vmatprep.subr.mxu0 0.0
    %4478 = vmatpush1.msra.mxu0 0.0
    %4479 = vmatprep.subr.mxu0 0.0
    %4480 = vmatpush1.msra.mxu0 0.0
    %4481 = vmatprep.subr.mxu0 0.0
    %4482 = vmatpush1.msra.mxu0 0.0
    %4483 = vmatprep.subr.mxu0 0.0
    %4484 = vmatpush1.msra.mxu0 0.0
    %4485 = vmatprep.subr.mxu0 0.0
    %4486 = vmatpush1.msra.mxu0 0.0
    %4487 = vmatprep.subr.mxu0 0.0
    %4488 = vmatpush1.msra.mxu0 0.0
    %4489 = vmatprep.subr.mxu0 0.0
    %4490 = vmatpush1.msra.mxu0 0.0
    %4491 = vmatprep.subr.mxu0 0.0
    %4492 = vmatpush1.msra.mxu0 0.0
    %4493 = vmatprep.subr.mxu0 0.0
    %4494 = vmatpush1.msra.mxu0 0.0
    %4495 = vmatprep.subr.mxu0 0.0
    %4496 = vmatpush1.msra.mxu0 0.0
    %4497 = vmatprep.mubr.f32.mxu0 0.0
    %4498 = vmatmul.mubr.f32.gmra.mrb[0].mxu0 %v4410
    %v4499 = vpop.f32.mrb[0].mxu0
    %v4500 = vadd.f32 0.0, %v4499
    %v4501 = vpop.f32.mrb[0].mxu0
    %4502 = vmatprep.mubr.f32.mxu0 0.0
    %4503 = vmatmul.mubr.f32.gmra.mrb[0].mxu0 %v4413
    %v4504 = vpop.f32.mrb[0].mxu0
    %v4505 = vadd.f32 0.0, %v4504
    %v4506 = vpop.f32.mrb[0].mxu0
    %4507 = vmatprep.mubr.f32.mxu0 0.0
    %4508 = vmatmul.mubr.f32.gmra.mrb[0].mxu0 %v4416
    %v4509 = vpop.f32.mrb[0].mxu0
    %v4510 = vadd.f32 0.0, %v4509
    %v4511 = vpop.f32.mrb[0].mxu0
    %4512 = vmatprep.mubr.f32.mxu0 0.0
    %4513 = vmatmul.mubr.f32.gmra.mrb[0].mxu0 %v4419
    %v4514 = vpop.f32.mrb[0].mxu0
    %v4515 = vadd.f32 0.0, %v4514
    %v4516 = vpop.f32.mrb[0].mxu0
    %4517 = vmatprep.mubr.f32.mxu0 0.0
    %4518 = vmatmul.mubr.f32.gmra.mrb[0].mxu0 %v4422
    %v4519 = vpop.f32.mrb[0].mxu0
    %v4520 = vadd.f32 0.0, %v4519
    %v4521 = vpop.f32.mrb[0].mxu0
    %4522 = vmatprep.mubr.f32.mxu0 0.0
    %4523 = vmatmul.mubr.f32.gmra.mrb[0].mxu0 %v4425
    %v4524 = vpop.f32.mrb[0].mxu0
    %v4525 = vadd.f32 0.0, %v4524
    %v4526 = vpop.f32.mrb[0].mxu0
    %4527 = vmatprep.mubr.f32.mxu0 0.0
    %4528 = vmatmul.mubr.f32.gmra.mrb[0].mxu0 %v4428
    %v4529 = vpop.f32.mrb[0].mxu0
    %v4530 = vadd.f32 0.0, %v4529
    %v4531 = vpop.f32.mrb[0].mxu0
    %4532 = vmatprep.mubr.f32.mxu0 0.0
    %4533 = vmatmul.mubr.f32.gmra.mrb[0].mxu0 %v4431
    %v4534 = vpop.f32.mrb[0].mxu0
    %v4535 = vadd.f32 0.0, %v4534
    %v4536 = vpop.f32.mrb[0].mxu0
    %4537 = vdwg.mxu0
    %v4539 = vsel %vm385, %v4406, 0
    %v4542 = vsel %vm385, %v4500, 0
    %v4545 = vsel %vm385, %v4505, 0
    %v4548 = vsel %vm385, %v4510, 0
    %v4551 = vsel %vm385, %v4515, 0
    %v4554 = vsel %vm385, %v4520, 0
    %v4557 = vsel %vm385, %v4525, 0
    %v4560 = vsel %vm385, %v4530, 0
    %v4563 = vsel %vm385, %v4535, 0
    %4565 = vmatprep.subr.mxu0 0.0
    %4566 = vmatpush1.xpose.msra.mxu0 %v4542
    %4567 = vmatprep.subr.mxu0 0.0
    %4568 = vmatpush1.xpose.msra.mxu0 %v4545
    %4569 = vmatprep.subr.mxu0 0.0
    %4570 = vmatpush1.xpose.msra.mxu0 %v4548
    %4571 = vmatprep.subr.mxu0 0.0
    %4572 = vmatpush1.xpose.msra.mxu0 %v4551
    %4573 = vmatprep.subr.mxu0 0.0
    %4574 = vmatpush1.xpose.msra.mxu0 %v4554
    %4575 = vmatprep.subr.mxu0 0.0
    %4576 = vmatpush1.xpose.msra.mxu0 %v4557
    %4577 = vmatprep.subr.mxu0 0.0
    %4578 = vmatpush1.xpose.msra.mxu0 %v4560
    %4579 = vmatprep.subr.mxu0 0.0
    %4580 = vmatpush1.xpose.msra.mxu0 %v4563
    %4581 = vmatprep.subr.mxu0 0.0
    %4582 = vmatpush1.xpose.msra.mxu0 0.0
    %4583 = vmatprep.subr.mxu0 0.0
    %4584 = vmatpush1.xpose.msra.mxu0 0.0
    %4585 = vmatprep.subr.mxu0 0.0
    %4586 = vmatpush1.xpose.msra.mxu0 0.0
    %4587 = vmatprep.subr.mxu0 0.0
    %4588 = vmatpush1.xpose.msra.mxu0 0.0
    %4589 = vmatprep.subr.mxu0 0.0
    %4590 = vmatpush1.xpose.msra.mxu0 0.0
    %4591 = vmatprep.subr.mxu0 0.0
    %4592 = vmatpush1.xpose.msra.mxu0 0.0
    %4593 = vmatprep.subr.mxu0 0.0
    %4594 = vmatpush1.xpose.msra.mxu0 0.0
    %4595 = vmatprep.subr.mxu0 0.0
    %4596 = vmatpush1.xpose.msra.mxu0 0.0
    %4597 = vmatprep.subr.mxu0 0.0
    %4598 = vmatpush1.xpose.msra.mxu0 0.0
    %4599 = vmatprep.subr.mxu0 0.0
    %4600 = vmatpush1.xpose.msra.mxu0 0.0
    %4601 = vmatprep.subr.mxu0 0.0
    %4602 = vmatpush1.xpose.msra.mxu0 0.0
    %4603 = vmatprep.subr.mxu0 0.0
    %4604 = vmatpush1.xpose.msra.mxu0 0.0
    %4605 = vmatprep.subr.mxu0 0.0
    %4606 = vmatpush1.xpose.msra.mxu0 0.0
    %4607 = vmatprep.subr.mxu0 0.0
    %4608 = vmatpush1.xpose.msra.mxu0 0.0
    %4609 = vmatprep.subr.mxu0 0.0
    %4610 = vmatpush1.xpose.msra.mxu0 0.0
    %4611 = vmatprep.subr.mxu0 0.0
    %4612 = vmatpush1.xpose.msra.mxu0 0.0
    %4613 = vmatprep.subr.mxu0 0.0
    %4614 = vmatpush1.xpose.msra.mxu0 0.0
    %4615 = vmatprep.subr.mxu0 0.0
    %4616 = vmatpush1.xpose.msra.mxu0 0.0
    %4617 = vmatprep.subr.mxu0 0.0
    %4618 = vmatpush1.xpose.msra.mxu0 0.0
    %4619 = vmatprep.subr.mxu0 0.0
    %4620 = vmatpush1.xpose.msra.mxu0 0.0
    %4621 = vmatprep.subr.mxu0 0.0
    %4622 = vmatpush1.xpose.msra.mxu0 0.0
    %4623 = vmatprep.subr.mxu0 0.0
    %4624 = vmatpush1.xpose.msra.mxu0 0.0
    %4625 = vmatprep.subr.mxu0 0.0
    %4626 = vmatpush1.xpose.msra.mxu0 0.0
    %4627 = vmatprep.subr.mxu0 0.0
    %4628 = vmatpush1.xpose.msra.mxu0 0.0
    %4629 = vmatprep.mubr.f32.mxu0 0.0
    %4630 = vmatmul.mubr.f32.gmra.mrb[0].mxu0 %v4539
    %v4631 = vpop.f32.mrb[0].mxu0
    %v4632 = vadd.f32 0.0, %v4631
    %v4633 = vpop.f32.mrb[0].mxu0
    %4634 = vdwg.mxu0
    %4635 = vrot.lane.b32.xlu0 %v4406, 120
    %v4636 = vpop.permute.xlu0 %4635
    %4637 = vrot.lane.b32.xlu0 %v4500, 120
    %v4638 = vpop.permute.xlu0 %4637
    %4639 = vrot.lane.b32.xlu0 %v4505, 120
    %v4640 = vpop.permute.xlu0 %4639
    %4641 = vrot.lane.b32.xlu0 %v4510, 120
    %v4642 = vpop.permute.xlu0 %4641
    %4643 = vrot.lane.b32.xlu0 %v4515, 120
    %v4644 = vpop.permute.xlu0 %4643
    %4645 = vrot.lane.b32.xlu0 %v4520, 120
    %v4646 = vpop.permute.xlu0 %4645
    %4647 = vrot.lane.b32.xlu0 %v4525, 120
    %v4648 = vpop.permute.xlu0 %4647
    %4649 = vrot.lane.b32.xlu0 %v4530, 120
    %v4650 = vpop.permute.xlu0 %4649
    %4651 = vrot.lane.b32.xlu0 %v4535, 120
    %v4652 = vpop.permute.xlu0 %4651
    %v4653 = vsel %vm385, %v4636, 0
    %v4655 = vsel %vm385, %v4638, 0
    %v4657 = vsel %vm385, %v4640, 0
    %v4659 = vsel %vm385, %v4642, 0
    %v4661 = vsel %vm385, %v4644, 0
    %v4663 = vsel %vm385, %v4646, 0
    %v4665 = vsel %vm385, %v4648, 0
    %v4667 = vsel %vm385, %v4650, 0
    %v4669 = vsel %vm385, %v4652, 0
    %4671 = vmatprep.subr.mxu0 0.0
    %4672 = vmatpush1.xpose.msra.mxu0 %v4655
    %4673 = vmatprep.subr.mxu0 0.0
    %4674 = vmatpush1.xpose.msra.mxu0 %v4657
    %4675 = vmatprep.subr.mxu0 0.0
    %4676 = vmatpush1.xpose.msra.mxu0 %v4659
    %4677 = vmatprep.subr.mxu0 0.0
    %4678 = vmatpush1.xpose.msra.mxu0 %v4661
    %4679 = vmatprep.subr.mxu0 0.0
    %4680 = vmatpush1.xpose.msra.mxu0 %v4663
    %4681 = vmatprep.subr.mxu0 0.0
    %4682 = vmatpush1.xpose.msra.mxu0 %v4665
    %4683 = vmatprep.subr.mxu0 0.0
    %4684 = vmatpush1.xpose.msra.mxu0 %v4667
    %4685 = vmatprep.subr.mxu0 0.0
    %4686 = vmatpush1.xpose.msra.mxu0 %v4669
    %4687 = vmatprep.subr.mxu0 0.0
    %4688 = vmatpush1.xpose.msra.mxu0 0.0
    %4689 = vmatprep.subr.mxu0 0.0
    %4690 = vmatpush1.xpose.msra.mxu0 0.0
    %4691 = vmatprep.subr.mxu0 0.0
    %4692 = vmatpush1.xpose.msra.mxu0 0.0
    %4693 = vmatprep.subr.mxu0 0.0
    %4694 = vmatpush1.xpose.msra.mxu0 0.0
    %4695 = vmatprep.subr.mxu0 0.0
    %4696 = vmatpush1.xpose.msra.mxu0 0.0
    %4697 = vmatprep.subr.mxu0 0.0
    %4698 = vmatpush1.xpose.msra.mxu0 0.0
    %4699 = vmatprep.subr.mxu0 0.0
    %4700 = vmatpush1.xpose.msra.mxu0 0.0
    %4701 = vmatprep.subr.mxu0 0.0
    %4702 = vmatpush1.xpose.msra.mxu0 0.0
    %4703 = vmatprep.subr.mxu0 0.0
    %4704 = vmatpush1.xpose.msra.mxu0 0.0
    %4705 = vmatprep.subr.mxu0 0.0
    %4706 = vmatpush1.xpose.msra.mxu0 0.0
    %4707 = vmatprep.subr.mxu0 0.0
    %4708 = vmatpush1.xpose.msra.mxu0 0.0
    %4709 = vmatprep.subr.mxu0 0.0
    %4710 = vmatpush1.xpose.msra.mxu0 0.0
    %4711 = vmatprep.subr.mxu0 0.0
    %4712 = vmatpush1.xpose.msra.mxu0 0.0
    %4713 = vmatprep.subr.mxu0 0.0
    %4714 = vmatpush1.xpose.msra.mxu0 0.0
    %4715 = vmatprep.subr.mxu0 0.0
    %4716 = vmatpush1.xpose.msra.mxu0 0.0
    %4717 = vmatprep.subr.mxu0 0.0
    %4718 = vmatpush1.xpose.msra.mxu0 0.0
    %4719 = vmatprep.subr.mxu0 0.0
    %4720 = vmatpush1.xpose.msra.mxu0 0.0
    %4721 = vmatprep.subr.mxu0 0.0
    %4722 = vmatpush1.xpose.msra.mxu0 0.0
    %4723 = vmatprep.subr.mxu0 0.0
    %4724 = vmatpush1.xpose.msra.mxu0 0.0
    %4725 = vmatprep.subr.mxu0 0.0
    %4726 = vmatpush1.xpose.msra.mxu0 0.0
    %4727 = vmatprep.subr.mxu0 0.0
    %4728 = vmatpush1.xpose.msra.mxu0 0.0
    %4729 = vmatprep.subr.mxu0 0.0
    %4730 = vmatpush1.xpose.msra.mxu0 0.0
    %4731 = vmatprep.subr.mxu0 0.0
    %4732 = vmatpush1.xpose.msra.mxu0 0.0
    %4733 = vmatprep.subr.mxu0 0.0
    %4734 = vmatpush1.xpose.msra.mxu0 0.0
    %4735 = vmatprep.mubr.f32.mxu0 0.0
    %4736 = vmatmul.mubr.f32.gmra.mrb[0].mxu0 %v4653
    %v4737 = vpop.f32.mrb[0].mxu0
    %v4738 = vadd.f32 0.0, %v4737
    %v4739 = vpop.f32.mrb[0].mxu0
    %4740 = vdwg.mxu0
    %4741 = vrot.lane.b32.xlu0 %v4406, 112
    %v4742 = vpop.permute.xlu0 %4741
    %4743 = vrot.lane.b32.xlu0 %v4500, 112
    %v4744 = vpop.permute.xlu0 %4743
    %4745 = vrot.lane.b32.xlu0 %v4505, 112
    %v4746 = vpop.permute.xlu0 %4745
    %4747 = vrot.lane.b32.xlu0 %v4510, 112
    %v4748 = vpop.permute.xlu0 %4747
    %4749 = vrot.lane.b32.xlu0 %v4515, 112
    %v4750 = vpop.permute.xlu0 %4749
    %4751 = vrot.lane.b32.xlu0 %v4520, 112
    %v4752 = vpop.permute.xlu0 %4751
    %4753 = vrot.lane.b32.xlu0 %v4525, 112
    %v4754 = vpop.permute.xlu0 %4753
    %4755 = vrot.lane.b32.xlu0 %v4530, 112
    %v4756 = vpop.permute.xlu0 %4755
    %4757 = vrot.lane.b32.xlu0 %v4535, 112
    %v4758 = vpop.permute.xlu0 %4757
    %v4759 = vsel %vm385, %v4742, 0
    %v4761 = vsel %vm385, %v4744, 0
    %v4763 = vsel %vm385, %v4746, 0
    %v4765 = vsel %vm385, %v4748, 0
    %v4767 = vsel %vm385, %v4750, 0
    %v4769 = vsel %vm385, %v4752, 0
    %v4771 = vsel %vm385, %v4754, 0
    %v4773 = vsel %vm385, %v4756, 0
    %v4775 = vsel %vm385, %v4758, 0
    %4777 = vmatprep.subr.mxu0 0.0
    %4778 = vmatpush1.xpose.msra.mxu0 %v4761
    %4779 = vmatprep.subr.mxu0 0.0
    %4780 = vmatpush1.xpose.msra.mxu0 %v4763
    %4781 = vmatprep.subr.mxu0 0.0
    %4782 = vmatpush1.xpose.msra.mxu0 %v4765
    %4783 = vmatprep.subr.mxu0 0.0
    %4784 = vmatpush1.xpose.msra.mxu0 %v4767
    %4785 = vmatprep.subr.mxu0 0.0
    %4786 = vmatpush1.xpose.msra.mxu0 %v4769
    %4787 = vmatprep.subr.mxu0 0.0
    %4788 = vmatpush1.xpose.msra.mxu0 %v4771
    %4789 = vmatprep.subr.mxu0 0.0
    %4790 = vmatpush1.xpose.msra.mxu0 %v4773
    %4791 = vmatprep.subr.mxu0 0.0
    %4792 = vmatpush1.xpose.msra.mxu0 %v4775
    %4793 = vmatprep.subr.mxu0 0.0
    %4794 = vmatpush1.xpose.msra.mxu0 0.0
    %4795 = vmatprep.subr.mxu0 0.0
    %4796 = vmatpush1.xpose.msra.mxu0 0.0
    %4797 = vmatprep.subr.mxu0 0.0
    %4798 = vmatpush1.xpose.msra.mxu0 0.0
    %4799 = vmatprep.subr.mxu0 0.0
    %4800 = vmatpush1.xpose.msra.mxu0 0.0
    %4801 = vmatprep.subr.mxu0 0.0
    %4802 = vmatpush1.xpose.msra.mxu0 0.0
    %4803 = vmatprep.subr.mxu0 0.0
    %4804 = vmatpush1.xpose.msra.mxu0 0.0
    %4805 = vmatprep.subr.mxu0 0.0
    %4806 = vmatpush1.xpose.msra.mxu0 0.0
    %4807 = vmatprep.subr.mxu0 0.0
    %4808 = vmatpush1.xpose.msra.mxu0 0.0
    %4809 = vmatprep.subr.mxu0 0.0
    %4810 = vmatpush1.xpose.msra.mxu0 0.0
    %4811 = vmatprep.subr.mxu0 0.0
    %4812 = vmatpush1.xpose.msra.mxu0 0.0
    %4813 = vmatprep.subr.mxu0 0.0
    %4814 = vmatpush1.xpose.msra.mxu0 0.0
    %4815 = vmatprep.subr.mxu0 0.0
    %4816 = vmatpush1.xpose.msra.mxu0 0.0
    %4817 = vmatprep.subr.mxu0 0.0
    %4818 = vmatpush1.xpose.msra.mxu0 0.0
    %4819 = vmatprep.subr.mxu0 0.0
    %4820 = vmatpush1.xpose.msra.mxu0 0.0
    %4821 = vmatprep.subr.mxu0 0.0
    %4822 = vmatpush1.xpose.msra.mxu0 0.0
    %4823 = vmatprep.subr.mxu0 0.0
    %4824 = vmatpush1.xpose.msra.mxu0 0.0
    %4825 = vmatprep.subr.mxu0 0.0
    %4826 = vmatpush1.xpose.msra.mxu0 0.0
    %4827 = vmatprep.subr.mxu0 0.0
    %4828 = vmatpush1.xpose.msra.mxu0 0.0
    %4829 = vmatprep.subr.mxu0 0.0
    %4830 = vmatpush1.xpose.msra.mxu0 0.0
    %4831 = vmatprep.subr.mxu0 0.0
    %4832 = vmatpush1.xpose.msra.mxu0 0.0
    %4833 = vmatprep.subr.mxu0 0.0
    %4834 = vmatpush1.xpose.msra.mxu0 0.0
    %4835 = vmatprep.subr.mxu0 0.0
    %4836 = vmatpush1.xpose.msra.mxu0 0.0
    %4837 = vmatprep.subr.mxu0 0.0
    %4838 = vmatpush1.xpose.msra.mxu0 0.0
    %4839 = vmatprep.subr.mxu0 0.0
    %4840 = vmatpush1.xpose.msra.mxu0 0.0
    %4841 = vmatprep.mubr.f32.mxu0 0.0
    %4842 = vmatmul.mubr.f32.gmra.mrb[0].mxu0 %v4759
    %v4843 = vpop.f32.mrb[0].mxu0
    %v4844 = vadd.f32 0.0, %v4843
    %v4845 = vpop.f32.mrb[0].mxu0
    %4846 = vdwg.mxu0
    %4847 = vrot.lane.b32.xlu0 %v4406, 104
    %v4848 = vpop.permute.xlu0 %4847
    %4849 = vrot.lane.b32.xlu0 %v4500, 104
    %v4850 = vpop.permute.xlu0 %4849
    %4851 = vrot.lane.b32.xlu0 %v4505, 104
    %v4852 = vpop.permute.xlu0 %4851
    %4853 = vrot.lane.b32.xlu0 %v4510, 104
    %v4854 = vpop.permute.xlu0 %4853
    %4855 = vrot.lane.b32.xlu0 %v4515, 104
    %v4856 = vpop.permute.xlu0 %4855
    %4857 = vrot.lane.b32.xlu0 %v4520, 104
    %v4858 = vpop.permute.xlu0 %4857
    %4859 = vrot.lane.b32.xlu0 %v4525, 104
    %v4860 = vpop.permute.xlu0 %4859
    %4861 = vrot.lane.b32.xlu0 %v4530, 104
    %v4862 = vpop.permute.xlu0 %4861
    %4863 = vrot.lane.b32.xlu0 %v4535, 104
    %v4864 = vpop.permute.xlu0 %4863
    %v4865 = vsel %vm385, %v4848, 0
    %v4867 = vsel %vm385, %v4850, 0
    %v4869 = vsel %vm385, %v4852, 0
    %v4871 = vsel %vm385, %v4854, 0
    %v4873 = vsel %vm385, %v4856, 0
    %v4875 = vsel %vm385, %v4858, 0
    %v4877 = vsel %vm385, %v4860, 0
    %v4879 = vsel %vm385, %v4862, 0
    %v4881 = vsel %vm385, %v4864, 0
    %4883 = vmatprep.subr.mxu0 0.0
    %4884 = vmatpush1.xpose.msra.mxu0 %v4867
    %4885 = vmatprep.subr.mxu0 0.0
    %4886 = vmatpush1.xpose.msra.mxu0 %v4869
    %4887 = vmatprep.subr.mxu0 0.0
    %4888 = vmatpush1.xpose.msra.mxu0 %v4871
    %4889 = vmatprep.subr.mxu0 0.0
    %4890 = vmatpush1.xpose.msra.mxu0 %v4873
    %4891 = vmatprep.subr.mxu0 0.0
    %4892 = vmatpush1.xpose.msra.mxu0 %v4875
    %4893 = vmatprep.subr.mxu0 0.0
    %4894 = vmatpush1.xpose.msra.mxu0 %v4877
    %4895 = vmatprep.subr.mxu0 0.0
    %4896 = vmatpush1.xpose.msra.mxu0 %v4879
    %4897 = vmatprep.subr.mxu0 0.0
    %4898 = vmatpush1.xpose.msra.mxu0 %v4881
    %4899 = vmatprep.subr.mxu0 0.0
    %4900 = vmatpush1.xpose.msra.mxu0 0.0
    %4901 = vmatprep.subr.mxu0 0.0
    %4902 = vmatpush1.xpose.msra.mxu0 0.0
    %4903 = vmatprep.subr.mxu0 0.0
    %4904 = vmatpush1.xpose.msra.mxu0 0.0
    %4905 = vmatprep.subr.mxu0 0.0
    %4906 = vmatpush1.xpose.msra.mxu0 0.0
    %4907 = vmatprep.subr.mxu0 0.0
    %4908 = vmatpush1.xpose.msra.mxu0 0.0
    %4909 = vmatprep.subr.mxu0 0.0
    %4910 = vmatpush1.xpose.msra.mxu0 0.0
    %4911 = vmatprep.subr.mxu0 0.0
    %4912 = vmatpush1.xpose.msra.mxu0 0.0
    %4913 = vmatprep.subr.mxu0 0.0
    %4914 = vmatpush1.xpose.msra.mxu0 0.0
    %4915 = vmatprep.subr.mxu0 0.0
    %4916 = vmatpush1.xpose.msra.mxu0 0.0
    %4917 = vmatprep.subr.mxu0 0.0
    %4918 = vmatpush1.xpose.msra.mxu0 0.0
    %4919 = vmatprep.subr.mxu0 0.0
    %4920 = vmatpush1.xpose.msra.mxu0 0.0
    %4921 = vmatprep.subr.mxu0 0.0
    %4922 = vmatpush1.xpose.msra.mxu0 0.0
    %4923 = vmatprep.subr.mxu0 0.0
    %4924 = vmatpush1.xpose.msra.mxu0 0.0
    %4925 = vmatprep.subr.mxu0 0.0
    %4926 = vmatpush1.xpose.msra.mxu0 0.0
    %4927 = vmatprep.subr.mxu0 0.0
    %4928 = vmatpush1.xpose.msra.mxu0 0.0
    %4929 = vmatprep.subr.mxu0 0.0
    %4930 = vmatpush1.xpose.msra.mxu0 0.0
    %4931 = vmatprep.subr.mxu0 0.0
    %4932 = vmatpush1.xpose.msra.mxu0 0.0
    %4933 = vmatprep.subr.mxu0 0.0
    %4934 = vmatpush1.xpose.msra.mxu0 0.0
    %4935 = vmatprep.subr.mxu0 0.0
    %4936 = vmatpush1.xpose.msra.mxu0 0.0
    %4937 = vmatprep.subr.mxu0 0.0
    %4938 = vmatpush1.xpose.msra.mxu0 0.0
    %4939 = vmatprep.subr.mxu0 0.0
    %4940 = vmatpush1.xpose.msra.mxu0 0.0
    %4941 = vmatprep.subr.mxu0 0.0
    %4942 = vmatpush1.xpose.msra.mxu0 0.0
    %4943 = vmatprep.subr.mxu0 0.0
    %4944 = vmatpush1.xpose.msra.mxu0 0.0
    %4945 = vmatprep.subr.mxu0 0.0
    %4946 = vmatpush1.xpose.msra.mxu0 0.0
    %4947 = vmatprep.mubr.f32.mxu0 0.0
    %4948 = vmatmul.mubr.f32.gmra.mrb[0].mxu0 %v4865
    %v4949 = vpop.f32.mrb[0].mxu0
    %v4950 = vadd.f32 0.0, %v4949
    %v4951 = vpop.f32.mrb[0].mxu0
    %4952 = vdwg.mxu0
    %v4953 = vsel %vm801, %v4632, -inf
    %4954 = vmax.xlane.f32.xlu0 %v4953
    %v4955 = vpop.xlane.xlu0 %4954
    %v4956 = vsel %vm801, %v4738, -inf
    %4957 = vmax.xlane.f32.xlu0 %v4956
    %v4958 = vpop.xlane.xlu0 %4957
    %v4959 = vsel %vm801, %v4844, -inf
    %4960 = vmax.xlane.f32.xlu0 %v4959
    %v4961 = vpop.xlane.xlu0 %4960
    %v4962 = vsel %vm801, %v4950, -inf
    %4963 = vmax.xlane.f32.xlu0 %v4962
    %v4964 = vpop.xlane.xlu0 %4963
    %v4965 = vsub.f32 %v4632, %v4955
    %v4966 = vsub.f32 %v4738, %v4958
    %v4967 = vsub.f32 %v4844, %v4961
    %v4968 = vsub.f32 %v4950, %v4964
    %v4969 = vmul.f32 %v4965, 1.442695
    %v4970 = vpow.pop %v4969
    %v4971 = vmul.f32 %v4966, 1.442695
    %v4972 = vpow.pop %v4971
    %v4973 = vmul.f32 %v4967, 1.442695
    %v4974 = vpow.pop %v4973
    %v4975 = vmul.f32 %v4968, 1.442695
    %v4976 = vpow.pop %v4975
    %v4977 = vsel %vm801, %v4970, 0.0
    %4978 = vadd.xlane.f32.xlu0 %v4977
    %v4979 = vpop.xlane.xlu0 %4978
    %v4980 = vsel %vm801, %v4972, 0.0
    %4981 = vadd.xlane.f32.xlu0 %v4980
    %v4982 = vpop.xlane.xlu0 %4981
    %v4983 = vsel %vm801, %v4974, 0.0
    %4984 = vadd.xlane.f32.xlu0 %v4983
    %v4985 = vpop.xlane.xlu0 %4984
    %v4986 = vsel %vm801, %v4976, 0.0
    %4987 = vadd.xlane.f32.xlu0 %v4986
    %v4988 = vpop.xlane.xlu0 %4987
    %v4989 = vrcp.pop %v4979
    %v4990 = vrcp.pop %v4982
    %v4991 = vrcp.pop %v4985
    %v4992 = vrcp.pop %v4988
    %v4993 = vmul.f32 %v4970, %v4989
    %v4994 = vmul.f32 %v4972, %v4990
    %v4995 = vmul.f32 %v4974, %v4991
    %v4996 = vmul.f32 %v4976, %v4992
    %4997 = vrot.lane.b32.xlu0 %v4500, 96
    %v4998 = vpop.permute.xlu0 %4997
    %4999 = vrot.lane.b32.xlu0 %v4505, 96
    %v5000 = vpop.permute.xlu0 %4999
    %5001 = vrot.lane.b32.xlu0 %v4510, 96
    %v5002 = vpop.permute.xlu0 %5001
    %5003 = vrot.lane.b32.xlu0 %v4515, 96
    %v5004 = vpop.permute.xlu0 %5003
    %5005 = vrot.lane.b32.xlu0 %v4520, 96
    %v5006 = vpop.permute.xlu0 %5005
    %5007 = vrot.lane.b32.xlu0 %v4525, 96
    %v5008 = vpop.permute.xlu0 %5007
    %5009 = vrot.lane.b32.xlu0 %v4530, 96
    %v5010 = vpop.permute.xlu0 %5009
    %5011 = vrot.lane.b32.xlu0 %v4535, 96
    %v5012 = vpop.permute.xlu0 %5011
    %v5022 = vsel %vm801, %v4993, 0
    %5024 = vmatprep.subr.mxu0 0.0
    %5025 = vmatpush1.msra.mxu0 %v4998
    %5026 = vmatprep.subr.mxu0 0.0
    %5027 = vmatpush1.msra.mxu0 %v5000
    %5028 = vmatprep.subr.mxu0 0.0
    %5029 = vmatpush1.msra.mxu0 %v5002
    %5030 = vmatprep.subr.mxu0 0.0
    %5031 = vmatpush1.msra.mxu0 %v5004
    %5032 = vmatprep.subr.mxu0 0.0
    %5033 = vmatpush1.msra.mxu0 %v5006
    %5034 = vmatprep.subr.mxu0 0.0
    %5035 = vmatpush1.msra.mxu0 %v5008
    %5036 = vmatprep.subr.mxu0 0.0
    %5037 = vmatpush1.msra.mxu0 %v5010
    %5038 = vmatprep.subr.mxu0 0.0
    %5039 = vmatpush1.msra.mxu0 %v5012
    %5040 = vmatprep.subr.mxu0 0.0
    %5041 = vmatpush1.msra.mxu0 0.0
    %5042 = vmatprep.subr.mxu0 0.0
    %5043 = vmatpush1.msra.mxu0 0.0
    %5044 = vmatprep.subr.mxu0 0.0
    %5045 = vmatpush1.msra.mxu0 0.0
    %5046 = vmatprep.subr.mxu0 0.0
    %5047 = vmatpush1.msra.mxu0 0.0
    %5048 = vmatprep.subr.mxu0 0.0
    %5049 = vmatpush1.msra.mxu0 0.0
    %5050 = vmatprep.subr.mxu0 0.0
    %5051 = vmatpush1.msra.mxu0 0.0
    %5052 = vmatprep.subr.mxu0 0.0
    %5053 = vmatpush1.msra.mxu0 0.0
    %5054 = vmatprep.subr.mxu0 0.0
    %5055 = vmatpush1.msra.mxu0 0.0
    %5056 = vmatprep.subr.mxu0 0.0
    %5057 = vmatpush1.msra.mxu0 0.0
    %5058 = vmatprep.subr.mxu0 0.0
    %5059 = vmatpush1.msra.mxu0 0.0
    %5060 = vmatprep.subr.mxu0 0.0
    %5061 = vmatpush1.msra.mxu0 0.0
    %5062 = vmatprep.subr.mxu0 0.0
    %5063 = vmatpush1.msra.mxu0 0.0
    %5064 = vmatprep.subr.mxu0 0.0
    %5065 = vmatpush1.msra.mxu0 0.0
    %5066 = vmatprep.subr.mxu0 0.0
    %5067 = vmatpush1.msra.mxu0 0.0
    %5068 = vmatprep.subr.mxu0 0.0
    %5069 = vmatpush1.msra.mxu0 0.0
    %5070 = vmatprep.subr.mxu0 0.0
    %5071 = vmatpush1.msra.mxu0 0.0
    %5072 = vmatprep.subr.mxu0 0.0
    %5073 = vmatpush1.msra.mxu0 0.0
    %5074 = vmatprep.subr.mxu0 0.0
    %5075 = vmatpush1.msra.mxu0 0.0
    %5076 = vmatprep.subr.mxu0 0.0
    %5077 = vmatpush1.msra.mxu0 0.0
    %5078 = vmatprep.subr.mxu0 0.0
    %5079 = vmatpush1.msra.mxu0 0.0
    %5080 = vmatprep.subr.mxu0 0.0
    %5081 = vmatpush1.msra.mxu0 0.0
    %5082 = vmatprep.subr.mxu0 0.0
    %5083 = vmatpush1.msra.mxu0 0.0
    %5084 = vmatprep.subr.mxu0 0.0
    %5085 = vmatpush1.msra.mxu0 0.0
    %5086 = vmatprep.subr.mxu0 0.0
    %5087 = vmatpush1.msra.mxu0 0.0
    %5088 = vmatprep.mubr.f32.mxu0 0.0
    %5089 = vmatmul.mubr.f32.gmra.mrb[0].mxu0 %v5022
    %v5090 = vpop.f32.mrb[0].mxu0
    %v5091 = vadd.f32 0.0, %v5090
    %v5092 = vpop.f32.mrb[0].mxu0
    %5093 = vdwg.mxu0
    %v5095 = vsel %vm385, %v5091, 0
    %5097 = vmatprep.subr.mxu0 0.0
    %5098 = vmatpush1.msra.mxu0 %v4332
    %5099 = vmatprep.subr.mxu0 0.0
    %5100 = vmatpush1.msra.mxu0 0.0
    %5101 = vmatprep.subr.mxu0 0.0
    %5102 = vmatpush1.msra.mxu0 0.0
    %5103 = vmatprep.subr.mxu0 0.0
    %5104 = vmatpush1.msra.mxu0 0.0
    %5105 = vmatprep.subr.mxu0 0.0
    %5106 = vmatpush1.msra.mxu0 0.0
    %5107 = vmatprep.subr.mxu0 0.0
    %5108 = vmatpush1.msra.mxu0 0.0
    %5109 = vmatprep.subr.mxu0 0.0
    %5110 = vmatpush1.msra.mxu0 0.0
    %5111 = vmatprep.subr.mxu0 0.0
    %5112 = vmatpush1.msra.mxu0 0.0
    %5113 = vmatprep.subr.mxu0 0.0
    %5114 = vmatpush1.msra.mxu0 0.0
    %5115 = vmatprep.subr.mxu0 0.0
    %5116 = vmatpush1.msra.mxu0 0.0
    %5117 = vmatprep.subr.mxu0 0.0
    %5118 = vmatpush1.msra.mxu0 0.0
    %5119 = vmatprep.subr.mxu0 0.0
    %5120 = vmatpush1.msra.mxu0 0.0
    %5121 = vmatprep.subr.mxu0 0.0
    %5122 = vmatpush1.msra.mxu0 0.0
    %5123 = vmatprep.subr.mxu0 0.0
    %5124 = vmatpush1.msra.mxu0 0.0
    %5125 = vmatprep.subr.mxu0 0.0
    %5126 = vmatpush1.msra.mxu0 0.0
    %5127 = vmatprep.subr.mxu0 0.0
    %5128 = vmatpush1.msra.mxu0 0.0
    %5129 = vmatprep.subr.mxu0 0.0
    %5130 = vmatpush1.msra.mxu0 0.0
    %5131 = vmatprep.subr.mxu0 0.0
    %5132 = vmatpush1.msra.mxu0 0.0
    %5133 = vmatprep.subr.mxu0 0.0
    %5134 = vmatpush1.msra.mxu0 0.0
    %5135 = vmatprep.subr.mxu0 0.0
    %5136 = vmatpush1.msra.mxu0 0.0
    %5137 = vmatprep.subr.mxu0 0.0
    %5138 = vmatpush1.msra.mxu0 0.0
    %5139 = vmatprep.subr.mxu0 0.0
    %5140 = vmatpush1.msra.mxu0 0.0
    %5141 = vmatprep.subr.mxu0 0.0
    %5142 = vmatpush1.msra.mxu0 0.0
    %5143 = vmatprep.subr.mxu0 0.0
    %5144 = vmatpush1.msra.mxu0 0.0
    %5145 = vmatprep.subr.mxu0 0.0
    %5146 = vmatpush1.msra.mxu0 0.0
    %5147 = vmatprep.subr.mxu0 0.0
    %5148 = vmatpush1.msra.mxu0 0.0
    %5149 = vmatprep.subr.mxu0 0.0
    %5150 = vmatpush1.msra.mxu0 0.0
    %5151 = vmatprep.subr.mxu0 0.0
    %5152 = vmatpush1.msra.mxu0 0.0
    %5153 = vmatprep.subr.mxu0 0.0
    %5154 = vmatpush1.msra.mxu0 0.0
    %5155 = vmatprep.subr.mxu0 0.0
    %5156 = vmatpush1.msra.mxu0 0.0
    %5157 = vmatprep.subr.mxu0 0.0
    %5158 = vmatpush1.msra.mxu0 0.0
    %5159 = vmatprep.subr.mxu0 0.0
    %5160 = vmatpush1.msra.mxu0 0.0
    %5161 = vmatprep.mubr.f32.mxu0 0.0
    %5162 = vmatmul.mubr.f32.gmra.mrb[0].mxu0 %v5095
    %v5163 = vpop.f32.mrb[0].mxu0
    %v5164 = vadd.f32 0.0, %v5163
    %v5165 = vpop.f32.mrb[0].mxu0
    %5166 = vdwg.mxu0
    %v5167 = vadd.f32 %v4312, %v5164
    %5168 = vrot.lane.b32.xlu0 %v4500, 88
    %v5169 = vpop.permute.xlu0 %5168
    %5170 = vrot.lane.b32.xlu0 %v4505, 88
    %v5171 = vpop.permute.xlu0 %5170
    %5172 = vrot.lane.b32.xlu0 %v4510, 88
    %v5173 = vpop.permute.xlu0 %5172
    %5174 = vrot.lane.b32.xlu0 %v4515, 88
    %v5175 = vpop.permute.xlu0 %5174
    %5176 = vrot.lane.b32.xlu0 %v4520, 88
    %v5177 = vpop.permute.xlu0 %5176
    %5178 = vrot.lane.b32.xlu0 %v4525, 88
    %v5179 = vpop.permute.xlu0 %5178
    %5180 = vrot.lane.b32.xlu0 %v4530, 88
    %v5181 = vpop.permute.xlu0 %5180
    %5182 = vrot.lane.b32.xlu0 %v4535, 88
    %v5183 = vpop.permute.xlu0 %5182
    %v5193 = vsel %vm801, %v4994, 0
    %5195 = vmatprep.subr.mxu0 0.0
    %5196 = vmatpush1.msra.mxu0 %v5169
    %5197 = vmatprep.subr.mxu0 0.0
    %5198 = vmatpush1.msra.mxu0 %v5171
    %5199 = vmatprep.subr.mxu0 0.0
    %5200 = vmatpush1.msra.mxu0 %v5173
    %5201 = vmatprep.subr.mxu0 0.0
    %5202 = vmatpush1.msra.mxu0 %v5175
    %5203 = vmatprep.subr.mxu0 0.0
    %5204 = vmatpush1.msra.mxu0 %v5177
    %5205 = vmatprep.subr.mxu0 0.0
    %5206 = vmatpush1.msra.mxu0 %v5179
    %5207 = vmatprep.subr.mxu0 0.0
    %5208 = vmatpush1.msra.mxu0 %v5181
    %5209 = vmatprep.subr.mxu0 0.0
    %5210 = vmatpush1.msra.mxu0 %v5183
    %5211 = vmatprep.subr.mxu0 0.0
    %5212 = vmatpush1.msra.mxu0 0.0
    %5213 = vmatprep.subr.mxu0 0.0
    %5214 = vmatpush1.msra.mxu0 0.0
    %5215 = vmatprep.subr.mxu0 0.0
    %5216 = vmatpush1.msra.mxu0 0.0
    %5217 = vmatprep.subr.mxu0 0.0
    %5218 = vmatpush1.msra.mxu0 0.0
    %5219 = vmatprep.subr.mxu0 0.0
    %5220 = vmatpush1.msra.mxu0 0.0
    %5221 = vmatprep.subr.mxu0 0.0
    %5222 = vmatpush1.msra.mxu0 0.0
    %5223 = vmatprep.subr.mxu0 0.0
    %5224 = vmatpush1.msra.mxu0 0.0
    %5225 = vmatprep.subr.mxu0 0.0
    %5226 = vmatpush1.msra.mxu0 0.0
    %5227 = vmatprep.subr.mxu0 0.0
    %5228 = vmatpush1.msra.mxu0 0.0
    %5229 = vmatprep.subr.mxu0 0.0
    %5230 = vmatpush1.msra.mxu0 0.0
    %5231 = vmatprep.subr.mxu0 0.0
    %5232 = vmatpush1.msra.mxu0 0.0
    %5233 = vmatprep.subr.mxu0 0.0
    %5234 = vmatpush1.msra.mxu0 0.0
    %5235 = vmatprep.subr.mxu0 0.0
    %5236 = vmatpush1.msra.mxu0 0.0
    %5237 = vmatprep.subr.mxu0 0.0
    %5238 = vmatpush1.msra.mxu0 0.0
    %5239 = vmatprep.subr.mxu0 0.0
    %5240 = vmatpush1.msra.mxu0 0.0
    %5241 = vmatprep.subr.mxu0 0.0
    %5242 = vmatpush1.msra.mxu0 0.0
    %5243 = vmatprep.subr.mxu0 0.0
    %5244 = vmatpush1.msra.mxu0 0.0
    %5245 = vmatprep.subr.mxu0 0.0
    %5246 = vmatpush1.msra.mxu0 0.0
    %5247 = vmatprep.subr.mxu0 0.0
    %5248 = vmatpush1.msra.mxu0 0.0
    %5249 = vmatprep.subr.mxu0 0.0
    %5250 = vmatpush1.msra.mxu0 0.0
    %5251 = vmatprep.subr.mxu0 0.0
    %5252 = vmatpush1.msra.mxu0 0.0
    %5253 = vmatprep.subr.mxu0 0.0
    %5254 = vmatpush1.msra.mxu0 0.0
    %5255 = vmatprep.subr.mxu0 0.0
    %5256 = vmatpush1.msra.mxu0 0.0
    %5257 = vmatprep.subr.mxu0 0.0
    %5258 = vmatpush1.msra.mxu0 0.0
    %5259 = vmatprep.mubr.f32.mxu0 0.0
    %5260 = vmatmul.mubr.f32.gmra.mrb[0].mxu0 %v5193
    %v5261 = vpop.f32.mrb[0].mxu0
    %v5262 = vadd.f32 0.0, %v5261
    %v5263 = vpop.f32.mrb[0].mxu0
    %5264 = vdwg.mxu0
    %v5266 = vsel %vm385, %v5262, 0
    %5268 = vmatprep.subr.mxu0 0.0
    %5269 = vmatpush1.msra.mxu0 %v4333
    %5270 = vmatprep.subr.mxu0 0.0
    %5271 = vmatpush1.msra.mxu0 0.0
    %5272 = vmatprep.subr.mxu0 0.0
    %5273 = vmatpush1.msra.mxu0 0.0
    %5274 = vmatprep.subr.mxu0 0.0
    %5275 = vmatpush1.msra.mxu0 0.0
    %5276 = vmatprep.subr.mxu0 0.0
    %5277 = vmatpush1.msra.mxu0 0.0
    %5278 = vmatprep.subr.mxu0 0.0
    %5279 = vmatpush1.msra.mxu0 0.0
    %5280 = vmatprep.subr.mxu0 0.0
    %5281 = vmatpush1.msra.mxu0 0.0
    %5282 = vmatprep.subr.mxu0 0.0
    %5283 = vmatpush1.msra.mxu0 0.0
    %5284 = vmatprep.subr.mxu0 0.0
    %5285 = vmatpush1.msra.mxu0 0.0
    %5286 = vmatprep.subr.mxu0 0.0
    %5287 = vmatpush1.msra.mxu0 0.0
    %5288 = vmatprep.subr.mxu0 0.0
    %5289 = vmatpush1.msra.mxu0 0.0
    %5290 = vmatprep.subr.mxu0 0.0
    %5291 = vmatpush1.msra.mxu0 0.0
    %5292 = vmatprep.subr.mxu0 0.0
    %5293 = vmatpush1.msra.mxu0 0.0
    %5294 = vmatprep.subr.mxu0 0.0
    %5295 = vmatpush1.msra.mxu0 0.0
    %5296 = vmatprep.subr.mxu0 0.0
    %5297 = vmatpush1.msra.mxu0 0.0
    %5298 = vmatprep.subr.mxu0 0.0
    %5299 = vmatpush1.msra.mxu0 0.0
    %5300 = vmatprep.subr.mxu0 0.0
    %5301 = vmatpush1.msra.mxu0 0.0
    %5302 = vmatprep.subr.mxu0 0.0
    %5303 = vmatpush1.msra.mxu0 0.0
    %5304 = vmatprep.subr.mxu0 0.0
    %5305 = vmatpush1.msra.mxu0 0.0
    %5306 = vmatprep.subr.mxu0 0.0
    %5307 = vmatpush1.msra.mxu0 0.0
    %5308 = vmatprep.subr.mxu0 0.0
    %5309 = vmatpush1.msra.mxu0 0.0
    %5310 = vmatprep.subr.mxu0 0.0
    %5311 = vmatpush1.msra.mxu0 0.0
    %5312 = vmatprep.subr.mxu0 0.0
    %5313 = vmatpush1.msra.mxu0 0.0
    %5314 = vmatprep.subr.mxu0 0.0
    %5315 = vmatpush1.msra.mxu0 0.0
    %5316 = vmatprep.subr.mxu0 0.0
    %5317 = vmatpush1.msra.mxu0 0.0
    %5318 = vmatprep.subr.mxu0 0.0
    %5319 = vmatpush1.msra.mxu0 0.0
    %5320 = vmatprep.subr.mxu0 0.0
    %5321 = vmatpush1.msra.mxu0 0.0
    %5322 = vmatprep.subr.mxu0 0.0
    %5323 = vmatpush1.msra.mxu0 0.0
    %5324 = vmatprep.subr.mxu0 0.0
    %5325 = vmatpush1.msra.mxu0 0.0
    %5326 = vmatprep.subr.mxu0 0.0
    %5327 = vmatpush1.msra.mxu0 0.0
    %5328 = vmatprep.subr.mxu0 0.0
    %5329 = vmatpush1.msra.mxu0 0.0
    %5330 = vmatprep.subr.mxu0 0.0
    %5331 = vmatpush1.msra.mxu0 0.0
    %5332 = vmatprep.mubr.f32.mxu0 0.0
    %5333 = vmatmul.mubr.f32.gmra.mrb[0].mxu0 %v5266
    %v5334 = vpop.f32.mrb[0].mxu0
    %v5335 = vadd.f32 0.0, %v5334
    %v5336 = vpop.f32.mrb[0].mxu0
    %5337 = vdwg.mxu0
    %v5338 = vadd.f32 %v5167, %v5335
    %5339 = vrot.lane.b32.xlu0 %v4500, 80
    %v5340 = vpop.permute.xlu0 %5339
    %5341 = vrot.lane.b32.xlu0 %v4505, 80
    %v5342 = vpop.permute.xlu0 %5341
    %5343 = vrot.lane.b32.xlu0 %v4510, 80
    %v5344 = vpop.permute.xlu0 %5343
    %5345 = vrot.lane.b32.xlu0 %v4515, 80
    %v5346 = vpop.permute.xlu0 %5345
    %5347 = vrot.lane.b32.xlu0 %v4520, 80
    %v5348 = vpop.permute.xlu0 %5347
    %5349 = vrot.lane.b32.xlu0 %v4525, 80
    %v5350 = vpop.permute.xlu0 %5349
    %5351 = vrot.lane.b32.xlu0 %v4530, 80
    %v5352 = vpop.permute.xlu0 %5351
    %5353 = vrot.lane.b32.xlu0 %v4535, 80
    %v5354 = vpop.permute.xlu0 %5353
    %v5364 = vsel %vm801, %v4995, 0
    %5366 = vmatprep.subr.mxu0 0.0
    %5367 = vmatpush1.msra.mxu0 %v5340
    %5368 = vmatprep.subr.mxu0 0.0
    %5369 = vmatpush1.msra.mxu0 %v5342
    %5370 = vmatprep.subr.mxu0 0.0
    %5371 = vmatpush1.msra.mxu0 %v5344
    %5372 = vmatprep.subr.mxu0 0.0
    %5373 = vmatpush1.msra.mxu0 %v5346
    %5374 = vmatprep.subr.mxu0 0.0
    %5375 = vmatpush1.msra.mxu0 %v5348
    %5376 = vmatprep.subr.mxu0 0.0
    %5377 = vmatpush1.msra.mxu0 %v5350
    %5378 = vmatprep.subr.mxu0 0.0
    %5379 = vmatpush1.msra.mxu0 %v5352
    %5380 = vmatprep.subr.mxu0 0.0
    %5381 = vmatpush1.msra.mxu0 %v5354
    %5382 = vmatprep.subr.mxu0 0.0
    %5383 = vmatpush1.msra.mxu0 0.0
    %5384 = vmatprep.subr.mxu0 0.0
    %5385 = vmatpush1.msra.mxu0 0.0
    %5386 = vmatprep.subr.mxu0 0.0
    %5387 = vmatpush1.msra.mxu0 0.0
    %5388 = vmatprep.subr.mxu0 0.0
    %5389 = vmatpush1.msra.mxu0 0.0
    %5390 = vmatprep.subr.mxu0 0.0
    %5391 = vmatpush1.msra.mxu0 0.0
    %5392 = vmatprep.subr.mxu0 0.0
    %5393 = vmatpush1.msra.mxu0 0.0
    %5394 = vmatprep.subr.mxu0 0.0
    %5395 = vmatpush1.msra.mxu0 0.0
    %5396 = vmatprep.subr.mxu0 0.0
    %5397 = vmatpush1.msra.mxu0 0.0
    %5398 = vmatprep.subr.mxu0 0.0
    %5399 = vmatpush1.msra.mxu0 0.0
    %5400 = vmatprep.subr.mxu0 0.0
    %5401 = vmatpush1.msra.mxu0 0.0
    %5402 = vmatprep.subr.mxu0 0.0
    %5403 = vmatpush1.msra.mxu0 0.0
    %5404 = vmatprep.subr.mxu0 0.0
    %5405 = vmatpush1.msra.mxu0 0.0
    %5406 = vmatprep.subr.mxu0 0.0
    %5407 = vmatpush1.msra.mxu0 0.0
    %5408 = vmatprep.subr.mxu0 0.0
    %5409 = vmatpush1.msra.mxu0 0.0
    %5410 = vmatprep.subr.mxu0 0.0
    %5411 = vmatpush1.msra.mxu0 0.0
    %5412 = vmatprep.subr.mxu0 0.0
    %5413 = vmatpush1.msra.mxu0 0.0
    %5414 = vmatprep.subr.mxu0 0.0
    %5415 = vmatpush1.msra.mxu0 0.0
    %5416 = vmatprep.subr.mxu0 0.0
    %5417 = vmatpush1.msra.mxu0 0.0
    %5418 = vmatprep.subr.mxu0 0.0
    %5419 = vmatpush1.msra.mxu0 0.0
    %5420 = vmatprep.subr.mxu0 0.0
    %5421 = vmatpush1.msra.mxu0 0.0
    %5422 = vmatprep.subr.mxu0 0.0
    %5423 = vmatpush1.msra.mxu0 0.0
    %5424 = vmatprep.subr.mxu0 0.0
    %5425 = vmatpush1.msra.mxu0 0.0
    %5426 = vmatprep.subr.mxu0 0.0
    %5427 = vmatpush1.msra.mxu0 0.0
    %5428 = vmatprep.subr.mxu0 0.0
    %5429 = vmatpush1.msra.mxu0 0.0
    %5430 = vmatprep.mubr.f32.mxu0 0.0
    %5431 = vmatmul.mubr.f32.gmra.mrb[0].mxu0 %v5364
    %v5432 = vpop.f32.mrb[0].mxu0
    %v5433 = vadd.f32 0.0, %v5432
    %v5434 = vpop.f32.mrb[0].mxu0
    %5435 = vdwg.mxu0
    %v5437 = vsel %vm385, %v5433, 0
    %5439 = vmatprep.subr.mxu0 0.0
    %5440 = vmatpush1.msra.mxu0 %v4334
    %5441 = vmatprep.subr.mxu0 0.0
    %5442 = vmatpush1.msra.mxu0 0.0
    %5443 = vmatprep.subr.mxu0 0.0
    %5444 = vmatpush1.msra.mxu0 0.0
    %5445 = vmatprep.subr.mxu0 0.0
    %5446 = vmatpush1.msra.mxu0 0.0
    %5447 = vmatprep.subr.mxu0 0.0
    %5448 = vmatpush1.msra.mxu0 0.0
    %5449 = vmatprep.subr.mxu0 0.0
    %5450 = vmatpush1.msra.mxu0 0.0
    %5451 = vmatprep.subr.mxu0 0.0
    %5452 = vmatpush1.msra.mxu0 0.0
    %5453 = vmatprep.subr.mxu0 0.0
    %5454 = vmatpush1.msra.mxu0 0.0
    %5455 = vmatprep.subr.mxu0 0.0
    %5456 = vmatpush1.msra.mxu0 0.0
    %5457 = vmatprep.subr.mxu0 0.0
    %5458 = vmatpush1.msra.mxu0 0.0
    %5459 = vmatprep.subr.mxu0 0.0
    %5460 = vmatpush1.msra.mxu0 0.0
    %5461 = vmatprep.subr.mxu0 0.0
    %5462 = vmatpush1.msra.mxu0 0.0
    %5463 = vmatprep.subr.mxu0 0.0
    %5464 = vmatpush1.msra.mxu0 0.0
    %5465 = vmatprep.subr.mxu0 0.0
    %5466 = vmatpush1.msra.mxu0 0.0
    %5467 = vmatprep.subr.mxu0 0.0
    %5468 = vmatpush1.msra.mxu0 0.0
    %5469 = vmatprep.subr.mxu0 0.0
    %5470 = vmatpush1.msra.mxu0 0.0
    %5471 = vmatprep.subr.mxu0 0.0
    %5472 = vmatpush1.msra.mxu0 0.0
    %5473 = vmatprep.subr.mxu0 0.0
    %5474 = vmatpush1.msra.mxu0 0.0
    %5475 = vmatprep.subr.mxu0 0.0
    %5476 = vmatpush1.msra.mxu0 0.0
    %5477 = vmatprep.subr.mxu0 0.0
    %5478 = vmatpush1.msra.mxu0 0.0
    %5479 = vmatprep.subr.mxu0 0.0
    %5480 = vmatpush1.msra.mxu0 0.0
    %5481 = vmatprep.subr.mxu0 0.0
    %5482 = vmatpush1.msra.mxu0 0.0
    %5483 = vmatprep.subr.mxu0 0.0
    %5484 = vmatpush1.msra.mxu0 0.0
    %5485 = vmatprep.subr.mxu0 0.0
    %5486 = vmatpush1.msra.mxu0 0.0
    %5487 = vmatprep.subr.mxu0 0.0
    %5488 = vmatpush1.msra.mxu0 0.0
    %5489 = vmatprep.subr.mxu0 0.0
    %5490 = vmatpush1.msra.mxu0 0.0
    %5491 = vmatprep.subr.mxu0 0.0
    %5492 = vmatpush1.msra.mxu0 0.0
    %5493 = vmatprep.subr.mxu0 0.0
    %5494 = vmatpush1.msra.mxu0 0.0
    %5495 = vmatprep.subr.mxu0 0.0
    %5496 = vmatpush1.msra.mxu0 0.0
    %5497 = vmatprep.subr.mxu0 0.0
    %5498 = vmatpush1.msra.mxu0 0.0
    %5499 = vmatprep.subr.mxu0 0.0
    %5500 = vmatpush1.msra.mxu0 0.0
    %5501 = vmatprep.subr.mxu0 0.0
    %5502 = vmatpush1.msra.mxu0 0.0
    %5503 = vmatprep.mubr.f32.mxu0 0.0
    %5504 = vmatmul.mubr.f32.gmra.mrb[0].mxu0 %v5437
    %v5505 = vpop.f32.mrb[0].mxu0
    %v5506 = vadd.f32 0.0, %v5505
    %v5507 = vpop.f32.mrb[0].mxu0
    %5508 = vdwg.mxu0
    %v5509 = vadd.f32 %v5338, %v5506
    %5510 = vrot.lane.b32.xlu0 %v4500, 72
    %v5511 = vpop.permute.xlu0 %5510
    %5512 = vrot.lane.b32.xlu0 %v4505, 72
    %v5513 = vpop.permute.xlu0 %5512
    %5514 = vrot.lane.b32.xlu0 %v4510, 72
    %v5515 = vpop.permute.xlu0 %5514
    %5516 = vrot.lane.b32.xlu0 %v4515, 72
    %v5517 = vpop.permute.xlu0 %5516
    %5518 = vrot.lane.b32.xlu0 %v4520, 72
    %v5519 = vpop.permute.xlu0 %5518
    %5520 = vrot.lane.b32.xlu0 %v4525, 72
    %v5521 = vpop.permute.xlu0 %5520
    %5522 = vrot.lane.b32.xlu0 %v4530, 72
    %v5523 = vpop.permute.xlu0 %5522
    %5524 = vrot.lane.b32.xlu0 %v4535, 72
    %v5525 = vpop.permute.xlu0 %5524
    %v5535 = vsel %vm801, %v4996, 0
    %5537 = vmatprep.subr.mxu0 0.0
    %5538 = vmatpush1.msra.mxu0 %v5511
    %5539 = vmatprep.subr.mxu0 0.0
    %5540 = vmatpush1.msra.mxu0 %v5513
    %5541 = vmatprep.subr.mxu0 0.0
    %5542 = vmatpush1.msra.mxu0 %v5515
    %5543 = vmatprep.subr.mxu0 0.0
    %5544 = vmatpush1.msra.mxu0 %v5517
    %5545 = vmatprep.subr.mxu0 0.0
    %5546 = vmatpush1.msra.mxu0 %v5519
    %5547 = vmatprep.subr.mxu0 0.0
    %5548 = vmatpush1.msra.mxu0 %v5521
    %5549 = vmatprep.subr.mxu0 0.0
    %5550 = vmatpush1.msra.mxu0 %v5523
    %5551 = vmatprep.subr.mxu0 0.0
    %5552 = vmatpush1.msra.mxu0 %v5525
    %5553 = vmatprep.subr.mxu0 0.0
    %5554 = vmatpush1.msra.mxu0 0.0
    %5555 = vmatprep.subr.mxu0 0.0
    %5556 = vmatpush1.msra.mxu0 0.0
    %5557 = vmatprep.subr.mxu0 0.0
    %5558 = vmatpush1.msra.mxu0 0.0
    %5559 = vmatprep.subr.mxu0 0.0
    %5560 = vmatpush1.msra.mxu0 0.0
    %5561 = vmatprep.subr.mxu0 0.0
    %5562 = vmatpush1.msra.mxu0 0.0
    %5563 = vmatprep.subr.mxu0 0.0
    %5564 = vmatpush1.msra.mxu0 0.0
    %5565 = vmatprep.subr.mxu0 0.0
    %5566 = vmatpush1.msra.mxu0 0.0
    %5567 = vmatprep.subr.mxu0 0.0
    %5568 = vmatpush1.msra.mxu0 0.0
    %5569 = vmatprep.subr.mxu0 0.0
    %5570 = vmatpush1.msra.mxu0 0.0
    %5571 = vmatprep.subr.mxu0 0.0
    %5572 = vmatpush1.msra.mxu0 0.0
    %5573 = vmatprep.subr.mxu0 0.0
    %5574 = vmatpush1.msra.mxu0 0.0
    %5575 = vmatprep.subr.mxu0 0.0
    %5576 = vmatpush1.msra.mxu0 0.0
    %5577 = vmatprep.subr.mxu0 0.0
    %5578 = vmatpush1.msra.mxu0 0.0
    %5579 = vmatprep.subr.mxu0 0.0
    %5580 = vmatpush1.msra.mxu0 0.0
    %5581 = vmatprep.subr.mxu0 0.0
    %5582 = vmatpush1.msra.mxu0 0.0
    %5583 = vmatprep.subr.mxu0 0.0
    %5584 = vmatpush1.msra.mxu0 0.0
    %5585 = vmatprep.subr.mxu0 0.0
    %5586 = vmatpush1.msra.mxu0 0.0
    %5587 = vmatprep.subr.mxu0 0.0
    %5588 = vmatpush1.msra.mxu0 0.0
    %5589 = vmatprep.subr.mxu0 0.0
    %5590 = vmatpush1.msra.mxu0 0.0
    %5591 = vmatprep.subr.mxu0 0.0
    %5592 = vmatpush1.msra.mxu0 0.0
    %5593 = vmatprep.subr.mxu0 0.0
    %5594 = vmatpush1.msra.mxu0 0.0
    %5595 = vmatprep.subr.mxu0 0.0
    %5596 = vmatpush1.msra.mxu0 0.0
    %5597 = vmatprep.subr.mxu0 0.0
    %5598 = vmatpush1.msra.mxu0 0.0
    %5599 = vmatprep.subr.mxu0 0.0
    %5600 = vmatpush1.msra.mxu0 0.0
    %5601 = vmatprep.mubr.f32.mxu0 0.0
    %5602 = vmatmul.mubr.f32.gmra.mrb[0].mxu0 %v5535
    %v5603 = vpop.f32.mrb[0].mxu0
    %v5604 = vadd.f32 0.0, %v5603
    %v5605 = vpop.f32.mrb[0].mxu0
    %5606 = vdwg.mxu0
    %v5608 = vsel %vm385, %v5604, 0
    %5610 = vmatprep.subr.mxu0 0.0
    %5611 = vmatpush1.msra.mxu0 %v4335
    %5612 = vmatprep.subr.mxu0 0.0
    %5613 = vmatpush1.msra.mxu0 0.0
    %5614 = vmatprep.subr.mxu0 0.0
    %5615 = vmatpush1.msra.mxu0 0.0
    %5616 = vmatprep.subr.mxu0 0.0
    %5617 = vmatpush1.msra.mxu0 0.0
    %5618 = vmatprep.subr.mxu0 0.0
    %5619 = vmatpush1.msra.mxu0 0.0
    %5620 = vmatprep.subr.mxu0 0.0
    %5621 = vmatpush1.msra.mxu0 0.0
    %5622 = vmatprep.subr.mxu0 0.0
    %5623 = vmatpush1.msra.mxu0 0.0
    %5624 = vmatprep.subr.mxu0 0.0
    %5625 = vmatpush1.msra.mxu0 0.0
    %5626 = vmatprep.subr.mxu0 0.0
    %5627 = vmatpush1.msra.mxu0 0.0
    %5628 = vmatprep.subr.mxu0 0.0
    %5629 = vmatpush1.msra.mxu0 0.0
    %5630 = vmatprep.subr.mxu0 0.0
    %5631 = vmatpush1.msra.mxu0 0.0
    %5632 = vmatprep.subr.mxu0 0.0
    %5633 = vmatpush1.msra.mxu0 0.0
    %5634 = vmatprep.subr.mxu0 0.0
    %5635 = vmatpush1.msra.mxu0 0.0
    %5636 = vmatprep.subr.mxu0 0.0
    %5637 = vmatpush1.msra.mxu0 0.0
    %5638 = vmatprep.subr.mxu0 0.0
    %5639 = vmatpush1.msra.mxu0 0.0
    %5640 = vmatprep.subr.mxu0 0.0
    %5641 = vmatpush1.msra.mxu0 0.0
    %5642 = vmatprep.subr.mxu0 0.0
    %5643 = vmatpush1.msra.mxu0 0.0
    %5644 = vmatprep.subr.mxu0 0.0
    %5645 = vmatpush1.msra.mxu0 0.0
    %5646 = vmatprep.subr.mxu0 0.0
    %5647 = vmatpush1.msra.mxu0 0.0
    %5648 = vmatprep.subr.mxu0 0.0
    %5649 = vmatpush1.msra.mxu0 0.0
    %5650 = vmatprep.subr.mxu0 0.0
    %5651 = vmatpush1.msra.mxu0 0.0
    %5652 = vmatprep.subr.mxu0 0.0
    %5653 = vmatpush1.msra.mxu0 0.0
    %5654 = vmatprep.subr.mxu0 0.0
    %5655 = vmatpush1.msra.mxu0 0.0
    %5656 = vmatprep.subr.mxu0 0.0
    %5657 = vmatpush1.msra.mxu0 0.0
    %5658 = vmatprep.subr.mxu0 0.0
    %5659 = vmatpush1.msra.mxu0 0.0
    %5660 = vmatprep.subr.mxu0 0.0
    %5661 = vmatpush1.msra.mxu0 0.0
    %5662 = vmatprep.subr.mxu0 0.0
    %5663 = vmatpush1.msra.mxu0 0.0
    %5664 = vmatprep.subr.mxu0 0.0
    %5665 = vmatpush1.msra.mxu0 0.0
    %5666 = vmatprep.subr.mxu0 0.0
    %5667 = vmatpush1.msra.mxu0 0.0
    %5668 = vmatprep.subr.mxu0 0.0
    %5669 = vmatpush1.msra.mxu0 0.0
    %5670 = vmatprep.subr.mxu0 0.0
    %5671 = vmatpush1.msra.mxu0 0.0
    %5672 = vmatprep.subr.mxu0 0.0
    %5673 = vmatpush1.msra.mxu0 0.0
    %5674 = vmatprep.mubr.f32.mxu0 0.0
    %5675 = vmatmul.mubr.f32.gmra.mrb[0].mxu0 %v5608
    %v5676 = vpop.f32.mrb[0].mxu0
    %v5677 = vadd.f32 0.0, %v5676
    %v5678 = vpop.f32.mrb[0].mxu0
    %5679 = vdwg.mxu0
    %v5680 = vadd.f32 %v5509, %v5677
    %5681 = vmatprep.subr.mxu0 0.0
    %5682 = vmatpush1.msra.mxu0 %v4322
    %5683 = vmatprep.subr.mxu0 0.0
    %5684 = vmatpush1.msra.mxu0 %v4323
    %5685 = vmatprep.subr.mxu0 0.0
    %5686 = vmatpush1.msra.mxu0 %v4324
    %5687 = vmatprep.subr.mxu0 0.0
    %5688 = vmatpush1.msra.mxu0 %v4325
    %5689 = vmatprep.subr.mxu0 0.0
    %5690 = vmatpush1.msra.mxu0 0.0
    %5691 = vmatprep.subr.mxu0 0.0
    %5692 = vmatpush1.msra.mxu0 0.0
    %5693 = vmatprep.subr.mxu0 0.0
    %5694 = vmatpush1.msra.mxu0 0.0
    %5695 = vmatprep.subr.mxu0 0.0
    %5696 = vmatpush1.msra.mxu0 0.0
    %5697 = vmatprep.subr.mxu0 0.0
    %5698 = vmatpush1.msra.mxu0 0.0
    %5699 = vmatprep.subr.mxu0 0.0
    %5700 = vmatpush1.msra.mxu0 0.0
    %5701 = vmatprep.subr.mxu0 0.0
    %5702 = vmatpush1.msra.mxu0 0.0
    %5703 = vmatprep.subr.mxu0 0.0
    %5704 = vmatpush1.msra.mxu0 0.0
    %5705 = vmatprep.subr.mxu0 0.0
    %5706 = vmatpush1.msra.mxu0 0.0
    %5707 = vmatprep.subr.mxu0 0.0
    %5708 = vmatpush1.msra.mxu0 0.0
    %5709 = vmatprep.subr.mxu0 0.0
    %5710 = vmatpush1.msra.mxu0 0.0
    %5711 = vmatprep.subr.mxu0 0.0
    %5712 = vmatpush1.msra.mxu0 0.0
    %5713 = vmatprep.subr.mxu0 0.0
    %5714 = vmatpush1.msra.mxu0 0.0
    %5715 = vmatprep.subr.mxu0 0.0
    %5716 = vmatpush1.msra.mxu0 0.0
    %5717 = vmatprep.subr.mxu0 0.0
    %5718 = vmatpush1.msra.mxu0 0.0
    %5719 = vmatprep.subr.mxu0 0.0
    %5720 = vmatpush1.msra.mxu0 0.0
    %5721 = vmatprep.subr.mxu0 0.0
    %5722 = vmatpush1.msra.mxu0 0.0
    %5723 = vmatprep.subr.mxu0 0.0
    %5724 = vmatpush1.msra.mxu0 0.0
    %5725 = vmatprep.subr.mxu0 0.0
    %5726 = vmatpush1.msra.mxu0 0.0
    %5727 = vmatprep.subr.mxu0 0.0
    %5728 = vmatpush1.msra.mxu0 0.0
    %5729 = vmatprep.subr.mxu0 0.0
    %5730 = vmatpush1.msra.mxu0 0.0
    %5731 = vmatprep.subr.mxu0 0.0
    %5732 = vmatpush1.msra.mxu0 0.0
    %5733 = vmatprep.subr.mxu0 0.0
    %5734 = vmatpush1.msra.mxu0 0.0
    %5735 = vmatprep.subr.mxu0 0.0
    %5736 = vmatpush1.msra.mxu0 0.0
    %5737 = vmatprep.subr.mxu0 0.0
    %5738 = vmatpush1.msra.mxu0 0.0
    %5739 = vmatprep.subr.mxu0 0.0
    %5740 = vmatpush1.msra.mxu0 0.0
    %5741 = vmatprep.subr.mxu0 0.0
    %5742 = vmatpush1.msra.mxu0 0.0
    %5743 = vmatprep.subr.mxu0 0.0
    %5744 = vmatpush1.msra.mxu0 0.0
    %5745 = vmatprep.mubr.f32.mxu0 0.0
    %5746 = vmatmul.mubr.f32.gmra.mrb[0].mxu0 %v4410
    %v5747 = vpop.f32.mrb[0].mxu0
    %v5748 = vadd.f32 0.0, %v5747
    %v5749 = vpop.f32.mrb[0].mxu0
    %5750 = vmatprep.mubr.f32.mxu0 0.0
    %5751 = vmatmul.mubr.f32.gmra.mrb[0].mxu0 %v4413
    %v5752 = vpop.f32.mrb[0].mxu0
    %v5753 = vadd.f32 0.0, %v5752
    %v5754 = vpop.f32.mrb[0].mxu0
    %5755 = vmatprep.mubr.f32.mxu0 0.0
    %5756 = vmatmul.mubr.f32.gmra.mrb[0].mxu0 %v4416
    %v5757 = vpop.f32.mrb[0].mxu0
    %v5758 = vadd.f32 0.0, %v5757
    %v5759 = vpop.f32.mrb[0].mxu0
    %5760 = vmatprep.mubr.f32.mxu0 0.0
    %5761 = vmatmul.mubr.f32.gmra.mrb[0].mxu0 %v4419
    %v5762 = vpop.f32.mrb[0].mxu0
    %v5763 = vadd.f32 0.0, %v5762
    %v5764 = vpop.f32.mrb[0].mxu0
    %5765 = vmatprep.mubr.f32.mxu0 0.0
    %5766 = vmatmul.mubr.f32.gmra.mrb[0].mxu0 %v4422
    %v5767 = vpop.f32.mrb[0].mxu0
    %v5768 = vadd.f32 0.0, %v5767
    %v5769 = vpop.f32.mrb[0].mxu0
    %5770 = vmatprep.mubr.f32.mxu0 0.0
    %5771 = vmatmul.mubr.f32.gmra.mrb[0].mxu0 %v4425
    %v5772 = vpop.f32.mrb[0].mxu0
    %v5773 = vadd.f32 0.0, %v5772
    %v5774 = vpop.f32.mrb[0].mxu0
    %5775 = vmatprep.mubr.f32.mxu0 0.0
    %5776 = vmatmul.mubr.f32.gmra.mrb[0].mxu0 %v4428
    %v5777 = vpop.f32.mrb[0].mxu0
    %v5778 = vadd.f32 0.0, %v5777
    %v5779 = vpop.f32.mrb[0].mxu0
    %5780 = vmatprep.mubr.f32.mxu0 0.0
    %5781 = vmatmul.mubr.f32.gmra.mrb[0].mxu0 %v4431
    %v5782 = vpop.f32.mrb[0].mxu0
    %v5783 = vadd.f32 0.0, %v5782
    %v5784 = vpop.f32.mrb[0].mxu0
    %5785 = vdwg.mxu0
    %v5787 = vsel %vm120, %v5680, 0
    %5789 = vmatprep.subr.mxu0 0.0
    %5790 = vmatpush1.msra.mxu0 %v4327
    %5791 = vmatprep.subr.mxu0 0.0
    %5792 = vmatpush1.msra.mxu0 %v4328
    %5793 = vmatprep.subr.mxu0 0.0
    %5794 = vmatpush1.msra.mxu0 %v4329
    %5795 = vmatprep.subr.mxu0 0.0
    %5796 = vmatpush1.msra.mxu0 %v4330
    %5797 = vmatprep.subr.mxu0 0.0
    %5798 = vmatpush1.msra.mxu0 0.0
    %5799 = vmatprep.subr.mxu0 0.0
    %5800 = vmatpush1.msra.mxu0 0.0
    %5801 = vmatprep.subr.mxu0 0.0
    %5802 = vmatpush1.msra.mxu0 0.0
    %5803 = vmatprep.subr.mxu0 0.0
    %5804 = vmatpush1.msra.mxu0 0.0
    %5805 = vmatprep.subr.mxu0 0.0
    %5806 = vmatpush1.msra.mxu0 0.0
    %5807 = vmatprep.subr.mxu0 0.0
    %5808 = vmatpush1.msra.mxu0 0.0
    %5809 = vmatprep.subr.mxu0 0.0
    %5810 = vmatpush1.msra.mxu0 0.0
    %5811 = vmatprep.subr.mxu0 0.0
    %5812 = vmatpush1.msra.mxu0 0.0
    %5813 = vmatprep.subr.mxu0 0.0
    %5814 = vmatpush1.msra.mxu0 0.0
    %5815 = vmatprep.subr.mxu0 0.0
    %5816 = vmatpush1.msra.mxu0 0.0
    %5817 = vmatprep.subr.mxu0 0.0
    %5818 = vmatpush1.msra.mxu0 0.0
    %5819 = vmatprep.subr.mxu0 0.0
    %5820 = vmatpush1.msra.mxu0 0.0
    %5821 = vmatprep.subr.mxu0 0.0
    %5822 = vmatpush1.msra.mxu0 0.0
    %5823 = vmatprep.subr.mxu0 0.0
    %5824 = vmatpush1.msra.mxu0 0.0
    %5825 = vmatprep.subr.mxu0 0.0
    %5826 = vmatpush1.msra.mxu0 0.0
    %5827 = vmatprep.subr.mxu0 0.0
    %5828 = vmatpush1.msra.mxu0 0.0
    %5829 = vmatprep.subr.mxu0 0.0
    %5830 = vmatpush1.msra.mxu0 0.0
    %5831 = vmatprep.subr.mxu0 0.0
    %5832 = vmatpush1.msra.mxu0 0.0
    %5833 = vmatprep.subr.mxu0 0.0
    %5834 = vmatpush1.msra.mxu0 0.0
    %5835 = vmatprep.subr.mxu0 0.0
    %5836 = vmatpush1.msra.mxu0 0.0
    %5837 = vmatprep.subr.mxu0 0.0
    %5838 = vmatpush1.msra.mxu0 0.0
    %5839 = vmatprep.subr.mxu0 0.0
    %5840 = vmatpush1.msra.mxu0 0.0
    %5841 = vmatprep.subr.mxu0 0.0
    %5842 = vmatpush1.msra.mxu0 0.0
    %5843 = vmatprep.subr.mxu0 0.0
    %5844 = vmatpush1.msra.mxu0 0.0
    %5845 = vmatprep.subr.mxu0 0.0
    %5846 = vmatpush1.msra.mxu0 0.0
    %5847 = vmatprep.subr.mxu0 0.0
    %5848 = vmatpush1.msra.mxu0 0.0
    %5849 = vmatprep.subr.mxu0 0.0
    %5850 = vmatpush1.msra.mxu0 0.0
    %5851 = vmatprep.subr.mxu0 0.0
    %5852 = vmatpush1.msra.mxu0 0.0
    %5853 = vmatprep.mubr.f32.mxu0 0.0
    %5854 = vmatmul.mubr.f32.gmra.mrb[0].mxu0 %v5787
    %v5855 = vpop.f32.mrb[0].mxu0
    %v5856 = vadd.f32 0.0, %v5855
    %v5857 = vpop.f32.mrb[0].mxu0
    %5858 = vdwg.mxu0
    %v5860 = vsel %vm385, %v5748, 0
    %v5863 = vsel %vm385, %v5753, 0
    %v5866 = vsel %vm385, %v5758, 0
    %v5869 = vsel %vm385, %v5763, 0
    %v5872 = vsel %vm385, %v5768, 0
    %v5875 = vsel %vm385, %v5773, 0
    %v5878 = vsel %vm385, %v5778, 0
    %v5881 = vsel %vm385, %v5783, 0
    %v5884 = vsel %vm385, %v5856, 0
    %5886 = vmatprep.subr.mxu0 0.0
    %5887 = vmatpush1.xpose.msra.mxu0 %v5884
    %5888 = vmatprep.subr.mxu0 0.0
    %5889 = vmatpush1.xpose.msra.mxu0 0.0
    %5890 = vmatprep.subr.mxu0 0.0
    %5891 = vmatpush1.xpose.msra.mxu0 0.0
    %5892 = vmatprep.subr.mxu0 0.0
    %5893 = vmatpush1.xpose.msra.mxu0 0.0
    %5894 = vmatprep.subr.mxu0 0.0
    %5895 = vmatpush1.xpose.msra.mxu0 0.0
    %5896 = vmatprep.subr.mxu0 0.0
    %5897 = vmatpush1.xpose.msra.mxu0 0.0
    %5898 = vmatprep.subr.mxu0 0.0
    %5899 = vmatpush1.xpose.msra.mxu0 0.0
    %5900 = vmatprep.subr.mxu0 0.0
    %5901 = vmatpush1.xpose.msra.mxu0 0.0
    %5902 = vmatprep.subr.mxu0 0.0
    %5903 = vmatpush1.xpose.msra.mxu0 0.0
    %5904 = vmatprep.subr.mxu0 0.0
    %5905 = vmatpush1.xpose.msra.mxu0 0.0
    %5906 = vmatprep.subr.mxu0 0.0
    %5907 = vmatpush1.xpose.msra.mxu0 0.0
    %5908 = vmatprep.subr.mxu0 0.0
    %5909 = vmatpush1.xpose.msra.mxu0 0.0
    %5910 = vmatprep.subr.mxu0 0.0
    %5911 = vmatpush1.xpose.msra.mxu0 0.0
    %5912 = vmatprep.subr.mxu0 0.0
    %5913 = vmatpush1.xpose.msra.mxu0 0.0
    %5914 = vmatprep.subr.mxu0 0.0
    %5915 = vmatpush1.xpose.msra.mxu0 0.0
    %5916 = vmatprep.subr.mxu0 0.0
    %5917 = vmatpush1.xpose.msra.mxu0 0.0
    %5918 = vmatprep.subr.mxu0 0.0
    %5919 = vmatpush1.xpose.msra.mxu0 0.0
    %5920 = vmatprep.subr.mxu0 0.0
    %5921 = vmatpush1.xpose.msra.mxu0 0.0
    %5922 = vmatprep.subr.mxu0 0.0
    %5923 = vmatpush1.xpose.msra.mxu0 0.0
    %5924 = vmatprep.subr.mxu0 0.0
    %5925 = vmatpush1.xpose.msra.mxu0 0.0
    %5926 = vmatprep.subr.mxu0 0.0
    %5927 = vmatpush1.xpose.msra.mxu0 0.0
    %5928 = vmatprep.subr.mxu0 0.0
    %5929 = vmatpush1.xpose.msra.mxu0 0.0
    %5930 = vmatprep.subr.mxu0 0.0
    %5931 = vmatpush1.xpose.msra.mxu0 0.0
    %5932 = vmatprep.subr.mxu0 0.0
    %5933 = vmatpush1.xpose.msra.mxu0 0.0
    %5934 = vmatprep.subr.mxu0 0.0
    %5935 = vmatpush1.xpose.msra.mxu0 0.0
    %5936 = vmatprep.subr.mxu0 0.0
    %5937 = vmatpush1.xpose.msra.mxu0 0.0
    %5938 = vmatprep.subr.mxu0 0.0
    %5939 = vmatpush1.xpose.msra.mxu0 0.0
    %5940 = vmatprep.subr.mxu0 0.0
    %5941 = vmatpush1.xpose.msra.mxu0 0.0
    %5942 = vmatprep.subr.mxu0 0.0
    %5943 = vmatpush1.xpose.msra.mxu0 0.0
    %5944 = vmatprep.subr.mxu0 0.0
    %5945 = vmatpush1.xpose.msra.mxu0 0.0
    %5946 = vmatprep.subr.mxu0 0.0
    %5947 = vmatpush1.xpose.msra.mxu0 0.0
    %5948 = vmatprep.subr.mxu0 0.0
    %5949 = vmatpush1.xpose.msra.mxu0 0.0
    %5950 = vmatprep.mubr.f32.mxu0 0.0
    %5951 = vmatmul.mubr.f32.gmra.mrb[0].mxu0 %v5860
    %v5952 = vpop.f32.mrb[0].mxu0
    %v5953 = vadd.f32 0.0, %v5952
    %v5954 = vpop.f32.mrb[0].mxu0
    %5955 = vmatprep.mubr.f32.mxu0 0.0
    %5956 = vmatmul.mubr.f32.gmra.mrb[0].mxu0 %v5863
    %v5957 = vpop.f32.mrb[0].mxu0
    %v5958 = vadd.f32 0.0, %v5957
    %v5959 = vpop.f32.mrb[0].mxu0
    %5960 = vmatprep.mubr.f32.mxu0 0.0
    %5961 = vmatmul.mubr.f32.gmra.mrb[0].mxu0 %v5866
    %v5962 = vpop.f32.mrb[0].mxu0
    %v5963 = vadd.f32 0.0, %v5962
    %v5964 = vpop.f32.mrb[0].mxu0
    %5965 = vmatprep.mubr.f32.mxu0 0.0
    %5966 = vmatmul.mubr.f32.gmra.mrb[0].mxu0 %v5869
    %v5967 = vpop.f32.mrb[0].mxu0
    %v5968 = vadd.f32 0.0, %v5967
    %v5969 = vpop.f32.mrb[0].mxu0
    %5970 = vmatprep.mubr.f32.mxu0 0.0
    %5971 = vmatmul.mubr.f32.gmra.mrb[0].mxu0 %v5872
    %v5972 = vpop.f32.mrb[0].mxu0
    %v5973 = vadd.f32 0.0, %v5972
    %v5974 = vpop.f32.mrb[0].mxu0
    %5975 = vmatprep.mubr.f32.mxu0 0.0
    %5976 = vmatmul.mubr.f32.gmra.mrb[0].mxu0 %v5875
    %v5977 = vpop.f32.mrb[0].mxu0
    %v5978 = vadd.f32 0.0, %v5977
    %v5979 = vpop.f32.mrb[0].mxu0
    %5980 = vmatprep.mubr.f32.mxu0 0.0
    %5981 = vmatmul.mubr.f32.gmra.mrb[0].mxu0 %v5878
    %v5982 = vpop.f32.mrb[0].mxu0
    %v5983 = vadd.f32 0.0, %v5982
    %v5984 = vpop.f32.mrb[0].mxu0
    %5985 = vmatprep.mubr.f32.mxu0 0.0
    %5986 = vmatmul.mubr.f32.gmra.mrb[0].mxu0 %v5881
    %v5987 = vpop.f32.mrb[0].mxu0
    %v5988 = vadd.f32 0.0, %v5987
    %v5989 = vpop.f32.mrb[0].mxu0
    %5990 = vdwg.mxu0
    %5991 = vrot.lane.b32.xlu0 %v5748, 120
    %v5992 = vpop.permute.xlu0 %5991
    %5993 = vrot.lane.b32.xlu0 %v5753, 120
    %v5994 = vpop.permute.xlu0 %5993
    %5995 = vrot.lane.b32.xlu0 %v5758, 120
    %v5996 = vpop.permute.xlu0 %5995
    %5997 = vrot.lane.b32.xlu0 %v5763, 120
    %v5998 = vpop.permute.xlu0 %5997
    %5999 = vrot.lane.b32.xlu0 %v5768, 120
    %v6000 = vpop.permute.xlu0 %5999
    %6001 = vrot.lane.b32.xlu0 %v5773, 120
    %v6002 = vpop.permute.xlu0 %6001
    %6003 = vrot.lane.b32.xlu0 %v5778, 120
    %v6004 = vpop.permute.xlu0 %6003
    %6005 = vrot.lane.b32.xlu0 %v5783, 120
    %v6006 = vpop.permute.xlu0 %6005
    %6007 = vrot.lane.b32.xlu0 %v5856, 120
    %v6008 = vpop.permute.xlu0 %6007
    %v6009 = vsel %vm385, %v5992, 0
    %v6011 = vsel %vm385, %v5994, 0
    %v6013 = vsel %vm385, %v5996, 0
    %v6015 = vsel %vm385, %v5998, 0
    %v6017 = vsel %vm385, %v6000, 0
    %v6019 = vsel %vm385, %v6002, 0
    %v6021 = vsel %vm385, %v6004, 0
    %v6023 = vsel %vm385, %v6006, 0
    %v6025 = vsel %vm385, %v6008, 0
    %6027 = vmatprep.subr.mxu0 0.0
    %6028 = vmatpush1.xpose.msra.mxu0 %v6025
    %6029 = vmatprep.subr.mxu0 0.0
    %6030 = vmatpush1.xpose.msra.mxu0 0.0
    %6031 = vmatprep.subr.mxu0 0.0
    %6032 = vmatpush1.xpose.msra.mxu0 0.0
    %6033 = vmatprep.subr.mxu0 0.0
    %6034 = vmatpush1.xpose.msra.mxu0 0.0
    %6035 = vmatprep.subr.mxu0 0.0
    %6036 = vmatpush1.xpose.msra.mxu0 0.0
    %6037 = vmatprep.subr.mxu0 0.0
    %6038 = vmatpush1.xpose.msra.mxu0 0.0
    %6039 = vmatprep.subr.mxu0 0.0
    %6040 = vmatpush1.xpose.msra.mxu0 0.0
    %6041 = vmatprep.subr.mxu0 0.0
    %6042 = vmatpush1.xpose.msra.mxu0 0.0
    %6043 = vmatprep.subr.mxu0 0.0
    %6044 = vmatpush1.xpose.msra.mxu0 0.0
    %6045 = vmatprep.subr.mxu0 0.0
    %6046 = vmatpush1.xpose.msra.mxu0 0.0
    %6047 = vmatprep.subr.mxu0 0.0
    %6048 = vmatpush1.xpose.msra.mxu0 0.0
    %6049 = vmatprep.subr.mxu0 0.0
    %6050 = vmatpush1.xpose.msra.mxu0 0.0
    %6051 = vmatprep.subr.mxu0 0.0
    %6052 = vmatpush1.xpose.msra.mxu0 0.0
    %6053 = vmatprep.subr.mxu0 0.0
    %6054 = vmatpush1.xpose.msra.mxu0 0.0
    %6055 = vmatprep.subr.mxu0 0.0
    %6056 = vmatpush1.xpose.msra.mxu0 0.0
    %6057 = vmatprep.subr.mxu0 0.0
    %6058 = vmatpush1.xpose.msra.mxu0 0.0
    %6059 = vmatprep.subr.mxu0 0.0
    %6060 = vmatpush1.xpose.msra.mxu0 0.0
    %6061 = vmatprep.subr.mxu0 0.0
    %6062 = vmatpush1.xpose.msra.mxu0 0.0
    %6063 = vmatprep.subr.mxu0 0.0
    %6064 = vmatpush1.xpose.msra.mxu0 0.0
    %6065 = vmatprep.subr.mxu0 0.0
    %6066 = vmatpush1.xpose.msra.mxu0 0.0
    %6067 = vmatprep.subr.mxu0 0.0
    %6068 = vmatpush1.xpose.msra.mxu0 0.0
    %6069 = vmatprep.subr.mxu0 0.0
    %6070 = vmatpush1.xpose.msra.mxu0 0.0
    %6071 = vmatprep.subr.mxu0 0.0
    %6072 = vmatpush1.xpose.msra.mxu0 0.0
    %6073 = vmatprep.subr.mxu0 0.0
    %6074 = vmatpush1.xpose.msra.mxu0 0.0
    %6075 = vmatprep.subr.mxu0 0.0
    %6076 = vmatpush1.xpose.msra.mxu0 0.0
    %6077 = vmatprep.subr.mxu0 0.0
    %6078 = vmatpush1.xpose.msra.mxu0 0.0
    %6079 = vmatprep.subr.mxu0 0.0
    %6080 = vmatpush1.xpose.msra.mxu0 0.0
    %6081 = vmatprep.subr.mxu0 0.0
    %6082 = vmatpush1.xpose.msra.mxu0 0.0
    %6083 = vmatprep.subr.mxu0 0.0
    %6084 = vmatpush1.xpose.msra.mxu0 0.0
    %6085 = vmatprep.subr.mxu0 0.0
    %6086 = vmatpush1.xpose.msra.mxu0 0.0
    %6087 = vmatprep.subr.mxu0 0.0
    %6088 = vmatpush1.xpose.msra.mxu0 0.0
    %6089 = vmatprep.subr.mxu0 0.0
    %6090 = vmatpush1.xpose.msra.mxu0 0.0
    %6091 = vmatprep.mubr.f32.mxu0 0.0
    %6092 = vmatmul.mubr.f32.gmra.mrb[0].mxu0 %v6009
    %v6093 = vpop.f32.mrb[0].mxu0
    %v6094 = vadd.f32 0.0, %v6093
    %v6095 = vpop.f32.mrb[0].mxu0
    %6096 = vmatprep.mubr.f32.mxu0 0.0
    %6097 = vmatmul.mubr.f32.gmra.mrb[0].mxu0 %v6011
    %v6098 = vpop.f32.mrb[0].mxu0
    %v6099 = vadd.f32 0.0, %v6098
    %v6100 = vpop.f32.mrb[0].mxu0
    %6101 = vmatprep.mubr.f32.mxu0 0.0
    %6102 = vmatmul.mubr.f32.gmra.mrb[0].mxu0 %v6013
    %v6103 = vpop.f32.mrb[0].mxu0
    %v6104 = vadd.f32 0.0, %v6103
    %v6105 = vpop.f32.mrb[0].mxu0
    %6106 = vmatprep.mubr.f32.mxu0 0.0
    %6107 = vmatmul.mubr.f32.gmra.mrb[0].mxu0 %v6015
    %v6108 = vpop.f32.mrb[0].mxu0
    %v6109 = vadd.f32 0.0, %v6108
    %v6110 = vpop.f32.mrb[0].mxu0
    %6111 = vmatprep.mubr.f32.mxu0 0.0
    %6112 = vmatmul.mubr.f32.gmra.mrb[0].mxu0 %v6017
    %v6113 = vpop.f32.mrb[0].mxu0
    %v6114 = vadd.f32 0.0, %v6113
    %v6115 = vpop.f32.mrb[0].mxu0
    %6116 = vmatprep.mubr.f32.mxu0 0.0
    %6117 = vmatmul.mubr.f32.gmra.mrb[0].mxu0 %v6019
    %v6118 = vpop.f32.mrb[0].mxu0
    %v6119 = vadd.f32 0.0, %v6118
    %v6120 = vpop.f32.mrb[0].mxu0
    %6121 = vmatprep.mubr.f32.mxu0 0.0
    %6122 = vmatmul.mubr.f32.gmra.mrb[0].mxu0 %v6021
    %v6123 = vpop.f32.mrb[0].mxu0
    %v6124 = vadd.f32 0.0, %v6123
    %v6125 = vpop.f32.mrb[0].mxu0
    %6126 = vmatprep.mubr.f32.mxu0 0.0
    %6127 = vmatmul.mubr.f32.gmra.mrb[0].mxu0 %v6023
    %v6128 = vpop.f32.mrb[0].mxu0
    %v6129 = vadd.f32 0.0, %v6128
    %v6130 = vpop.f32.mrb[0].mxu0
    %6131 = vdwg.mxu0
    %6132 = vrot.lane.b32.xlu0 %v5748, 112
    %v6133 = vpop.permute.xlu0 %6132
    %6134 = vrot.lane.b32.xlu0 %v5753, 112
    %v6135 = vpop.permute.xlu0 %6134
    %6136 = vrot.lane.b32.xlu0 %v5758, 112
    %v6137 = vpop.permute.xlu0 %6136
    %6138 = vrot.lane.b32.xlu0 %v5763, 112
    %v6139 = vpop.permute.xlu0 %6138
    %6140 = vrot.lane.b32.xlu0 %v5768, 112
    %v6141 = vpop.permute.xlu0 %6140
    %6142 = vrot.lane.b32.xlu0 %v5773, 112
    %v6143 = vpop.permute.xlu0 %6142
    %6144 = vrot.lane.b32.xlu0 %v5778, 112
    %v6145 = vpop.permute.xlu0 %6144
    %6146 = vrot.lane.b32.xlu0 %v5783, 112
    %v6147 = vpop.permute.xlu0 %6146
    %6148 = vrot.lane.b32.xlu0 %v5856, 112
    %v6149 = vpop.permute.xlu0 %6148
    %v6150 = vsel %vm385, %v6133, 0
    %v6152 = vsel %vm385, %v6135, 0
    %v6154 = vsel %vm385, %v6137, 0
    %v6156 = vsel %vm385, %v6139, 0
    %v6158 = vsel %vm385, %v6141, 0
    %v6160 = vsel %vm385, %v6143, 0
    %v6162 = vsel %vm385, %v6145, 0
    %v6164 = vsel %vm385, %v6147, 0
    %v6166 = vsel %vm385, %v6149, 0
    %6168 = vmatprep.subr.mxu0 0.0
    %6169 = vmatpush1.xpose.msra.mxu0 %v6166
    %6170 = vmatprep.subr.mxu0 0.0
    %6171 = vmatpush1.xpose.msra.mxu0 0.0
    %6172 = vmatprep.subr.mxu0 0.0
    %6173 = vmatpush1.xpose.msra.mxu0 0.0
    %6174 = vmatprep.subr.mxu0 0.0
    %6175 = vmatpush1.xpose.msra.mxu0 0.0
    %6176 = vmatprep.subr.mxu0 0.0
    %6177 = vmatpush1.xpose.msra.mxu0 0.0
    %6178 = vmatprep.subr.mxu0 0.0
    %6179 = vmatpush1.xpose.msra.mxu0 0.0
    %6180 = vmatprep.subr.mxu0 0.0
    %6181 = vmatpush1.xpose.msra.mxu0 0.0
    %6182 = vmatprep.subr.mxu0 0.0
    %6183 = vmatpush1.xpose.msra.mxu0 0.0
    %6184 = vmatprep.subr.mxu0 0.0
    %6185 = vmatpush1.xpose.msra.mxu0 0.0
    %6186 = vmatprep.subr.mxu0 0.0
    %6187 = vmatpush1.xpose.msra.mxu0 0.0
    %6188 = vmatprep.subr.mxu0 0.0
    %6189 = vmatpush1.xpose.msra.mxu0 0.0
    %6190 = vmatprep.subr.mxu0 0.0
    %6191 = vmatpush1.xpose.msra.mxu0 0.0
    %6192 = vmatprep.subr.mxu0 0.0
    %6193 = vmatpush1.xpose.msra.mxu0 0.0
    %6194 = vmatprep.subr.mxu0 0.0
    %6195 = vmatpush1.xpose.msra.mxu0 0.0
    %6196 = vmatprep.subr.mxu0 0.0
    %6197 = vmatpush1.xpose.msra.mxu0 0.0
    %6198 = vmatprep.subr.mxu0 0.0
    %6199 = vmatpush1.xpose.msra.mxu0 0.0
    %6200 = vmatprep.subr.mxu0 0.0
    %6201 = vmatpush1.xpose.msra.mxu0 0.0
    %6202 = vmatprep.subr.mxu0 0.0
    %6203 = vmatpush1.xpose.msra.mxu0 0.0
    %6204 = vmatprep.subr.mxu0 0.0
    %6205 = vmatpush1.xpose.msra.mxu0 0.0
    %6206 = vmatprep.subr.mxu0 0.0
    %6207 = vmatpush1.xpose.msra.mxu0 0.0
    %6208 = vmatprep.subr.mxu0 0.0
    %6209 = vmatpush1.xpose.msra.mxu0 0.0
    %6210 = vmatprep.subr.mxu0 0.0
    %6211 = vmatpush1.xpose.msra.mxu0 0.0
    %6212 = vmatprep.subr.mxu0 0.0
    %6213 = vmatpush1.xpose.msra.mxu0 0.0
    %6214 = vmatprep.subr.mxu0 0.0
    %6215 = vmatpush1.xpose.msra.mxu0 0.0
    %6216 = vmatprep.subr.mxu0 0.0
    %6217 = vmatpush1.xpose.msra.mxu0 0.0
    %6218 = vmatprep.subr.mxu0 0.0
    %6219 = vmatpush1.xpose.msra.mxu0 0.0
    %6220 = vmatprep.subr.mxu0 0.0
    %6221 = vmatpush1.xpose.msra.mxu0 0.0
    %6222 = vmatprep.subr.mxu0 0.0
    %6223 = vmatpush1.xpose.msra.mxu0 0.0
    %6224 = vmatprep.subr.mxu0 0.0
    %6225 = vmatpush1.xpose.msra.mxu0 0.0
    %6226 = vmatprep.subr.mxu0 0.0
    %6227 = vmatpush1.xpose.msra.mxu0 0.0
    %6228 = vmatprep.subr.mxu0 0.0
    %6229 = vmatpush1.xpose.msra.mxu0 0.0
    %6230 = vmatprep.subr.mxu0 0.0
    %6231 = vmatpush1.xpose.msra.mxu0 0.0
    %6232 = vmatprep.mubr.f32.mxu0 0.0
    %6233 = vmatmul.mubr.f32.gmra.mrb[0].mxu0 %v6150
    %v6234 = vpop.f32.mrb[0].mxu0
    %v6235 = vadd.f32 0.0, %v6234
    %v6236 = vpop.f32.mrb[0].mxu0
    %6237 = vmatprep.mubr.f32.mxu0 0.0
    %6238 = vmatmul.mubr.f32.gmra.mrb[0].mxu0 %v6152
    %v6239 = vpop.f32.mrb[0].mxu0
    %v6240 = vadd.f32 0.0, %v6239
    %v6241 = vpop.f32.mrb[0].mxu0
    %6242 = vmatprep.mubr.f32.mxu0 0.0
    %6243 = vmatmul.mubr.f32.gmra.mrb[0].mxu0 %v6154
    %v6244 = vpop.f32.mrb[0].mxu0
    %v6245 = vadd.f32 0.0, %v6244
    %v6246 = vpop.f32.mrb[0].mxu0
    %6247 = vmatprep.mubr.f32.mxu0 0.0
    %6248 = vmatmul.mubr.f32.gmra.mrb[0].mxu0 %v6156
    %v6249 = vpop.f32.mrb[0].mxu0
    %v6250 = vadd.f32 0.0, %v6249
    %v6251 = vpop.f32.mrb[0].mxu0
    %6252 = vmatprep.mubr.f32.mxu0 0.0
    %6253 = vmatmul.mubr.f32.gmra.mrb[0].mxu0 %v6158
    %v6254 = vpop.f32.mrb[0].mxu0
    %v6255 = vadd.f32 0.0, %v6254
    %v6256 = vpop.f32.mrb[0].mxu0
    %6257 = vmatprep.mubr.f32.mxu0 0.0
    %6258 = vmatmul.mubr.f32.gmra.mrb[0].mxu0 %v6160
    %v6259 = vpop.f32.mrb[0].mxu0
    %v6260 = vadd.f32 0.0, %v6259
    %v6261 = vpop.f32.mrb[0].mxu0
    %6262 = vmatprep.mubr.f32.mxu0 0.0
    %6263 = vmatmul.mubr.f32.gmra.mrb[0].mxu0 %v6162
    %v6264 = vpop.f32.mrb[0].mxu0
    %v6265 = vadd.f32 0.0, %v6264
    %v6266 = vpop.f32.mrb[0].mxu0
    %6267 = vmatprep.mubr.f32.mxu0 0.0
    %6268 = vmatmul.mubr.f32.gmra.mrb[0].mxu0 %v6164
    %v6269 = vpop.f32.mrb[0].mxu0
    %v6270 = vadd.f32 0.0, %v6269
    %v6271 = vpop.f32.mrb[0].mxu0
    %6272 = vdwg.mxu0
    %6273 = vrot.lane.b32.xlu0 %v5748, 104
    %v6274 = vpop.permute.xlu0 %6273
    %6275 = vrot.lane.b32.xlu0 %v5753, 104
    %v6276 = vpop.permute.xlu0 %6275
    %6277 = vrot.lane.b32.xlu0 %v5758, 104
    %v6278 = vpop.permute.xlu0 %6277
    %6279 = vrot.lane.b32.xlu0 %v5763, 104
    %v6280 = vpop.permute.xlu0 %6279
    %6281 = vrot.lane.b32.xlu0 %v5768, 104
    %v6282 = vpop.permute.xlu0 %6281
    %6283 = vrot.lane.b32.xlu0 %v5773, 104
    %v6284 = vpop.permute.xlu0 %6283
    %6285 = vrot.lane.b32.xlu0 %v5778, 104
    %v6286 = vpop.permute.xlu0 %6285
    %6287 = vrot.lane.b32.xlu0 %v5783, 104
    %v6288 = vpop.permute.xlu0 %6287
    %6289 = vrot.lane.b32.xlu0 %v5856, 104
    %v6290 = vpop.permute.xlu0 %6289
    %v6291 = vsel %vm385, %v6274, 0
    %v6293 = vsel %vm385, %v6276, 0
    %v6295 = vsel %vm385, %v6278, 0
    %v6297 = vsel %vm385, %v6280, 0
    %v6299 = vsel %vm385, %v6282, 0
    %v6301 = vsel %vm385, %v6284, 0
    %v6303 = vsel %vm385, %v6286, 0
    %v6305 = vsel %vm385, %v6288, 0
    %v6307 = vsel %vm385, %v6290, 0
    %6309 = vmatprep.subr.mxu0 0.0
    %6310 = vmatpush1.xpose.msra.mxu0 %v6307
    %6311 = vmatprep.subr.mxu0 0.0
    %6312 = vmatpush1.xpose.msra.mxu0 0.0
    %6313 = vmatprep.subr.mxu0 0.0
    %6314 = vmatpush1.xpose.msra.mxu0 0.0
    %6315 = vmatprep.subr.mxu0 0.0
    %6316 = vmatpush1.xpose.msra.mxu0 0.0
    %6317 = vmatprep.subr.mxu0 0.0
    %6318 = vmatpush1.xpose.msra.mxu0 0.0
    %6319 = vmatprep.subr.mxu0 0.0
    %6320 = vmatpush1.xpose.msra.mxu0 0.0
    %6321 = vmatprep.subr.mxu0 0.0
    %6322 = vmatpush1.xpose.msra.mxu0 0.0
    %6323 = vmatprep.subr.mxu0 0.0
    %6324 = vmatpush1.xpose.msra.mxu0 0.0
    %6325 = vmatprep.subr.mxu0 0.0
    %6326 = vmatpush1.xpose.msra.mxu0 0.0
    %6327 = vmatprep.subr.mxu0 0.0
    %6328 = vmatpush1.xpose.msra.mxu0 0.0
    %6329 = vmatprep.subr.mxu0 0.0
    %6330 = vmatpush1.xpose.msra.mxu0 0.0
    %6331 = vmatprep.subr.mxu0 0.0
    %6332 = vmatpush1.xpose.msra.mxu0 0.0
    %6333 = vmatprep.subr.mxu0 0.0
    %6334 = vmatpush1.xpose.msra.mxu0 0.0
    %6335 = vmatprep.subr.mxu0 0.0
    %6336 = vmatpush1.xpose.msra.mxu0 0.0
    %6337 = vmatprep.subr.mxu0 0.0
    %6338 = vmatpush1.xpose.msra.mxu0 0.0
    %6339 = vmatprep.subr.mxu0 0.0
    %6340 = vmatpush1.xpose.msra.mxu0 0.0
    %6341 = vmatprep.subr.mxu0 0.0
    %6342 = vmatpush1.xpose.msra.mxu0 0.0
    %6343 = vmatprep.subr.mxu0 0.0
    %6344 = vmatpush1.xpose.msra.mxu0 0.0
    %6345 = vmatprep.subr.mxu0 0.0
    %6346 = vmatpush1.xpose.msra.mxu0 0.0
    %6347 = vmatprep.subr.mxu0 0.0
    %6348 = vmatpush1.xpose.msra.mxu0 0.0
    %6349 = vmatprep.subr.mxu0 0.0
    %6350 = vmatpush1.xpose.msra.mxu0 0.0
    %6351 = vmatprep.subr.mxu0 0.0
    %6352 = vmatpush1.xpose.msra.mxu0 0.0
    %6353 = vmatprep.subr.mxu0 0.0
    %6354 = vmatpush1.xpose.msra.mxu0 0.0
    %6355 = vmatprep.subr.mxu0 0.0
    %6356 = vmatpush1.xpose.msra.mxu0 0.0
    %6357 = vmatprep.subr.mxu0 0.0
    %6358 = vmatpush1.xpose.msra.mxu0 0.0
    %6359 = vmatprep.subr.mxu0 0.0
    %6360 = vmatpush1.xpose.msra.mxu0 0.0
    %6361 = vmatprep.subr.mxu0 0.0
    %6362 = vmatpush1.xpose.msra.mxu0 0.0
    %6363 = vmatprep.subr.mxu0 0.0
    %6364 = vmatpush1.xpose.msra.mxu0 0.0
    %6365 = vmatprep.subr.mxu0 0.0
    %6366 = vmatpush1.xpose.msra.mxu0 0.0
    %6367 = vmatprep.subr.mxu0 0.0
    %6368 = vmatpush1.xpose.msra.mxu0 0.0
    %6369 = vmatprep.subr.mxu0 0.0
    %6370 = vmatpush1.xpose.msra.mxu0 0.0
    %6371 = vmatprep.subr.mxu0 0.0
    %6372 = vmatpush1.xpose.msra.mxu0 0.0
    %6373 = vmatprep.mubr.f32.mxu0 0.0
    %6374 = vmatmul.mubr.f32.gmra.mrb[0].mxu0 %v6291
    %v6375 = vpop.f32.mrb[0].mxu0
    %v6376 = vadd.f32 0.0, %v6375
    %v6377 = vpop.f32.mrb[0].mxu0
    %6378 = vmatprep.mubr.f32.mxu0 0.0
    %6379 = vmatmul.mubr.f32.gmra.mrb[0].mxu0 %v6293
    %v6380 = vpop.f32.mrb[0].mxu0
    %v6381 = vadd.f32 0.0, %v6380
    %v6382 = vpop.f32.mrb[0].mxu0
    %6383 = vmatprep.mubr.f32.mxu0 0.0
    %6384 = vmatmul.mubr.f32.gmra.mrb[0].mxu0 %v6295
    %v6385 = vpop.f32.mrb[0].mxu0
    %v6386 = vadd.f32 0.0, %v6385
    %v6387 = vpop.f32.mrb[0].mxu0
    %6388 = vmatprep.mubr.f32.mxu0 0.0
    %6389 = vmatmul.mubr.f32.gmra.mrb[0].mxu0 %v6297
    %v6390 = vpop.f32.mrb[0].mxu0
    %v6391 = vadd.f32 0.0, %v6390
    %v6392 = vpop.f32.mrb[0].mxu0
    %6393 = vmatprep.mubr.f32.mxu0 0.0
    %6394 = vmatmul.mubr.f32.gmra.mrb[0].mxu0 %v6299
    %v6395 = vpop.f32.mrb[0].mxu0
    %v6396 = vadd.f32 0.0, %v6395
    %v6397 = vpop.f32.mrb[0].mxu0
    %6398 = vmatprep.mubr.f32.mxu0 0.0
    %6399 = vmatmul.mubr.f32.gmra.mrb[0].mxu0 %v6301
    %v6400 = vpop.f32.mrb[0].mxu0
    %v6401 = vadd.f32 0.0, %v6400
    %v6402 = vpop.f32.mrb[0].mxu0
    %6403 = vmatprep.mubr.f32.mxu0 0.0
    %6404 = vmatmul.mubr.f32.gmra.mrb[0].mxu0 %v6303
    %v6405 = vpop.f32.mrb[0].mxu0
    %v6406 = vadd.f32 0.0, %v6405
    %v6407 = vpop.f32.mrb[0].mxu0
    %6408 = vmatprep.mubr.f32.mxu0 0.0
    %6409 = vmatmul.mubr.f32.gmra.mrb[0].mxu0 %v6305
    %v6410 = vpop.f32.mrb[0].mxu0
    %v6411 = vadd.f32 0.0, %v6410
    %v6412 = vpop.f32.mrb[0].mxu0
    %6413 = vdwg.mxu0
    %v6414 = vsel %vm385, %v5953, -inf
    %6415 = vmax.xlane.f32.xlu0 %v6414
    %v6416 = vpop.xlane.xlu0 %6415
    %v6417 = vsel %vm385, %v5958, -inf
    %6418 = vmax.xlane.f32.xlu0 %v6417
    %v6419 = vpop.xlane.xlu0 %6418
    %v6420 = vsel %vm385, %v5963, -inf
    %6421 = vmax.xlane.f32.xlu0 %v6420
    %v6422 = vpop.xlane.xlu0 %6421
    %v6423 = vsel %vm385, %v5968, -inf
    %6424 = vmax.xlane.f32.xlu0 %v6423
    %v6425 = vpop.xlane.xlu0 %6424
    %v6426 = vsel %vm385, %v5973, -inf
    %6427 = vmax.xlane.f32.xlu0 %v6426
    %v6428 = vpop.xlane.xlu0 %6427
    %v6429 = vsel %vm385, %v5978, -inf
    %6430 = vmax.xlane.f32.xlu0 %v6429
    %v6431 = vpop.xlane.xlu0 %6430
    %v6432 = vsel %vm385, %v5983, -inf
    %6433 = vmax.xlane.f32.xlu0 %v6432
    %v6434 = vpop.xlane.xlu0 %6433
    %v6435 = vsel %vm385, %v5988, -inf
    %6436 = vmax.xlane.f32.xlu0 %v6435
    %v6437 = vpop.xlane.xlu0 %6436
    %v6438 = vsel %vm385, %v6094, -inf
    %6439 = vmax.xlane.f32.xlu0 %v6438
    %v6440 = vpop.xlane.xlu0 %6439
    %v6441 = vsel %vm385, %v6099, -inf
    %6442 = vmax.xlane.f32.xlu0 %v6441
    %v6443 = vpop.xlane.xlu0 %6442
    %v6444 = vsel %vm385, %v6104, -inf
    %6445 = vmax.xlane.f32.xlu0 %v6444
    %v6446 = vpop.xlane.xlu0 %6445
    %v6447 = vsel %vm385, %v6109, -inf
    %6448 = vmax.xlane.f32.xlu0 %v6447
    %v6449 = vpop.xlane.xlu0 %6448
    %v6450 = vsel %vm385, %v6114, -inf
    %6451 = vmax.xlane.f32.xlu0 %v6450
    %v6452 = vpop.xlane.xlu0 %6451
    %v6453 = vsel %vm385, %v6119, -inf
    %6454 = vmax.xlane.f32.xlu0 %v6453
    %v6455 = vpop.xlane.xlu0 %6454
    %v6456 = vsel %vm385, %v6124, -inf
    %6457 = vmax.xlane.f32.xlu0 %v6456
    %v6458 = vpop.xlane.xlu0 %6457
    %v6459 = vsel %vm385, %v6129, -inf
    %6460 = vmax.xlane.f32.xlu0 %v6459
    %v6461 = vpop.xlane.xlu0 %6460
    %v6462 = vsel %vm385, %v6235, -inf
    %6463 = vmax.xlane.f32.xlu0 %v6462
    %v6464 = vpop.xlane.xlu0 %6463
    %v6465 = vsel %vm385, %v6240, -inf
    %6466 = vmax.xlane.f32.xlu0 %v6465
    %v6467 = vpop.xlane.xlu0 %6466
    %v6468 = vsel %vm385, %v6245, -inf
    %6469 = vmax.xlane.f32.xlu0 %v6468
    %v6470 = vpop.xlane.xlu0 %6469
    %v6471 = vsel %vm385, %v6250, -inf
    %6472 = vmax.xlane.f32.xlu0 %v6471
    %v6473 = vpop.xlane.xlu0 %6472
    %v6474 = vsel %vm385, %v6255, -inf
    %6475 = vmax.xlane.f32.xlu0 %v6474
    %v6476 = vpop.xlane.xlu0 %6475
    %v6477 = vsel %vm385, %v6260, -inf
    %6478 = vmax.xlane.f32.xlu0 %v6477
    %v6479 = vpop.xlane.xlu0 %6478
    %v6480 = vsel %vm385, %v6265, -inf
    %6481 = vmax.xlane.f32.xlu0 %v6480
    %v6482 = vpop.xlane.xlu0 %6481
    %v6483 = vsel %vm385, %v6270, -inf
    %6484 = vmax.xlane.f32.xlu0 %v6483
    %v6485 = vpop.xlane.xlu0 %6484
    %v6486 = vsel %vm385, %v6376, -inf
    %6487 = vmax.xlane.f32.xlu0 %v6486
    %v6488 = vpop.xlane.xlu0 %6487
    %v6489 = vsel %vm385, %v6381, -inf
    %6490 = vmax.xlane.f32.xlu0 %v6489
    %v6491 = vpop.xlane.xlu0 %6490
    %v6492 = vsel %vm385, %v6386, -inf
    %6493 = vmax.xlane.f32.xlu0 %v6492
    %v6494 = vpop.xlane.xlu0 %6493
    %v6495 = vsel %vm385, %v6391, -inf
    %6496 = vmax.xlane.f32.xlu0 %v6495
    %v6497 = vpop.xlane.xlu0 %6496
    %v6498 = vsel %vm385, %v6396, -inf
    %6499 = vmax.xlane.f32.xlu0 %v6498
    %v6500 = vpop.xlane.xlu0 %6499
    %v6501 = vsel %vm385, %v6401, -inf
    %6502 = vmax.xlane.f32.xlu0 %v6501
    %v6503 = vpop.xlane.xlu0 %6502
    %v6504 = vsel %vm385, %v6406, -inf
    %6505 = vmax.xlane.f32.xlu0 %v6504
    %v6506 = vpop.xlane.xlu0 %6505
    %v6507 = vsel %vm385, %v6411, -inf
    %6508 = vmax.xlane.f32.xlu0 %v6507
    %v6509 = vpop.xlane.xlu0 %6508
    %v6510 = vsub.f32 %v5953, %v6416
    %v6511 = vsub.f32 %v5958, %v6419
    %v6512 = vsub.f32 %v5963, %v6422
    %v6513 = vsub.f32 %v5968, %v6425
    %v6514 = vsub.f32 %v5973, %v6428
    %v6515 = vsub.f32 %v5978, %v6431
    %v6516 = vsub.f32 %v5983, %v6434
    %v6517 = vsub.f32 %v5988, %v6437
    %v6518 = vsub.f32 %v6094, %v6440
    %v6519 = vsub.f32 %v6099, %v6443
    %v6520 = vsub.f32 %v6104, %v6446
    %v6521 = vsub.f32 %v6109, %v6449
    %v6522 = vsub.f32 %v6114, %v6452
    %v6523 = vsub.f32 %v6119, %v6455
    %v6524 = vsub.f32 %v6124, %v6458
    %v6525 = vsub.f32 %v6129, %v6461
    %v6526 = vsub.f32 %v6235, %v6464
    %v6527 = vsub.f32 %v6240, %v6467
    %v6528 = vsub.f32 %v6245, %v6470
    %v6529 = vsub.f32 %v6250, %v6473
    %v6530 = vsub.f32 %v6255, %v6476
    %v6531 = vsub.f32 %v6260, %v6479
    %v6532 = vsub.f32 %v6265, %v6482
    %v6533 = vsub.f32 %v6270, %v6485
    %v6534 = vsub.f32 %v6376, %v6488
    %v6535 = vsub.f32 %v6381, %v6491
    %v6536 = vsub.f32 %v6386, %v6494
    %v6537 = vsub.f32 %v6391, %v6497
    %v6538 = vsub.f32 %v6396, %v6500
    %v6539 = vsub.f32 %v6401, %v6503
    %v6540 = vsub.f32 %v6406, %v6506
    %v6541 = vsub.f32 %v6411, %v6509
    %v6542 = vmul.f32 %v6510, 1.442695
    %v6543 = vpow.pop %v6542
    %v6544 = vmul.f32 %v6511, 1.442695
    %v6545 = vpow.pop %v6544
    %v6546 = vmul.f32 %v6512, 1.442695
    %v6547 = vpow.pop %v6546
    %v6548 = vmul.f32 %v6513, 1.442695
    %v6549 = vpow.pop %v6548
    %v6550 = vmul.f32 %v6514, 1.442695
    %v6551 = vpow.pop %v6550
    %v6552 = vmul.f32 %v6515, 1.442695
    %v6553 = vpow.pop %v6552
    %v6554 = vmul.f32 %v6516, 1.442695
    %v6555 = vpow.pop %v6554
    %v6556 = vmul.f32 %v6517, 1.442695
    %v6557 = vpow.pop %v6556
    %v6558 = vmul.f32 %v6518, 1.442695
    %v6559 = vpow.pop %v6558
    %v6560 = vmul.f32 %v6519, 1.442695
    %v6561 = vpow.pop %v6560
    %v6562 = vmul.f32 %v6520, 1.442695
    %v6563 = vpow.pop %v6562
    %v6564 = vmul.f32 %v6521, 1.442695
    %v6565 = vpow.pop %v6564
    %v6566 = vmul.f32 %v6522, 1.442695
    %v6567 = vpow.pop %v6566
    %v6568 = vmul.f32 %v6523, 1.442695
    %v6569 = vpow.pop %v6568
    %v6570 = vmul.f32 %v6524, 1.442695
    %v6571 = vpow.pop %v6570
    %v6572 = vmul.f32 %v6525, 1.442695
    %v6573 = vpow.pop %v6572
    %v6574 = vmul.f32 %v6526, 1.442695
    %v6575 = vpow.pop %v6574
    %v6576 = vmul.f32 %v6527, 1.442695
    %v6577 = vpow.pop %v6576
    %v6578 = vmul.f32 %v6528, 1.442695
    %v6579 = vpow.pop %v6578
    %v6580 = vmul.f32 %v6529, 1.442695
    %v6581 = vpow.pop %v6580
    %v6582 = vmul.f32 %v6530, 1.442695
    %v6583 = vpow.pop %v6582
    %v6584 = vmul.f32 %v6531, 1.442695
    %v6585 = vpow.pop %v6584
    %v6586 = vmul.f32 %v6532, 1.442695
    %v6587 = vpow.pop %v6586
    %v6588 = vmul.f32 %v6533, 1.442695
    %v6589 = vpow.pop %v6588
    %v6590 = vmul.f32 %v6534, 1.442695
    %v6591 = vpow.pop %v6590
    %v6592 = vmul.f32 %v6535, 1.442695
    %v6593 = vpow.pop %v6592
    %v6594 = vmul.f32 %v6536, 1.442695
    %v6595 = vpow.pop %v6594
    %v6596 = vmul.f32 %v6537, 1.442695
    %v6597 = vpow.pop %v6596
    %v6598 = vmul.f32 %v6538, 1.442695
    %v6599 = vpow.pop %v6598
    %v6600 = vmul.f32 %v6539, 1.442695
    %v6601 = vpow.pop %v6600
    %v6602 = vmul.f32 %v6540, 1.442695
    %v6603 = vpow.pop %v6602
    %v6604 = vmul.f32 %v6541, 1.442695
    %v6605 = vpow.pop %v6604
    %v6606 = vsel %vm385, %v6543, 0.0
    %6607 = vadd.xlane.f32.xlu0 %v6606
    %v6608 = vpop.xlane.xlu0 %6607
    %v6609 = vsel %vm385, %v6545, 0.0
    %6610 = vadd.xlane.f32.xlu0 %v6609
    %v6611 = vpop.xlane.xlu0 %6610
    %v6612 = vsel %vm385, %v6547, 0.0
    %6613 = vadd.xlane.f32.xlu0 %v6612
    %v6614 = vpop.xlane.xlu0 %6613
    %v6615 = vsel %vm385, %v6549, 0.0
    %6616 = vadd.xlane.f32.xlu0 %v6615
    %v6617 = vpop.xlane.xlu0 %6616
    %v6618 = vsel %vm385, %v6551, 0.0
    %6619 = vadd.xlane.f32.xlu0 %v6618
    %v6620 = vpop.xlane.xlu0 %6619
    %v6621 = vsel %vm385, %v6553, 0.0
    %6622 = vadd.xlane.f32.xlu0 %v6621
    %v6623 = vpop.xlane.xlu0 %6622
    %v6624 = vsel %vm385, %v6555, 0.0
    %6625 = vadd.xlane.f32.xlu0 %v6624
    %v6626 = vpop.xlane.xlu0 %6625
    %v6627 = vsel %vm385, %v6557, 0.0
    %6628 = vadd.xlane.f32.xlu0 %v6627
    %v6629 = vpop.xlane.xlu0 %6628
    %v6630 = vsel %vm385, %v6559, 0.0
    %6631 = vadd.xlane.f32.xlu0 %v6630
    %v6632 = vpop.xlane.xlu0 %6631
    %v6633 = vsel %vm385, %v6561, 0.0
    %6634 = vadd.xlane.f32.xlu0 %v6633
    %v6635 = vpop.xlane.xlu0 %6634
    %v6636 = vsel %vm385, %v6563, 0.0
    %6637 = vadd.xlane.f32.xlu0 %v6636
    %v6638 = vpop.xlane.xlu0 %6637
    %v6639 = vsel %vm385, %v6565, 0.0
    %6640 = vadd.xlane.f32.xlu0 %v6639
    %v6641 = vpop.xlane.xlu0 %6640
    %v6642 = vsel %vm385, %v6567, 0.0
    %6643 = vadd.xlane.f32.xlu0 %v6642
    %v6644 = vpop.xlane.xlu0 %6643
    %v6645 = vsel %vm385, %v6569, 0.0
    %6646 = vadd.xlane.f32.xlu0 %v6645
    %v6647 = vpop.xlane.xlu0 %6646
    %v6648 = vsel %vm385, %v6571, 0.0
    %6649 = vadd.xlane.f32.xlu0 %v6648
    %v6650 = vpop.xlane.xlu0 %6649
    %v6651 = vsel %vm385, %v6573, 0.0
    %6652 = vadd.xlane.f32.xlu0 %v6651
    %v6653 = vpop.xlane.xlu0 %6652
    %v6654 = vsel %vm385, %v6575, 0.0
    %6655 = vadd.xlane.f32.xlu0 %v6654
    %v6656 = vpop.xlane.xlu0 %6655
    %v6657 = vsel %vm385, %v6577, 0.0
    %6658 = vadd.xlane.f32.xlu0 %v6657
    %v6659 = vpop.xlane.xlu0 %6658
    %v6660 = vsel %vm385, %v6579, 0.0
    %6661 = vadd.xlane.f32.xlu0 %v6660
    %v6662 = vpop.xlane.xlu0 %6661
    %v6663 = vsel %vm385, %v6581, 0.0
    %6664 = vadd.xlane.f32.xlu0 %v6663
    %v6665 = vpop.xlane.xlu0 %6664
    %v6666 = vsel %vm385, %v6583, 0.0
    %6667 = vadd.xlane.f32.xlu0 %v6666
    %v6668 = vpop.xlane.xlu0 %6667
    %v6669 = vsel %vm385, %v6585, 0.0
    %6670 = vadd.xlane.f32.xlu0 %v6669
    %v6671 = vpop.xlane.xlu0 %6670
    %v6672 = vsel %vm385, %v6587, 0.0
    %6673 = vadd.xlane.f32.xlu0 %v6672
    %v6674 = vpop.xlane.xlu0 %6673
    %v6675 = vsel %vm385, %v6589, 0.0
    %6676 = vadd.xlane.f32.xlu0 %v6675
    %v6677 = vpop.xlane.xlu0 %6676
    %v6678 = vsel %vm385, %v6591, 0.0
    %6679 = vadd.xlane.f32.xlu0 %v6678
    %v6680 = vpop.xlane.xlu0 %6679
    %v6681 = vsel %vm385, %v6593, 0.0
    %6682 = vadd.xlane.f32.xlu0 %v6681
    %v6683 = vpop.xlane.xlu0 %6682
    %v6684 = vsel %vm385, %v6595, 0.0
    %6685 = vadd.xlane.f32.xlu0 %v6684
    %v6686 = vpop.xlane.xlu0 %6685
    %v6687 = vsel %vm385, %v6597, 0.0
    %6688 = vadd.xlane.f32.xlu0 %v6687
    %v6689 = vpop.xlane.xlu0 %6688
    %v6690 = vsel %vm385, %v6599, 0.0
    %6691 = vadd.xlane.f32.xlu0 %v6690
    %v6692 = vpop.xlane.xlu0 %6691
    %v6693 = vsel %vm385, %v6601, 0.0
    %6694 = vadd.xlane.f32.xlu0 %v6693
    %v6695 = vpop.xlane.xlu0 %6694
    %v6696 = vsel %vm385, %v6603, 0.0
    %6697 = vadd.xlane.f32.xlu0 %v6696
    %v6698 = vpop.xlane.xlu0 %6697
    %v6699 = vsel %vm385, %v6605, 0.0
    %6700 = vadd.xlane.f32.xlu0 %v6699
    %v6701 = vpop.xlane.xlu0 %6700
    %v6702 = vrcp.pop %v6608
    %v6703 = vrcp.pop %v6611
    %v6704 = vrcp.pop %v6614
    %v6705 = vrcp.pop %v6617
    %v6706 = vrcp.pop %v6620
    %v6707 = vrcp.pop %v6623
    %v6708 = vrcp.pop %v6626
    %v6709 = vrcp.pop %v6629
    %v6710 = vrcp.pop %v6632
    %v6711 = vrcp.pop %v6635
    %v6712 = vrcp.pop %v6638
    %v6713 = vrcp.pop %v6641
    %v6714 = vrcp.pop %v6644
    %v6715 = vrcp.pop %v6647
    %v6716 = vrcp.pop %v6650
    %v6717 = vrcp.pop %v6653
    %v6718 = vrcp.pop %v6656
    %v6719 = vrcp.pop %v6659
    %v6720 = vrcp.pop %v6662
    %v6721 = vrcp.pop %v6665
    %v6722 = vrcp.pop %v6668
    %v6723 = vrcp.pop %v6671
    %v6724 = vrcp.pop %v6674
    %v6725 = vrcp.pop %v6677
    %v6726 = vrcp.pop %v6680
    %v6727 = vrcp.pop %v6683
    %v6728 = vrcp.pop %v6686
    %v6729 = vrcp.pop %v6689
    %v6730 = vrcp.pop %v6692
    %v6731 = vrcp.pop %v6695
    %v6732 = vrcp.pop %v6698
    %v6733 = vrcp.pop %v6701
    %v6734 = vmul.f32 %v6543, %v6702
    %v6735 = vmul.f32 %v6545, %v6703
    %v6736 = vmul.f32 %v6547, %v6704
    %v6737 = vmul.f32 %v6549, %v6705
    %v6738 = vmul.f32 %v6551, %v6706
    %v6739 = vmul.f32 %v6553, %v6707
    %v6740 = vmul.f32 %v6555, %v6708
    %v6741 = vmul.f32 %v6557, %v6709
    %v6742 = vmul.f32 %v6559, %v6710
    %v6743 = vmul.f32 %v6561, %v6711
    %v6744 = vmul.f32 %v6563, %v6712
    %v6745 = vmul.f32 %v6565, %v6713
    %v6746 = vmul.f32 %v6567, %v6714
    %v6747 = vmul.f32 %v6569, %v6715
    %v6748 = vmul.f32 %v6571, %v6716
    %v6749 = vmul.f32 %v6573, %v6717
    %v6750 = vmul.f32 %v6575, %v6718
    %v6751 = vmul.f32 %v6577, %v6719
    %v6752 = vmul.f32 %v6579, %v6720
    %v6753 = vmul.f32 %v6581, %v6721
    %v6754 = vmul.f32 %v6583, %v6722
    %v6755 = vmul.f32 %v6585, %v6723
    %v6756 = vmul.f32 %v6587, %v6724
    %v6757 = vmul.f32 %v6589, %v6725
    %v6758 = vmul.f32 %v6591, %v6726
    %v6759 = vmul.f32 %v6593, %v6727
    %v6760 = vmul.f32 %v6595, %v6728
    %v6761 = vmul.f32 %v6597, %v6729
    %v6762 = vmul.f32 %v6599, %v6730
    %v6763 = vmul.f32 %v6601, %v6731
    %v6764 = vmul.f32 %v6603, %v6732
    %v6765 = vmul.f32 %v6605, %v6733
    %6766 = vrot.lane.b32.xlu0 %v5856, 96
    %v6767 = vpop.permute.xlu0 %6766
    %v6770 = vsel %vm385, %v6734, 0
    %v6773 = vsel %vm385, %v6735, 0
    %v6776 = vsel %vm385, %v6736, 0
    %v6779 = vsel %vm385, %v6737, 0
    %v6782 = vsel %vm385, %v6738, 0
    %v6785 = vsel %vm385, %v6739, 0
    %v6788 = vsel %vm385, %v6740, 0
    %v6791 = vsel %vm385, %v6741, 0
    %6793 = vmatprep.subr.mxu0 0.0
    %6794 = vmatpush1.msra.mxu0 %v6767
    %6795 = vmatprep.subr.mxu0 0.0
    %6796 = vmatpush1.msra.mxu0 0.0
    %6797 = vmatprep.subr.mxu0 0.0
    %6798 = vmatpush1.msra.mxu0 0.0
    %6799 = vmatprep.subr.mxu0 0.0
    %6800 = vmatpush1.msra.mxu0 0.0
    %6801 = vmatprep.subr.mxu0 0.0
    %6802 = vmatpush1.msra.mxu0 0.0
    %6803 = vmatprep.subr.mxu0 0.0
    %6804 = vmatpush1.msra.mxu0 0.0
    %6805 = vmatprep.subr.mxu0 0.0
    %6806 = vmatpush1.msra.mxu0 0.0
    %6807 = vmatprep.subr.mxu0 0.0
    %6808 = vmatpush1.msra.mxu0 0.0
    %6809 = vmatprep.subr.mxu0 0.0
    %6810 = vmatpush1.msra.mxu0 0.0
    %6811 = vmatprep.subr.mxu0 0.0
    %6812 = vmatpush1.msra.mxu0 0.0
    %6813 = vmatprep.subr.mxu0 0.0
    %6814 = vmatpush1.msra.mxu0 0.0
    %6815 = vmatprep.subr.mxu0 0.0
    %6816 = vmatpush1.msra.mxu0 0.0
    %6817 = vmatprep.subr.mxu0 0.0
    %6818 = vmatpush1.msra.mxu0 0.0
    %6819 = vmatprep.subr.mxu0 0.0
    %6820 = vmatpush1.msra.mxu0 0.0
    %6821 = vmatprep.subr.mxu0 0.0
    %6822 = vmatpush1.msra.mxu0 0.0
    %6823 = vmatprep.subr.mxu0 0.0
    %6824 = vmatpush1.msra.mxu0 0.0
    %6825 = vmatprep.subr.mxu0 0.0
    %6826 = vmatpush1.msra.mxu0 0.0
    %6827 = vmatprep.subr.mxu0 0.0
    %6828 = vmatpush1.msra.mxu0 0.0
    %6829 = vmatprep.subr.mxu0 0.0
    %6830 = vmatpush1.msra.mxu0 0.0
    %6831 = vmatprep.subr.mxu0 0.0
    %6832 = vmatpush1.msra.mxu0 0.0
    %6833 = vmatprep.subr.mxu0 0.0
    %6834 = vmatpush1.msra.mxu0 0.0
    %6835 = vmatprep.subr.mxu0 0.0
    %6836 = vmatpush1.msra.mxu0 0.0
    %6837 = vmatprep.subr.mxu0 0.0
    %6838 = vmatpush1.msra.mxu0 0.0
    %6839 = vmatprep.subr.mxu0 0.0
    %6840 = vmatpush1.msra.mxu0 0.0
    %6841 = vmatprep.subr.mxu0 0.0
    %6842 = vmatpush1.msra.mxu0 0.0
    %6843 = vmatprep.subr.mxu0 0.0
    %6844 = vmatpush1.msra.mxu0 0.0
    %6845 = vmatprep.subr.mxu0 0.0
    %6846 = vmatpush1.msra.mxu0 0.0
    %6847 = vmatprep.subr.mxu0 0.0
    %6848 = vmatpush1.msra.mxu0 0.0
    %6849 = vmatprep.subr.mxu0 0.0
    %6850 = vmatpush1.msra.mxu0 0.0
    %6851 = vmatprep.subr.mxu0 0.0
    %6852 = vmatpush1.msra.mxu0 0.0
    %6853 = vmatprep.subr.mxu0 0.0
    %6854 = vmatpush1.msra.mxu0 0.0
    %6855 = vmatprep.subr.mxu0 0.0
    %6856 = vmatpush1.msra.mxu0 0.0
    %6857 = vmatprep.mubr.f32.mxu0 0.0
    %6858 = vmatmul.mubr.f32.gmra.mrb[0].mxu0 %v6770
    %v6859 = vpop.f32.mrb[0].mxu0
    %v6860 = vadd.f32 0.0, %v6859
    %v6861 = vpop.f32.mrb[0].mxu0
    %6862 = vmatprep.mubr.f32.mxu0 0.0
    %6863 = vmatmul.mubr.f32.gmra.mrb[0].mxu0 %v6773
    %v6864 = vpop.f32.mrb[0].mxu0
    %v6865 = vadd.f32 0.0, %v6864
    %v6866 = vpop.f32.mrb[0].mxu0
    %6867 = vmatprep.mubr.f32.mxu0 0.0
    %6868 = vmatmul.mubr.f32.gmra.mrb[0].mxu0 %v6776
    %v6869 = vpop.f32.mrb[0].mxu0
    %v6870 = vadd.f32 0.0, %v6869
    %v6871 = vpop.f32.mrb[0].mxu0
    %6872 = vmatprep.mubr.f32.mxu0 0.0
    %6873 = vmatmul.mubr.f32.gmra.mrb[0].mxu0 %v6779
    %v6874 = vpop.f32.mrb[0].mxu0
    %v6875 = vadd.f32 0.0, %v6874
    %v6876 = vpop.f32.mrb[0].mxu0
    %6877 = vmatprep.mubr.f32.mxu0 0.0
    %6878 = vmatmul.mubr.f32.gmra.mrb[0].mxu0 %v6782
    %v6879 = vpop.f32.mrb[0].mxu0
    %v6880 = vadd.f32 0.0, %v6879
    %v6881 = vpop.f32.mrb[0].mxu0
    %6882 = vmatprep.mubr.f32.mxu0 0.0
    %6883 = vmatmul.mubr.f32.gmra.mrb[0].mxu0 %v6785
    %v6884 = vpop.f32.mrb[0].mxu0
    %v6885 = vadd.f32 0.0, %v6884
    %v6886 = vpop.f32.mrb[0].mxu0
    %6887 = vmatprep.mubr.f32.mxu0 0.0
    %6888 = vmatmul.mubr.f32.gmra.mrb[0].mxu0 %v6788
    %v6889 = vpop.f32.mrb[0].mxu0
    %v6890 = vadd.f32 0.0, %v6889
    %v6891 = vpop.f32.mrb[0].mxu0
    %6892 = vmatprep.mubr.f32.mxu0 0.0
    %6893 = vmatmul.mubr.f32.gmra.mrb[0].mxu0 %v6791
    %v6894 = vpop.f32.mrb[0].mxu0
    %v6895 = vadd.f32 0.0, %v6894
    %v6896 = vpop.f32.mrb[0].mxu0
    %6897 = vdwg.mxu0
    %v6899 = vsel %vm385, %v6860, 0
    %v6902 = vsel %vm385, %v6865, 0
    %v6905 = vsel %vm385, %v6870, 0
    %v6908 = vsel %vm385, %v6875, 0
    %v6911 = vsel %vm385, %v6880, 0
    %v6914 = vsel %vm385, %v6885, 0
    %v6917 = vsel %vm385, %v6890, 0
    %v6920 = vsel %vm385, %v6895, 0
    %6922 = vmatprep.subr.mxu0 0.0
    %6923 = vmatpush1.msra.mxu0 %v4332
    %6924 = vmatprep.subr.mxu0 0.0
    %6925 = vmatpush1.msra.mxu0 0.0
    %6926 = vmatprep.subr.mxu0 0.0
    %6927 = vmatpush1.msra.mxu0 0.0
    %6928 = vmatprep.subr.mxu0 0.0
    %6929 = vmatpush1.msra.mxu0 0.0
    %6930 = vmatprep.subr.mxu0 0.0
    %6931 = vmatpush1.msra.mxu0 0.0
    %6932 = vmatprep.subr.mxu0 0.0
    %6933 = vmatpush1.msra.mxu0 0.0
    %6934 = vmatprep.subr.mxu0 0.0
    %6935 = vmatpush1.msra.mxu0 0.0
    %6936 = vmatprep.subr.mxu0 0.0
    %6937 = vmatpush1.msra.mxu0 0.0
    %6938 = vmatprep.subr.mxu0 0.0
    %6939 = vmatpush1.msra.mxu0 0.0
    %6940 = vmatprep.subr.mxu0 0.0
    %6941 = vmatpush1.msra.mxu0 0.0
    %6942 = vmatprep.subr.mxu0 0.0
    %6943 = vmatpush1.msra.mxu0 0.0
    %6944 = vmatprep.subr.mxu0 0.0
    %6945 = vmatpush1.msra.mxu0 0.0
    %6946 = vmatprep.subr.mxu0 0.0
    %6947 = vmatpush1.msra.mxu0 0.0
    %6948 = vmatprep.subr.mxu0 0.0
    %6949 = vmatpush1.msra.mxu0 0.0
    %6950 = vmatprep.subr.mxu0 0.0
    %6951 = vmatpush1.msra.mxu0 0.0
    %6952 = vmatprep.subr.mxu0 0.0
    %6953 = vmatpush1.msra.mxu0 0.0
    %6954 = vmatprep.subr.mxu0 0.0
    %6955 = vmatpush1.msra.mxu0 0.0
    %6956 = vmatprep.subr.mxu0 0.0
    %6957 = vmatpush1.msra.mxu0 0.0
    %6958 = vmatprep.subr.mxu0 0.0
    %6959 = vmatpush1.msra.mxu0 0.0
    %6960 = vmatprep.subr.mxu0 0.0
    %6961 = vmatpush1.msra.mxu0 0.0
    %6962 = vmatprep.subr.mxu0 0.0
    %6963 = vmatpush1.msra.mxu0 0.0
    %6964 = vmatprep.subr.mxu0 0.0
    %6965 = vmatpush1.msra.mxu0 0.0
    %6966 = vmatprep.subr.mxu0 0.0
    %6967 = vmatpush1.msra.mxu0 0.0
    %6968 = vmatprep.subr.mxu0 0.0
    %6969 = vmatpush1.msra.mxu0 0.0
    %6970 = vmatprep.subr.mxu0 0.0
    %6971 = vmatpush1.msra.mxu0 0.0
    %6972 = vmatprep.subr.mxu0 0.0
    %6973 = vmatpush1.msra.mxu0 0.0
    %6974 = vmatprep.subr.mxu0 0.0
    %6975 = vmatpush1.msra.mxu0 0.0
    %6976 = vmatprep.subr.mxu0 0.0
    %6977 = vmatpush1.msra.mxu0 0.0
    %6978 = vmatprep.subr.mxu0 0.0
    %6979 = vmatpush1.msra.mxu0 0.0
    %6980 = vmatprep.subr.mxu0 0.0
    %6981 = vmatpush1.msra.mxu0 0.0
    %6982 = vmatprep.subr.mxu0 0.0
    %6983 = vmatpush1.msra.mxu0 0.0
    %6984 = vmatprep.subr.mxu0 0.0
    %6985 = vmatpush1.msra.mxu0 0.0
    %6986 = vmatprep.mubr.f32.mxu0 0.0
    %6987 = vmatmul.mubr.f32.gmra.mrb[0].mxu0 %v6899
    %v6988 = vpop.f32.mrb[0].mxu0
    %v6989 = vadd.f32 0.0, %v6988
    %v6990 = vpop.f32.mrb[0].mxu0
    %6991 = vmatprep.mubr.f32.mxu0 0.0
    %6992 = vmatmul.mubr.f32.gmra.mrb[0].mxu0 %v6902
    %v6993 = vpop.f32.mrb[0].mxu0
    %v6994 = vadd.f32 0.0, %v6993
    %v6995 = vpop.f32.mrb[0].mxu0
    %6996 = vmatprep.mubr.f32.mxu0 0.0
    %6997 = vmatmul.mubr.f32.gmra.mrb[0].mxu0 %v6905
    %v6998 = vpop.f32.mrb[0].mxu0
    %v6999 = vadd.f32 0.0, %v6998
    %v7000 = vpop.f32.mrb[0].mxu0
    %7001 = vmatprep.mubr.f32.mxu0 0.0
    %7002 = vmatmul.mubr.f32.gmra.mrb[0].mxu0 %v6908
    %v7003 = vpop.f32.mrb[0].mxu0
    %v7004 = vadd.f32 0.0, %v7003
    %v7005 = vpop.f32.mrb[0].mxu0
    %7006 = vmatprep.mubr.f32.mxu0 0.0
    %7007 = vmatmul.mubr.f32.gmra.mrb[0].mxu0 %v6911
    %v7008 = vpop.f32.mrb[0].mxu0
    %v7009 = vadd.f32 0.0, %v7008
    %v7010 = vpop.f32.mrb[0].mxu0
    %7011 = vmatprep.mubr.f32.mxu0 0.0
    %7012 = vmatmul.mubr.f32.gmra.mrb[0].mxu0 %v6914
    %v7013 = vpop.f32.mrb[0].mxu0
    %v7014 = vadd.f32 0.0, %v7013
    %v7015 = vpop.f32.mrb[0].mxu0
    %7016 = vmatprep.mubr.f32.mxu0 0.0
    %7017 = vmatmul.mubr.f32.gmra.mrb[0].mxu0 %v6917
    %v7018 = vpop.f32.mrb[0].mxu0
    %v7019 = vadd.f32 0.0, %v7018
    %v7020 = vpop.f32.mrb[0].mxu0
    %7021 = vmatprep.mubr.f32.mxu0 0.0
    %7022 = vmatmul.mubr.f32.gmra.mrb[0].mxu0 %v6920
    %v7023 = vpop.f32.mrb[0].mxu0
    %v7024 = vadd.f32 0.0, %v7023
    %v7025 = vpop.f32.mrb[0].mxu0
    %7026 = vdwg.mxu0
    %v7027 = vadd.f32 %v4313, %v6989
    %v7028 = vadd.f32 %v4314, %v6994
    %v7029 = vadd.f32 %v4315, %v6999
    %v7030 = vadd.f32 %v4316, %v7004
    %v7031 = vadd.f32 %v4317, %v7009
    %v7032 = vadd.f32 %v4318, %v7014
    %v7033 = vadd.f32 %v4319, %v7019
    %v7034 = vadd.f32 %v4320, %v7024
    %7035 = vrot.lane.b32.xlu0 %v5856, 88
    %v7036 = vpop.permute.xlu0 %7035
    %v7039 = vsel %vm385, %v6742, 0
    %v7042 = vsel %vm385, %v6743, 0
    %v7045 = vsel %vm385, %v6744, 0
    %v7048 = vsel %vm385, %v6745, 0
    %v7051 = vsel %vm385, %v6746, 0
    %v7054 = vsel %vm385, %v6747, 0
    %v7057 = vsel %vm385, %v6748, 0
    %v7060 = vsel %vm385, %v6749, 0
    %7062 = vmatprep.subr.mxu0 0.0
    %7063 = vmatpush1.msra.mxu0 %v7036
    %7064 = vmatprep.subr.mxu0 0.0
    %7065 = vmatpush1.msra.mxu0 0.0
    %7066 = vmatprep.subr.mxu0 0.0
    %7067 = vmatpush1.msra.mxu0 0.0
    %7068 = vmatprep.subr.mxu0 0.0
    %7069 = vmatpush1.msra.mxu0 0.0
    %7070 = vmatprep.subr.mxu0 0.0
    %7071 = vmatpush1.msra.mxu0 0.0
    %7072 = vmatprep.subr.mxu0 0.0
    %7073 = vmatpush1.msra.mxu0 0.0
    %7074 = vmatprep.subr.mxu0 0.0
    %7075 = vmatpush1.msra.mxu0 0.0
    %7076 = vmatprep.subr.mxu0 0.0
    %7077 = vmatpush1.msra.mxu0 0.0
    %7078 = vmatprep.subr.mxu0 0.0
    %7079 = vmatpush1.msra.mxu0 0.0
    %7080 = vmatprep.subr.mxu0 0.0
    %7081 = vmatpush1.msra.mxu0 0.0
    %7082 = vmatprep.subr.mxu0 0.0
    %7083 = vmatpush1.msra.mxu0 0.0
    %7084 = vmatprep.subr.mxu0 0.0
    %7085 = vmatpush1.msra.mxu0 0.0
    %7086 = vmatprep.subr.mxu0 0.0
    %7087 = vmatpush1.msra.mxu0 0.0
    %7088 = vmatprep.subr.mxu0 0.0
    %7089 = vmatpush1.msra.mxu0 0.0
    %7090 = vmatprep.subr.mxu0 0.0
    %7091 = vmatpush1.msra.mxu0 0.0
    %7092 = vmatprep.subr.mxu0 0.0
    %7093 = vmatpush1.msra.mxu0 0.0
    %7094 = vmatprep.subr.mxu0 0.0
    %7095 = vmatpush1.msra.mxu0 0.0
    %7096 = vmatprep.subr.mxu0 0.0
    %7097 = vmatpush1.msra.mxu0 0.0
    %7098 = vmatprep.subr.mxu0 0.0
    %7099 = vmatpush1.msra.mxu0 0.0
    %7100 = vmatprep.subr.mxu0 0.0
    %7101 = vmatpush1.msra.mxu0 0.0
    %7102 = vmatprep.subr.mxu0 0.0
    %7103 = vmatpush1.msra.mxu0 0.0
    %7104 = vmatprep.subr.mxu0 0.0
    %7105 = vmatpush1.msra.mxu0 0.0
    %7106 = vmatprep.subr.mxu0 0.0
    %7107 = vmatpush1.msra.mxu0 0.0
    %7108 = vmatprep.subr.mxu0 0.0
    %7109 = vmatpush1.msra.mxu0 0.0
    %7110 = vmatprep.subr.mxu0 0.0
    %7111 = vmatpush1.msra.mxu0 0.0
    %7112 = vmatprep.subr.mxu0 0.0
    %7113 = vmatpush1.msra.mxu0 0.0
    %7114 = vmatprep.subr.mxu0 0.0
    %7115 = vmatpush1.msra.mxu0 0.0
    %7116 = vmatprep.subr.mxu0 0.0
    %7117 = vmatpush1.msra.mxu0 0.0
    %7118 = vmatprep.subr.mxu0 0.0
    %7119 = vmatpush1.msra.mxu0 0.0
    %7120 = vmatprep.subr.mxu0 0.0
    %7121 = vmatpush1.msra.mxu0 0.0
    %7122 = vmatprep.subr.mxu0 0.0
    %7123 = vmatpush1.msra.mxu0 0.0
    %7124 = vmatprep.subr.mxu0 0.0
    %7125 = vmatpush1.msra.mxu0 0.0
    %7126 = vmatprep.mubr.f32.mxu0 0.0
    %7127 = vmatmul.mubr.f32.gmra.mrb[0].mxu0 %v7039
    %v7128 = vpop.f32.mrb[0].mxu0
    %v7129 = vadd.f32 0.0, %v7128
    %v7130 = vpop.f32.mrb[0].mxu0
    %7131 = vmatprep.mubr.f32.mxu0 0.0
    %7132 = vmatmul.mubr.f32.gmra.mrb[0].mxu0 %v7042
    %v7133 = vpop.f32.mrb[0].mxu0
    %v7134 = vadd.f32 0.0, %v7133
    %v7135 = vpop.f32.mrb[0].mxu0
    %7136 = vmatprep.mubr.f32.mxu0 0.0
    %7137 = vmatmul.mubr.f32.gmra.mrb[0].mxu0 %v7045
    %v7138 = vpop.f32.mrb[0].mxu0
    %v7139 = vadd.f32 0.0, %v7138
    %v7140 = vpop.f32.mrb[0].mxu0
    %7141 = vmatprep.mubr.f32.mxu0 0.0
    %7142 = vmatmul.mubr.f32.gmra.mrb[0].mxu0 %v7048
    %v7143 = vpop.f32.mrb[0].mxu0
    %v7144 = vadd.f32 0.0, %v7143
    %v7145 = vpop.f32.mrb[0].mxu0
    %7146 = vmatprep.mubr.f32.mxu0 0.0
    %7147 = vmatmul.mubr.f32.gmra.mrb[0].mxu0 %v7051
    %v7148 = vpop.f32.mrb[0].mxu0
    %v7149 = vadd.f32 0.0, %v7148
    %v7150 = vpop.f32.mrb[0].mxu0
    %7151 = vmatprep.mubr.f32.mxu0 0.0
    %7152 = vmatmul.mubr.f32.gmra.mrb[0].mxu0 %v7054
    %v7153 = vpop.f32.mrb[0].mxu0
    %v7154 = vadd.f32 0.0, %v7153
    %v7155 = vpop.f32.mrb[0].mxu0
    %7156 = vmatprep.mubr.f32.mxu0 0.0
    %7157 = vmatmul.mubr.f32.gmra.mrb[0].mxu0 %v7057
    %v7158 = vpop.f32.mrb[0].mxu0
    %v7159 = vadd.f32 0.0, %v7158
    %v7160 = vpop.f32.mrb[0].mxu0
    %7161 = vmatprep.mubr.f32.mxu0 0.0
    %7162 = vmatmul.mubr.f32.gmra.mrb[0].mxu0 %v7060
    %v7163 = vpop.f32.mrb[0].mxu0
    %v7164 = vadd.f32 0.0, %v7163
    %v7165 = vpop.f32.mrb[0].mxu0
    %7166 = vdwg.mxu0
    %v7168 = vsel %vm385, %v7129, 0
    %v7171 = vsel %vm385, %v7134, 0
    %v7174 = vsel %vm385, %v7139, 0
    %v7177 = vsel %vm385, %v7144, 0
    %v7180 = vsel %vm385, %v7149, 0
    %v7183 = vsel %vm385, %v7154, 0
    %v7186 = vsel %vm385, %v7159, 0
    %v7189 = vsel %vm385, %v7164, 0
    %7191 = vmatprep.subr.mxu0 0.0
    %7192 = vmatpush1.msra.mxu0 %v4333
    %7193 = vmatprep.subr.mxu0 0.0
    %7194 = vmatpush1.msra.mxu0 0.0
    %7195 = vmatprep.subr.mxu0 0.0
    %7196 = vmatpush1.msra.mxu0 0.0
    %7197 = vmatprep.subr.mxu0 0.0
    %7198 = vmatpush1.msra.mxu0 0.0
    %7199 = vmatprep.subr.mxu0 0.0
    %7200 = vmatpush1.msra.mxu0 0.0
    %7201 = vmatprep.subr.mxu0 0.0
    %7202 = vmatpush1.msra.mxu0 0.0
    %7203 = vmatprep.subr.mxu0 0.0
    %7204 = vmatpush1.msra.mxu0 0.0
    %7205 = vmatprep.subr.mxu0 0.0
    %7206 = vmatpush1.msra.mxu0 0.0
    %7207 = vmatprep.subr.mxu0 0.0
    %7208 = vmatpush1.msra.mxu0 0.0
    %7209 = vmatprep.subr.mxu0 0.0
    %7210 = vmatpush1.msra.mxu0 0.0
    %7211 = vmatprep.subr.mxu0 0.0
    %7212 = vmatpush1.msra.mxu0 0.0
    %7213 = vmatprep.subr.mxu0 0.0
    %7214 = vmatpush1.msra.mxu0 0.0
    %7215 = vmatprep.subr.mxu0 0.0
    %7216 = vmatpush1.msra.mxu0 0.0
    %7217 = vmatprep.subr.mxu0 0.0
    %7218 = vmatpush1.msra.mxu0 0.0
    %7219 = vmatprep.subr.mxu0 0.0
    %7220 = vmatpush1.msra.mxu0 0.0
    %7221 = vmatprep.subr.mxu0 0.0
    %7222 = vmatpush1.msra.mxu0 0.0
    %7223 = vmatprep.subr.mxu0 0.0
    %7224 = vmatpush1.msra.mxu0 0.0
    %7225 = vmatprep.subr.mxu0 0.0
    %7226 = vmatpush1.msra.mxu0 0.0
    %7227 = vmatprep.subr.mxu0 0.0
    %7228 = vmatpush1.msra.mxu0 0.0
    %7229 = vmatprep.subr.mxu0 0.0
    %7230 = vmatpush1.msra.mxu0 0.0
    %7231 = vmatprep.subr.mxu0 0.0
    %7232 = vmatpush1.msra.mxu0 0.0
    %7233 = vmatprep.subr.mxu0 0.0
    %7234 = vmatpush1.msra.mxu0 0.0
    %7235 = vmatprep.subr.mxu0 0.0
    %7236 = vmatpush1.msra.mxu0 0.0
    %7237 = vmatprep.subr.mxu0 0.0
    %7238 = vmatpush1.msra.mxu0 0.0
    %7239 = vmatprep.subr.mxu0 0.0
    %7240 = vmatpush1.msra.mxu0 0.0
    %7241 = vmatprep.subr.mxu0 0.0
    %7242 = vmatpush1.msra.mxu0 0.0
    %7243 = vmatprep.subr.mxu0 0.0
    %7244 = vmatpush1.msra.mxu0 0.0
    %7245 = vmatprep.subr.mxu0 0.0
    %7246 = vmatpush1.msra.mxu0 0.0
    %7247 = vmatprep.subr.mxu0 0.0
    %7248 = vmatpush1.msra.mxu0 0.0
    %7249 = vmatprep.subr.mxu0 0.0
    %7250 = vmatpush1.msra.mxu0 0.0
    %7251 = vmatprep.subr.mxu0 0.0
    %7252 = vmatpush1.msra.mxu0 0.0
    %7253 = vmatprep.subr.mxu0 0.0
    %7254 = vmatpush1.msra.mxu0 0.0
    %7255 = vmatprep.mubr.f32.mxu0 0.0
    %7256 = vmatmul.mubr.f32.gmra.mrb[0].mxu0 %v7168
    %v7257 = vpop.f32.mrb[0].mxu0
    %v7258 = vadd.f32 0.0, %v7257
    %v7259 = vpop.f32.mrb[0].mxu0
    %7260 = vmatprep.mubr.f32.mxu0 0.0
    %7261 = vmatmul.mubr.f32.gmra.mrb[0].mxu0 %v7171
    %v7262 = vpop.f32.mrb[0].mxu0
    %v7263 = vadd.f32 0.0, %v7262
    %v7264 = vpop.f32.mrb[0].mxu0
    %7265 = vmatprep.mubr.f32.mxu0 0.0
    %7266 = vmatmul.mubr.f32.gmra.mrb[0].mxu0 %v7174
    %v7267 = vpop.f32.mrb[0].mxu0
    %v7268 = vadd.f32 0.0, %v7267
    %v7269 = vpop.f32.mrb[0].mxu0
    %7270 = vmatprep.mubr.f32.mxu0 0.0
    %7271 = vmatmul.mubr.f32.gmra.mrb[0].mxu0 %v7177
    %v7272 = vpop.f32.mrb[0].mxu0
    %v7273 = vadd.f32 0.0, %v7272
    %v7274 = vpop.f32.mrb[0].mxu0
    %7275 = vmatprep.mubr.f32.mxu0 0.0
    %7276 = vmatmul.mubr.f32.gmra.mrb[0].mxu0 %v7180
    %v7277 = vpop.f32.mrb[0].mxu0
    %v7278 = vadd.f32 0.0, %v7277
    %v7279 = vpop.f32.mrb[0].mxu0
    %7280 = vmatprep.mubr.f32.mxu0 0.0
    %7281 = vmatmul.mubr.f32.gmra.mrb[0].mxu0 %v7183
    %v7282 = vpop.f32.mrb[0].mxu0
    %v7283 = vadd.f32 0.0, %v7282
    %v7284 = vpop.f32.mrb[0].mxu0
    %7285 = vmatprep.mubr.f32.mxu0 0.0
    %7286 = vmatmul.mubr.f32.gmra.mrb[0].mxu0 %v7186
    %v7287 = vpop.f32.mrb[0].mxu0
    %v7288 = vadd.f32 0.0, %v7287
    %v7289 = vpop.f32.mrb[0].mxu0
    %7290 = vmatprep.mubr.f32.mxu0 0.0
    %7291 = vmatmul.mubr.f32.gmra.mrb[0].mxu0 %v7189
    %v7292 = vpop.f32.mrb[0].mxu0
    %v7293 = vadd.f32 0.0, %v7292
    %v7294 = vpop.f32.mrb[0].mxu0
    %7295 = vdwg.mxu0
    %v7296 = vadd.f32 %v7027, %v7258
    %v7297 = vadd.f32 %v7028, %v7263
    %v7298 = vadd.f32 %v7029, %v7268
    %v7299 = vadd.f32 %v7030, %v7273
    %v7300 = vadd.f32 %v7031, %v7278
    %v7301 = vadd.f32 %v7032, %v7283
    %v7302 = vadd.f32 %v7033, %v7288
    %v7303 = vadd.f32 %v7034, %v7293
    %7304 = vrot.lane.b32.xlu0 %v5856, 80
    %v7305 = vpop.permute.xlu0 %7304
    %v7308 = vsel %vm385, %v6750, 0
    %v7311 = vsel %vm385, %v6751, 0
    %v7314 = vsel %vm385, %v6752, 0
    %v7317 = vsel %vm385, %v6753, 0
    %v7320 = vsel %vm385, %v6754, 0
    %v7323 = vsel %vm385, %v6755, 0
    %v7326 = vsel %vm385, %v6756, 0
    %v7329 = vsel %vm385, %v6757, 0
    %7331 = vmatprep.subr.mxu0 0.0
    %7332 = vmatpush1.msra.mxu0 %v7305
    %7333 = vmatprep.subr.mxu0 0.0
    %7334 = vmatpush1.msra.mxu0 0.0
    %7335 = vmatprep.subr.mxu0 0.0
    %7336 = vmatpush1.msra.mxu0 0.0
    %7337 = vmatprep.subr.mxu0 0.0
    %7338 = vmatpush1.msra.mxu0 0.0
    %7339 = vmatprep.subr.mxu0 0.0
    %7340 = vmatpush1.msra.mxu0 0.0
    %7341 = vmatprep.subr.mxu0 0.0
    %7342 = vmatpush1.msra.mxu0 0.0
    %7343 = vmatprep.subr.mxu0 0.0
    %7344 = vmatpush1.msra.mxu0 0.0
    %7345 = vmatprep.subr.mxu0 0.0
    %7346 = vmatpush1.msra.mxu0 0.0
    %7347 = vmatprep.subr.mxu0 0.0
    %7348 = vmatpush1.msra.mxu0 0.0
    %7349 = vmatprep.subr.mxu0 0.0
    %7350 = vmatpush1.msra.mxu0 0.0
    %7351 = vmatprep.subr.mxu0 0.0
    %7352 = vmatpush1.msra.mxu0 0.0
    %7353 = vmatprep.subr.mxu0 0.0
    %7354 = vmatpush1.msra.mxu0 0.0
    %7355 = vmatprep.subr.mxu0 0.0
    %7356 = vmatpush1.msra.mxu0 0.0
    %7357 = vmatprep.subr.mxu0 0.0
    %7358 = vmatpush1.msra.mxu0 0.0
    %7359 = vmatprep.subr.mxu0 0.0
    %7360 = vmatpush1.msra.mxu0 0.0
    %7361 = vmatprep.subr.mxu0 0.0
    %7362 = vmatpush1.msra.mxu0 0.0
    %7363 = vmatprep.subr.mxu0 0.0
    %7364 = vmatpush1.msra.mxu0 0.0
    %7365 = vmatprep.subr.mxu0 0.0
    %7366 = vmatpush1.msra.mxu0 0.0
    %7367 = vmatprep.subr.mxu0 0.0
    %7368 = vmatpush1.msra.mxu0 0.0
    %7369 = vmatprep.subr.mxu0 0.0
    %7370 = vmatpush1.msra.mxu0 0.0
    %7371 = vmatprep.subr.mxu0 0.0
    %7372 = vmatpush1.msra.mxu0 0.0
    %7373 = vmatprep.subr.mxu0 0.0
    %7374 = vmatpush1.msra.mxu0 0.0
    %7375 = vmatprep.subr.mxu0 0.0
    %7376 = vmatpush1.msra.mxu0 0.0
    %7377 = vmatprep.subr.mxu0 0.0
    %7378 = vmatpush1.msra.mxu0 0.0
    %7379 = vmatprep.subr.mxu0 0.0
    %7380 = vmatpush1.msra.mxu0 0.0
    %7381 = vmatprep.subr.mxu0 0.0
    %7382 = vmatpush1.msra.mxu0 0.0
    %7383 = vmatprep.subr.mxu0 0.0
    %7384 = vmatpush1.msra.mxu0 0.0
    %7385 = vmatprep.subr.mxu0 0.0
    %7386 = vmatpush1.msra.mxu0 0.0
    %7387 = vmatprep.subr.mxu0 0.0
    %7388 = vmatpush1.msra.mxu0 0.0
    %7389 = vmatprep.subr.mxu0 0.0
    %7390 = vmatpush1.msra.mxu0 0.0
    %7391 = vmatprep.subr.mxu0 0.0
    %7392 = vmatpush1.msra.mxu0 0.0
    %7393 = vmatprep.subr.mxu0 0.0
    %7394 = vmatpush1.msra.mxu0 0.0
    %7395 = vmatprep.mubr.f32.mxu0 0.0
    %7396 = vmatmul.mubr.f32.gmra.mrb[0].mxu0 %v7308
    %v7397 = vpop.f32.mrb[0].mxu0
    %v7398 = vadd.f32 0.0, %v7397
    %v7399 = vpop.f32.mrb[0].mxu0
    %7400 = vmatprep.mubr.f32.mxu0 0.0
    %7401 = vmatmul.mubr.f32.gmra.mrb[0].mxu0 %v7311
    %v7402 = vpop.f32.mrb[0].mxu0
    %v7403 = vadd.f32 0.0, %v7402
    %v7404 = vpop.f32.mrb[0].mxu0
    %7405 = vmatprep.mubr.f32.mxu0 0.0
    %7406 = vmatmul.mubr.f32.gmra.mrb[0].mxu0 %v7314
    %v7407 = vpop.f32.mrb[0].mxu0
    %v7408 = vadd.f32 0.0, %v7407
    %v7409 = vpop.f32.mrb[0].mxu0
    %7410 = vmatprep.mubr.f32.mxu0 0.0
    %7411 = vmatmul.mubr.f32.gmra.mrb[0].mxu0 %v7317
    %v7412 = vpop.f32.mrb[0].mxu0
    %v7413 = vadd.f32 0.0, %v7412
    %v7414 = vpop.f32.mrb[0].mxu0
    %7415 = vmatprep.mubr.f32.mxu0 0.0
    %7416 = vmatmul.mubr.f32.gmra.mrb[0].mxu0 %v7320
    %v7417 = vpop.f32.mrb[0].mxu0
    %v7418 = vadd.f32 0.0, %v7417
    %v7419 = vpop.f32.mrb[0].mxu0
    %7420 = vmatprep.mubr.f32.mxu0 0.0
    %7421 = vmatmul.mubr.f32.gmra.mrb[0].mxu0 %v7323
    %v7422 = vpop.f32.mrb[0].mxu0
    %v7423 = vadd.f32 0.0, %v7422
    %v7424 = vpop.f32.mrb[0].mxu0
    %7425 = vmatprep.mubr.f32.mxu0 0.0
    %7426 = vmatmul.mubr.f32.gmra.mrb[0].mxu0 %v7326
    %v7427 = vpop.f32.mrb[0].mxu0
    %v7428 = vadd.f32 0.0, %v7427
    %v7429 = vpop.f32.mrb[0].mxu0
    %7430 = vmatprep.mubr.f32.mxu0 0.0
    %7431 = vmatmul.mubr.f32.gmra.mrb[0].mxu0 %v7329
    %v7432 = vpop.f32.mrb[0].mxu0
    %v7433 = vadd.f32 0.0, %v7432
    %v7434 = vpop.f32.mrb[0].mxu0
    %7435 = vdwg.mxu0
    %v7437 = vsel %vm385, %v7398, 0
    %v7440 = vsel %vm385, %v7403, 0
    %v7443 = vsel %vm385, %v7408, 0
    %v7446 = vsel %vm385, %v7413, 0
    %v7449 = vsel %vm385, %v7418, 0
    %v7452 = vsel %vm385, %v7423, 0
    %v7455 = vsel %vm385, %v7428, 0
    %v7458 = vsel %vm385, %v7433, 0
    %7460 = vmatprep.subr.mxu0 0.0
    %7461 = vmatpush1.msra.mxu0 %v4334
    %7462 = vmatprep.subr.mxu0 0.0
    %7463 = vmatpush1.msra.mxu0 0.0
    %7464 = vmatprep.subr.mxu0 0.0
    %7465 = vmatpush1.msra.mxu0 0.0
    %7466 = vmatprep.subr.mxu0 0.0
    %7467 = vmatpush1.msra.mxu0 0.0
    %7468 = vmatprep.subr.mxu0 0.0
    %7469 = vmatpush1.msra.mxu0 0.0
    %7470 = vmatprep.subr.mxu0 0.0
    %7471 = vmatpush1.msra.mxu0 0.0
    %7472 = vmatprep.subr.mxu0 0.0
    %7473 = vmatpush1.msra.mxu0 0.0
    %7474 = vmatprep.subr.mxu0 0.0
    %7475 = vmatpush1.msra.mxu0 0.0
    %7476 = vmatprep.subr.mxu0 0.0
    %7477 = vmatpush1.msra.mxu0 0.0
    %7478 = vmatprep.subr.mxu0 0.0
    %7479 = vmatpush1.msra.mxu0 0.0
    %7480 = vmatprep.subr.mxu0 0.0
    %7481 = vmatpush1.msra.mxu0 0.0
    %7482 = vmatprep.subr.mxu0 0.0
    %7483 = vmatpush1.msra.mxu0 0.0
    %7484 = vmatprep.subr.mxu0 0.0
    %7485 = vmatpush1.msra.mxu0 0.0
    %7486 = vmatprep.subr.mxu0 0.0
    %7487 = vmatpush1.msra.mxu0 0.0
    %7488 = vmatprep.subr.mxu0 0.0
    %7489 = vmatpush1.msra.mxu0 0.0
    %7490 = vmatprep.subr.mxu0 0.0
    %7491 = vmatpush1.msra.mxu0 0.0
    %7492 = vmatprep.subr.mxu0 0.0
    %7493 = vmatpush1.msra.mxu0 0.0
    %7494 = vmatprep.subr.mxu0 0.0
    %7495 = vmatpush1.msra.mxu0 0.0
    %7496 = vmatprep.subr.mxu0 0.0
    %7497 = vmatpush1.msra.mxu0 0.0
    %7498 = vmatprep.subr.mxu0 0.0
    %7499 = vmatpush1.msra.mxu0 0.0
    %7500 = vmatprep.subr.mxu0 0.0
    %7501 = vmatpush1.msra.mxu0 0.0
    %7502 = vmatprep.subr.mxu0 0.0
    %7503 = vmatpush1.msra.mxu0 0.0
    %7504 = vmatprep.subr.mxu0 0.0
    %7505 = vmatpush1.msra.mxu0 0.0
    %7506 = vmatprep.subr.mxu0 0.0
    %7507 = vmatpush1.msra.mxu0 0.0
    %7508 = vmatprep.subr.mxu0 0.0
    %7509 = vmatpush1.msra.mxu0 0.0
    %7510 = vmatprep.subr.mxu0 0.0
    %7511 = vmatpush1.msra.mxu0 0.0
    %7512 = vmatprep.subr.mxu0 0.0
    %7513 = vmatpush1.msra.mxu0 0.0
    %7514 = vmatprep.subr.mxu0 0.0
    %7515 = vmatpush1.msra.mxu0 0.0
    %7516 = vmatprep.subr.mxu0 0.0
    %7517 = vmatpush1.msra.mxu0 0.0
    %7518 = vmatprep.subr.mxu0 0.0
    %7519 = vmatpush1.msra.mxu0 0.0
    %7520 = vmatprep.subr.mxu0 0.0
    %7521 = vmatpush1.msra.mxu0 0.0
    %7522 = vmatprep.subr.mxu0 0.0
    %7523 = vmatpush1.msra.mxu0 0.0
    %7524 = vmatprep.mubr.f32.mxu0 0.0
    %7525 = vmatmul.mubr.f32.gmra.mrb[0].mxu0 %v7437
    %v7526 = vpop.f32.mrb[0].mxu0
    %v7527 = vadd.f32 0.0, %v7526
    %v7528 = vpop.f32.mrb[0].mxu0
    %7529 = vmatprep.mubr.f32.mxu0 0.0
    %7530 = vmatmul.mubr.f32.gmra.mrb[0].mxu0 %v7440
    %v7531 = vpop.f32.mrb[0].mxu0
    %v7532 = vadd.f32 0.0, %v7531
    %v7533 = vpop.f32.mrb[0].mxu0
    %7534 = vmatprep.mubr.f32.mxu0 0.0
    %7535 = vmatmul.mubr.f32.gmra.mrb[0].mxu0 %v7443
    %v7536 = vpop.f32.mrb[0].mxu0
    %v7537 = vadd.f32 0.0, %v7536
    %v7538 = vpop.f32.mrb[0].mxu0
    %7539 = vmatprep.mubr.f32.mxu0 0.0
    %7540 = vmatmul.mubr.f32.gmra.mrb[0].mxu0 %v7446
    %v7541 = vpop.f32.mrb[0].mxu0
    %v7542 = vadd.f32 0.0, %v7541
    %v7543 = vpop.f32.mrb[0].mxu0
    %7544 = vmatprep.mubr.f32.mxu0 0.0
    %7545 = vmatmul.mubr.f32.gmra.mrb[0].mxu0 %v7449
    %v7546 = vpop.f32.mrb[0].mxu0
    %v7547 = vadd.f32 0.0, %v7546
    %v7548 = vpop.f32.mrb[0].mxu0
    %7549 = vmatprep.mubr.f32.mxu0 0.0
    %7550 = vmatmul.mubr.f32.gmra.mrb[0].mxu0 %v7452
    %v7551 = vpop.f32.mrb[0].mxu0
    %v7552 = vadd.f32 0.0, %v7551
    %v7553 = vpop.f32.mrb[0].mxu0
    %7554 = vmatprep.mubr.f32.mxu0 0.0
    %7555 = vmatmul.mubr.f32.gmra.mrb[0].mxu0 %v7455
    %v7556 = vpop.f32.mrb[0].mxu0
    %v7557 = vadd.f32 0.0, %v7556
    %v7558 = vpop.f32.mrb[0].mxu0
    %7559 = vmatprep.mubr.f32.mxu0 0.0
    %7560 = vmatmul.mubr.f32.gmra.mrb[0].mxu0 %v7458
    %v7561 = vpop.f32.mrb[0].mxu0
    %v7562 = vadd.f32 0.0, %v7561
    %v7563 = vpop.f32.mrb[0].mxu0
    %7564 = vdwg.mxu0
    %v7565 = vadd.f32 %v7296, %v7527
    %v7566 = vadd.f32 %v7297, %v7532
    %v7567 = vadd.f32 %v7298, %v7537
    %v7568 = vadd.f32 %v7299, %v7542
    %v7569 = vadd.f32 %v7300, %v7547
    %v7570 = vadd.f32 %v7301, %v7552
    %v7571 = vadd.f32 %v7302, %v7557
    %v7572 = vadd.f32 %v7303, %v7562
    %7573 = vrot.lane.b32.xlu0 %v5856, 72
    %v7574 = vpop.permute.xlu0 %7573
    %v7577 = vsel %vm385, %v6758, 0
    %v7580 = vsel %vm385, %v6759, 0
    %v7583 = vsel %vm385, %v6760, 0
    %v7586 = vsel %vm385, %v6761, 0
    %v7589 = vsel %vm385, %v6762, 0
    %v7592 = vsel %vm385, %v6763, 0
    %v7595 = vsel %vm385, %v6764, 0
    %v7598 = vsel %vm385, %v6765, 0
    %7600 = vmatprep.subr.mxu0 0.0
    %7601 = vmatpush1.msra.mxu0 %v7574
    %7602 = vmatprep.subr.mxu0 0.0
    %7603 = vmatpush1.msra.mxu0 0.0
    %7604 = vmatprep.subr.mxu0 0.0
    %7605 = vmatpush1.msra.mxu0 0.0
    %7606 = vmatprep.subr.mxu0 0.0
    %7607 = vmatpush1.msra.mxu0 0.0
    %7608 = vmatprep.subr.mxu0 0.0
    %7609 = vmatpush1.msra.mxu0 0.0
    %7610 = vmatprep.subr.mxu0 0.0
    %7611 = vmatpush1.msra.mxu0 0.0
    %7612 = vmatprep.subr.mxu0 0.0
    %7613 = vmatpush1.msra.mxu0 0.0
    %7614 = vmatprep.subr.mxu0 0.0
    %7615 = vmatpush1.msra.mxu0 0.0
    %7616 = vmatprep.subr.mxu0 0.0
    %7617 = vmatpush1.msra.mxu0 0.0
    %7618 = vmatprep.subr.mxu0 0.0
    %7619 = vmatpush1.msra.mxu0 0.0
    %7620 = vmatprep.subr.mxu0 0.0
    %7621 = vmatpush1.msra.mxu0 0.0
    %7622 = vmatprep.subr.mxu0 0.0
    %7623 = vmatpush1.msra.mxu0 0.0
    %7624 = vmatprep.subr.mxu0 0.0
    %7625 = vmatpush1.msra.mxu0 0.0
    %7626 = vmatprep.subr.mxu0 0.0
    %7627 = vmatpush1.msra.mxu0 0.0
    %7628 = vmatprep.subr.mxu0 0.0
    %7629 = vmatpush1.msra.mxu0 0.0
    %7630 = vmatprep.subr.mxu0 0.0
    %7631 = vmatpush1.msra.mxu0 0.0
    %7632 = vmatprep.subr.mxu0 0.0
    %7633 = vmatpush1.msra.mxu0 0.0
    %7634 = vmatprep.subr.mxu0 0.0
    %7635 = vmatpush1.msra.mxu0 0.0
    %7636 = vmatprep.subr.mxu0 0.0
    %7637 = vmatpush1.msra.mxu0 0.0
    %7638 = vmatprep.subr.mxu0 0.0
    %7639 = vmatpush1.msra.mxu0 0.0
    %7640 = vmatprep.subr.mxu0 0.0
    %7641 = vmatpush1.msra.mxu0 0.0
    %7642 = vmatprep.subr.mxu0 0.0
    %7643 = vmatpush1.msra.mxu0 0.0
    %7644 = vmatprep.subr.mxu0 0.0
    %7645 = vmatpush1.msra.mxu0 0.0
    %7646 = vmatprep.subr.mxu0 0.0
    %7647 = vmatpush1.msra.mxu0 0.0
    %7648 = vmatprep.subr.mxu0 0.0
    %7649 = vmatpush1.msra.mxu0 0.0
    %7650 = vmatprep.subr.mxu0 0.0
    %7651 = vmatpush1.msra.mxu0 0.0
    %7652 = vmatprep.subr.mxu0 0.0
    %7653 = vmatpush1.msra.mxu0 0.0
    %7654 = vmatprep.subr.mxu0 0.0
    %7655 = vmatpush1.msra.mxu0 0.0
    %7656 = vmatprep.subr.mxu0 0.0
    %7657 = vmatpush1.msra.mxu0 0.0
    %7658 = vmatprep.subr.mxu0 0.0
    %7659 = vmatpush1.msra.mxu0 0.0
    %7660 = vmatprep.subr.mxu0 0.0
    %7661 = vmatpush1.msra.mxu0 0.0
    %7662 = vmatprep.subr.mxu0 0.0
    %7663 = vmatpush1.msra.mxu0 0.0
    %7664 = vmatprep.mubr.f32.mxu0 0.0
    %7665 = vmatmul.mubr.f32.gmra.mrb[0].mxu0 %v7577
    %v7666 = vpop.f32.mrb[0].mxu0
    %v7667 = vadd.f32 0.0, %v7666
    %v7668 = vpop.f32.mrb[0].mxu0
    %7669 = vmatprep.mubr.f32.mxu0 0.0
    %7670 = vmatmul.mubr.f32.gmra.mrb[0].mxu0 %v7580
    %v7671 = vpop.f32.mrb[0].mxu0
    %v7672 = vadd.f32 0.0, %v7671
    %v7673 = vpop.f32.mrb[0].mxu0
    %7674 = vmatprep.mubr.f32.mxu0 0.0
    %7675 = vmatmul.mubr.f32.gmra.mrb[0].mxu0 %v7583
    %v7676 = vpop.f32.mrb[0].mxu0
    %v7677 = vadd.f32 0.0, %v7676
    %v7678 = vpop.f32.mrb[0].mxu0
    %7679 = vmatprep.mubr.f32.mxu0 0.0
    %7680 = vmatmul.mubr.f32.gmra.mrb[0].mxu0 %v7586
    %v7681 = vpop.f32.mrb[0].mxu0
    %v7682 = vadd.f32 0.0, %v7681
    %v7683 = vpop.f32.mrb[0].mxu0
    %7684 = vmatprep.mubr.f32.mxu0 0.0
    %7685 = vmatmul.mubr.f32.gmra.mrb[0].mxu0 %v7589
    %v7686 = vpop.f32.mrb[0].mxu0
    %v7687 = vadd.f32 0.0, %v7686
    %v7688 = vpop.f32.mrb[0].mxu0
    %7689 = vmatprep.mubr.f32.mxu0 0.0
    %7690 = vmatmul.mubr.f32.gmra.mrb[0].mxu0 %v7592
    %v7691 = vpop.f32.mrb[0].mxu0
    %v7692 = vadd.f32 0.0, %v7691
    %v7693 = vpop.f32.mrb[0].mxu0
    %7694 = vmatprep.mubr.f32.mxu0 0.0
    %7695 = vmatmul.mubr.f32.gmra.mrb[0].mxu0 %v7595
    %v7696 = vpop.f32.mrb[0].mxu0
    %v7697 = vadd.f32 0.0, %v7696
    %v7698 = vpop.f32.mrb[0].mxu0
    %7699 = vmatprep.mubr.f32.mxu0 0.0
    %7700 = vmatmul.mubr.f32.gmra.mrb[0].mxu0 %v7598
    %v7701 = vpop.f32.mrb[0].mxu0
    %v7702 = vadd.f32 0.0, %v7701
    %v7703 = vpop.f32.mrb[0].mxu0
    %7704 = vdwg.mxu0
    %v7706 = vsel %vm385, %v7667, 0
    %v7709 = vsel %vm385, %v7672, 0
    %v7712 = vsel %vm385, %v7677, 0
    %v7715 = vsel %vm385, %v7682, 0
    %v7718 = vsel %vm385, %v7687, 0
    %v7721 = vsel %vm385, %v7692, 0
    %v7724 = vsel %vm385, %v7697, 0
    %v7727 = vsel %vm385, %v7702, 0
    %7729 = vmatprep.subr.mxu0 0.0
    %7730 = vmatpush1.msra.mxu0 %v4335
    %7731 = vmatprep.subr.mxu0 0.0
    %7732 = vmatpush1.msra.mxu0 0.0
    %7733 = vmatprep.subr.mxu0 0.0
    %7734 = vmatpush1.msra.mxu0 0.0
    %7735 = vmatprep.subr.mxu0 0.0
    %7736 = vmatpush1.msra.mxu0 0.0
    %7737 = vmatprep.subr.mxu0 0.0
    %7738 = vmatpush1.msra.mxu0 0.0
    %7739 = vmatprep.subr.mxu0 0.0
    %7740 = vmatpush1.msra.mxu0 0.0
    %7741 = vmatprep.subr.mxu0 0.0
    %7742 = vmatpush1.msra.mxu0 0.0
    %7743 = vmatprep.subr.mxu0 0.0
    %7744 = vmatpush1.msra.mxu0 0.0
    %7745 = vmatprep.subr.mxu0 0.0
    %7746 = vmatpush1.msra.mxu0 0.0
    %7747 = vmatprep.subr.mxu0 0.0
    %7748 = vmatpush1.msra.mxu0 0.0
    %7749 = vmatprep.subr.mxu0 0.0
    %7750 = vmatpush1.msra.mxu0 0.0
    %7751 = vmatprep.subr.mxu0 0.0
    %7752 = vmatpush1.msra.mxu0 0.0
    %7753 = vmatprep.subr.mxu0 0.0
    %7754 = vmatpush1.msra.mxu0 0.0
    %7755 = vmatprep.subr.mxu0 0.0
    %7756 = vmatpush1.msra.mxu0 0.0
    %7757 = vmatprep.subr.mxu0 0.0
    %7758 = vmatpush1.msra.mxu0 0.0
    %7759 = vmatprep.subr.mxu0 0.0
    %7760 = vmatpush1.msra.mxu0 0.0
    %7761 = vmatprep.subr.mxu0 0.0
    %7762 = vmatpush1.msra.mxu0 0.0
    %7763 = vmatprep.subr.mxu0 0.0
    %7764 = vmatpush1.msra.mxu0 0.0
    %7765 = vmatprep.subr.mxu0 0.0
    %7766 = vmatpush1.msra.mxu0 0.0
    %7767 = vmatprep.subr.mxu0 0.0
    %7768 = vmatpush1.msra.mxu0 0.0
    %7769 = vmatprep.subr.mxu0 0.0
    %7770 = vmatpush1.msra.mxu0 0.0
    %7771 = vmatprep.subr.mxu0 0.0
    %7772 = vmatpush1.msra.mxu0 0.0
    %7773 = vmatprep.subr.mxu0 0.0
    %7774 = vmatpush1.msra.mxu0 0.0
    %7775 = vmatprep.subr.mxu0 0.0
    %7776 = vmatpush1.msra.mxu0 0.0
    %7777 = vmatprep.subr.mxu0 0.0
    %7778 = vmatpush1.msra.mxu0 0.0
    %7779 = vmatprep.subr.mxu0 0.0
    %7780 = vmatpush1.msra.mxu0 0.0
    %7781 = vmatprep.subr.mxu0 0.0
    %7782 = vmatpush1.msra.mxu0 0.0
    %7783 = vmatprep.subr.mxu0 0.0
    %7784 = vmatpush1.msra.mxu0 0.0
    %7785 = vmatprep.subr.mxu0 0.0
    %7786 = vmatpush1.msra.mxu0 0.0
    %7787 = vmatprep.subr.mxu0 0.0
    %7788 = vmatpush1.msra.mxu0 0.0
    %7789 = vmatprep.subr.mxu0 0.0
    %7790 = vmatpush1.msra.mxu0 0.0
    %7791 = vmatprep.subr.mxu0 0.0
    %7792 = vmatpush1.msra.mxu0 0.0
    %7793 = vmatprep.mubr.f32.mxu0 0.0
    %7794 = vmatmul.mubr.f32.gmra.mrb[0].mxu0 %v7706
    %v7795 = vpop.f32.mrb[0].mxu0
    %v7796 = vadd.f32 0.0, %v7795
    %v7797 = vpop.f32.mrb[0].mxu0
    %7798 = vmatprep.mubr.f32.mxu0 0.0
    %7799 = vmatmul.mubr.f32.gmra.mrb[0].mxu0 %v7709
    %v7800 = vpop.f32.mrb[0].mxu0
    %v7801 = vadd.f32 0.0, %v7800
    %v7802 = vpop.f32.mrb[0].mxu0
    %7803 = vmatprep.mubr.f32.mxu0 0.0
    %7804 = vmatmul.mubr.f32.gmra.mrb[0].mxu0 %v7712
    %v7805 = vpop.f32.mrb[0].mxu0
    %v7806 = vadd.f32 0.0, %v7805
    %v7807 = vpop.f32.mrb[0].mxu0
    %7808 = vmatprep.mubr.f32.mxu0 0.0
    %7809 = vmatmul.mubr.f32.gmra.mrb[0].mxu0 %v7715
    %v7810 = vpop.f32.mrb[0].mxu0
    %v7811 = vadd.f32 0.0, %v7810
    %v7812 = vpop.f32.mrb[0].mxu0
    %7813 = vmatprep.mubr.f32.mxu0 0.0
    %7814 = vmatmul.mubr.f32.gmra.mrb[0].mxu0 %v7718
    %v7815 = vpop.f32.mrb[0].mxu0
    %v7816 = vadd.f32 0.0, %v7815
    %v7817 = vpop.f32.mrb[0].mxu0
    %7818 = vmatprep.mubr.f32.mxu0 0.0
    %7819 = vmatmul.mubr.f32.gmra.mrb[0].mxu0 %v7721
    %v7820 = vpop.f32.mrb[0].mxu0
    %v7821 = vadd.f32 0.0, %v7820
    %v7822 = vpop.f32.mrb[0].mxu0
    %7823 = vmatprep.mubr.f32.mxu0 0.0
    %7824 = vmatmul.mubr.f32.gmra.mrb[0].mxu0 %v7724
    %v7825 = vpop.f32.mrb[0].mxu0
    %v7826 = vadd.f32 0.0, %v7825
    %v7827 = vpop.f32.mrb[0].mxu0
    %7828 = vmatprep.mubr.f32.mxu0 0.0
    %7829 = vmatmul.mubr.f32.gmra.mrb[0].mxu0 %v7727
    %v7830 = vpop.f32.mrb[0].mxu0
    %v7831 = vadd.f32 0.0, %v7830
    %v7832 = vpop.f32.mrb[0].mxu0
    %7833 = vdwg.mxu0
    %v7834 = vadd.f32 %v7565, %v7796
    %v7835 = vadd.f32 %v7566, %v7801
    %v7836 = vadd.f32 %v7567, %v7806
    %v7837 = vadd.f32 %v7568, %v7811
    %v7838 = vadd.f32 %v7569, %v7816
    %v7839 = vadd.f32 %v7570, %v7821
    %v7840 = vadd.f32 %v7571, %v7826
    %v7841 = vadd.f32 %v7572, %v7831
    %s7842 = scalar_lea.vmem %s9, 1
    %v7843 = vld [vmem:[%s7842] sm:$0x1]
    %s7844 = scalar_lea.vmem %s10, 1
    %v7845 = vld [vmem:[%s7844] sm:$0x1]
    %v7846 = vsel %vm120, %v7834, 0.0
    %7847 = vadd.xlane.f32.xlu0 %v7846
    %v7848 = vpop.xlane.xlu0 %7847
    %v7849 = vsel %vm120, %v7835, 0.0
    %7850 = vadd.xlane.f32.xlu0 %v7849
    %v7851 = vpop.xlane.xlu0 %7850
    %v7852 = vsel %vm120, %v7836, 0.0
    %7853 = vadd.xlane.f32.xlu0 %v7852
    %v7854 = vpop.xlane.xlu0 %7853
    %v7855 = vsel %vm120, %v7837, 0.0
    %7856 = vadd.xlane.f32.xlu0 %v7855
    %v7857 = vpop.xlane.xlu0 %7856
    %v7858 = vsel %vm120, %v7838, 0.0
    %7859 = vadd.xlane.f32.xlu0 %v7858
    %v7860 = vpop.xlane.xlu0 %7859
    %v7861 = vsel %vm120, %v7839, 0.0
    %7862 = vadd.xlane.f32.xlu0 %v7861
    %v7863 = vpop.xlane.xlu0 %7862
    %v7864 = vsel %vm120, %v7840, 0.0
    %7865 = vadd.xlane.f32.xlu0 %v7864
    %v7866 = vpop.xlane.xlu0 %7865
    %v7867 = vsel %vm120, %v7841, 0.0
    %7868 = vadd.xlane.f32.xlu0 %v7867
    %v7869 = vpop.xlane.xlu0 %7868
    %v7870 = vmul.f32 %v7848, %v3717
    %v7871 = vmul.f32 %v7851, %v3717
    %v7872 = vmul.f32 %v7854, %v3717
    %v7873 = vmul.f32 %v7857, %v3717
    %v7874 = vmul.f32 %v7860, %v3717
    %v7875 = vmul.f32 %v7863, %v3717
    %v7876 = vmul.f32 %v7866, %v3717
    %v7877 = vmul.f32 %v7869, %v3717
    %v7878 = vsub.f32 %v7834, %v7870
    %v7879 = vsub.f32 %v7835, %v7871
    %v7880 = vsub.f32 %v7836, %v7872
    %v7881 = vsub.f32 %v7837, %v7873
    %v7882 = vsub.f32 %v7838, %v7874
    %v7883 = vsub.f32 %v7839, %v7875
    %v7884 = vsub.f32 %v7840, %v7876
    %v7885 = vsub.f32 %v7841, %v7877
    %v7886 = vmul.f32 %v7878, %v7878
    %v7887 = vmul.f32 %v7879, %v7879
    %v7888 = vmul.f32 %v7880, %v7880
    %v7889 = vmul.f32 %v7881, %v7881
    %v7890 = vmul.f32 %v7882, %v7882
    %v7891 = vmul.f32 %v7883, %v7883
    %v7892 = vmul.f32 %v7884, %v7884
    %v7893 = vmul.f32 %v7885, %v7885
    %v7894 = vsel %vm120, %v7886, 0.0
    %7895 = vadd.xlane.f32.xlu0 %v7894
    %v7896 = vpop.xlane.xlu0 %7895
    %v7897 = vsel %vm120, %v7887, 0.0
    %7898 = vadd.xlane.f32.xlu0 %v7897
    %v7899 = vpop.xlane.xlu0 %7898
    %v7900 = vsel %vm120, %v7888, 0.0
    %7901 = vadd.xlane.f32.xlu0 %v7900
    %v7902 = vpop.xlane.xlu0 %7901
    %v7903 = vsel %vm120, %v7889, 0.0
    %7904 = vadd.xlane.f32.xlu0 %v7903
    %v7905 = vpop.xlane.xlu0 %7904
    %v7906 = vsel %vm120, %v7890, 0.0
    %7907 = vadd.xlane.f32.xlu0 %v7906
    %v7908 = vpop.xlane.xlu0 %7907
    %v7909 = vsel %vm120, %v7891, 0.0
    %7910 = vadd.xlane.f32.xlu0 %v7909
    %v7911 = vpop.xlane.xlu0 %7910
    %v7912 = vsel %vm120, %v7892, 0.0
    %7913 = vadd.xlane.f32.xlu0 %v7912
    %v7914 = vpop.xlane.xlu0 %7913
    %v7915 = vsel %vm120, %v7893, 0.0
    %7916 = vadd.xlane.f32.xlu0 %v7915
    %v7917 = vpop.xlane.xlu0 %7916
    %v7918 = vmul.f32 %v7896, %v3717
    %v7919 = vmul.f32 %v7899, %v3717
    %v7920 = vmul.f32 %v7902, %v3717
    %v7921 = vmul.f32 %v7905, %v3717
    %v7922 = vmul.f32 %v7908, %v3717
    %v7923 = vmul.f32 %v7911, %v3717
    %v7924 = vmul.f32 %v7914, %v3717
    %v7925 = vmul.f32 %v7917, %v3717
    %v7926 = vadd.f32 %v7918, 1e-05
    %v7927 = vadd.f32 %v7919, 1e-05
    %v7928 = vadd.f32 %v7920, 1e-05
    %v7929 = vadd.f32 %v7921, 1e-05
    %v7930 = vadd.f32 %v7922, 1e-05
    %v7931 = vadd.f32 %v7923, 1e-05
    %v7932 = vadd.f32 %v7924, 1e-05
    %v7933 = vadd.f32 %v7925, 1e-05
    %v7934 = vrsqrt.pop %v7926
    %v7935 = vrsqrt.pop %v7927
    %v7936 = vrsqrt.pop %v7928
    %v7937 = vrsqrt.pop %v7929
    %v7938 = vrsqrt.pop %v7930
    %v7939 = vrsqrt.pop %v7931
    %v7940 = vrsqrt.pop %v7932
    %v7941 = vrsqrt.pop %v7933
    %v7942 = vmul.f32 %v7878, %v7934
    %v7943 = vmul.f32 %v7879, %v7935
    %v7944 = vmul.f32 %v7880, %v7936
    %v7945 = vmul.f32 %v7881, %v7937
    %v7946 = vmul.f32 %v7882, %v7938
    %v7947 = vmul.f32 %v7883, %v7939
    %v7948 = vmul.f32 %v7884, %v7940
    %v7949 = vmul.f32 %v7885, %v7941
    %v7951 = vlaneseq
    %v7952 = vshrl.u32 %v7951, 7
    %v7953 = vsub.s32 0, %v7952
    %v7954 = vrot.slane %v7843, %v7953
    %v7956 = vmul.f32 %v7942, %v7954
    %v7957 = vmul.f32 %v7943, %v7954
    %v7958 = vmul.f32 %v7944, %v7954
    %v7959 = vmul.f32 %v7945, %v7954
    %v7960 = vmul.f32 %v7946, %v7954
    %v7961 = vmul.f32 %v7947, %v7954
    %v7962 = vmul.f32 %v7948, %v7954
    %v7963 = vmul.f32 %v7949, %v7954
    %v7965 = vlaneseq
    %v7966 = vshrl.u32 %v7965, 7
    %v7967 = vsub.s32 0, %v7966
    %v7968 = vrot.slane %v7845, %v7967
    %v7970 = vadd.f32 %v7956, %v7968
    %v7971 = vadd.f32 %v7957, %v7968
    %v7972 = vadd.f32 %v7958, %v7968
    %v7973 = vadd.f32 %v7959, %v7968
    %v7974 = vadd.f32 %v7960, %v7968
    %v7975 = vadd.f32 %v7961, %v7968
    %v7976 = vadd.f32 %v7962, %v7968
    %v7977 = vadd.f32 %v7963, %v7968
    %s7978 = scalar_lea.vmem [#allocation9], 32
    %v7979 = vld [vmem:[%s7978] sm:$0xff]
    %v7980 = vld [vmem:[%s7978 + $0x8] sm:$0xff]
    %v7981 = vld [vmem:[%s7978 + $0x10] sm:$0xff]
    %v7982 = vld [vmem:[%s7978 + $0x18] sm:$0xff]
    %s7983 = scalar_lea.vmem %s6, 1
    %v7984 = vld [vmem:[%s7983] sm:$0x1]
    %v7986 = vlaneseq
    %v7987 = vshrl.u32 %v7986, 7
    %v7988 = vsub.s32 0, %v7987
    %v7989 = vrot.slane %v7984, %v7988
    %v7992 = vsel %vm120, %v7970, 0
    %v7995 = vsel %vm120, %v7971, 0
    %v7998 = vsel %vm120, %v7972, 0
    %v8001 = vsel %vm120, %v7973, 0
    %v8004 = vsel %vm120, %v7974, 0
    %v8007 = vsel %vm120, %v7975, 0
    %v8010 = vsel %vm120, %v7976, 0
    %v8013 = vsel %vm120, %v7977, 0
    %8015 = vmatprep.subr.mxu0 0.0
    %8016 = vmatpush1.msra.mxu0 %v7979
    %8017 = vmatprep.subr.mxu0 0.0
    %8018 = vmatpush1.msra.mxu0 %v7980
    %8019 = vmatprep.subr.mxu0 0.0
    %8020 = vmatpush1.msra.mxu0 %v7981
    %8021 = vmatprep.subr.mxu0 0.0
    %8022 = vmatpush1.msra.mxu0 %v7982
    %8023 = vmatprep.subr.mxu0 0.0
    %8024 = vmatpush1.msra.mxu0 0.0
    %8025 = vmatprep.subr.mxu0 0.0
    %8026 = vmatpush1.msra.mxu0 0.0
    %8027 = vmatprep.subr.mxu0 0.0
    %8028 = vmatpush1.msra.mxu0 0.0
    %8029 = vmatprep.subr.mxu0 0.0
    %8030 = vmatpush1.msra.mxu0 0.0
    %8031 = vmatprep.subr.mxu0 0.0
    %8032 = vmatpush1.msra.mxu0 0.0
    %8033 = vmatprep.subr.mxu0 0.0
    %8034 = vmatpush1.msra.mxu0 0.0
    %8035 = vmatprep.subr.mxu0 0.0
    %8036 = vmatpush1.msra.mxu0 0.0
    %8037 = vmatprep.subr.mxu0 0.0
    %8038 = vmatpush1.msra.mxu0 0.0
    %8039 = vmatprep.subr.mxu0 0.0
    %8040 = vmatpush1.msra.mxu0 0.0
    %8041 = vmatprep.subr.mxu0 0.0
    %8042 = vmatpush1.msra.mxu0 0.0
    %8043 = vmatprep.subr.mxu0 0.0
    %8044 = vmatpush1.msra.mxu0 0.0
    %8045 = vmatprep.subr.mxu0 0.0
    %8046 = vmatpush1.msra.mxu0 0.0
    %8047 = vmatprep.subr.mxu0 0.0
    %8048 = vmatpush1.msra.mxu0 0.0
    %8049 = vmatprep.subr.mxu0 0.0
    %8050 = vmatpush1.msra.mxu0 0.0
    %8051 = vmatprep.subr.mxu0 0.0
    %8052 = vmatpush1.msra.mxu0 0.0
    %8053 = vmatprep.subr.mxu0 0.0
    %8054 = vmatpush1.msra.mxu0 0.0
    %8055 = vmatprep.subr.mxu0 0.0
    %8056 = vmatpush1.msra.mxu0 0.0
    %8057 = vmatprep.subr.mxu0 0.0
    %8058 = vmatpush1.msra.mxu0 0.0
    %8059 = vmatprep.subr.mxu0 0.0
    %8060 = vmatpush1.msra.mxu0 0.0
    %8061 = vmatprep.subr.mxu0 0.0
    %8062 = vmatpush1.msra.mxu0 0.0
    %8063 = vmatprep.subr.mxu0 0.0
    %8064 = vmatpush1.msra.mxu0 0.0
    %8065 = vmatprep.subr.mxu0 0.0
    %8066 = vmatpush1.msra.mxu0 0.0
    %8067 = vmatprep.subr.mxu0 0.0
    %8068 = vmatpush1.msra.mxu0 0.0
    %8069 = vmatprep.subr.mxu0 0.0
    %8070 = vmatpush1.msra.mxu0 0.0
    %8071 = vmatprep.subr.mxu0 0.0
    %8072 = vmatpush1.msra.mxu0 0.0
    %8073 = vmatprep.subr.mxu0 0.0
    %8074 = vmatpush1.msra.mxu0 0.0
    %8075 = vmatprep.subr.mxu0 0.0
    %8076 = vmatpush1.msra.mxu0 0.0
    %8077 = vmatprep.subr.mxu0 0.0
    %8078 = vmatpush1.msra.mxu0 0.0
    %8079 = vmatprep.mubr.f32.mxu0 0.0
    %8080 = vmatmul.mubr.f32.gmra.mrb[0].mxu0 %v7992
    %v8081 = vpop.f32.mrb[0].mxu0
    %v8082 = vadd.f32 %v7989, %v8081
    %v8083 = vpop.f32.mrb[0].mxu0
    %8084 = vmatprep.mubr.f32.mxu0 0.0
    %8085 = vmatmul.mubr.f32.gmra.mrb[0].mxu0 %v7995
    %v8086 = vpop.f32.mrb[0].mxu0
    %v8087 = vadd.f32 %v7989, %v8086
    %v8088 = vpop.f32.mrb[0].mxu0
    %8089 = vmatprep.mubr.f32.mxu0 0.0
    %8090 = vmatmul.mubr.f32.gmra.mrb[0].mxu0 %v7998
    %v8091 = vpop.f32.mrb[0].mxu0
    %v8092 = vadd.f32 %v7989, %v8091
    %v8093 = vpop.f32.mrb[0].mxu0
    %8094 = vmatprep.mubr.f32.mxu0 0.0
    %8095 = vmatmul.mubr.f32.gmra.mrb[0].mxu0 %v8001
    %v8096 = vpop.f32.mrb[0].mxu0
    %v8097 = vadd.f32 %v7989, %v8096
    %v8098 = vpop.f32.mrb[0].mxu0
    %8099 = vmatprep.mubr.f32.mxu0 0.0
    %8100 = vmatmul.mubr.f32.gmra.mrb[0].mxu0 %v8004
    %v8101 = vpop.f32.mrb[0].mxu0
    %v8102 = vadd.f32 %v7989, %v8101
    %v8103 = vpop.f32.mrb[0].mxu0
    %8104 = vmatprep.mubr.f32.mxu0 0.0
    %8105 = vmatmul.mubr.f32.gmra.mrb[0].mxu0 %v8007
    %v8106 = vpop.f32.mrb[0].mxu0
    %v8107 = vadd.f32 %v7989, %v8106
    %v8108 = vpop.f32.mrb[0].mxu0
    %8109 = vmatprep.mubr.f32.mxu0 0.0
    %8110 = vmatmul.mubr.f32.gmra.mrb[0].mxu0 %v8010
    %v8111 = vpop.f32.mrb[0].mxu0
    %v8112 = vadd.f32 %v7989, %v8111
    %v8113 = vpop.f32.mrb[0].mxu0
    %8114 = vmatprep.mubr.f32.mxu0 0.0
    %8115 = vmatmul.mubr.f32.gmra.mrb[0].mxu0 %v8013
    %v8116 = vpop.f32.mrb[0].mxu0
    %v8117 = vadd.f32 %v7989, %v8116
    %v8118 = vpop.f32.mrb[0].mxu0
    %8119 = vdwg.mxu0
    %v8120 = vmax.f32 %v8082, 0.0
    %v8121 = vmax.f32 %v8087, 0.0
    %v8122 = vmax.f32 %v8092, 0.0
    %v8123 = vmax.f32 %v8097, 0.0
    %v8124 = vmax.f32 %v8102, 0.0
    %v8125 = vmax.f32 %v8107, 0.0
    %v8126 = vmax.f32 %v8112, 0.0
    %v8127 = vmax.f32 %v8117, 0.0
    %s8128 = scalar_lea.vmem [#allocation10], 32
    %v8129 = vld [vmem:[%s8128] sm:$0xff]
    %v8130 = vld [vmem:[%s8128 + $0x8] sm:$0xff]
    %v8131 = vld [vmem:[%s8128 + $0x10] sm:$0xff]
    %v8132 = vld [vmem:[%s8128 + $0x18] sm:$0xff]
    %s8133 = scalar_lea.vmem %s8, 1
    %v8134 = vld [vmem:[%s8133] sm:$0x1]
    %v8136 = vlaneseq
    %v8137 = vshrl.u32 %v8136, 7
    %v8138 = vsub.s32 0, %v8137
    %v8139 = vrot.slane %v8134, %v8138
    %v8142 = vsel %vm120, %v8120, 0
    %v8145 = vsel %vm120, %v8121, 0
    %v8148 = vsel %vm120, %v8122, 0
    %v8151 = vsel %vm120, %v8123, 0
    %v8154 = vsel %vm120, %v8124, 0
    %v8157 = vsel %vm120, %v8125, 0
    %v8160 = vsel %vm120, %v8126, 0
    %v8163 = vsel %vm120, %v8127, 0
    %8165 = vmatprep.subr.mxu0 0.0
    %8166 = vmatpush1.msra.mxu0 %v8129
    %8167 = vmatprep.subr.mxu0 0.0
    %8168 = vmatpush1.msra.mxu0 %v8130
    %8169 = vmatprep.subr.mxu0 0.0
    %8170 = vmatpush1.msra.mxu0 %v8131
    %8171 = vmatprep.subr.mxu0 0.0
    %8172 = vmatpush1.msra.mxu0 %v8132
    %8173 = vmatprep.subr.mxu0 0.0
    %8174 = vmatpush1.msra.mxu0 0.0
    %8175 = vmatprep.subr.mxu0 0.0
    %8176 = vmatpush1.msra.mxu0 0.0
    %8177 = vmatprep.subr.mxu0 0.0
    %8178 = vmatpush1.msra.mxu0 0.0
    %8179 = vmatprep.subr.mxu0 0.0
    %8180 = vmatpush1.msra.mxu0 0.0
    %8181 = vmatprep.subr.mxu0 0.0
    %8182 = vmatpush1.msra.mxu0 0.0
    %8183 = vmatprep.subr.mxu0 0.0
    %8184 = vmatpush1.msra.mxu0 0.0
    %8185 = vmatprep.subr.mxu0 0.0
    %8186 = vmatpush1.msra.mxu0 0.0
    %8187 = vmatprep.subr.mxu0 0.0
    %8188 = vmatpush1.msra.mxu0 0.0
    %8189 = vmatprep.subr.mxu0 0.0
    %8190 = vmatpush1.msra.mxu0 0.0
    %8191 = vmatprep.subr.mxu0 0.0
    %8192 = vmatpush1.msra.mxu0 0.0
    %8193 = vmatprep.subr.mxu0 0.0
    %8194 = vmatpush1.msra.mxu0 0.0
    %8195 = vmatprep.subr.mxu0 0.0
    %8196 = vmatpush1.msra.mxu0 0.0
    %8197 = vmatprep.subr.mxu0 0.0
    %8198 = vmatpush1.msra.mxu0 0.0
    %8199 = vmatprep.subr.mxu0 0.0
    %8200 = vmatpush1.msra.mxu0 0.0
    %8201 = vmatprep.subr.mxu0 0.0
    %8202 = vmatpush1.msra.mxu0 0.0
    %8203 = vmatprep.subr.mxu0 0.0
    %8204 = vmatpush1.msra.mxu0 0.0
    %8205 = vmatprep.subr.mxu0 0.0
    %8206 = vmatpush1.msra.mxu0 0.0
    %8207 = vmatprep.subr.mxu0 0.0
    %8208 = vmatpush1.msra.mxu0 0.0
    %8209 = vmatprep.subr.mxu0 0.0
    %8210 = vmatpush1.msra.mxu0 0.0
    %8211 = vmatprep.subr.mxu0 0.0
    %8212 = vmatpush1.msra.mxu0 0.0
    %8213 = vmatprep.subr.mxu0 0.0
    %8214 = vmatpush1.msra.mxu0 0.0
    %8215 = vmatprep.subr.mxu0 0.0
    %8216 = vmatpush1.msra.mxu0 0.0
    %8217 = vmatprep.subr.mxu0 0.0
    %8218 = vmatpush1.msra.mxu0 0.0
    %8219 = vmatprep.subr.mxu0 0.0
    %8220 = vmatpush1.msra.mxu0 0.0
    %8221 = vmatprep.subr.mxu0 0.0
    %8222 = vmatpush1.msra.mxu0 0.0
    %8223 = vmatprep.subr.mxu0 0.0
    %8224 = vmatpush1.msra.mxu0 0.0
    %8225 = vmatprep.subr.mxu0 0.0
    %8226 = vmatpush1.msra.mxu0 0.0
    %8227 = vmatprep.subr.mxu0 0.0
    %8228 = vmatpush1.msra.mxu0 0.0
    %8229 = vmatprep.mubr.f32.mxu0 0.0
    %8230 = vmatmul.mubr.f32.gmra.mrb[0].mxu0 %v8142
    %v8231 = vpop.f32.mrb[0].mxu0
    %v8232 = vadd.f32 %v8139, %v8231
    %v8233 = vpop.f32.mrb[0].mxu0
    %8234 = vmatprep.mubr.f32.mxu0 0.0
    %8235 = vmatmul.mubr.f32.gmra.mrb[0].mxu0 %v8145
    %v8236 = vpop.f32.mrb[0].mxu0
    %v8237 = vadd.f32 %v8139, %v8236
    %v8238 = vpop.f32.mrb[0].mxu0
    %8239 = vmatprep.mubr.f32.mxu0 0.0
    %8240 = vmatmul.mubr.f32.gmra.mrb[0].mxu0 %v8148
    %v8241 = vpop.f32.mrb[0].mxu0
    %v8242 = vadd.f32 %v8139, %v8241
    %v8243 = vpop.f32.mrb[0].mxu0
    %8244 = vmatprep.mubr.f32.mxu0 0.0
    %8245 = vmatmul.mubr.f32.gmra.mrb[0].mxu0 %v8151
    %v8246 = vpop.f32.mrb[0].mxu0
    %v8247 = vadd.f32 %v8139, %v8246
    %v8248 = vpop.f32.mrb[0].mxu0
    %8249 = vmatprep.mubr.f32.mxu0 0.0
    %8250 = vmatmul.mubr.f32.gmra.mrb[0].mxu0 %v8154
    %v8251 = vpop.f32.mrb[0].mxu0
    %v8252 = vadd.f32 %v8139, %v8251
    %v8253 = vpop.f32.mrb[0].mxu0
    %8254 = vmatprep.mubr.f32.mxu0 0.0
    %8255 = vmatmul.mubr.f32.gmra.mrb[0].mxu0 %v8157
    %v8256 = vpop.f32.mrb[0].mxu0
    %v8257 = vadd.f32 %v8139, %v8256
    %v8258 = vpop.f32.mrb[0].mxu0
    %8259 = vmatprep.mubr.f32.mxu0 0.0
    %8260 = vmatmul.mubr.f32.gmra.mrb[0].mxu0 %v8160
    %v8261 = vpop.f32.mrb[0].mxu0
    %v8262 = vadd.f32 %v8139, %v8261
    %v8263 = vpop.f32.mrb[0].mxu0
    %8264 = vmatprep.mubr.f32.mxu0 0.0
    %8265 = vmatmul.mubr.f32.gmra.mrb[0].mxu0 %v8163
    %v8266 = vpop.f32.mrb[0].mxu0
    %v8267 = vadd.f32 %v8139, %v8266
    %v8268 = vpop.f32.mrb[0].mxu0
    %8269 = vdwg.mxu0
    %v8270 = vmax.f32 %v8232, 0.0
    %v8271 = vmax.f32 %v8237, 0.0
    %v8272 = vmax.f32 %v8242, 0.0
    %v8273 = vmax.f32 %v8247, 0.0
    %v8274 = vmax.f32 %v8252, 0.0
    %v8275 = vmax.f32 %v8257, 0.0
    %v8276 = vmax.f32 %v8262, 0.0
    %v8277 = vmax.f32 %v8267, 0.0
    %v8278 = vadd.f32 %v7970, %v8270
    %v8279 = vadd.f32 %v7971, %v8271
    %v8280 = vadd.f32 %v7972, %v8272
    %v8281 = vadd.f32 %v7973, %v8273
    %v8282 = vadd.f32 %v7974, %v8274
    %v8283 = vadd.f32 %v7975, %v8275
    %v8284 = vadd.f32 %v7976, %v8276
    %v8285 = vadd.f32 %v7977, %v8277
    %s8286 = scalar_lea.vmem %s11, 1
    %v8287 = vld [vmem:[%s8286] sm:$0x1]
    %s8288 = scalar_lea.vmem %s12, 1
    %v8289 = vld [vmem:[%s8288] sm:$0x1]
    %v8290 = vsel %vm120, %v8278, 0.0
    %8291 = vadd.xlane.f32.xlu0 %v8290
    %v8292 = vpop.xlane.xlu0 %8291
    %v8293 = vsel %vm120, %v8279, 0.0
    %8294 = vadd.xlane.f32.xlu0 %v8293
    %v8295 = vpop.xlane.xlu0 %8294
    %v8296 = vsel %vm120, %v8280, 0.0
    %8297 = vadd.xlane.f32.xlu0 %v8296
    %v8298 = vpop.xlane.xlu0 %8297
    %v8299 = vsel %vm120, %v8281, 0.0
    %8300 = vadd.xlane.f32.xlu0 %v8299
    %v8301 = vpop.xlane.xlu0 %8300
    %v8302 = vsel %vm120, %v8282, 0.0
    %8303 = vadd.xlane.f32.xlu0 %v8302
    %v8304 = vpop.xlane.xlu0 %8303
    %v8305 = vsel %vm120, %v8283, 0.0
    %8306 = vadd.xlane.f32.xlu0 %v8305
    %v8307 = vpop.xlane.xlu0 %8306
    %v8308 = vsel %vm120, %v8284, 0.0
    %8309 = vadd.xlane.f32.xlu0 %v8308
    %v8310 = vpop.xlane.xlu0 %8309
    %v8311 = vsel %vm120, %v8285, 0.0
    %8312 = vadd.xlane.f32.xlu0 %v8311
    %v8313 = vpop.xlane.xlu0 %8312
    %v8314 = vmul.f32 %v8292, %v3717
    %v8315 = vmul.f32 %v8295, %v3717
    %v8316 = vmul.f32 %v8298, %v3717
    %v8317 = vmul.f32 %v8301, %v3717
    %v8318 = vmul.f32 %v8304, %v3717
    %v8319 = vmul.f32 %v8307, %v3717
    %v8320 = vmul.f32 %v8310, %v3717
    %v8321 = vmul.f32 %v8313, %v3717
    %v8322 = vsub.f32 %v8278, %v8314
    %v8323 = vsub.f32 %v8279, %v8315
    %v8324 = vsub.f32 %v8280, %v8316
    %v8325 = vsub.f32 %v8281, %v8317
    %v8326 = vsub.f32 %v8282, %v8318
    %v8327 = vsub.f32 %v8283, %v8319
    %v8328 = vsub.f32 %v8284, %v8320
    %v8329 = vsub.f32 %v8285, %v8321
    %v8330 = vmul.f32 %v8322, %v8322
    %v8331 = vmul.f32 %v8323, %v8323
    %v8332 = vmul.f32 %v8324, %v8324
    %v8333 = vmul.f32 %v8325, %v8325
    %v8334 = vmul.f32 %v8326, %v8326
    %v8335 = vmul.f32 %v8327, %v8327
    %v8336 = vmul.f32 %v8328, %v8328
    %v8337 = vmul.f32 %v8329, %v8329
    %v8338 = vsel %vm120, %v8330, 0.0
    %8339 = vadd.xlane.f32.xlu0 %v8338
    %v8340 = vpop.xlane.xlu0 %8339
    %v8341 = vsel %vm120, %v8331, 0.0
    %8342 = vadd.xlane.f32.xlu0 %v8341
    %v8343 = vpop.xlane.xlu0 %8342
    %v8344 = vsel %vm120, %v8332, 0.0
    %8345 = vadd.xlane.f32.xlu0 %v8344
    %v8346 = vpop.xlane.xlu0 %8345
    %v8347 = vsel %vm120, %v8333, 0.0
    %8348 = vadd.xlane.f32.xlu0 %v8347
    %v8349 = vpop.xlane.xlu0 %8348
    %v8350 = vsel %vm120, %v8334, 0.0
    %8351 = vadd.xlane.f32.xlu0 %v8350
    %v8352 = vpop.xlane.xlu0 %8351
    %v8353 = vsel %vm120, %v8335, 0.0
    %8354 = vadd.xlane.f32.xlu0 %v8353
    %v8355 = vpop.xlane.xlu0 %8354
    %v8356 = vsel %vm120, %v8336, 0.0
    %8357 = vadd.xlane.f32.xlu0 %v8356
    %v8358 = vpop.xlane.xlu0 %8357
    %v8359 = vsel %vm120, %v8337, 0.0
    %8360 = vadd.xlane.f32.xlu0 %v8359
    %v8361 = vpop.xlane.xlu0 %8360
    %v8362 = vmul.f32 %v8340, %v3717
    %v8363 = vmul.f32 %v8343, %v3717
    %v8364 = vmul.f32 %v8346, %v3717
    %v8365 = vmul.f32 %v8349, %v3717
    %v8366 = vmul.f32 %v8352, %v3717
    %v8367 = vmul.f32 %v8355, %v3717
    %v8368 = vmul.f32 %v8358, %v3717
    %v8369 = vmul.f32 %v8361, %v3717
    %v8370 = vadd.f32 %v8362, 1e-05
    %v8371 = vadd.f32 %v8363, 1e-05
    %v8372 = vadd.f32 %v8364, 1e-05
    %v8373 = vadd.f32 %v8365, 1e-05
    %v8374 = vadd.f32 %v8366, 1e-05
    %v8375 = vadd.f32 %v8367, 1e-05
    %v8376 = vadd.f32 %v8368, 1e-05
    %v8377 = vadd.f32 %v8369, 1e-05
    %v8378 = vrsqrt.pop %v8370
    %v8379 = vrsqrt.pop %v8371
    %v8380 = vrsqrt.pop %v8372
    %v8381 = vrsqrt.pop %v8373
    %v8382 = vrsqrt.pop %v8374
    %v8383 = vrsqrt.pop %v8375
    %v8384 = vrsqrt.pop %v8376
    %v8385 = vrsqrt.pop %v8377
    %v8386 = vmul.f32 %v8322, %v8378
    %v8387 = vmul.f32 %v8323, %v8379
    %v8388 = vmul.f32 %v8324, %v8380
    %v8389 = vmul.f32 %v8325, %v8381
    %v8390 = vmul.f32 %v8326, %v8382
    %v8391 = vmul.f32 %v8327, %v8383
    %v8392 = vmul.f32 %v8328, %v8384
    %v8393 = vmul.f32 %v8329, %v8385
    %v8395 = vlaneseq
    %v8396 = vshrl.u32 %v8395, 7
    %v8397 = vsub.s32 0, %v8396
    %v8398 = vrot.slane %v8287, %v8397
    %v8400 = vmul.f32 %v8386, %v8398
    %v8401 = vmul.f32 %v8387, %v8398
    %v8402 = vmul.f32 %v8388, %v8398
    %v8403 = vmul.f32 %v8389, %v8398
    %v8404 = vmul.f32 %v8390, %v8398
    %v8405 = vmul.f32 %v8391, %v8398
    %v8406 = vmul.f32 %v8392, %v8398
    %v8407 = vmul.f32 %v8393, %v8398
    %v8409 = vlaneseq
    %v8410 = vshrl.u32 %v8409, 7
    %v8411 = vsub.s32 0, %v8410
    %v8412 = vrot.slane %v8289, %v8411
    %v8414 = vadd.f32 %v8400, %v8412
    %v8415 = vadd.f32 %v8401, %v8412
    %v8416 = vadd.f32 %v8402, %v8412
    %v8417 = vadd.f32 %v8403, %v8412
    %v8418 = vadd.f32 %v8404, %v8412
    %v8419 = vadd.f32 %v8405, %v8412
    %v8420 = vadd.f32 %v8406, %v8412
    %v8421 = vadd.f32 %v8407, %v8412
    %v8422 = vmul.f32 %v8414, 0.5
    %v8423 = vmul.f32 %v8415, 0.5
    %v8424 = vmul.f32 %v8416, 0.5
    %v8425 = vmul.f32 %v8417, 0.5
    %v8426 = vmul.f32 %v8418, 0.5
    %v8427 = vmul.f32 %v8419, 0.5
    %v8428 = vmul.f32 %v8420, 0.5
    %v8429 = vmul.f32 %v8421, 0.5
    %8430 = vst.msk [vmem:[%s13] sm:$0xff] %vm120, %v8422
    %8431 = vst.msk [vmem:[%s13 + $0x8] sm:$0xff] %vm120, %v8423
    %8432 = vst.msk [vmem:[%s13 + $0x10] sm:$0xff] %vm120, %v8424
    %8433 = vst.msk [vmem:[%s13 + $0x18] sm:$0xff] %vm120, %v8425
    %8434 = vst.msk [vmem:[%s13 + $0x20] sm:$0xff] %vm120, %v8426
    %8435 = vst.msk [vmem:[%s13 + $0x28] sm:$0xff] %vm120, %v8427
    %8436 = vst.msk [vmem:[%s13 + $0x30] sm:$0xff] %vm120, %v8428
    %8437 = vst.msk [vmem:[%s13 + $0x38] sm:$0xff] %vm120, %v8429
    // Predicated region
    $region74: #{tpu_custom_call.1} parent=1 // pred_check
      _
    $region75: #{tpu_custom_call.1} parent=1 // pred_check_branch
      %8439 = sbr.rel (0) target = $region77
    $region76: #{tpu_custom_call.1} parent=1 // pred_region
      _
    $region77: #{tpu_custom_call.1} parent=1 // pred_fallthru
      _
    // Predicated region
    $region78: #{tpu_custom_call.1} parent=1 // pred_check
      _
    $region79: #{tpu_custom_call.1} parent=1 // pred_check_branch
      %8441 = sbr.rel (0) target = $region81
    $region80: #{tpu_custom_call.1} parent=1 // pred_region
      _
    $region81: #{tpu_custom_call.1} parent=1 // pred_fallthru
      _
    %8442 = vsyncpa [#allocation4], 1
    %8443 = vsyncpa [#allocation8], 1
    %8444 = vsyncpa [#allocation11], 1
    %8445 = vsyncpa [#allocation5], 1

</llo_original>
